<compile_context>
chip_gen: v7x
topology: tpu7x:2x2x1
jax: 0.10.0
libtpu: 0.0.40
codegen_flags: <defaults>
</compile_context>

<pallas_src>
import functools

import jax
import jax.numpy as jnp
from jax.experimental import pallas as pl
from jax.experimental.pallas import tpu as pltpu

MATMUL_DTYPE = jnp.bfloat16       # MXU input / inter-layer activation dtype.
_LANE = 128
_SUBLANE = 8
_VMEM_LIMIT = 32 * 1024 * 1024    # explicit scoped-VMEM limit (safe on v5e..v7x)


def _round_up(x, m):
    return ((x + m - 1) // m) * m


def _cdiv(a, b):
    return -(-a // b)


# ----------------------------------------------------------------------------
# Pallas kernels
# ----------------------------------------------------------------------------
def _conv_kernel(*refs, k, Wp, Cin_p, relu, with_res, n_tiles):
    """Conv + folded-BN shift (+ ReLU / residual) as a single wide-K matmul.

    refs: x (Cin_p, L_in), w (Cout, K), b (Cout, 1), [res (Cout, M_tile)],
          out (Cout, M_tile), patches scratch (K, M_tile).
    x is the batch-folded, spatially padded plane flattened on the lane axis;
    tap (i, j) of the kernel window is the lane-shift i*Wp + j of that plane.
    """
    if with_res:
        x_ref, w_ref, b_ref, r_ref, o_ref, p_ref = refs
    else:
        x_ref, w_ref, b_ref, o_ref, p_ref = refs
        r_ref = None
    M_tile = o_ref.shape[1]

    # im2col into VMEM scratch: one matmul with contraction K = k*k*Cin_p
    # (72..392) instead of k*k matmuls with K = 8..32.
    if n_tiles == 1:
        for t in range(k * k):
            i, j = divmod(t, k)
            off = i * Wp + j
            p_ref[t * Cin_p:(t + 1) * Cin_p, :] = x_ref[:, off:off + M_tile]
    else:
        m0 = pl.multiple_of(pl.program_id(0) * M_tile, _LANE)
        for t in range(k * k):
            i, j = divmod(t, k)
            off = i * Wp + j
            p_ref[t * Cin_p:(t + 1) * Cin_p, :] = x_ref[:, pl.ds(m0 + off,
                                                                 M_tile)]

    y = jnp.dot(w_ref[...], p_ref[...], preferred_element_type=jnp.float32)
    y = y + b_ref[...]                       # BN shift (scale folded into W)
    if relu:
        y = jnp.maximum(y, 0.0)
    if with_res:
        y = y + r_ref[...].astype(jnp.float32)   # ResnetBlock skip connection
    o_ref[...] = y.astype(o_ref.dtype)


def _blur_kernel(x_ref, o_ref, *, Wp):
    """Separable 3x3 binomial blur ([1,2,1] x [1,2,1] / 16).

    x_ref: (C, R, 2*Wp) row-pair layout: row r holds [plane row 2g | row 2g+1]
           of the reflect-padded plane (samples concatenated along R).
    o_ref: (C, R-1, Wp-2) -- vertical blur *with stride-2 rows* done here;
           the horizontal stride-2 column pick is a cheap slice outside.
    """
    x = x_ref[...].astype(jnp.float32)
    R = x.shape[1]
    W = Wp - 2
    a = x[:, :, 0:Wp]            # even plane rows (2g)
    b = x[:, :, Wp:2 * Wp]       # odd  plane rows (2g+1)
    # out_row(yo) = row(2yo) + 2*row(2yo+1) + row(2yo+2)
    v = a[:, 0:R - 1, :] + 2.0 * b[:, 0:R - 1, :] + a[:, 1:R, :]
    h = v[:, :, 0:W] + 2.0 * v[:, :, 1:W + 1] + v[:, :, 2:W + 2]
    o_ref[...] = (h * 0.0625).astype(o_ref.dtype)


# ----------------------------------------------------------------------------
# Layer wrappers (channel-major activations: (C, N, H, W))
# ----------------------------------------------------------------------------
def _bn_fold(w_hwio, bn, eps=1e-5):
    """Fold eval-mode BN scale into the conv weight; return (w_mat, shift)."""
    scale = bn["gamma"] / jnp.sqrt(bn["var"] + eps)
    shift = bn["beta"] - bn["mean"] * scale
    k, _, Cin, Cout = w_hwio.shape
    Cin_p = _round_up(Cin, _SUBLANE)
    w = jnp.transpose(w_hwio, (3, 0, 1, 2)) * scale[:, None, None, None]
    w = w.reshape(Cout, k * k, Cin)
    if Cin_p != Cin:
        w = jnp.pad(w, ((0, 0), (0, 0), (0, Cin_p - Cin)))
    w_mat = w.reshape(Cout, k * k * Cin_p).astype(MATMUL_DTYPE)
    shift = shift.reshape(Cout, 1).astype(jnp.float32)
    return w_mat, shift, Cin_p


def _fit_last(a, L):
    """Pad with zeros or slice the last dim of a 2-D array to length L."""
    cur = a.shape[-1]
    if cur < L:
        return jnp.pad(a, ((0, 0), (0, L - cur)))
    if cur > L:
        return a[:, :L]
    return a


def conv_layer(x_cm, w_hwio, bn, *, relu, pad, pad_mode, residual=None,
               out_dtype=MATMUL_DTYPE, max_lane_tile=4096):
    """Conv2d(bias=False) + BatchNorm(eval) + optional ReLU + optional residual.

    x_cm: (Cin, N, H, W) channel-major.  Returns (Cout, N, H, W) `out_dtype`.
    """
    Cin, N, H, W = x_cm.shape
    k = w_hwio.shape[0]
    Cout = w_hwio.shape[3]
    if pad_mode == "reflect":
        assert H > pad and W > pad, "reflect padding needs H, W > pad"
    Hp, Wp = H + 2 * pad, W + 2 * pad
    OH, OW = Hp - k + 1, Wp - k + 1          # == H, W for all layers used here
    Lp = Hp * Wp
    max_off = (k - 1) * (Wp + 1)             # largest tap lane offset

    w_mat, shift, Cin_p = _bn_fold(w_hwio, bn)
    K = w_mat.shape[1]

    # Batch folded into the lane axis: lane-dense output, multiple of 128.
    M_valid = N * Lp - max_off               # covers every valid output index
    n_tiles = max(1, _cdiv(M_valid, max_lane_tile))
    M_tile = _round_up(_cdiv(M_valid, n_tiles), _LANE)
    M_out = n_tiles * M_tile
    L_in = M_out + max_off

    # XLA-side prep (cast/pad/flatten).  TODO(synk): move padding in-kernel.
    xb = x_cm.astype(MATMUL_DTYPE)
    if Cin_p != Cin:
        xb = jnp.pad(xb, ((0, Cin_p - Cin), (0, 0), (0, 0), (0, 0)))
    if pad > 0:
        xb = jnp.pad(xb, ((0, 0), (0, 0), (pad, pad), (pad, pad)),
                     mode=pad_mode)
    x_flat = _fit_last(xb.reshape(Cin_p, N * Lp), L_in)

    args = [x_flat, w_mat, shift]
    in_specs = [
        pl.BlockSpec((Cin_p, L_in), lambda m: (0, 0)),
        pl.BlockSpec((Cout, K), lambda m: (0, 0)),
        pl.BlockSpec((Cout, 1), lambda m: (0, 0)),
    ]
    if residual is not None:
        r = jnp.pad(residual.astype(MATMUL_DTYPE),
                    ((0, 0), (0, 0), (0, Hp - H), (0, Wp - W)))
        args.append(_fit_last(r.reshape(Cout, N * Lp), M_out))
        in_specs.append(pl.BlockSpec((Cout, M_tile), lambda m: (0, m)))

    flops = 2 * Cout * K * M_out
    bytes_accessed = (sum(int(a.size) * a.dtype.itemsize for a in args)
                      + Cout * M_out * jnp.dtype(out_dtype).itemsize)

    out = pl.pallas_call(
        functools.partial(_conv_kernel, k=k, Wp=Wp, Cin_p=Cin_p, relu=relu,
                          with_res=residual is not None, n_tiles=n_tiles),
        out_shape=jax.ShapeDtypeStruct((Cout, M_out), out_dtype),
        grid=(n_tiles,),
        in_specs=in_specs,
        out_specs=pl.BlockSpec((Cout, M_tile), lambda m: (0, m)),
        scratch_shapes=[pltpu.VMEM((K, M_tile), MATMUL_DTYPE)],
        compiler_params=pltpu.CompilerParams(
            dimension_semantics=("parallel",),
            vmem_limit_bytes=_VMEM_LIMIT),
        cost_estimate=pl.CostEstimate(flops=flops, transcendentals=0,
                                      bytes_accessed=bytes_accessed),
    )(*args)

    # Back to compact channel-major (Cout, N, H, W); junk rows/cols dropped.
    out = _fit_last(out, N * Lp).reshape(Cout, N, Hp, Wp)
    return out[:, :, :OH, :OW]


def blur_downsample(x_cm):
    """Downsample(C, 'reflect', filt_size=3, stride=2) on channel-major input.

    x_cm: (C, N, H, W) -> (C, N, H//2, W//2).
    """
    C, N, H, W = x_cm.shape
    assert H % 2 == 0 and W % 2 == 0, "antialias downsample expects even H, W"
    Hp, Wp = H + 2, W + 2
    G = Hp // 2
    OHd, OWd = H // 2, W // 2
    R = N * G

    xp = jnp.pad(x_cm, ((0, 0), (0, 0), (1, 1), (1, 1)), mode="reflect")
    xg = xp.reshape(C, R, 2 * Wp)            # row-pair layout [row 2g|row 2g+1]

    out = pl.pallas_call(
        functools.partial(_blur_kernel, Wp=Wp),
        out_shape=jax.ShapeDtypeStruct((C, R - 1, W), MATMUL_DTYPE),
        grid=(1,),
        in_specs=[pl.BlockSpec((C, R, 2 * Wp), lambda i: (0, 0, 0))],
        out_specs=pl.BlockSpec((C, R - 1, W), lambda i: (0, 0, 0)),
        compiler_params=pltpu.CompilerParams(
            dimension_semantics=("arbitrary",),
            vmem_limit_bytes=_VMEM_LIMIT),
    )(xg)

    # TODO(synk): fuse the horizontal stride-2 pick (and the whole blur) into
    # the preceding conv epilogue.
    out = jnp.pad(out, ((0, 0), (0, 1), (0, 0)))           # restore R rows
    return out.reshape(C, N, G, W)[:, :, :OHd, 0:W:2]      # (C, N, H/2, W/2)


# ----------------------------------------------------------------------------
# Parameter init (matches ResnetEncoder(input_nc, output_nc, ngf, BatchNorm2d,
# use_dropout=False, n_blocks, 'reflect', no_antialias=False), eval-mode BN).
# ----------------------------------------------------------------------------
def init_params(key, input_nc=3, ngf=8, n_blocks=2):
    def conv_w(k_, ksz, cin, cout):
        std = (2.0 / (ksz * ksz * cin)) ** 0.5
        return std * jax.random.normal(k_, (ksz, ksz, cin, cout), jnp.float32)

    def bn_p(k_, c):
        k1, k2, k3, k4 = jax.random.split(k_, 4)
        return dict(
            gamma=1.0 + 0.1 * jax.random.normal(k1, (c,), jnp.float32),
            beta=0.1 * jax.random.normal(k2, (c,), jnp.float32),
            mean=0.1 * jax.random.normal(k3, (c,), jnp.float32),
            var=1.0 + 0.1 * jax.random.uniform(k4, (c,), jnp.float32),
        )

    keys = jax.random.split(key, 6 + 4 * n_blocks)
    p = {
        "conv1_w": conv_w(keys[0], 7, input_nc, ngf),
        "bn1": bn_p(keys[1], ngf),
        "conv2_w": conv_w(keys[2], 3, ngf, ngf * 2),
        "bn2": bn_p(keys[3], ngf * 2),
        "conv3_w": conv_w(keys[4], 3, ngf * 2, ngf * 4),
        "bn3": bn_p(keys[5], ngf * 4),
        "blocks": [],
    }
    dim = ngf * 4
    for b in range(n_blocks):
        k0, k1, k2, k3 = keys[6 + 4 * b: 10 + 4 * b]
        p["blocks"].append(dict(
            w1=conv_w(k0, 3, dim, dim), bn1=bn_p(k1, dim),
            w2=conv_w(k2, 3, dim, dim), bn2=bn_p(k3, dim),
        ))
    return p


# ----------------------------------------------------------------------------
# Full forward (eval-mode)
# ----------------------------------------------------------------------------
def resnet_encoder_forward(x_nchw, params):
    x = jnp.transpose(x_nchw, (1, 0, 2, 3))      # channel-major (C, N, H, W)

    # Stem: ReflectionPad2d(3) + Conv7x7 (bias=False) + BN + ReLU
    x = conv_layer(x, params["conv1_w"], params["bn1"],
                   relu=True, pad=3, pad_mode="reflect")
    # Downsampling stage 1: Conv3x3 (zero pad 1) + BN + ReLU + antialias blur
    x = conv_layer(x, params["conv2_w"], params["bn2"],
                   relu=True, pad=1, pad_mode="constant")
    x = blur_downsample(x)
    # Downsampling stage 2
    x = conv_layer(x, params["conv3_w"], params["bn3"],
                   relu=True, pad=1, pad_mode="constant")
    x = blur_downsample(x)
    # Resnet blocks (reflect padding, use_dropout=False)
    n_blocks = len(params["blocks"])
    for bi, blk in enumerate(params["blocks"]):
        last = bi == n_blocks - 1
        y = conv_layer(x, blk["w1"], blk["bn1"],
                       relu=True, pad=1, pad_mode="reflect")
        x = conv_layer(y, blk["w2"], blk["bn2"],
                       relu=False, pad=1, pad_mode="reflect", residual=x,
                       out_dtype=jnp.float32 if last else MATMUL_DTYPE)
    return jnp.transpose(x, (1, 0, 2, 3))        # back to NCHW, float32


# ----------------------------------------------------------------------------
# Pure-JAX reference (for a loose numerical sanity check vs. bf16 kernels)
# ----------------------------------------------------------------------------
def _ref_forward(x, params):
    def conv_bn(x, w_hwio, bn, relu, pad, mode):
        xp = jnp.pad(x, ((0, 0), (0, 0), (pad, pad), (pad, pad)), mode=mode)
        y = jax.lax.conv_general_dilated(
            xp, w_hwio, window_strides=(1, 1), padding="VALID",
            dimension_numbers=("NCHW", "HWIO", "NCHW"))
        scale = bn["gamma"] / jnp.sqrt(bn["var"] + 1e-5)
        shift = bn["beta"] - bn["mean"] * scale
        y = y * scale[None, :, None, None] + shift[None, :, None, None]
        return jnp.maximum(y, 0.0) if relu else y

    def blur(x):
        C = x.shape[1]
        f1 = jnp.array([1.0, 2.0, 1.0], jnp.float32)
        f = (f1[:, None] * f1[None, :]) / 16.0
        w = jnp.tile(f[:, :, None, None], (1, 1, 1, C))
        xp = jnp.pad(x, ((0, 0), (0, 0), (1, 1), (1, 1)), mode="reflect")
        return jax.lax.conv_general_dilated(
            xp, w, window_strides=(2, 2), padding="VALID",
            dimension_numbers=("NCHW", "HWIO", "NCHW"), feature_group_count=C)

    x = conv_bn(x, params["conv1_w"], params["bn1"], True, 3, "reflect")
    x = conv_bn(x, params["conv2_w"], params["bn2"], True, 1, "constant")
    x = blur(x)
    x = conv_bn(x, params["conv3_w"], params["bn3"], True, 1, "constant")
    x = blur(x)
    for blk in params["blocks"]:
        y = conv_bn(x, blk["w1"], blk["bn1"], True, 1, "reflect")
        x = x + conv_bn(y, blk["w2"], blk["bn2"], False, 1, "reflect")
    return x


if __name__ == "__main__":
    key = jax.random.PRNGKey(0)
    k_params, k_x = jax.random.split(key)

    input_nc, ngf, n_blocks = 3, 8, 2
    params = init_params(k_params, input_nc=input_nc, ngf=ngf,
                         n_blocks=n_blocks)

    x = jax.random.normal(k_x, (2, input_nc, 16, 16), jnp.float32)  # NCHW

    out = jax.jit(resnet_encoder_forward)(x, params)
    out = jax.block_until_ready(out)

    assert out.shape == (2, ngf * 4, 4, 4), out.shape
    assert out.dtype == jnp.float32
    assert bool(jnp.all(jnp.isfinite(out)))

    # Loose check vs. an XLA reference (kernels use bf16 MXU inputs).
    ref = _ref_forward(x, params)
    rel = jnp.sqrt(jnp.sum((out - ref) ** 2)) / (jnp.sqrt(jnp.sum(ref ** 2)) + 1e-8)
    assert float(rel) < 0.15, f"relative L2 error vs reference: {float(rel)}"

    print("KERNEL_OK")
</pallas_src>

<mosaic_0001>
module attributes {stable_mosaic.version = 11 : i64} {
  func.func @_conv_kernel(%arg0: i32, %arg1: memref<8x1034xbf16, #tpu.memory_space<vmem>>, %arg2: memref<8x392xbf16, #tpu.memory_space<vmem>>, %arg3: memref<8x1xf32, #tpu.memory_space<vmem>>, %arg4: memref<8x896xbf16, #tpu.memory_space<vmem>>, %arg5: memref<392x896xbf16, #tpu.memory_space<vmem>>) attributes {dimension_semantics = [#tpu.dimension_semantics<parallel>], iteration_bounds = array<i64: 1>, scalar_prefetch = 0 : i64, scratch_operands = 1 : i64, tpu.core_type = #tpu.core_type<tc>, window_params = [{pipeline_mode = #tpu.pipeline_mode<synchronous>, transform_indices = @transform_0, window_bounds = array<i64: 8, 1034>}, {pipeline_mode = #tpu.pipeline_mode<synchronous>, transform_indices = @transform_1, window_bounds = array<i64: 8, 392>}, {pipeline_mode = #tpu.pipeline_mode<synchronous>, transform_indices = @transform_2, window_bounds = array<i64: 8, 1>}, {transform_indices = @transform_3, window_bounds = array<i64: 8, 896>}]} {
    %c0 = arith.constant 0 : index
    %c0_0 = arith.constant 0 : index
    %0 = vector.load %arg1[%c0, %c0_0] : memref<8x1034xbf16, #tpu.memory_space<vmem>>, vector<8x896xbf16>
    %c0_1 = arith.constant 0 : index
    %c0_2 = arith.constant 0 : index
    %1 = vector.load %arg5[%c0_1, %c0_2] : memref<392x896xbf16, #tpu.memory_space<vmem>>, vector<8x896xbf16>
    tpu.vector_store %arg5[%c0_1, %c0_2], %0 {strides = array<i32>} : memref<392x896xbf16, #tpu.memory_space<vmem>>, vector<8x896xbf16>,
    %c0_3 = arith.constant 0 : index
    %c1 = arith.constant 1 : index
    %2 = vector.load %arg1[%c0_3, %c1] : memref<8x1034xbf16, #tpu.memory_space<vmem>>, vector<8x896xbf16>
    %c8 = arith.constant 8 : index
    %c0_4 = arith.constant 0 : index
    %3 = vector.load %arg5[%c8, %c0_4] : memref<392x896xbf16, #tpu.memory_space<vmem>>, vector<8x896xbf16>
    tpu.vector_store %arg5[%c8, %c0_4], %2 {strides = array<i32>} : memref<392x896xbf16, #tpu.memory_space<vmem>>, vector<8x896xbf16>,
    %c0_5 = arith.constant 0 : index
    %c2 = arith.constant 2 : index
    %4 = vector.load %arg1[%c0_5, %c2] : memref<8x1034xbf16, #tpu.memory_space<vmem>>, vector<8x896xbf16>
    %c16 = arith.constant 16 : index
    %c0_6 = arith.constant 0 : index
    %5 = vector.load %arg5[%c16, %c0_6] : memref<392x896xbf16, #tpu.memory_space<vmem>>, vector<8x896xbf16>
    tpu.vector_store %arg5[%c16, %c0_6], %4 {strides = array<i32>} : memref<392x896xbf16, #tpu.memory_space<vmem>>, vector<8x896xbf16>,
    %c0_7 = arith.constant 0 : index
    %c3 = arith.constant 3 : index
    %6 = vector.load %arg1[%c0_7, %c3] : memref<8x1034xbf16, #tpu.memory_space<vmem>>, vector<8x896xbf16>
    %c24 = arith.constant 24 : index
    %c0_8 = arith.constant 0 : index
    %7 = vector.load %arg5[%c24, %c0_8] : memref<392x896xbf16, #tpu.memory_space<vmem>>, vector<8x896xbf16>
    tpu.vector_store %arg5[%c24, %c0_8], %6 {strides = array<i32>} : memref<392x896xbf16, #tpu.memory_space<vmem>>, vector<8x896xbf16>,
    %c0_9 = arith.constant 0 : index
    %c4 = arith.constant 4 : index
    %8 = vector.load %arg1[%c0_9, %c4] : memref<8x1034xbf16, #tpu.memory_space<vmem>>, vector<8x896xbf16>
    %c32 = arith.constant 32 : index
    %c0_10 = arith.constant 0 : index
    %9 = vector.load %arg5[%c32, %c0_10] : memref<392x896xbf16, #tpu.memory_space<vmem>>, vector<8x896xbf16>
    tpu.vector_store %arg5[%c32, %c0_10], %8 {strides = array<i32>} : memref<392x896xbf16, #tpu.memory_space<vmem>>, vector<8x896xbf16>,
    %c0_11 = arith.constant 0 : index
    %c5 = arith.constant 5 : index
    %10 = vector.load %arg1[%c0_11, %c5] : memref<8x1034xbf16, #tpu.memory_space<vmem>>, vector<8x896xbf16>
    %c40 = arith.constant 40 : index
    %c0_12 = arith.constant 0 : index
    %11 = vector.load %arg5[%c40, %c0_12] : memref<392x896xbf16, #tpu.memory_space<vmem>>, vector<8x896xbf16>
    tpu.vector_store %arg5[%c40, %c0_12], %10 {strides = array<i32>} : memref<392x896xbf16, #tpu.memory_space<vmem>>, vector<8x896xbf16>,
    %c0_13 = arith.constant 0 : index
    %c6 = arith.constant 6 : index
    %12 = vector.load %arg1[%c0_13, %c6] : memref<8x1034xbf16, #tpu.memory_space<vmem>>, vector<8x896xbf16>
    %c48 = arith.constant 48 : index
    %c0_14 = arith.constant 0 : index
    %13 = vector.load %arg5[%c48, %c0_14] : memref<392x896xbf16, #tpu.memory_space<vmem>>, vector<8x896xbf16>
    tpu.vector_store %arg5[%c48, %c0_14], %12 {strides = array<i32>} : memref<392x896xbf16, #tpu.memory_space<vmem>>, vector<8x896xbf16>,
    %c0_15 = arith.constant 0 : index
    %c22 = arith.constant 22 : index
    %14 = vector.load %arg1[%c0_15, %c22] : memref<8x1034xbf16, #tpu.memory_space<vmem>>, vector<8x896xbf16>
    %c56 = arith.constant 56 : index
    %c0_16 = arith.constant 0 : index
    %15 = vector.load %arg5[%c56, %c0_16] : memref<392x896xbf16, #tpu.memory_space<vmem>>, vector<8x896xbf16>
    tpu.vector_store %arg5[%c56, %c0_16], %14 {strides = array<i32>} : memref<392x896xbf16, #tpu.memory_space<vmem>>, vector<8x896xbf16>,
    %c0_17 = arith.constant 0 : index
    %c23 = arith.constant 23 : index
    %16 = vector.load %arg1[%c0_17, %c23] : memref<8x1034xbf16, #tpu.memory_space<vmem>>, vector<8x896xbf16>
    %c64 = arith.constant 64 : index
    %c0_18 = arith.constant 0 : index
    %17 = vector.load %arg5[%c64, %c0_18] : memref<392x896xbf16, #tpu.memory_space<vmem>>, vector<8x896xbf16>
    tpu.vector_store %arg5[%c64, %c0_18], %16 {strides = array<i32>} : memref<392x896xbf16, #tpu.memory_space<vmem>>, vector<8x896xbf16>,
    %c0_19 = arith.constant 0 : index
    %c24_20 = arith.constant 24 : index
    %18 = vector.load %arg1[%c0_19, %c24_20] : memref<8x1034xbf16, #tpu.memory_space<vmem>>, vector<8x896xbf16>
    %c72 = arith.constant 72 : index
    %c0_21 = arith.constant 0 : index
    %19 = vector.load %arg5[%c72, %c0_21] : memref<392x896xbf16, #tpu.memory_space<vmem>>, vector<8x896xbf16>
    tpu.vector_store %arg5[%c72, %c0_21], %18 {strides = array<i32>} : memref<392x896xbf16, #tpu.memory_space<vmem>>, vector<8x896xbf16>,
    %c0_22 = arith.constant 0 : index
    %c25 = arith.constant 25 : index
    %20 = vector.load %arg1[%c0_22, %c25] : memref<8x1034xbf16, #tpu.memory_space<vmem>>, vector<8x896xbf16>
    %c80 = arith.constant 80 : index
    %c0_23 = arith.constant 0 : index
    %21 = vector.load %arg5[%c80, %c0_23] : memref<392x896xbf16, #tpu.memory_space<vmem>>, vector<8x896xbf16>
    tpu.vector_store %arg5[%c80, %c0_23], %20 {strides = array<i32>} : memref<392x896xbf16, #tpu.memory_space<vmem>>, vector<8x896xbf16>,
    %c0_24 = arith.constant 0 : index
    %c26 = arith.constant 26 : index
    %22 = vector.load %arg1[%c0_24, %c26] : memref<8x1034xbf16, #tpu.memory_space<vmem>>, vector<8x896xbf16>
    %c88 = arith.constant 88 : index
    %c0_25 = arith.constant 0 : index
    %23 = vector.load %arg5[%c88, %c0_25] : memref<392x896xbf16, #tpu.memory_space<vmem>>, vector<8x896xbf16>
    tpu.vector_store %arg5[%c88, %c0_25], %22 {strides = array<i32>} : memref<392x896xbf16, #tpu.memory_space<vmem>>, vector<8x896xbf16>,
    %c0_26 = arith.constant 0 : index
    %c27 = arith.constant 27 : index
    %24 = vector.load %arg1[%c0_26, %c27] : memref<8x1034xbf16, #tpu.memory_space<vmem>>, vector<8x896xbf16>
    %c96 = arith.constant 96 : index
    %c0_27 = arith.constant 0 : index
    %25 = vector.load %arg5[%c96, %c0_27] : memref<392x896xbf16, #tpu.memory_space<vmem>>, vector<8x896xbf16>
    tpu.vector_store %arg5[%c96, %c0_27], %24 {strides = array<i32>} : memref<392x896xbf16, #tpu.memory_space<vmem>>, vector<8x896xbf16>,
    %c0_28 = arith.constant 0 : index
    %c28 = arith.constant 28 : index
    %26 = vector.load %arg1[%c0_28, %c28] : memref<8x1034xbf16, #tpu.memory_space<vmem>>, vector<8x896xbf16>
    %c104 = arith.constant 104 : index
    %c0_29 = arith.constant 0 : index
    %27 = vector.load %arg5[%c104, %c0_29] : memref<392x896xbf16, #tpu.memory_space<vmem>>, vector<8x896xbf16>
    tpu.vector_store %arg5[%c104, %c0_29], %26 {strides = array<i32>} : memref<392x896xbf16, #tpu.memory_space<vmem>>, vector<8x896xbf16>,
    %c0_30 = arith.constant 0 : index
    %c44 = arith.constant 44 : index
    %28 = vector.load %arg1[%c0_30, %c44] : memref<8x1034xbf16, #tpu.memory_space<vmem>>, vector<8x896xbf16>
    %c112 = arith.constant 112 : index
    %c0_31 = arith.constant 0 : index
    %29 = vector.load %arg5[%c112, %c0_31] : memref<392x896xbf16, #tpu.memory_space<vmem>>, vector<8x896xbf16>
    tpu.vector_store %arg5[%c112, %c0_31], %28 {strides = array<i32>} : memref<392x896xbf16, #tpu.memory_space<vmem>>, vector<8x896xbf16>,
    %c0_32 = arith.constant 0 : index
    %c45 = arith.constant 45 : index
    %30 = vector.load %arg1[%c0_32, %c45] : memref<8x1034xbf16, #tpu.memory_space<vmem>>, vector<8x896xbf16>
    %c120 = arith.constant 120 : index
    %c0_33 = arith.constant 0 : index
    %31 = vector.load %arg5[%c120, %c0_33] : memref<392x896xbf16, #tpu.memory_space<vmem>>, vector<8x896xbf16>
    tpu.vector_store %arg5[%c120, %c0_33], %30 {strides = array<i32>} : memref<392x896xbf16, #tpu.memory_space<vmem>>, vector<8x896xbf16>,
    %c0_34 = arith.constant 0 : index
    %c46 = arith.constant 46 : index
    %32 = vector.load %arg1[%c0_34, %c46] : memref<8x1034xbf16, #tpu.memory_space<vmem>>, vector<8x896xbf16>
    %c128 = arith.constant 128 : index
    %c0_35 = arith.constant 0 : index
    %33 = vector.load %arg5[%c128, %c0_35] : memref<392x896xbf16, #tpu.memory_space<vmem>>, vector<8x896xbf16>
    tpu.vector_store %arg5[%c128, %c0_35], %32 {strides = array<i32>} : memref<392x896xbf16, #tpu.memory_space<vmem>>, vector<8x896xbf16>,
    %c0_36 = arith.constant 0 : index
    %c47 = arith.constant 47 : index
    %34 = vector.load %arg1[%c0_36, %c47] : memref<8x1034xbf16, #tpu.memory_space<vmem>>, vector<8x896xbf16>
    %c136 = arith.constant 136 : index
    %c0_37 = arith.constant 0 : index
    %35 = vector.load %arg5[%c136, %c0_37] : memref<392x896xbf16, #tpu.memory_space<vmem>>, vector<8x896xbf16>
    tpu.vector_store %arg5[%c136, %c0_37], %34 {strides = array<i32>} : memref<392x896xbf16, #tpu.memory_space<vmem>>, vector<8x896xbf16>,
    %c0_38 = arith.constant 0 : index
    %c48_39 = arith.constant 48 : index
    %36 = vector.load %arg1[%c0_38, %c48_39] : memref<8x1034xbf16, #tpu.memory_space<vmem>>, vector<8x896xbf16>
    %c144 = arith.constant 144 : index
    %c0_40 = arith.constant 0 : index
    %37 = vector.load %arg5[%c144, %c0_40] : memref<392x896xbf16, #tpu.memory_space<vmem>>, vector<8x896xbf16>
    tpu.vector_store %arg5[%c144, %c0_40], %36 {strides = array<i32>} : memref<392x896xbf16, #tpu.memory_space<vmem>>, vector<8x896xbf16>,
    %c0_41 = arith.constant 0 : index
    %c49 = arith.constant 49 : index
    %38 = vector.load %arg1[%c0_41, %c49] : memref<8x1034xbf16, #tpu.memory_space<vmem>>, vector<8x896xbf16>
    %c152 = arith.constant 152 : index
    %c0_42 = arith.constant 0 : index
    %39 = vector.load %arg5[%c152, %c0_42] : memref<392x896xbf16, #tpu.memory_space<vmem>>, vector<8x896xbf16>
    tpu.vector_store %arg5[%c152, %c0_42], %38 {strides = array<i32>} : memref<392x896xbf16, #tpu.memory_space<vmem>>, vector<8x896xbf16>,
    %c0_43 = arith.constant 0 : index
    %c50 = arith.constant 50 : index
    %40 = vector.load %arg1[%c0_43, %c50] : memref<8x1034xbf16, #tpu.memory_space<vmem>>, vector<8x896xbf16>
    %c160 = arith.constant 160 : index
    %c0_44 = arith.constant 0 : index
    %41 = vector.load %arg5[%c160, %c0_44] : memref<392x896xbf16, #tpu.memory_space<vmem>>, vector<8x896xbf16>
    tpu.vector_store %arg5[%c160, %c0_44], %40 {strides = array<i32>} : memref<392x896xbf16, #tpu.memory_space<vmem>>, vector<8x896xbf16>,
    %c0_45 = arith.constant 0 : index
    %c66 = arith.constant 66 : index
    %42 = vector.load %arg1[%c0_45, %c66] : memref<8x1034xbf16, #tpu.memory_space<vmem>>, vector<8x896xbf16>
    %c168 = arith.constant 168 : index
    %c0_46 = arith.constant 0 : index
    %43 = vector.load %arg5[%c168, %c0_46] : memref<392x896xbf16, #tpu.memory_space<vmem>>, vector<8x896xbf16>
    tpu.vector_store %arg5[%c168, %c0_46], %42 {strides = array<i32>} : memref<392x896xbf16, #tpu.memory_space<vmem>>, vector<8x896xbf16>,
    %c0_47 = arith.constant 0 : index
    %c67 = arith.constant 67 : index
    %44 = vector.load %arg1[%c0_47, %c67] : memref<8x1034xbf16, #tpu.memory_space<vmem>>, vector<8x896xbf16>
    %c176 = arith.constant 176 : index
    %c0_48 = arith.constant 0 : index
    %45 = vector.load %arg5[%c176, %c0_48] : memref<392x896xbf16, #tpu.memory_space<vmem>>, vector<8x896xbf16>
    tpu.vector_store %arg5[%c176, %c0_48], %44 {strides = array<i32>} : memref<392x896xbf16, #tpu.memory_space<vmem>>, vector<8x896xbf16>,
    %c0_49 = arith.constant 0 : index
    %c68 = arith.constant 68 : index
    %46 = vector.load %arg1[%c0_49, %c68] : memref<8x1034xbf16, #tpu.memory_space<vmem>>, vector<8x896xbf16>
    %c184 = arith.constant 184 : index
    %c0_50 = arith.constant 0 : index
    %47 = vector.load %arg5[%c184, %c0_50] : memref<392x896xbf16, #tpu.memory_space<vmem>>, vector<8x896xbf16>
    tpu.vector_store %arg5[%c184, %c0_50], %46 {strides = array<i32>} : memref<392x896xbf16, #tpu.memory_space<vmem>>, vector<8x896xbf16>,
    %c0_51 = arith.constant 0 : index
    %c69 = arith.constant 69 : index
    %48 = vector.load %arg1[%c0_51, %c69] : memref<8x1034xbf16, #tpu.memory_space<vmem>>, vector<8x896xbf16>
    %c192 = arith.constant 192 : index
    %c0_52 = arith.constant 0 : index
    %49 = vector.load %arg5[%c192, %c0_52] : memref<392x896xbf16, #tpu.memory_space<vmem>>, vector<8x896xbf16>
    tpu.vector_store %arg5[%c192, %c0_52], %48 {strides = array<i32>} : memref<392x896xbf16, #tpu.memory_space<vmem>>, vector<8x896xbf16>,
    %c0_53 = arith.constant 0 : index
    %c70 = arith.constant 70 : index
    %50 = vector.load %arg1[%c0_53, %c70] : memref<8x1034xbf16, #tpu.memory_space<vmem>>, vector<8x896xbf16>
    %c200 = arith.constant 200 : index
    %c0_54 = arith.constant 0 : index
    %51 = vector.load %arg5[%c200, %c0_54] : memref<392x896xbf16, #tpu.memory_space<vmem>>, vector<8x896xbf16>
    tpu.vector_store %arg5[%c200, %c0_54], %50 {strides = array<i32>} : memref<392x896xbf16, #tpu.memory_space<vmem>>, vector<8x896xbf16>,
    %c0_55 = arith.constant 0 : index
    %c71 = arith.constant 71 : index
    %52 = vector.load %arg1[%c0_55, %c71] : memref<8x1034xbf16, #tpu.memory_space<vmem>>, vector<8x896xbf16>
    %c208 = arith.constant 208 : index
    %c0_56 = arith.constant 0 : index
    %53 = vector.load %arg5[%c208, %c0_56] : memref<392x896xbf16, #tpu.memory_space<vmem>>, vector<8x896xbf16>
    tpu.vector_store %arg5[%c208, %c0_56], %52 {strides = array<i32>} : memref<392x896xbf16, #tpu.memory_space<vmem>>, vector<8x896xbf16>,
    %c0_57 = arith.constant 0 : index
    %c72_58 = arith.constant 72 : index
    %54 = vector.load %arg1[%c0_57, %c72_58] : memref<8x1034xbf16, #tpu.memory_space<vmem>>, vector<8x896xbf16>
    %c216 = arith.constant 216 : index
    %c0_59 = arith.constant 0 : index
    %55 = vector.load %arg5[%c216, %c0_59] : memref<392x896xbf16, #tpu.memory_space<vmem>>, vector<8x896xbf16>
    tpu.vector_store %arg5[%c216, %c0_59], %54 {strides = array<i32>} : memref<392x896xbf16, #tpu.memory_space<vmem>>, vector<8x896xbf16>,
    %c0_60 = arith.constant 0 : index
    %c88_61 = arith.constant 88 : index
    %56 = vector.load %arg1[%c0_60, %c88_61] : memref<8x1034xbf16, #tpu.memory_space<vmem>>, vector<8x896xbf16>
    %c224 = arith.constant 224 : index
    %c0_62 = arith.constant 0 : index
    %57 = vector.load %arg5[%c224, %c0_62] : memref<392x896xbf16, #tpu.memory_space<vmem>>, vector<8x896xbf16>
    tpu.vector_store %arg5[%c224, %c0_62], %56 {strides = array<i32>} : memref<392x896xbf16, #tpu.memory_space<vmem>>, vector<8x896xbf16>,
    %c0_63 = arith.constant 0 : index
    %c89 = arith.constant 89 : index
    %58 = vector.load %arg1[%c0_63, %c89] : memref<8x1034xbf16, #tpu.memory_space<vmem>>, vector<8x896xbf16>
    %c232 = arith.constant 232 : index
    %c0_64 = arith.constant 0 : index
    %59 = vector.load %arg5[%c232, %c0_64] : memref<392x896xbf16, #tpu.memory_space<vmem>>, vector<8x896xbf16>
    tpu.vector_store %arg5[%c232, %c0_64], %58 {strides = array<i32>} : memref<392x896xbf16, #tpu.memory_space<vmem>>, vector<8x896xbf16>,
    %c0_65 = arith.constant 0 : index
    %c90 = arith.constant 90 : index
    %60 = vector.load %arg1[%c0_65, %c90] : memref<8x1034xbf16, #tpu.memory_space<vmem>>, vector<8x896xbf16>
    %c240 = arith.constant 240 : index
    %c0_66 = arith.constant 0 : index
    %61 = vector.load %arg5[%c240, %c0_66] : memref<392x896xbf16, #tpu.memory_space<vmem>>, vector<8x896xbf16>
    tpu.vector_store %arg5[%c240, %c0_66], %60 {strides = array<i32>} : memref<392x896xbf16, #tpu.memory_space<vmem>>, vector<8x896xbf16>,
    %c0_67 = arith.constant 0 : index
    %c91 = arith.constant 91 : index
    %62 = vector.load %arg1[%c0_67, %c91] : memref<8x1034xbf16, #tpu.memory_space<vmem>>, vector<8x896xbf16>
    %c248 = arith.constant 248 : index
    %c0_68 = arith.constant 0 : index
    %63 = vector.load %arg5[%c248, %c0_68] : memref<392x896xbf16, #tpu.memory_space<vmem>>, vector<8x896xbf16>
    tpu.vector_store %arg5[%c248, %c0_68], %62 {strides = array<i32>} : memref<392x896xbf16, #tpu.memory_space<vmem>>, vector<8x896xbf16>,
    %c0_69 = arith.constant 0 : index
    %c92 = arith.constant 92 : index
    %64 = vector.load %arg1[%c0_69, %c92] : memref<8x1034xbf16, #tpu.memory_space<vmem>>, vector<8x896xbf16>
    %c256 = arith.constant 256 : index
    %c0_70 = arith.constant 0 : index
    %65 = vector.load %arg5[%c256, %c0_70] : memref<392x896xbf16, #tpu.memory_space<vmem>>, vector<8x896xbf16>
    tpu.vector_store %arg5[%c256, %c0_70], %64 {strides = array<i32>} : memref<392x896xbf16, #tpu.memory_space<vmem>>, vector<8x896xbf16>,
    %c0_71 = arith.constant 0 : index
    %c93 = arith.constant 93 : index
    %66 = vector.load %arg1[%c0_71, %c93] : memref<8x1034xbf16, #tpu.memory_space<vmem>>, vector<8x896xbf16>
    %c264 = arith.constant 264 : index
    %c0_72 = arith.constant 0 : index
    %67 = vector.load %arg5[%c264, %c0_72] : memref<392x896xbf16, #tpu.memory_space<vmem>>, vector<8x896xbf16>
    tpu.vector_store %arg5[%c264, %c0_72], %66 {strides = array<i32>} : memref<392x896xbf16, #tpu.memory_space<vmem>>, vector<8x896xbf16>,
    %c0_73 = arith.constant 0 : index
    %c94 = arith.constant 94 : index
    %68 = vector.load %arg1[%c0_73, %c94] : memref<8x1034xbf16, #tpu.memory_space<vmem>>, vector<8x896xbf16>
    %c272 = arith.constant 272 : index
    %c0_74 = arith.constant 0 : index
    %69 = vector.load %arg5[%c272, %c0_74] : memref<392x896xbf16, #tpu.memory_space<vmem>>, vector<8x896xbf16>
    tpu.vector_store %arg5[%c272, %c0_74], %68 {strides = array<i32>} : memref<392x896xbf16, #tpu.memory_space<vmem>>, vector<8x896xbf16>,
    %c0_75 = arith.constant 0 : index
    %c110 = arith.constant 110 : index
    %70 = vector.load %arg1[%c0_75, %c110] : memref<8x1034xbf16, #tpu.memory_space<vmem>>, vector<8x896xbf16>
    %c280 = arith.constant 280 : index
    %c0_76 = arith.constant 0 : index
    %71 = vector.load %arg5[%c280, %c0_76] : memref<392x896xbf16, #tpu.memory_space<vmem>>, vector<8x896xbf16>
    tpu.vector_store %arg5[%c280, %c0_76], %70 {strides = array<i32>} : memref<392x896xbf16, #tpu.memory_space<vmem>>, vector<8x896xbf16>,
    %c0_77 = arith.constant 0 : index
    %c111 = arith.constant 111 : index
    %72 = vector.load %arg1[%c0_77, %c111] : memref<8x1034xbf16, #tpu.memory_space<vmem>>, vector<8x896xbf16>
    %c288 = arith.constant 288 : index
    %c0_78 = arith.constant 0 : index
    %73 = vector.load %arg5[%c288, %c0_78] : memref<392x896xbf16, #tpu.memory_space<vmem>>, vector<8x896xbf16>
    tpu.vector_store %arg5[%c288, %c0_78], %72 {strides = array<i32>} : memref<392x896xbf16, #tpu.memory_space<vmem>>, vector<8x896xbf16>,
    %c0_79 = arith.constant 0 : index
    %c112_80 = arith.constant 112 : index
    %74 = vector.load %arg1[%c0_79, %c112_80] : memref<8x1034xbf16, #tpu.memory_space<vmem>>, vector<8x896xbf16>
    %c296 = arith.constant 296 : index
    %c0_81 = arith.constant 0 : index
    %75 = vector.load %arg5[%c296, %c0_81] : memref<392x896xbf16, #tpu.memory_space<vmem>>, vector<8x896xbf16>
    tpu.vector_store %arg5[%c296, %c0_81], %74 {strides = array<i32>} : memref<392x896xbf16, #tpu.memory_space<vmem>>, vector<8x896xbf16>,
    %c0_82 = arith.constant 0 : index
    %c113 = arith.constant 113 : index
    %76 = vector.load %arg1[%c0_82, %c113] : memref<8x1034xbf16, #tpu.memory_space<vmem>>, vector<8x896xbf16>
    %c304 = arith.constant 304 : index
    %c0_83 = arith.constant 0 : index
    %77 = vector.load %arg5[%c304, %c0_83] : memref<392x896xbf16, #tpu.memory_space<vmem>>, vector<8x896xbf16>
    tpu.vector_store %arg5[%c304, %c0_83], %76 {strides = array<i32>} : memref<392x896xbf16, #tpu.memory_space<vmem>>, vector<8x896xbf16>,
    %c0_84 = arith.constant 0 : index
    %c114 = arith.constant 114 : index
    %78 = vector.load %arg1[%c0_84, %c114] : memref<8x1034xbf16, #tpu.memory_space<vmem>>, vector<8x896xbf16>
    %c312 = arith.constant 312 : index
    %c0_85 = arith.constant 0 : index
    %79 = vector.load %arg5[%c312, %c0_85] : memref<392x896xbf16, #tpu.memory_space<vmem>>, vector<8x896xbf16>
    tpu.vector_store %arg5[%c312, %c0_85], %78 {strides = array<i32>} : memref<392x896xbf16, #tpu.memory_space<vmem>>, vector<8x896xbf16>,
    %c0_86 = arith.constant 0 : index
    %c115 = arith.constant 115 : index
    %80 = vector.load %arg1[%c0_86, %c115] : memref<8x1034xbf16, #tpu.memory_space<vmem>>, vector<8x896xbf16>
    %c320 = arith.constant 320 : index
    %c0_87 = arith.constant 0 : index
    %81 = vector.load %arg5[%c320, %c0_87] : memref<392x896xbf16, #tpu.memory_space<vmem>>, vector<8x896xbf16>
    tpu.vector_store %arg5[%c320, %c0_87], %80 {strides = array<i32>} : memref<392x896xbf16, #tpu.memory_space<vmem>>, vector<8x896xbf16>,
    %c0_88 = arith.constant 0 : index
    %c116 = arith.constant 116 : index
    %82 = vector.load %arg1[%c0_88, %c116] : memref<8x1034xbf16, #tpu.memory_space<vmem>>, vector<8x896xbf16>
    %c328 = arith.constant 328 : index
    %c0_89 = arith.constant 0 : index
    %83 = vector.load %arg5[%c328, %c0_89] : memref<392x896xbf16, #tpu.memory_space<vmem>>, vector<8x896xbf16>
    tpu.vector_store %arg5[%c328, %c0_89], %82 {strides = array<i32>} : memref<392x896xbf16, #tpu.memory_space<vmem>>, vector<8x896xbf16>,
    %c0_90 = arith.constant 0 : index
    %c132 = arith.constant 132 : index
    %84 = vector.load %arg1[%c0_90, %c132] : memref<8x1034xbf16, #tpu.memory_space<vmem>>, vector<8x896xbf16>
    %c336 = arith.constant 336 : index
    %c0_91 = arith.constant 0 : index
    %85 = vector.load %arg5[%c336, %c0_91] : memref<392x896xbf16, #tpu.memory_space<vmem>>, vector<8x896xbf16>
    tpu.vector_store %arg5[%c336, %c0_91], %84 {strides = array<i32>} : memref<392x896xbf16, #tpu.memory_space<vmem>>, vector<8x896xbf16>,
    %c0_92 = arith.constant 0 : index
    %c133 = arith.constant 133 : index
    %86 = vector.load %arg1[%c0_92, %c133] : memref<8x1034xbf16, #tpu.memory_space<vmem>>, vector<8x896xbf16>
    %c344 = arith.constant 344 : index
    %c0_93 = arith.constant 0 : index
    %87 = vector.load %arg5[%c344, %c0_93] : memref<392x896xbf16, #tpu.memory_space<vmem>>, vector<8x896xbf16>
    tpu.vector_store %arg5[%c344, %c0_93], %86 {strides = array<i32>} : memref<392x896xbf16, #tpu.memory_space<vmem>>, vector<8x896xbf16>,
    %c0_94 = arith.constant 0 : index
    %c134 = arith.constant 134 : index
    %88 = vector.load %arg1[%c0_94, %c134] : memref<8x1034xbf16, #tpu.memory_space<vmem>>, vector<8x896xbf16>
    %c352 = arith.constant 352 : index
    %c0_95 = arith.constant 0 : index
    %89 = vector.load %arg5[%c352, %c0_95] : memref<392x896xbf16, #tpu.memory_space<vmem>>, vector<8x896xbf16>
    tpu.vector_store %arg5[%c352, %c0_95], %88 {strides = array<i32>} : memref<392x896xbf16, #tpu.memory_space<vmem>>, vector<8x896xbf16>,
    %c0_96 = arith.constant 0 : index
    %c135 = arith.constant 135 : index
    %90 = vector.load %arg1[%c0_96, %c135] : memref<8x1034xbf16, #tpu.memory_space<vmem>>, vector<8x896xbf16>
    %c360 = arith.constant 360 : index
    %c0_97 = arith.constant 0 : index
    %91 = vector.load %arg5[%c360, %c0_97] : memref<392x896xbf16, #tpu.memory_space<vmem>>, vector<8x896xbf16>
    tpu.vector_store %arg5[%c360, %c0_97], %90 {strides = array<i32>} : memref<392x896xbf16, #tpu.memory_space<vmem>>, vector<8x896xbf16>,
    %c0_98 = arith.constant 0 : index
    %c136_99 = arith.constant 136 : index
    %92 = vector.load %arg1[%c0_98, %c136_99] : memref<8x1034xbf16, #tpu.memory_space<vmem>>, vector<8x896xbf16>
    %c368 = arith.constant 368 : index
    %c0_100 = arith.constant 0 : index
    %93 = vector.load %arg5[%c368, %c0_100] : memref<392x896xbf16, #tpu.memory_space<vmem>>, vector<8x896xbf16>
    tpu.vector_store %arg5[%c368, %c0_100], %92 {strides = array<i32>} : memref<392x896xbf16, #tpu.memory_space<vmem>>, vector<8x896xbf16>,
    %c0_101 = arith.constant 0 : index
    %c137 = arith.constant 137 : index
    %94 = vector.load %arg1[%c0_101, %c137] : memref<8x1034xbf16, #tpu.memory_space<vmem>>, vector<8x896xbf16>
    %c376 = arith.constant 376 : index
    %c0_102 = arith.constant 0 : index
    %95 = vector.load %arg5[%c376, %c0_102] : memref<392x896xbf16, #tpu.memory_space<vmem>>, vector<8x896xbf16>
    tpu.vector_store %arg5[%c376, %c0_102], %94 {strides = array<i32>} : memref<392x896xbf16, #tpu.memory_space<vmem>>, vector<8x896xbf16>,
    %c0_103 = arith.constant 0 : index
    %c138 = arith.constant 138 : index
    %96 = vector.load %arg1[%c0_103, %c138] : memref<8x1034xbf16, #tpu.memory_space<vmem>>, vector<8x896xbf16>
    %c384 = arith.constant 384 : index
    %c0_104 = arith.constant 0 : index
    %97 = vector.load %arg5[%c384, %c0_104] : memref<392x896xbf16, #tpu.memory_space<vmem>>, vector<8x896xbf16>
    tpu.vector_store %arg5[%c384, %c0_104], %96 {strides = array<i32>} : memref<392x896xbf16, #tpu.memory_space<vmem>>, vector<8x896xbf16>,
    %c0_105 = arith.constant 0 : index
    %c0_106 = arith.constant 0 : index
    %98 = vector.load %arg2[%c0_105, %c0_106] : memref<8x392xbf16, #tpu.memory_space<vmem>>, vector<8x392xbf16>
    %c0_107 = arith.constant 0 : index
    %c0_108 = arith.constant 0 : index
    %99 = vector.load %arg5[%c0_107, %c0_108] : memref<392x896xbf16, #tpu.memory_space<vmem>>, vector<392x896xbf16>
    %cst = arith.constant dense<0.000000e+00> : vector<8x896xf32>
    %100 = tpu.matmul %98, %99, %cst {dimension_numbers = #tpu.dot_dimension_numbers<[1], [0], [0], [1], [0, 0, 1, 1], [], []>} : vector<8x392xbf16>, vector<392x896xbf16>, vector<8x896xf32> -> vector<8x896xf32>
    %c0_109 = arith.constant 0 : index
    %c0_110 = arith.constant 0 : index
    %101 = vector.load %arg3[%c0_109, %c0_110] : memref<8x1xf32, #tpu.memory_space<vmem>>, vector<8x1xf32>
    %102 = vector.broadcast %101 : vector<8x1xf32> to vector<8x896xf32>
    %103 = arith.addf %100, %102 : vector<8x896xf32>
    %cst_111 = arith.constant 0.000000e+00 : f32
    %104 = vector.broadcast %cst_111 : f32 to vector<8x896xf32>
    %105 = arith.maximumf %103, %104 : vector<8x896xf32>
    %106 = arith.truncf %105 : vector<8x896xf32> to vector<8x896xbf16>
    %c0_112 = arith.constant 0 : index
    %c0_113 = arith.constant 0 : index
    %107 = vector.load %arg4[%c0_112, %c0_113] : memref<8x896xbf16, #tpu.memory_space<vmem>>, vector<8x896xbf16>
    tpu.vector_store %arg4[%c0_112, %c0_113], %106 {strides = array<i32>} : memref<8x896xbf16, #tpu.memory_space<vmem>>, vector<8x896xbf16>,
    return
  }
  func.func @transform_0(%arg0: i32) -> (i32, i32) {
    %c0_i32 = arith.constant 0 : i32
    %c0_i32_0 = arith.constant 0 : i32
    %c0_i32_1 = arith.constant 0 : i32
    return %c0_i32, %c0_i32_0 : i32, i32
  }
  func.func @transform_1(%arg0: i32) -> (i32, i32) {
    %c0_i32 = arith.constant 0 : i32
    %c0_i32_0 = arith.constant 0 : i32
    %c0_i32_1 = arith.constant 0 : i32
    return %c0_i32, %c0_i32_0 : i32, i32
  }
  func.func @transform_2(%arg0: i32) -> (i32, i32) {
    %c0_i32 = arith.constant 0 : i32
    %c0_i32_0 = arith.constant 0 : i32
    %c0_i32_1 = arith.constant 0 : i32
    return %c0_i32, %c0_i32_0 : i32, i32
  }
  func.func @transform_3(%arg0: i32) -> (i32, i32) {
    %c0_i32 = arith.constant 0 : i32
    %c0_i32_0 = arith.constant 0 : i32
    return %c0_i32, %arg0 : i32, i32
  }
}

module attributes {stable_mosaic.version = 11 : i64} {
  func.func @_conv_kernel(%arg0: i32, %arg1: memref<8x678xbf16, #tpu.memory_space<vmem>>, %arg2: memref<16x72xbf16, #tpu.memory_space<vmem>>, %arg3: memref<16x1xf32, #tpu.memory_space<vmem>>, %arg4: memref<16x640xbf16, #tpu.memory_space<vmem>>, %arg5: memref<72x640xbf16, #tpu.memory_space<vmem>>) attributes {dimension_semantics = [#tpu.dimension_semantics<parallel>], iteration_bounds = array<i64: 1>, scalar_prefetch = 0 : i64, scratch_operands = 1 : i64, tpu.core_type = #tpu.core_type<tc>, window_params = [{pipeline_mode = #tpu.pipeline_mode<synchronous>, transform_indices = @transform_0, window_bounds = array<i64: 8, 678>}, {pipeline_mode = #tpu.pipeline_mode<synchronous>, transform_indices = @transform_1, window_bounds = array<i64: 16, 72>}, {pipeline_mode = #tpu.pipeline_mode<synchronous>, transform_indices = @transform_2, window_bounds = array<i64: 16, 1>}, {transform_indices = @transform_3, window_bounds = array<i64: 16, 640>}]} {
    %c0 = arith.constant 0 : index
    %c0_0 = arith.constant 0 : index
    %0 = vector.load %arg1[%c0, %c0_0] : memref<8x678xbf16, #tpu.memory_space<vmem>>, vector<8x640xbf16>
    %c0_1 = arith.constant 0 : index
    %c0_2 = arith.constant 0 : index
    %1 = vector.load %arg5[%c0_1, %c0_2] : memref<72x640xbf16, #tpu.memory_space<vmem>>, vector<8x640xbf16>
    tpu.vector_store %arg5[%c0_1, %c0_2], %0 {strides = array<i32>} : memref<72x640xbf16, #tpu.memory_space<vmem>>, vector<8x640xbf16>,
    %c0_3 = arith.constant 0 : index
    %c1 = arith.constant 1 : index
    %2 = vector.load %arg1[%c0_3, %c1] : memref<8x678xbf16, #tpu.memory_space<vmem>>, vector<8x640xbf16>
    %c8 = arith.constant 8 : index
    %c0_4 = arith.constant 0 : index
    %3 = vector.load %arg5[%c8, %c0_4] : memref<72x640xbf16, #tpu.memory_space<vmem>>, vector<8x640xbf16>
    tpu.vector_store %arg5[%c8, %c0_4], %2 {strides = array<i32>} : memref<72x640xbf16, #tpu.memory_space<vmem>>, vector<8x640xbf16>,
    %c0_5 = arith.constant 0 : index
    %c2 = arith.constant 2 : index
    %4 = vector.load %arg1[%c0_5, %c2] : memref<8x678xbf16, #tpu.memory_space<vmem>>, vector<8x640xbf16>
    %c16 = arith.constant 16 : index
    %c0_6 = arith.constant 0 : index
    %5 = vector.load %arg5[%c16, %c0_6] : memref<72x640xbf16, #tpu.memory_space<vmem>>, vector<8x640xbf16>
    tpu.vector_store %arg5[%c16, %c0_6], %4 {strides = array<i32>} : memref<72x640xbf16, #tpu.memory_space<vmem>>, vector<8x640xbf16>,
    %c0_7 = arith.constant 0 : index
    %c18 = arith.constant 18 : index
    %6 = vector.load %arg1[%c0_7, %c18] : memref<8x678xbf16, #tpu.memory_space<vmem>>, vector<8x640xbf16>
    %c24 = arith.constant 24 : index
    %c0_8 = arith.constant 0 : index
    %7 = vector.load %arg5[%c24, %c0_8] : memref<72x640xbf16, #tpu.memory_space<vmem>>, vector<8x640xbf16>
    tpu.vector_store %arg5[%c24, %c0_8], %6 {strides = array<i32>} : memref<72x640xbf16, #tpu.memory_space<vmem>>, vector<8x640xbf16>,
    %c0_9 = arith.constant 0 : index
    %c19 = arith.constant 19 : index
    %8 = vector.load %arg1[%c0_9, %c19] : memref<8x678xbf16, #tpu.memory_space<vmem>>, vector<8x640xbf16>
    %c32 = arith.constant 32 : index
    %c0_10 = arith.constant 0 : index
    %9 = vector.load %arg5[%c32, %c0_10] : memref<72x640xbf16, #tpu.memory_space<vmem>>, vector<8x640xbf16>
    tpu.vector_store %arg5[%c32, %c0_10], %8 {strides = array<i32>} : memref<72x640xbf16, #tpu.memory_space<vmem>>, vector<8x640xbf16>,
    %c0_11 = arith.constant 0 : index
    %c20 = arith.constant 20 : index
    %10 = vector.load %arg1[%c0_11, %c20] : memref<8x678xbf16, #tpu.memory_space<vmem>>, vector<8x640xbf16>
    %c40 = arith.constant 40 : index
    %c0_12 = arith.constant 0 : index
    %11 = vector.load %arg5[%c40, %c0_12] : memref<72x640xbf16, #tpu.memory_space<vmem>>, vector<8x640xbf16>
    tpu.vector_store %arg5[%c40, %c0_12], %10 {strides = array<i32>} : memref<72x640xbf16, #tpu.memory_space<vmem>>, vector<8x640xbf16>,
    %c0_13 = arith.constant 0 : index
    %c36 = arith.constant 36 : index
    %12 = vector.load %arg1[%c0_13, %c36] : memref<8x678xbf16, #tpu.memory_space<vmem>>, vector<8x640xbf16>
    %c48 = arith.constant 48 : index
    %c0_14 = arith.constant 0 : index
    %13 = vector.load %arg5[%c48, %c0_14] : memref<72x640xbf16, #tpu.memory_space<vmem>>, vector<8x640xbf16>
    tpu.vector_store %arg5[%c48, %c0_14], %12 {strides = array<i32>} : memref<72x640xbf16, #tpu.memory_space<vmem>>, vector<8x640xbf16>,
    %c0_15 = arith.constant 0 : index
    %c37 = arith.constant 37 : index
    %14 = vector.load %arg1[%c0_15, %c37] : memref<8x678xbf16, #tpu.memory_space<vmem>>, vector<8x640xbf16>
    %c56 = arith.constant 56 : index
    %c0_16 = arith.constant 0 : index
    %15 = vector.load %arg5[%c56, %c0_16] : memref<72x640xbf16, #tpu.memory_space<vmem>>, vector<8x640xbf16>
    tpu.vector_store %arg5[%c56, %c0_16], %14 {strides = array<i32>} : memref<72x640xbf16, #tpu.memory_space<vmem>>, vector<8x640xbf16>,
    %c0_17 = arith.constant 0 : index
    %c38 = arith.constant 38 : index
    %16 = vector.load %arg1[%c0_17, %c38] : memref<8x678xbf16, #tpu.memory_space<vmem>>, vector<8x640xbf16>
    %c64 = arith.constant 64 : index
    %c0_18 = arith.constant 0 : index
    %17 = vector.load %arg5[%c64, %c0_18] : memref<72x640xbf16, #tpu.memory_space<vmem>>, vector<8x640xbf16>
    tpu.vector_store %arg5[%c64, %c0_18], %16 {strides = array<i32>} : memref<72x640xbf16, #tpu.memory_space<vmem>>, vector<8x640xbf16>,
    %c0_19 = arith.constant 0 : index
    %c0_20 = arith.constant 0 : index
    %18 = vector.load %arg2[%c0_19, %c0_20] : memref<16x72xbf16, #tpu.memory_space<vmem>>, vector<16x72xbf16>
    %c0_21 = arith.constant 0 : index
    %c0_22 = arith.constant 0 : index
    %19 = vector.load %arg5[%c0_21, %c0_22] : memref<72x640xbf16, #tpu.memory_space<vmem>>, vector<72x640xbf16>
    %cst = arith.constant dense<0.000000e+00> : vector<16x640xf32>
    %20 = tpu.matmul %18, %19, %cst {dimension_numbers = #tpu.dot_dimension_numbers<[1], [0], [0], [1], [0, 0, 1, 1], [], []>} : vector<16x72xbf16>, vector<72x640xbf16>, vector<16x640xf32> -> vector<16x640xf32>
    %c0_23 = arith.constant 0 : index
    %c0_24 = arith.constant 0 : index
    %21 = vector.load %arg3[%c0_23, %c0_24] : memref<16x1xf32, #tpu.memory_space<vmem>>, vector<16x1xf32>
    %22 = vector.broadcast %21 : vector<16x1xf32> to vector<16x640xf32>
    %23 = arith.addf %20, %22 : vector<16x640xf32>
    %cst_25 = arith.constant 0.000000e+00 : f32
    %24 = vector.broadcast %cst_25 : f32 to vector<16x640xf32>
    %25 = arith.maximumf %23, %24 : vector<16x640xf32>
    %26 = arith.truncf %25 : vector<16x640xf32> to vector<16x640xbf16>
    %c0_26 = arith.constant 0 : index
    %c0_27 = arith.constant 0 : index
    %27 = vector.load %arg4[%c0_26, %c0_27] : memref<16x640xbf16, #tpu.memory_space<vmem>>, vector<16x640xbf16>
    tpu.vector_store %arg4[%c0_26, %c0_27], %26 {strides = array<i32>} : memref<16x640xbf16, #tpu.memory_space<vmem>>, vector<16x640xbf16>,
    return
  }
  func.func @transform_0(%arg0: i32) -> (i32, i32) {
    %c0_i32 = arith.constant 0 : i32
    %c0_i32_0 = arith.constant 0 : i32
    %c0_i32_1 = arith.constant 0 : i32
    return %c0_i32, %c0_i32_0 : i32, i32
  }
  func.func @transform_1(%arg0: i32) -> (i32, i32) {
    %c0_i32 = arith.constant 0 : i32
    %c0_i32_0 = arith.constant 0 : i32
    %c0_i32_1 = arith.constant 0 : i32
    return %c0_i32, %c0_i32_0 : i32, i32
  }
  func.func @transform_2(%arg0: i32) -> (i32, i32) {
    %c0_i32 = arith.constant 0 : i32
    %c0_i32_0 = arith.constant 0 : i32
    %c0_i32_1 = arith.constant 0 : i32
    return %c0_i32, %c0_i32_0 : i32, i32
  }
  func.func @transform_3(%arg0: i32) -> (i32, i32) {
    %c0_i32 = arith.constant 0 : i32
    %c0_i32_0 = arith.constant 0 : i32
    return %c0_i32, %arg0 : i32, i32
  }
}

module attributes {stable_mosaic.version = 11 : i64} {
  func.func @_blur_kernel(%arg0: i32, %arg1: memref<16x18x36xbf16, #tpu.memory_space<vmem>>, %arg2: memref<16x17x16xbf16, #tpu.memory_space<vmem>>) attributes {dimension_semantics = [#tpu.dimension_semantics<arbitrary>], iteration_bounds = array<i64: 1>, scalar_prefetch = 0 : i64, scratch_operands = 0 : i64, tpu.core_type = #tpu.core_type<tc>, window_params = [{pipeline_mode = #tpu.pipeline_mode<synchronous>, transform_indices = @transform_0, window_bounds = array<i64: 16, 18, 36>}, {pipeline_mode = #tpu.pipeline_mode<synchronous>, transform_indices = @transform_1, window_bounds = array<i64: 16, 17, 16>}]} {
    %c0 = arith.constant 0 : index
    %c0_0 = arith.constant 0 : index
    %c0_1 = arith.constant 0 : index
    %0 = vector.load %arg1[%c0, %c0_0, %c0_1] : memref<16x18x36xbf16, #tpu.memory_space<vmem>>, vector<16x18x36xbf16>
    %1 = arith.extf %0 : vector<16x18x36xbf16> to vector<16x18x36xf32>
    %2 = vector.extract_strided_slice %1 {offsets = [0, 0, 0], sizes = [16, 18, 18], strides = [1, 1, 1]} : vector<16x18x36xf32> to vector<16x18x18xf32>
    %3 = vector.extract_strided_slice %1 {offsets = [0, 0, 18], sizes = [16, 18, 18], strides = [1, 1, 1]} : vector<16x18x36xf32> to vector<16x18x18xf32>
    %4 = vector.extract_strided_slice %2 {offsets = [0, 0, 0], sizes = [16, 17, 18], strides = [1, 1, 1]} : vector<16x18x18xf32> to vector<16x17x18xf32>
    %5 = vector.extract_strided_slice %3 {offsets = [0, 0, 0], sizes = [16, 17, 18], strides = [1, 1, 1]} : vector<16x18x18xf32> to vector<16x17x18xf32>
    %cst = arith.constant 2.000000e+00 : f32
    %6 = vector.broadcast %cst : f32 to vector<16x17x18xf32>
    %7 = arith.mulf %6, %5 : vector<16x17x18xf32>
    %8 = arith.addf %4, %7 : vector<16x17x18xf32>
    %9 = vector.extract_strided_slice %2 {offsets = [0, 1, 0], sizes = [16, 17, 18], strides = [1, 1, 1]} : vector<16x18x18xf32> to vector<16x17x18xf32>
    %10 = arith.addf %8, %9 : vector<16x17x18xf32>
    %11 = vector.extract_strided_slice %10 {offsets = [0, 0, 0], sizes = [16, 17, 16], strides = [1, 1, 1]} : vector<16x17x18xf32> to vector<16x17x16xf32>
    %12 = vector.extract_strided_slice %10 {offsets = [0, 0, 1], sizes = [16, 17, 16], strides = [1, 1, 1]} : vector<16x17x18xf32> to vector<16x17x16xf32>
    %cst_2 = arith.constant 2.000000e+00 : f32
    %13 = vector.broadcast %cst_2 : f32 to vector<16x17x16xf32>
    %14 = arith.mulf %13, %12 : vector<16x17x16xf32>
    %15 = arith.addf %11, %14 : vector<16x17x16xf32>
    %16 = vector.extract_strided_slice %10 {offsets = [0, 0, 2], sizes = [16, 17, 16], strides = [1, 1, 1]} : vector<16x17x18xf32> to vector<16x17x16xf32>
    %17 = arith.addf %15, %16 : vector<16x17x16xf32>
    %cst_3 = arith.constant 6.250000e-02 : f32
    %18 = vector.broadcast %cst_3 : f32 to vector<16x17x16xf32>
    %19 = arith.mulf %17, %18 : vector<16x17x16xf32>
    %20 = arith.truncf %19 : vector<16x17x16xf32> to vector<16x17x16xbf16>
    %c0_4 = arith.constant 0 : index
    %c0_5 = arith.constant 0 : index
    %c0_6 = arith.constant 0 : index
    %21 = vector.load %arg2[%c0_4, %c0_5, %c0_6] : memref<16x17x16xbf16, #tpu.memory_space<vmem>>, vector<16x17x16xbf16>
    tpu.vector_store %arg2[%c0_4, %c0_5, %c0_6], %20 {strides = array<i32>} : memref<16x17x16xbf16, #tpu.memory_space<vmem>>, vector<16x17x16xbf16>,
    return
  }
  func.func @transform_0(%arg0: i32) -> (i32, i32, i32) {
    %c0_i32 = arith.constant 0 : i32
    %c0_i32_0 = arith.constant 0 : i32
    %c0_i32_1 = arith.constant 0 : i32
    %c0_i32_2 = arith.constant 0 : i32
    return %c0_i32, %c0_i32_0, %c0_i32_1 : i32, i32, i32
  }
  func.func @transform_1(%arg0: i32) -> (i32, i32, i32) {
    %c0_i32 = arith.constant 0 : i32
    %c0_i32_0 = arith.constant 0 : i32
    %c0_i32_1 = arith.constant 0 : i32
    %c0_i32_2 = arith.constant 0 : i32
    return %c0_i32, %c0_i32_0, %c0_i32_1 : i32, i32, i32
  }
}

module attributes {stable_mosaic.version = 11 : i64} {
  func.func @_conv_kernel(%arg0: i32, %arg1: memref<16x278xbf16, #tpu.memory_space<vmem>>, %arg2: memref<32x144xbf16, #tpu.memory_space<vmem>>, %arg3: memref<32x1xf32, #tpu.memory_space<vmem>>, %arg4: memref<32x256xbf16, #tpu.memory_space<vmem>>, %arg5: memref<144x256xbf16, #tpu.memory_space<vmem>>) attributes {dimension_semantics = [#tpu.dimension_semantics<parallel>], iteration_bounds = array<i64: 1>, scalar_prefetch = 0 : i64, scratch_operands = 1 : i64, tpu.core_type = #tpu.core_type<tc>, window_params = [{pipeline_mode = #tpu.pipeline_mode<synchronous>, transform_indices = @transform_0, window_bounds = array<i64: 16, 278>}, {pipeline_mode = #tpu.pipeline_mode<synchronous>, transform_indices = @transform_1, window_bounds = array<i64: 32, 144>}, {pipeline_mode = #tpu.pipeline_mode<synchronous>, transform_indices = @transform_2, window_bounds = array<i64: 32, 1>}, {transform_indices = @transform_3, window_bounds = array<i64: 32, 256>}]} {
    %c0 = arith.constant 0 : index
    %c0_0 = arith.constant 0 : index
    %0 = vector.load %arg1[%c0, %c0_0] : memref<16x278xbf16, #tpu.memory_space<vmem>>, vector<16x256xbf16>
    %c0_1 = arith.constant 0 : index
    %c0_2 = arith.constant 0 : index
    %1 = vector.load %arg5[%c0_1, %c0_2] : memref<144x256xbf16, #tpu.memory_space<vmem>>, vector<16x256xbf16>
    tpu.vector_store %arg5[%c0_1, %c0_2], %0 {strides = array<i32>} : memref<144x256xbf16, #tpu.memory_space<vmem>>, vector<16x256xbf16>,
    %c0_3 = arith.constant 0 : index
    %c1 = arith.constant 1 : index
    %2 = vector.load %arg1[%c0_3, %c1] : memref<16x278xbf16, #tpu.memory_space<vmem>>, vector<16x256xbf16>
    %c16 = arith.constant 16 : index
    %c0_4 = arith.constant 0 : index
    %3 = vector.load %arg5[%c16, %c0_4] : memref<144x256xbf16, #tpu.memory_space<vmem>>, vector<16x256xbf16>
    tpu.vector_store %arg5[%c16, %c0_4], %2 {strides = array<i32>} : memref<144x256xbf16, #tpu.memory_space<vmem>>, vector<16x256xbf16>,
    %c0_5 = arith.constant 0 : index
    %c2 = arith.constant 2 : index
    %4 = vector.load %arg1[%c0_5, %c2] : memref<16x278xbf16, #tpu.memory_space<vmem>>, vector<16x256xbf16>
    %c32 = arith.constant 32 : index
    %c0_6 = arith.constant 0 : index
    %5 = vector.load %arg5[%c32, %c0_6] : memref<144x256xbf16, #tpu.memory_space<vmem>>, vector<16x256xbf16>
    tpu.vector_store %arg5[%c32, %c0_6], %4 {strides = array<i32>} : memref<144x256xbf16, #tpu.memory_space<vmem>>, vector<16x256xbf16>,
    %c0_7 = arith.constant 0 : index
    %c10 = arith.constant 10 : index
    %6 = vector.load %arg1[%c0_7, %c10] : memref<16x278xbf16, #tpu.memory_space<vmem>>, vector<16x256xbf16>
    %c48 = arith.constant 48 : index
    %c0_8 = arith.constant 0 : index
    %7 = vector.load %arg5[%c48, %c0_8] : memref<144x256xbf16, #tpu.memory_space<vmem>>, vector<16x256xbf16>
    tpu.vector_store %arg5[%c48, %c0_8], %6 {strides = array<i32>} : memref<144x256xbf16, #tpu.memory_space<vmem>>, vector<16x256xbf16>,
    %c0_9 = arith.constant 0 : index
    %c11 = arith.constant 11 : index
    %8 = vector.load %arg1[%c0_9, %c11] : memref<16x278xbf16, #tpu.memory_space<vmem>>, vector<16x256xbf16>
    %c64 = arith.constant 64 : index
    %c0_10 = arith.constant 0 : index
    %9 = vector.load %arg5[%c64, %c0_10] : memref<144x256xbf16, #tpu.memory_space<vmem>>, vector<16x256xbf16>
    tpu.vector_store %arg5[%c64, %c0_10], %8 {strides = array<i32>} : memref<144x256xbf16, #tpu.memory_space<vmem>>, vector<16x256xbf16>,
    %c0_11 = arith.constant 0 : index
    %c12 = arith.constant 12 : index
    %10 = vector.load %arg1[%c0_11, %c12] : memref<16x278xbf16, #tpu.memory_space<vmem>>, vector<16x256xbf16>
    %c80 = arith.constant 80 : index
    %c0_12 = arith.constant 0 : index
    %11 = vector.load %arg5[%c80, %c0_12] : memref<144x256xbf16, #tpu.memory_space<vmem>>, vector<16x256xbf16>
    tpu.vector_store %arg5[%c80, %c0_12], %10 {strides = array<i32>} : memref<144x256xbf16, #tpu.memory_space<vmem>>, vector<16x256xbf16>,
    %c0_13 = arith.constant 0 : index
    %c20 = arith.constant 20 : index
    %12 = vector.load %arg1[%c0_13, %c20] : memref<16x278xbf16, #tpu.memory_space<vmem>>, vector<16x256xbf16>
    %c96 = arith.constant 96 : index
    %c0_14 = arith.constant 0 : index
    %13 = vector.load %arg5[%c96, %c0_14] : memref<144x256xbf16, #tpu.memory_space<vmem>>, vector<16x256xbf16>
    tpu.vector_store %arg5[%c96, %c0_14], %12 {strides = array<i32>} : memref<144x256xbf16, #tpu.memory_space<vmem>>, vector<16x256xbf16>,
    %c0_15 = arith.constant 0 : index
    %c21 = arith.constant 21 : index
    %14 = vector.load %arg1[%c0_15, %c21] : memref<16x278xbf16, #tpu.memory_space<vmem>>, vector<16x256xbf16>
    %c112 = arith.constant 112 : index
    %c0_16 = arith.constant 0 : index
    %15 = vector.load %arg5[%c112, %c0_16] : memref<144x256xbf16, #tpu.memory_space<vmem>>, vector<16x256xbf16>
    tpu.vector_store %arg5[%c112, %c0_16], %14 {strides = array<i32>} : memref<144x256xbf16, #tpu.memory_space<vmem>>, vector<16x256xbf16>,
    %c0_17 = arith.constant 0 : index
    %c22 = arith.constant 22 : index
    %16 = vector.load %arg1[%c0_17, %c22] : memref<16x278xbf16, #tpu.memory_space<vmem>>, vector<16x256xbf16>
    %c128 = arith.constant 128 : index
    %c0_18 = arith.constant 0 : index
    %17 = vector.load %arg5[%c128, %c0_18] : memref<144x256xbf16, #tpu.memory_space<vmem>>, vector<16x256xbf16>
    tpu.vector_store %arg5[%c128, %c0_18], %16 {strides = array<i32>} : memref<144x256xbf16, #tpu.memory_space<vmem>>, vector<16x256xbf16>,
    %c0_19 = arith.constant 0 : index
    %c0_20 = arith.constant 0 : index
    %18 = vector.load %arg2[%c0_19, %c0_20] : memref<32x144xbf16, #tpu.memory_space<vmem>>, vector<32x144xbf16>
    %c0_21 = arith.constant 0 : index
    %c0_22 = arith.constant 0 : index
    %19 = vector.load %arg5[%c0_21, %c0_22] : memref<144x256xbf16, #tpu.memory_space<vmem>>, vector<144x256xbf16>
    %cst = arith.constant dense<0.000000e+00> : vector<32x256xf32>
    %20 = tpu.matmul %18, %19, %cst {dimension_numbers = #tpu.dot_dimension_numbers<[1], [0], [0], [1], [0, 0, 1, 1], [], []>} : vector<32x144xbf16>, vector<144x256xbf16>, vector<32x256xf32> -> vector<32x256xf32>
    %c0_23 = arith.constant 0 : index
    %c0_24 = arith.constant 0 : index
    %21 = vector.load %arg3[%c0_23, %c0_24] : memref<32x1xf32, #tpu.memory_space<vmem>>, vector<32x1xf32>
    %22 = vector.broadcast %21 : vector<32x1xf32> to vector<32x256xf32>
    %23 = arith.addf %20, %22 : vector<32x256xf32>
    %cst_25 = arith.constant 0.000000e+00 : f32
    %24 = vector.broadcast %cst_25 : f32 to vector<32x256xf32>
    %25 = arith.maximumf %23, %24 : vector<32x256xf32>
    %26 = arith.truncf %25 : vector<32x256xf32> to vector<32x256xbf16>
    %c0_26 = arith.constant 0 : index
    %c0_27 = arith.constant 0 : index
    %27 = vector.load %arg4[%c0_26, %c0_27] : memref<32x256xbf16, #tpu.memory_space<vmem>>, vector<32x256xbf16>
    tpu.vector_store %arg4[%c0_26, %c0_27], %26 {strides = array<i32>} : memref<32x256xbf16, #tpu.memory_space<vmem>>, vector<32x256xbf16>,
    return
  }
  func.func @transform_0(%arg0: i32) -> (i32, i32) {
    %c0_i32 = arith.constant 0 : i32
    %c0_i32_0 = arith.constant 0 : i32
    %c0_i32_1 = arith.constant 0 : i32
    return %c0_i32, %c0_i32_0 : i32, i32
  }
  func.func @transform_1(%arg0: i32) -> (i32, i32) {
    %c0_i32 = arith.constant 0 : i32
    %c0_i32_0 = arith.constant 0 : i32
    %c0_i32_1 = arith.constant 0 : i32
    return %c0_i32, %c0_i32_0 : i32, i32
  }
  func.func @transform_2(%arg0: i32) -> (i32, i32) {
    %c0_i32 = arith.constant 0 : i32
    %c0_i32_0 = arith.constant 0 : i32
    %c0_i32_1 = arith.constant 0 : i32
    return %c0_i32, %c0_i32_0 : i32, i32
  }
  func.func @transform_3(%arg0: i32) -> (i32, i32) {
    %c0_i32 = arith.constant 0 : i32
    %c0_i32_0 = arith.constant 0 : i32
    return %c0_i32, %arg0 : i32, i32
  }
}

module attributes {stable_mosaic.version = 11 : i64} {
  func.func @_blur_kernel(%arg0: i32, %arg1: memref<32x10x20xbf16, #tpu.memory_space<vmem>>, %arg2: memref<32x9x8xbf16, #tpu.memory_space<vmem>>) attributes {dimension_semantics = [#tpu.dimension_semantics<arbitrary>], iteration_bounds = array<i64: 1>, scalar_prefetch = 0 : i64, scratch_operands = 0 : i64, tpu.core_type = #tpu.core_type<tc>, window_params = [{pipeline_mode = #tpu.pipeline_mode<synchronous>, transform_indices = @transform_0, window_bounds = array<i64: 32, 10, 20>}, {pipeline_mode = #tpu.pipeline_mode<synchronous>, transform_indices = @transform_1, window_bounds = array<i64: 32, 9, 8>}]} {
    %c0 = arith.constant 0 : index
    %c0_0 = arith.constant 0 : index
    %c0_1 = arith.constant 0 : index
    %0 = vector.load %arg1[%c0, %c0_0, %c0_1] : memref<32x10x20xbf16, #tpu.memory_space<vmem>>, vector<32x10x20xbf16>
    %1 = arith.extf %0 : vector<32x10x20xbf16> to vector<32x10x20xf32>
    %2 = vector.extract_strided_slice %1 {offsets = [0, 0, 0], sizes = [32, 10, 10], strides = [1, 1, 1]} : vector<32x10x20xf32> to vector<32x10x10xf32>
    %3 = vector.extract_strided_slice %1 {offsets = [0, 0, 10], sizes = [32, 10, 10], strides = [1, 1, 1]} : vector<32x10x20xf32> to vector<32x10x10xf32>
    %4 = vector.extract_strided_slice %2 {offsets = [0, 0, 0], sizes = [32, 9, 10], strides = [1, 1, 1]} : vector<32x10x10xf32> to vector<32x9x10xf32>
    %5 = vector.extract_strided_slice %3 {offsets = [0, 0, 0], sizes = [32, 9, 10], strides = [1, 1, 1]} : vector<32x10x10xf32> to vector<32x9x10xf32>
    %cst = arith.constant 2.000000e+00 : f32
    %6 = vector.broadcast %cst : f32 to vector<32x9x10xf32>
    %7 = arith.mulf %6, %5 : vector<32x9x10xf32>
    %8 = arith.addf %4, %7 : vector<32x9x10xf32>
    %9 = vector.extract_strided_slice %2 {offsets = [0, 1, 0], sizes = [32, 9, 10], strides = [1, 1, 1]} : vector<32x10x10xf32> to vector<32x9x10xf32>
    %10 = arith.addf %8, %9 : vector<32x9x10xf32>
    %11 = vector.extract_strided_slice %10 {offsets = [0, 0, 0], sizes = [32, 9, 8], strides = [1, 1, 1]} : vector<32x9x10xf32> to vector<32x9x8xf32>
    %12 = vector.extract_strided_slice %10 {offsets = [0, 0, 1], sizes = [32, 9, 8], strides = [1, 1, 1]} : vector<32x9x10xf32> to vector<32x9x8xf32>
    %cst_2 = arith.constant 2.000000e+00 : f32
    %13 = vector.broadcast %cst_2 : f32 to vector<32x9x8xf32>
    %14 = arith.mulf %13, %12 : vector<32x9x8xf32>
    %15 = arith.addf %11, %14 : vector<32x9x8xf32>
    %16 = vector.extract_strided_slice %10 {offsets = [0, 0, 2], sizes = [32, 9, 8], strides = [1, 1, 1]} : vector<32x9x10xf32> to vector<32x9x8xf32>
    %17 = arith.addf %15, %16 : vector<32x9x8xf32>
    %cst_3 = arith.constant 6.250000e-02 : f32
    %18 = vector.broadcast %cst_3 : f32 to vector<32x9x8xf32>
    %19 = arith.mulf %17, %18 : vector<32x9x8xf32>
    %20 = arith.truncf %19 : vector<32x9x8xf32> to vector<32x9x8xbf16>
    %c0_4 = arith.constant 0 : index
    %c0_5 = arith.constant 0 : index
    %c0_6 = arith.constant 0 : index
    %21 = vector.load %arg2[%c0_4, %c0_5, %c0_6] : memref<32x9x8xbf16, #tpu.memory_space<vmem>>, vector<32x9x8xbf16>
    tpu.vector_store %arg2[%c0_4, %c0_5, %c0_6], %20 {strides = array<i32>} : memref<32x9x8xbf16, #tpu.memory_space<vmem>>, vector<32x9x8xbf16>,
    return
  }
  func.func @transform_0(%arg0: i32) -> (i32, i32, i32) {
    %c0_i32 = arith.constant 0 : i32
    %c0_i32_0 = arith.constant 0 : i32
    %c0_i32_1 = arith.constant 0 : i32
    %c0_i32_2 = arith.constant 0 : i32
    return %c0_i32, %c0_i32_0, %c0_i32_1 : i32, i32, i32
  }
  func.func @transform_1(%arg0: i32) -> (i32, i32, i32) {
    %c0_i32 = arith.constant 0 : i32
    %c0_i32_0 = arith.constant 0 : i32
    %c0_i32_1 = arith.constant 0 : i32
    %c0_i32_2 = arith.constant 0 : i32
    return %c0_i32, %c0_i32_0, %c0_i32_1 : i32, i32, i32
  }
}

module attributes {stable_mosaic.version = 11 : i64} {
  func.func @_conv_kernel(%arg0: i32, %arg1: memref<32x142xbf16, #tpu.memory_space<vmem>>, %arg2: memref<32x288xbf16, #tpu.memory_space<vmem>>, %arg3: memref<32x1xf32, #tpu.memory_space<vmem>>, %arg4: memref<32x128xbf16, #tpu.memory_space<vmem>>, %arg5: memref<288x128xbf16, #tpu.memory_space<vmem>>) attributes {dimension_semantics = [#tpu.dimension_semantics<parallel>], iteration_bounds = array<i64: 1>, scalar_prefetch = 0 : i64, scratch_operands = 1 : i64, tpu.core_type = #tpu.core_type<tc>, window_params = [{pipeline_mode = #tpu.pipeline_mode<synchronous>, transform_indices = @transform_0, window_bounds = array<i64: 32, 142>}, {pipeline_mode = #tpu.pipeline_mode<synchronous>, transform_indices = @transform_1, window_bounds = array<i64: 32, 288>}, {pipeline_mode = #tpu.pipeline_mode<synchronous>, transform_indices = @transform_2, window_bounds = array<i64: 32, 1>}, {transform_indices = @transform_3, window_bounds = array<i64: 32, 128>}]} {
    %c0 = arith.constant 0 : index
    %c0_0 = arith.constant 0 : index
    %0 = vector.load %arg1[%c0, %c0_0] : memref<32x142xbf16, #tpu.memory_space<vmem>>, vector<32x128xbf16>
    %c0_1 = arith.constant 0 : index
    %c0_2 = arith.constant 0 : index
    %1 = vector.load %arg5[%c0_1, %c0_2] : memref<288x128xbf16, #tpu.memory_space<vmem>>, vector<32x128xbf16>
    tpu.vector_store %arg5[%c0_1, %c0_2], %0 {strides = array<i32>} : memref<288x128xbf16, #tpu.memory_space<vmem>>, vector<32x128xbf16>,
    %c0_3 = arith.constant 0 : index
    %c1 = arith.constant 1 : index
    %2 = vector.load %arg1[%c0_3, %c1] : memref<32x142xbf16, #tpu.memory_space<vmem>>, vector<32x128xbf16>
    %c32 = arith.constant 32 : index
    %c0_4 = arith.constant 0 : index
    %3 = vector.load %arg5[%c32, %c0_4] : memref<288x128xbf16, #tpu.memory_space<vmem>>, vector<32x128xbf16>
    tpu.vector_store %arg5[%c32, %c0_4], %2 {strides = array<i32>} : memref<288x128xbf16, #tpu.memory_space<vmem>>, vector<32x128xbf16>,
    %c0_5 = arith.constant 0 : index
    %c2 = arith.constant 2 : index
    %4 = vector.load %arg1[%c0_5, %c2] : memref<32x142xbf16, #tpu.memory_space<vmem>>, vector<32x128xbf16>
    %c64 = arith.constant 64 : index
    %c0_6 = arith.constant 0 : index
    %5 = vector.load %arg5[%c64, %c0_6] : memref<288x128xbf16, #tpu.memory_space<vmem>>, vector<32x128xbf16>
    tpu.vector_store %arg5[%c64, %c0_6], %4 {strides = array<i32>} : memref<288x128xbf16, #tpu.memory_space<vmem>>, vector<32x128xbf16>,
    %c0_7 = arith.constant 0 : index
    %c6 = arith.constant 6 : index
    %6 = vector.load %arg1[%c0_7, %c6] : memref<32x142xbf16, #tpu.memory_space<vmem>>, vector<32x128xbf16>
    %c96 = arith.constant 96 : index
    %c0_8 = arith.constant 0 : index
    %7 = vector.load %arg5[%c96, %c0_8] : memref<288x128xbf16, #tpu.memory_space<vmem>>, vector<32x128xbf16>
    tpu.vector_store %arg5[%c96, %c0_8], %6 {strides = array<i32>} : memref<288x128xbf16, #tpu.memory_space<vmem>>, vector<32x128xbf16>,
    %c0_9 = arith.constant 0 : index
    %c7 = arith.constant 7 : index
    %8 = vector.load %arg1[%c0_9, %c7] : memref<32x142xbf16, #tpu.memory_space<vmem>>, vector<32x128xbf16>
    %c128 = arith.constant 128 : index
    %c0_10 = arith.constant 0 : index
    %9 = vector.load %arg5[%c128, %c0_10] : memref<288x128xbf16, #tpu.memory_space<vmem>>, vector<32x128xbf16>
    tpu.vector_store %arg5[%c128, %c0_10], %8 {strides = array<i32>} : memref<288x128xbf16, #tpu.memory_space<vmem>>, vector<32x128xbf16>,
    %c0_11 = arith.constant 0 : index
    %c8 = arith.constant 8 : index
    %10 = vector.load %arg1[%c0_11, %c8] : memref<32x142xbf16, #tpu.memory_space<vmem>>, vector<32x128xbf16>
    %c160 = arith.constant 160 : index
    %c0_12 = arith.constant 0 : index
    %11 = vector.load %arg5[%c160, %c0_12] : memref<288x128xbf16, #tpu.memory_space<vmem>>, vector<32x128xbf16>
    tpu.vector_store %arg5[%c160, %c0_12], %10 {strides = array<i32>} : memref<288x128xbf16, #tpu.memory_space<vmem>>, vector<32x128xbf16>,
    %c0_13 = arith.constant 0 : index
    %c12 = arith.constant 12 : index
    %12 = vector.load %arg1[%c0_13, %c12] : memref<32x142xbf16, #tpu.memory_space<vmem>>, vector<32x128xbf16>
    %c192 = arith.constant 192 : index
    %c0_14 = arith.constant 0 : index
    %13 = vector.load %arg5[%c192, %c0_14] : memref<288x128xbf16, #tpu.memory_space<vmem>>, vector<32x128xbf16>
    tpu.vector_store %arg5[%c192, %c0_14], %12 {strides = array<i32>} : memref<288x128xbf16, #tpu.memory_space<vmem>>, vector<32x128xbf16>,
    %c0_15 = arith.constant 0 : index
    %c13 = arith.constant 13 : index
    %14 = vector.load %arg1[%c0_15, %c13] : memref<32x142xbf16, #tpu.memory_space<vmem>>, vector<32x128xbf16>
    %c224 = arith.constant 224 : index
    %c0_16 = arith.constant 0 : index
    %15 = vector.load %arg5[%c224, %c0_16] : memref<288x128xbf16, #tpu.memory_space<vmem>>, vector<32x128xbf16>
    tpu.vector_store %arg5[%c224, %c0_16], %14 {strides = array<i32>} : memref<288x128xbf16, #tpu.memory_space<vmem>>, vector<32x128xbf16>,
    %c0_17 = arith.constant 0 : index
    %c14 = arith.constant 14 : index
    %16 = vector.load %arg1[%c0_17, %c14] : memref<32x142xbf16, #tpu.memory_space<vmem>>, vector<32x128xbf16>
    %c256 = arith.constant 256 : index
    %c0_18 = arith.constant 0 : index
    %17 = vector.load %arg5[%c256, %c0_18] : memref<288x128xbf16, #tpu.memory_space<vmem>>, vector<32x128xbf16>
    tpu.vector_store %arg5[%c256, %c0_18], %16 {strides = array<i32>} : memref<288x128xbf16, #tpu.memory_space<vmem>>, vector<32x128xbf16>,
    %c0_19 = arith.constant 0 : index
    %c0_20 = arith.constant 0 : index
    %18 = vector.load %arg2[%c0_19, %c0_20] : memref<32x288xbf16, #tpu.memory_space<vmem>>, vector<32x288xbf16>
    %c0_21 = arith.constant 0 : index
    %c0_22 = arith.constant 0 : index
    %19 = vector.load %arg5[%c0_21, %c0_22] : memref<288x128xbf16, #tpu.memory_space<vmem>>, vector<288x128xbf16>
    %cst = arith.constant dense<0.000000e+00> : vector<32x128xf32>
    %20 = tpu.matmul %18, %19, %cst {dimension_numbers = #tpu.dot_dimension_numbers<[1], [0], [0], [1], [0, 0, 1, 1], [], []>} : vector<32x288xbf16>, vector<288x128xbf16>, vector<32x128xf32> -> vector<32x128xf32>
    %c0_23 = arith.constant 0 : index
    %c0_24 = arith.constant 0 : index
    %21 = vector.load %arg3[%c0_23, %c0_24] : memref<32x1xf32, #tpu.memory_space<vmem>>, vector<32x1xf32>
    %22 = vector.broadcast %21 : vector<32x1xf32> to vector<32x128xf32>
    %23 = arith.addf %20, %22 : vector<32x128xf32>
    %cst_25 = arith.constant 0.000000e+00 : f32
    %24 = vector.broadcast %cst_25 : f32 to vector<32x128xf32>
    %25 = arith.maximumf %23, %24 : vector<32x128xf32>
    %26 = arith.truncf %25 : vector<32x128xf32> to vector<32x128xbf16>
    %c0_26 = arith.constant 0 : index
    %c0_27 = arith.constant 0 : index
    %27 = vector.load %arg4[%c0_26, %c0_27] : memref<32x128xbf16, #tpu.memory_space<vmem>>, vector<32x128xbf16>
    tpu.vector_store %arg4[%c0_26, %c0_27], %26 {strides = array<i32>} : memref<32x128xbf16, #tpu.memory_space<vmem>>, vector<32x128xbf16>,
    return
  }
  func.func @transform_0(%arg0: i32) -> (i32, i32) {
    %c0_i32 = arith.constant 0 : i32
    %c0_i32_0 = arith.constant 0 : i32
    %c0_i32_1 = arith.constant 0 : i32
    return %c0_i32, %c0_i32_0 : i32, i32
  }
  func.func @transform_1(%arg0: i32) -> (i32, i32) {
    %c0_i32 = arith.constant 0 : i32
    %c0_i32_0 = arith.constant 0 : i32
    %c0_i32_1 = arith.constant 0 : i32
    return %c0_i32, %c0_i32_0 : i32, i32
  }
  func.func @transform_2(%arg0: i32) -> (i32, i32) {
    %c0_i32 = arith.constant 0 : i32
    %c0_i32_0 = arith.constant 0 : i32
    %c0_i32_1 = arith.constant 0 : i32
    return %c0_i32, %c0_i32_0 : i32, i32
  }
  func.func @transform_3(%arg0: i32) -> (i32, i32) {
    %c0_i32 = arith.constant 0 : i32
    %c0_i32_0 = arith.constant 0 : i32
    return %c0_i32, %arg0 : i32, i32
  }
}

module attributes {stable_mosaic.version = 11 : i64} {
  func.func @_conv_kernel(%arg0: i32, %arg1: memref<32x142xbf16, #tpu.memory_space<vmem>>, %arg2: memref<32x288xbf16, #tpu.memory_space<vmem>>, %arg3: memref<32x1xf32, #tpu.memory_space<vmem>>, %arg4: memref<32x128xbf16, #tpu.memory_space<vmem>>, %arg5: memref<32x128xbf16, #tpu.memory_space<vmem>>, %arg6: memref<288x128xbf16, #tpu.memory_space<vmem>>) attributes {dimension_semantics = [#tpu.dimension_semantics<parallel>], iteration_bounds = array<i64: 1>, scalar_prefetch = 0 : i64, scratch_operands = 1 : i64, tpu.core_type = #tpu.core_type<tc>, window_params = [{pipeline_mode = #tpu.pipeline_mode<synchronous>, transform_indices = @transform_0, window_bounds = array<i64: 32, 142>}, {pipeline_mode = #tpu.pipeline_mode<synchronous>, transform_indices = @transform_1, window_bounds = array<i64: 32, 288>}, {pipeline_mode = #tpu.pipeline_mode<synchronous>, transform_indices = @transform_2, window_bounds = array<i64: 32, 1>}, {transform_indices = @transform_3, window_bounds = array<i64: 32, 128>}, {transform_indices = @transform_4, window_bounds = array<i64: 32, 128>}]} {
    %c0 = arith.constant 0 : index
    %c0_0 = arith.constant 0 : index
    %0 = vector.load %arg1[%c0, %c0_0] : memref<32x142xbf16, #tpu.memory_space<vmem>>, vector<32x128xbf16>
    %c0_1 = arith.constant 0 : index
    %c0_2 = arith.constant 0 : index
    %1 = vector.load %arg6[%c0_1, %c0_2] : memref<288x128xbf16, #tpu.memory_space<vmem>>, vector<32x128xbf16>
    tpu.vector_store %arg6[%c0_1, %c0_2], %0 {strides = array<i32>} : memref<288x128xbf16, #tpu.memory_space<vmem>>, vector<32x128xbf16>,
    %c0_3 = arith.constant 0 : index
    %c1 = arith.constant 1 : index
    %2 = vector.load %arg1[%c0_3, %c1] : memref<32x142xbf16, #tpu.memory_space<vmem>>, vector<32x128xbf16>
    %c32 = arith.constant 32 : index
    %c0_4 = arith.constant 0 : index
    %3 = vector.load %arg6[%c32, %c0_4] : memref<288x128xbf16, #tpu.memory_space<vmem>>, vector<32x128xbf16>
    tpu.vector_store %arg6[%c32, %c0_4], %2 {strides = array<i32>} : memref<288x128xbf16, #tpu.memory_space<vmem>>, vector<32x128xbf16>,
    %c0_5 = arith.constant 0 : index
    %c2 = arith.constant 2 : index
    %4 = vector.load %arg1[%c0_5, %c2] : memref<32x142xbf16, #tpu.memory_space<vmem>>, vector<32x128xbf16>
    %c64 = arith.constant 64 : index
    %c0_6 = arith.constant 0 : index
    %5 = vector.load %arg6[%c64, %c0_6] : memref<288x128xbf16, #tpu.memory_space<vmem>>, vector<32x128xbf16>
    tpu.vector_store %arg6[%c64, %c0_6], %4 {strides = array<i32>} : memref<288x128xbf16, #tpu.memory_space<vmem>>, vector<32x128xbf16>,
    %c0_7 = arith.constant 0 : index
    %c6 = arith.constant 6 : index
    %6 = vector.load %arg1[%c0_7, %c6] : memref<32x142xbf16, #tpu.memory_space<vmem>>, vector<32x128xbf16>
    %c96 = arith.constant 96 : index
    %c0_8 = arith.constant 0 : index
    %7 = vector.load %arg6[%c96, %c0_8] : memref<288x128xbf16, #tpu.memory_space<vmem>>, vector<32x128xbf16>
    tpu.vector_store %arg6[%c96, %c0_8], %6 {strides = array<i32>} : memref<288x128xbf16, #tpu.memory_space<vmem>>, vector<32x128xbf16>,
    %c0_9 = arith.constant 0 : index
    %c7 = arith.constant 7 : index
    %8 = vector.load %arg1[%c0_9, %c7] : memref<32x142xbf16, #tpu.memory_space<vmem>>, vector<32x128xbf16>
    %c128 = arith.constant 128 : index
    %c0_10 = arith.constant 0 : index
    %9 = vector.load %arg6[%c128, %c0_10] : memref<288x128xbf16, #tpu.memory_space<vmem>>, vector<32x128xbf16>
    tpu.vector_store %arg6[%c128, %c0_10], %8 {strides = array<i32>} : memref<288x128xbf16, #tpu.memory_space<vmem>>, vector<32x128xbf16>,
    %c0_11 = arith.constant 0 : index
    %c8 = arith.constant 8 : index
    %10 = vector.load %arg1[%c0_11, %c8] : memref<32x142xbf16, #tpu.memory_space<vmem>>, vector<32x128xbf16>
    %c160 = arith.constant 160 : index
    %c0_12 = arith.constant 0 : index
    %11 = vector.load %arg6[%c160, %c0_12] : memref<288x128xbf16, #tpu.memory_space<vmem>>, vector<32x128xbf16>
    tpu.vector_store %arg6[%c160, %c0_12], %10 {strides = array<i32>} : memref<288x128xbf16, #tpu.memory_space<vmem>>, vector<32x128xbf16>,
    %c0_13 = arith.constant 0 : index
    %c12 = arith.constant 12 : index
    %12 = vector.load %arg1[%c0_13, %c12] : memref<32x142xbf16, #tpu.memory_space<vmem>>, vector<32x128xbf16>
    %c192 = arith.constant 192 : index
    %c0_14 = arith.constant 0 : index
    %13 = vector.load %arg6[%c192, %c0_14] : memref<288x128xbf16, #tpu.memory_space<vmem>>, vector<32x128xbf16>
    tpu.vector_store %arg6[%c192, %c0_14], %12 {strides = array<i32>} : memref<288x128xbf16, #tpu.memory_space<vmem>>, vector<32x128xbf16>,
    %c0_15 = arith.constant 0 : index
    %c13 = arith.constant 13 : index
    %14 = vector.load %arg1[%c0_15, %c13] : memref<32x142xbf16, #tpu.memory_space<vmem>>, vector<32x128xbf16>
    %c224 = arith.constant 224 : index
    %c0_16 = arith.constant 0 : index
    %15 = vector.load %arg6[%c224, %c0_16] : memref<288x128xbf16, #tpu.memory_space<vmem>>, vector<32x128xbf16>
    tpu.vector_store %arg6[%c224, %c0_16], %14 {strides = array<i32>} : memref<288x128xbf16, #tpu.memory_space<vmem>>, vector<32x128xbf16>,
    %c0_17 = arith.constant 0 : index
    %c14 = arith.constant 14 : index
    %16 = vector.load %arg1[%c0_17, %c14] : memref<32x142xbf16, #tpu.memory_space<vmem>>, vector<32x128xbf16>
    %c256 = arith.constant 256 : index
    %c0_18 = arith.constant 0 : index
    %17 = vector.load %arg6[%c256, %c0_18] : memref<288x128xbf16, #tpu.memory_space<vmem>>, vector<32x128xbf16>
    tpu.vector_store %arg6[%c256, %c0_18], %16 {strides = array<i32>} : memref<288x128xbf16, #tpu.memory_space<vmem>>, vector<32x128xbf16>,
    %c0_19 = arith.constant 0 : index
    %c0_20 = arith.constant 0 : index
    %18 = vector.load %arg2[%c0_19, %c0_20] : memref<32x288xbf16, #tpu.memory_space<vmem>>, vector<32x288xbf16>
    %c0_21 = arith.constant 0 : index
    %c0_22 = arith.constant 0 : index
    %19 = vector.load %arg6[%c0_21, %c0_22] : memref<288x128xbf16, #tpu.memory_space<vmem>>, vector<288x128xbf16>
    %cst = arith.constant dense<0.000000e+00> : vector<32x128xf32>
    %20 = tpu.matmul %18, %19, %cst {dimension_numbers = #tpu.dot_dimension_numbers<[1], [0], [0], [1], [0, 0, 1, 1], [], []>} : vector<32x288xbf16>, vector<288x128xbf16>, vector<32x128xf32> -> vector<32x128xf32>
    %c0_23 = arith.constant 0 : index
    %c0_24 = arith.constant 0 : index
    %21 = vector.load %arg3[%c0_23, %c0_24] : memref<32x1xf32, #tpu.memory_space<vmem>>, vector<32x1xf32>
    %22 = vector.broadcast %21 : vector<32x1xf32> to vector<32x128xf32>
    %23 = arith.addf %20, %22 : vector<32x128xf32>
    %c0_25 = arith.constant 0 : index
    %c0_26 = arith.constant 0 : index
    %24 = vector.load %arg4[%c0_25, %c0_26] : memref<32x128xbf16, #tpu.memory_space<vmem>>, vector<32x128xbf16>
    %25 = arith.extf %24 : vector<32x128xbf16> to vector<32x128xf32>
    %26 = arith.addf %23, %25 : vector<32x128xf32>
    %27 = arith.truncf %26 : vector<32x128xf32> to vector<32x128xbf16>
    %c0_27 = arith.constant 0 : index
    %c0_28 = arith.constant 0 : index
    %28 = vector.load %arg5[%c0_27, %c0_28] : memref<32x128xbf16, #tpu.memory_space<vmem>>, vector<32x128xbf16>
    tpu.vector_store %arg5[%c0_27, %c0_28], %27 {strides = array<i32>} : memref<32x128xbf16, #tpu.memory_space<vmem>>, vector<32x128xbf16>,
    return
  }
  func.func @transform_0(%arg0: i32) -> (i32, i32) {
    %c0_i32 = arith.constant 0 : i32
    %c0_i32_0 = arith.constant 0 : i32
    %c0_i32_1 = arith.constant 0 : i32
    return %c0_i32, %c0_i32_0 : i32, i32
  }
  func.func @transform_1(%arg0: i32) -> (i32, i32) {
    %c0_i32 = arith.constant 0 : i32
    %c0_i32_0 = arith.constant 0 : i32
    %c0_i32_1 = arith.constant 0 : i32
    return %c0_i32, %c0_i32_0 : i32, i32
  }
  func.func @transform_2(%arg0: i32) -> (i32, i32) {
    %c0_i32 = arith.constant 0 : i32
    %c0_i32_0 = arith.constant 0 : i32
    %c0_i32_1 = arith.constant 0 : i32
    return %c0_i32, %c0_i32_0 : i32, i32
  }
  func.func @transform_3(%arg0: i32) -> (i32, i32) {
    %c0_i32 = arith.constant 0 : i32
    %c0_i32_0 = arith.constant 0 : i32
    return %c0_i32, %arg0 : i32, i32
  }
  func.func @transform_4(%arg0: i32) -> (i32, i32) {
    %c0_i32 = arith.constant 0 : i32
    %c0_i32_0 = arith.constant 0 : i32
    return %c0_i32, %arg0 : i32, i32
  }
}

module attributes {stable_mosaic.version = 11 : i64} {
  func.func @_conv_kernel(%arg0: i32, %arg1: memref<32x142xbf16, #tpu.memory_space<vmem>>, %arg2: memref<32x288xbf16, #tpu.memory_space<vmem>>, %arg3: memref<32x1xf32, #tpu.memory_space<vmem>>, %arg4: memref<32x128xbf16, #tpu.memory_space<vmem>>, %arg5: memref<32x128xf32, #tpu.memory_space<vmem>>, %arg6: memref<288x128xbf16, #tpu.memory_space<vmem>>) attributes {dimension_semantics = [#tpu.dimension_semantics<parallel>], iteration_bounds = array<i64: 1>, scalar_prefetch = 0 : i64, scratch_operands = 1 : i64, tpu.core_type = #tpu.core_type<tc>, window_params = [{pipeline_mode = #tpu.pipeline_mode<synchronous>, transform_indices = @transform_0, window_bounds = array<i64: 32, 142>}, {pipeline_mode = #tpu.pipeline_mode<synchronous>, transform_indices = @transform_1, window_bounds = array<i64: 32, 288>}, {pipeline_mode = #tpu.pipeline_mode<synchronous>, transform_indices = @transform_2, window_bounds = array<i64: 32, 1>}, {transform_indices = @transform_3, window_bounds = array<i64: 32, 128>}, {transform_indices = @transform_4, window_bounds = array<i64: 32, 128>}]} {
    %c0 = arith.constant 0 : index
    %c0_0 = arith.constant 0 : index
    %0 = vector.load %arg1[%c0, %c0_0] : memref<32x142xbf16, #tpu.memory_space<vmem>>, vector<32x128xbf16>
    %c0_1 = arith.constant 0 : index
    %c0_2 = arith.constant 0 : index
    %1 = vector.load %arg6[%c0_1, %c0_2] : memref<288x128xbf16, #tpu.memory_space<vmem>>, vector<32x128xbf16>
    tpu.vector_store %arg6[%c0_1, %c0_2], %0 {strides = array<i32>} : memref<288x128xbf16, #tpu.memory_space<vmem>>, vector<32x128xbf16>,
    %c0_3 = arith.constant 0 : index
    %c1 = arith.constant 1 : index
    %2 = vector.load %arg1[%c0_3, %c1] : memref<32x142xbf16, #tpu.memory_space<vmem>>, vector<32x128xbf16>
    %c32 = arith.constant 32 : index
    %c0_4 = arith.constant 0 : index
    %3 = vector.load %arg6[%c32, %c0_4] : memref<288x128xbf16, #tpu.memory_space<vmem>>, vector<32x128xbf16>
    tpu.vector_store %arg6[%c32, %c0_4], %2 {strides = array<i32>} : memref<288x128xbf16, #tpu.memory_space<vmem>>, vector<32x128xbf16>,
    %c0_5 = arith.constant 0 : index
    %c2 = arith.constant 2 : index
    %4 = vector.load %arg1[%c0_5, %c2] : memref<32x142xbf16, #tpu.memory_space<vmem>>, vector<32x128xbf16>
    %c64 = arith.constant 64 : index
    %c0_6 = arith.constant 0 : index
    %5 = vector.load %arg6[%c64, %c0_6] : memref<288x128xbf16, #tpu.memory_space<vmem>>, vector<32x128xbf16>
    tpu.vector_store %arg6[%c64, %c0_6], %4 {strides = array<i32>} : memref<288x128xbf16, #tpu.memory_space<vmem>>, vector<32x128xbf16>,
    %c0_7 = arith.constant 0 : index
    %c6 = arith.constant 6 : index
    %6 = vector.load %arg1[%c0_7, %c6] : memref<32x142xbf16, #tpu.memory_space<vmem>>, vector<32x128xbf16>
    %c96 = arith.constant 96 : index
    %c0_8 = arith.constant 0 : index
    %7 = vector.load %arg6[%c96, %c0_8] : memref<288x128xbf16, #tpu.memory_space<vmem>>, vector<32x128xbf16>
    tpu.vector_store %arg6[%c96, %c0_8], %6 {strides = array<i32>} : memref<288x128xbf16, #tpu.memory_space<vmem>>, vector<32x128xbf16>,
    %c0_9 = arith.constant 0 : index
    %c7 = arith.constant 7 : index
    %8 = vector.load %arg1[%c0_9, %c7] : memref<32x142xbf16, #tpu.memory_space<vmem>>, vector<32x128xbf16>
    %c128 = arith.constant 128 : index
    %c0_10 = arith.constant 0 : index
    %9 = vector.load %arg6[%c128, %c0_10] : memref<288x128xbf16, #tpu.memory_space<vmem>>, vector<32x128xbf16>
    tpu.vector_store %arg6[%c128, %c0_10], %8 {strides = array<i32>} : memref<288x128xbf16, #tpu.memory_space<vmem>>, vector<32x128xbf16>,
    %c0_11 = arith.constant 0 : index
    %c8 = arith.constant 8 : index
    %10 = vector.load %arg1[%c0_11, %c8] : memref<32x142xbf16, #tpu.memory_space<vmem>>, vector<32x128xbf16>
    %c160 = arith.constant 160 : index
    %c0_12 = arith.constant 0 : index
    %11 = vector.load %arg6[%c160, %c0_12] : memref<288x128xbf16, #tpu.memory_space<vmem>>, vector<32x128xbf16>
    tpu.vector_store %arg6[%c160, %c0_12], %10 {strides = array<i32>} : memref<288x128xbf16, #tpu.memory_space<vmem>>, vector<32x128xbf16>,
    %c0_13 = arith.constant 0 : index
    %c12 = arith.constant 12 : index
    %12 = vector.load %arg1[%c0_13, %c12] : memref<32x142xbf16, #tpu.memory_space<vmem>>, vector<32x128xbf16>
    %c192 = arith.constant 192 : index
    %c0_14 = arith.constant 0 : index
    %13 = vector.load %arg6[%c192, %c0_14] : memref<288x128xbf16, #tpu.memory_space<vmem>>, vector<32x128xbf16>
    tpu.vector_store %arg6[%c192, %c0_14], %12 {strides = array<i32>} : memref<288x128xbf16, #tpu.memory_space<vmem>>, vector<32x128xbf16>,
    %c0_15 = arith.constant 0 : index
    %c13 = arith.constant 13 : index
    %14 = vector.load %arg1[%c0_15, %c13] : memref<32x142xbf16, #tpu.memory_space<vmem>>, vector<32x128xbf16>
    %c224 = arith.constant 224 : index
    %c0_16 = arith.constant 0 : index
    %15 = vector.load %arg6[%c224, %c0_16] : memref<288x128xbf16, #tpu.memory_space<vmem>>, vector<32x128xbf16>
    tpu.vector_store %arg6[%c224, %c0_16], %14 {strides = array<i32>} : memref<288x128xbf16, #tpu.memory_space<vmem>>, vector<32x128xbf16>,
    %c0_17 = arith.constant 0 : index
    %c14 = arith.constant 14 : index
    %16 = vector.load %arg1[%c0_17, %c14] : memref<32x142xbf16, #tpu.memory_space<vmem>>, vector<32x128xbf16>
    %c256 = arith.constant 256 : index
    %c0_18 = arith.constant 0 : index
    %17 = vector.load %arg6[%c256, %c0_18] : memref<288x128xbf16, #tpu.memory_space<vmem>>, vector<32x128xbf16>
    tpu.vector_store %arg6[%c256, %c0_18], %16 {strides = array<i32>} : memref<288x128xbf16, #tpu.memory_space<vmem>>, vector<32x128xbf16>,
    %c0_19 = arith.constant 0 : index
    %c0_20 = arith.constant 0 : index
    %18 = vector.load %arg2[%c0_19, %c0_20] : memref<32x288xbf16, #tpu.memory_space<vmem>>, vector<32x288xbf16>
    %c0_21 = arith.constant 0 : index
    %c0_22 = arith.constant 0 : index
    %19 = vector.load %arg6[%c0_21, %c0_22] : memref<288x128xbf16, #tpu.memory_space<vmem>>, vector<288x128xbf16>
    %cst = arith.constant dense<0.000000e+00> : vector<32x128xf32>
    %20 = tpu.matmul %18, %19, %cst {dimension_numbers = #tpu.dot_dimension_numbers<[1], [0], [0], [1], [0, 0, 1, 1], [], []>} : vector<32x288xbf16>, vector<288x128xbf16>, vector<32x128xf32> -> vector<32x128xf32>
    %c0_23 = arith.constant 0 : index
    %c0_24 = arith.constant 0 : index
    %21 = vector.load %arg3[%c0_23, %c0_24] : memref<32x1xf32, #tpu.memory_space<vmem>>, vector<32x1xf32>
    %22 = vector.broadcast %21 : vector<32x1xf32> to vector<32x128xf32>
    %23 = arith.addf %20, %22 : vector<32x128xf32>
    %c0_25 = arith.constant 0 : index
    %c0_26 = arith.constant 0 : index
    %24 = vector.load %arg4[%c0_25, %c0_26] : memref<32x128xbf16, #tpu.memory_space<vmem>>, vector<32x128xbf16>
    %25 = arith.extf %24 : vector<32x128xbf16> to vector<32x128xf32>
    %26 = arith.addf %23, %25 : vector<32x128xf32>
    %c0_27 = arith.constant 0 : index
    %c0_28 = arith.constant 0 : index
    %27 = vector.load %arg5[%c0_27, %c0_28] : memref<32x128xf32, #tpu.memory_space<vmem>>, vector<32x128xf32>
    tpu.vector_store %arg5[%c0_27, %c0_28], %26 {strides = array<i32>} : memref<32x128xf32, #tpu.memory_space<vmem>>, vector<32x128xf32>,
    return
  }
  func.func @transform_0(%arg0: i32) -> (i32, i32) {
    %c0_i32 = arith.constant 0 : i32
    %c0_i32_0 = arith.constant 0 : i32
    %c0_i32_1 = arith.constant 0 : i32
    return %c0_i32, %c0_i32_0 : i32, i32
  }
  func.func @transform_1(%arg0: i32) -> (i32, i32) {
    %c0_i32 = arith.constant 0 : i32
    %c0_i32_0 = arith.constant 0 : i32
    %c0_i32_1 = arith.constant 0 : i32
    return %c0_i32, %c0_i32_0 : i32, i32
  }
  func.func @transform_2(%arg0: i32) -> (i32, i32) {
    %c0_i32 = arith.constant 0 : i32
    %c0_i32_0 = arith.constant 0 : i32
    %c0_i32_1 = arith.constant 0 : i32
    return %c0_i32, %c0_i32_0 : i32, i32
  }
  func.func @transform_3(%arg0: i32) -> (i32, i32) {
    %c0_i32 = arith.constant 0 : i32
    %c0_i32_0 = arith.constant 0 : i32
    return %c0_i32, %arg0 : i32, i32
  }
  func.func @transform_4(%arg0: i32) -> (i32, i32) {
    %c0_i32 = arith.constant 0 : i32
    %c0_i32_0 = arith.constant 0 : i32
    return %c0_i32, %arg0 : i32, i32
  }
}

</mosaic_0001>

<llo_original>
// kernel: resnet_encoder_forward.10
$region0: #{resnet_encoder_forward.10}
  #allocation0 [shape = 'u32[]', space=smem, size = 0x4, offset = 0x4, fixed_abs, tag = 'smem constant byte address 0x4 - core index']
  #allocation1 [shape = 'u32[144,128]{1,0:T(1,128)}', space=vmem, size = 0x12000, scoped, tag = 'internal scratch']
  #allocation2 [shape = 'bf16[72,640]{1,0:T(8,128)(2,1)}', space=vmem, size = 0x16800, scoped, tag = 'scratch operand']
  %s0 = inlined_call_operand.vmem [shape: bf16[8,678], index: 0, kind: input, shape index: {}]
  %s1 = inlined_call_operand.vmem [shape: bf16[16,72], index: 1, kind: input, shape index: {}]
  %s2 = inlined_call_operand.vmem [shape: f32[16,1], index: 2, kind: input, shape index: {}]
  %s3 = inlined_call_operand.vmem [shape: bf16[16,640], index: 3, kind: output, shape index: {}]
  %s4 = sld [smem:[#allocation0]]
  $region22: #{resnet_encoder_forward.10} parent=0
    _
  %s6 = ssub.s32 1, %s4
  %s7 = scalar_select 0, %s6, %s4
  // Predicated region
  $region2: #{resnet_encoder_forward.10} parent=0 // pred_check
    _
  $region3: #{resnet_encoder_forward.10} parent=0 // pred_check_branch
    %9 = sbr.rel (0) target = $region5
  $region4: #{resnet_encoder_forward.10} parent=0 // pred_region
    _
  $region5: #{resnet_encoder_forward.10} parent=0 // pred_fallthru
    _
  // Predicated region
  $region6: #{resnet_encoder_forward.10} parent=0 // pred_check
    _
  $region7: #{resnet_encoder_forward.10} parent=0 // pred_check_branch
    %11 = sbr.rel (0) target = $region9
  $region8: #{resnet_encoder_forward.10} parent=0 // pred_region
    _
  $region9: #{resnet_encoder_forward.10} parent=0 // pred_fallthru
    _
  // Predicated region
  $region10: #{resnet_encoder_forward.10} parent=0 // pred_check
    _
  $region11: #{resnet_encoder_forward.10} parent=0 // pred_check_branch
    %13 = sbr.rel (0) target = $region13
  $region12: #{resnet_encoder_forward.10} parent=0 // pred_region
    _
  $region13: #{resnet_encoder_forward.10} parent=0 // pred_fallthru
    _
  %v15 = vld [vmem:[%s0] sm:$0xff]
  %v16 = vld [vmem:[%s0 + $0x8] sm:$0xff]
  %v17 = vld [vmem:[%s0 + $0x10] sm:$0xf]
  %18 = vst [vmem:[#allocation2] sm:$0xff] %v15
  %19 = vst [vmem:[#allocation2 + $0x8] sm:$0xff] %v16
  %20 = vst [vmem:[#allocation2 + $0x10] sm:$0xf] %v17
  %v21 = vld [vmem:[%s0] sm:$0xff]
  %v22 = vld [vmem:[%s0 + $0x8] sm:$0xff]
  %v23 = vld [vmem:[%s0 + $0x10] sm:$0xff]
  %27 = vrot.lane.b32.xlu0 %v21, 127
  %v28 = vpop.permute.xlu0 %27
  %29 = vrot.lane.b32.xlu0 %v22, 127
  %v30 = vpop.permute.xlu0 %29
  %31 = vrot.lane.b32.xlu0 %v23, 127
  %v32 = vpop.permute.xlu0 %31
  %v33 = vrot.slane %v28, 4
  %v34 = vrot.slane %v30, 4
  %v35 = vrot.slane %v32, 4
  %vm36 = vcmask 1043456
  %v37 = vsel %vm36, %v33, %v34
  %vm38 = vcmask 1039360
  %v39 = vsel %vm38, %v28, %v37
  %v40 = vsel %vm36, %v34, %v35
  %v41 = vsel %vm38, %v30, %v40
  %v42 = vsel %vm38, %v32, %v35
  %46 = vst [vmem:[#allocation2 + $0x14] sm:$0xff] %v39
  %47 = vst [vmem:[#allocation2 + $0x1c] sm:$0xff] %v41
  %48 = vst [vmem:[#allocation2 + $0x24] sm:$0xf] %v42
  %v49 = vld [vmem:[%s0] sm:$0xff]
  %v50 = vld [vmem:[%s0 + $0x8] sm:$0xff]
  %v51 = vld [vmem:[%s0 + $0x10] sm:$0xff]
  %55 = vrot.lane.b32.xlu0 %v49, 126
  %v56 = vpop.permute.xlu0 %55
  %57 = vrot.lane.b32.xlu0 %v50, 126
  %v58 = vpop.permute.xlu0 %57
  %59 = vrot.lane.b32.xlu0 %v51, 126
  %v60 = vpop.permute.xlu0 %59
  %v61 = vrot.slane %v56, 4
  %v62 = vrot.slane %v58, 4
  %v63 = vrot.slane %v60, 4
  %v64 = vsel %vm36, %v61, %v62
  %vm65 = vcmask 1031168
  %v66 = vsel %vm65, %v56, %v64
  %v67 = vsel %vm36, %v62, %v63
  %v68 = vsel %vm65, %v58, %v67
  %v69 = vsel %vm65, %v60, %v63
  %73 = vst [vmem:[#allocation2 + $0x28] sm:$0xff] %v66
  %74 = vst [vmem:[#allocation2 + $0x30] sm:$0xff] %v68
  %75 = vst [vmem:[#allocation2 + $0x38] sm:$0xf] %v69
  %v76 = vld [vmem:[%s0] sm:$0xff]
  %v77 = vld [vmem:[%s0 + $0x8] sm:$0xff]
  %v78 = vld [vmem:[%s0 + $0x10] sm:$0xff]
  %82 = vrot.lane.b32.xlu0 %v76, 110
  %v83 = vpop.permute.xlu0 %82
  %84 = vrot.lane.b32.xlu0 %v77, 110
  %v85 = vpop.permute.xlu0 %84
  %86 = vrot.lane.b32.xlu0 %v78, 110
  %v87 = vpop.permute.xlu0 %86
  %v88 = vrot.slane %v83, 4
  %v89 = vrot.slane %v85, 4
  %v90 = vrot.slane %v87, 4
  %v91 = vsel %vm36, %v88, %v89
  %vm92 = vcmask 900096
  %v93 = vsel %vm92, %v83, %v91
  %v94 = vsel %vm36, %v89, %v90
  %v95 = vsel %vm92, %v85, %v94
  %v96 = vsel %vm92, %v87, %v90
  %100 = vst [vmem:[#allocation2 + $0x3c] sm:$0xff] %v93
  %101 = vst [vmem:[#allocation2 + $0x44] sm:$0xff] %v95
  %102 = vst [vmem:[#allocation2 + $0x4c] sm:$0xf] %v96
  %v103 = vld [vmem:[%s0] sm:$0xff]
  %v104 = vld [vmem:[%s0 + $0x8] sm:$0xff]
  %v105 = vld [vmem:[%s0 + $0x10] sm:$0xff]
  %109 = vrot.lane.b32.xlu0 %v103, 109
  %v110 = vpop.permute.xlu0 %109
  %111 = vrot.lane.b32.xlu0 %v104, 109
  %v112 = vpop.permute.xlu0 %111
  %113 = vrot.lane.b32.xlu0 %v105, 109
  %v114 = vpop.permute.xlu0 %113
  %v115 = vrot.slane %v110, 4
  %v116 = vrot.slane %v112, 4
  %v117 = vrot.slane %v114, 4
  %v118 = vsel %vm36, %v115, %v116
  %vm119 = vcmask 891904
  %v120 = vsel %vm119, %v110, %v118
  %v121 = vsel %vm36, %v116, %v117
  %v122 = vsel %vm119, %v112, %v121
  %v123 = vsel %vm119, %v114, %v117
  %127 = vst [vmem:[#allocation2 + $0x50] sm:$0xff] %v120
  %128 = vst [vmem:[#allocation2 + $0x58] sm:$0xff] %v122
  %129 = vst [vmem:[#allocation2 + $0x60] sm:$0xf] %v123
  %v130 = vld [vmem:[%s0] sm:$0xff]
  %v131 = vld [vmem:[%s0 + $0x8] sm:$0xff]
  %v132 = vld [vmem:[%s0 + $0x10] sm:$0xff]
  %136 = vrot.lane.b32.xlu0 %v130, 108
  %v137 = vpop.permute.xlu0 %136
  %138 = vrot.lane.b32.xlu0 %v131, 108
  %v139 = vpop.permute.xlu0 %138
  %140 = vrot.lane.b32.xlu0 %v132, 108
  %v141 = vpop.permute.xlu0 %140
  %v142 = vrot.slane %v137, 4
  %v143 = vrot.slane %v139, 4
  %v144 = vrot.slane %v141, 4
  %v145 = vsel %vm36, %v142, %v143
  %vm146 = vcmask 883712
  %v147 = vsel %vm146, %v137, %v145
  %v148 = vsel %vm36, %v143, %v144
  %v149 = vsel %vm146, %v139, %v148
  %v150 = vsel %vm146, %v141, %v144
  %154 = vst [vmem:[#allocation2 + $0x64] sm:$0xff] %v147
  %155 = vst [vmem:[#allocation2 + $0x6c] sm:$0xff] %v149
  %156 = vst [vmem:[#allocation2 + $0x74] sm:$0xf] %v150
  %v157 = vld [vmem:[%s0] sm:$0xff]
  %v158 = vld [vmem:[%s0 + $0x8] sm:$0xff]
  %v159 = vld [vmem:[%s0 + $0x10] sm:$0xff]
  %163 = vrot.lane.b32.xlu0 %v157, 92
  %v164 = vpop.permute.xlu0 %163
  %165 = vrot.lane.b32.xlu0 %v158, 92
  %v166 = vpop.permute.xlu0 %165
  %167 = vrot.lane.b32.xlu0 %v159, 92
  %v168 = vpop.permute.xlu0 %167
  %v169 = vrot.slane %v164, 4
  %v170 = vrot.slane %v166, 4
  %v171 = vrot.slane %v168, 4
  %v172 = vsel %vm36, %v169, %v170
  %vm173 = vcmask 752640
  %v174 = vsel %vm173, %v164, %v172
  %v175 = vsel %vm36, %v170, %v171
  %v176 = vsel %vm173, %v166, %v175
  %v177 = vsel %vm173, %v168, %v171
  %181 = vst [vmem:[#allocation2 + $0x78] sm:$0xff] %v174
  %182 = vst [vmem:[#allocation2 + $0x80] sm:$0xff] %v176
  %183 = vst [vmem:[#allocation2 + $0x88] sm:$0xf] %v177
  %v184 = vld [vmem:[%s0] sm:$0xff]
  %v185 = vld [vmem:[%s0 + $0x8] sm:$0xff]
  %v186 = vld [vmem:[%s0 + $0x10] sm:$0xff]
  %190 = vrot.lane.b32.xlu0 %v184, 91
  %v191 = vpop.permute.xlu0 %190
  %192 = vrot.lane.b32.xlu0 %v185, 91
  %v193 = vpop.permute.xlu0 %192
  %194 = vrot.lane.b32.xlu0 %v186, 91
  %v195 = vpop.permute.xlu0 %194
  %v196 = vrot.slane %v191, 4
  %v197 = vrot.slane %v193, 4
  %v198 = vrot.slane %v195, 4
  %v199 = vsel %vm36, %v196, %v197
  %vm200 = vcmask 744448
  %v201 = vsel %vm200, %v191, %v199
  %v202 = vsel %vm36, %v197, %v198
  %v203 = vsel %vm200, %v193, %v202
  %v204 = vsel %vm200, %v195, %v198
  %208 = vst [vmem:[#allocation2 + $0x8c] sm:$0xff] %v201
  %209 = vst [vmem:[#allocation2 + $0x94] sm:$0xff] %v203
  %210 = vst [vmem:[#allocation2 + $0x9c] sm:$0xf] %v204
  %v211 = vld [vmem:[%s0] sm:$0xff]
  %v212 = vld [vmem:[%s0 + $0x8] sm:$0xff]
  %v213 = vld [vmem:[%s0 + $0x10] sm:$0xff]
  %217 = vrot.lane.b32.xlu0 %v211, 90
  %v218 = vpop.permute.xlu0 %217
  %219 = vrot.lane.b32.xlu0 %v212, 90
  %v220 = vpop.permute.xlu0 %219
  %221 = vrot.lane.b32.xlu0 %v213, 90
  %v222 = vpop.permute.xlu0 %221
  %v223 = vrot.slane %v218, 4
  %v224 = vrot.slane %v220, 4
  %v225 = vrot.slane %v222, 4
  %v226 = vsel %vm36, %v223, %v224
  %vm227 = vcmask 736256
  %v228 = vsel %vm227, %v218, %v226
  %v229 = vsel %vm36, %v224, %v225
  %v230 = vsel %vm227, %v220, %v229
  %v231 = vsel %vm227, %v222, %v225
  %235 = vst [vmem:[#allocation2 + $0xa0] sm:$0xff] %v228
  %236 = vst [vmem:[#allocation2 + $0xa8] sm:$0xff] %v230
  %237 = vst [vmem:[#allocation2 + $0xb0] sm:$0xf] %v231
  %v238 = vld [vmem:[%s1] sm:$0xf]
  %v239 = vld [vmem:[%s1 + $0x4] sm:$0xf]
  %v240 = vld [vmem:[#allocation2] sm:$0xff]
  %v241 = vld [vmem:[#allocation2 + $0x8] sm:$0xff]
  %v242 = vld [vmem:[#allocation2 + $0x10] sm:$0xf]
  %v243 = vld [vmem:[#allocation2 + $0x14] sm:$0xff]
  %v244 = vld [vmem:[#allocation2 + $0x1c] sm:$0xff]
  %v245 = vld [vmem:[#allocation2 + $0x24] sm:$0xf]
  %v246 = vld [vmem:[#allocation2 + $0x28] sm:$0xff]
  %v247 = vld [vmem:[#allocation2 + $0x30] sm:$0xff]
  %v248 = vld [vmem:[#allocation2 + $0x38] sm:$0xf]
  %v249 = vld [vmem:[#allocation2 + $0x3c] sm:$0xff]
  %v250 = vld [vmem:[#allocation2 + $0x44] sm:$0xff]
  %v251 = vld [vmem:[#allocation2 + $0x4c] sm:$0xf]
  %v252 = vld [vmem:[#allocation2 + $0x50] sm:$0xff]
  %v253 = vld [vmem:[#allocation2 + $0x58] sm:$0xff]
  %v254 = vld [vmem:[#allocation2 + $0x60] sm:$0xf]
  %v255 = vld [vmem:[#allocation2 + $0x64] sm:$0xff]
  %v256 = vld [vmem:[#allocation2 + $0x6c] sm:$0xff]
  %v257 = vld [vmem:[#allocation2 + $0x74] sm:$0xf]
  %v258 = vld [vmem:[#allocation2 + $0x78] sm:$0xff]
  %v259 = vld [vmem:[#allocation2 + $0x80] sm:$0xff]
  %v260 = vld [vmem:[#allocation2 + $0x88] sm:$0xf]
  %v261 = vld [vmem:[#allocation2 + $0x8c] sm:$0xff]
  %v262 = vld [vmem:[#allocation2 + $0x94] sm:$0xff]
  %v263 = vld [vmem:[#allocation2 + $0x9c] sm:$0xf]
  %v264 = vld [vmem:[#allocation2 + $0xa0] sm:$0xff]
  %v265 = vld [vmem:[#allocation2 + $0xa8] sm:$0xff]
  %v266 = vld [vmem:[#allocation2 + $0xb0] sm:$0xf]
  %v267 = vld [vmem:[%s2] sm:$0xff]
  %v268 = vld [vmem:[%s2 + $0x8] sm:$0xff]
  %270 = vset.pattern.permute.xlu0 0
  %271 = vperm.xlu0 %270, %v267
  %v272 = vpop.permute.xlu0 %271
  %275 = vset.pattern.permute.xlu0 0
  %276 = vperm.xlu0 %275, %v268
  %v277 = vpop.permute.xlu0 %276
  %v281 = vunpack.c.l.b16 %v238
  %v282 = vunpack.c.l.b16 %v239
  %v283 = vpack.c.b16 %v282, %v281
  %v311 = vunpack.c.l.b16 %v240
  %v312 = vunpack.c.h.b16 %v240
  %v313 = vunpack.c.l.b16 %v241
  %v314 = vunpack.c.h.b16 %v241
  %v315 = vunpack.c.l.b16 %v242
  %v316 = vunpack.c.l.b16 %v243
  %v317 = vunpack.c.h.b16 %v243
  %v318 = vunpack.c.l.b16 %v244
  %v319 = vunpack.c.h.b16 %v244
  %v320 = vunpack.c.l.b16 %v245
  %v321 = vunpack.c.l.b16 %v246
  %v322 = vunpack.c.h.b16 %v246
  %v323 = vunpack.c.l.b16 %v247
  %v324 = vunpack.c.h.b16 %v247
  %v325 = vunpack.c.l.b16 %v248
  %v326 = vunpack.c.l.b16 %v249
  %v327 = vunpack.c.h.b16 %v249
  %v328 = vunpack.c.l.b16 %v250
  %v329 = vunpack.c.h.b16 %v250
  %v330 = vunpack.c.l.b16 %v251
  %v331 = vunpack.c.l.b16 %v252
  %v332 = vunpack.c.h.b16 %v252
  %v333 = vunpack.c.l.b16 %v253
  %v334 = vunpack.c.h.b16 %v253
  %v335 = vunpack.c.l.b16 %v254
  %v336 = vunpack.c.l.b16 %v255
  %v337 = vunpack.c.h.b16 %v255
  %v338 = vunpack.c.l.b16 %v256
  %v339 = vunpack.c.h.b16 %v256
  %v340 = vunpack.c.l.b16 %v257
  %v341 = vunpack.c.l.b16 %v258
  %v342 = vunpack.c.h.b16 %v258
  %v343 = vunpack.c.l.b16 %v259
  %v344 = vunpack.c.h.b16 %v259
  %v345 = vunpack.c.l.b16 %v260
  %v346 = vunpack.c.l.b16 %v261
  %v347 = vunpack.c.h.b16 %v261
  %v348 = vunpack.c.l.b16 %v262
  %v349 = vunpack.c.h.b16 %v262
  %v350 = vunpack.c.l.b16 %v263
  %v351 = vunpack.c.l.b16 %v264
  %v352 = vunpack.c.h.b16 %v264
  %v353 = vunpack.c.l.b16 %v265
  %v354 = vunpack.c.h.b16 %v265
  %v355 = vunpack.c.l.b16 %v266
  %v356 = vpack.c.b16 %v316, %v311
  %v357 = vpack.c.b16 %v317, %v312
  %v358 = vpack.c.b16 %v318, %v313
  %v359 = vpack.c.b16 %v319, %v314
  %v360 = vpack.c.b16 %v320, %v315
  %v361 = vpack.c.b16 %v326, %v321
  %v362 = vpack.c.b16 %v327, %v322
  %v363 = vpack.c.b16 %v328, %v323
  %v364 = vpack.c.b16 %v329, %v324
  %v365 = vpack.c.b16 %v330, %v325
  %v366 = vpack.c.b16 %v336, %v331
  %v367 = vpack.c.b16 %v337, %v332
  %v368 = vpack.c.b16 %v338, %v333
  %v369 = vpack.c.b16 %v339, %v334
  %v370 = vpack.c.b16 %v340, %v335
  %v371 = vpack.c.b16 %v346, %v341
  %v372 = vpack.c.b16 %v347, %v342
  %v373 = vpack.c.b16 %v348, %v343
  %v374 = vpack.c.b16 %v349, %v344
  %v375 = vpack.c.b16 %v350, %v345
  %v376 = vpack.c.b16 %v351, %v351
  %v377 = vpack.c.b16 %v352, %v352
  %v378 = vpack.c.b16 %v353, %v353
  %v379 = vpack.c.b16 %v354, %v354
  %v380 = vpack.c.b16 %v355, %v355
  %vm401 = vcmask 588800
  %v403 = vsel %vm401, %v283, 0
  %vm405 = vcmask 1043456
  %v407 = vsel %vm405, %v376, 0
  %v410 = vsel %vm405, %v377, 0
  %v413 = vsel %vm405, %v378, 0
  %v416 = vsel %vm405, %v379, 0
  %v419 = vsel %vm405, %v380, 0
  %421 = vmatprep.subr.bf16.mxu0 %v357
  %422 = vmatpush1.bf16.msra.mxu0 %v356
  %423 = vmatprep.subr.bf16.mxu0 %v362
  %424 = vmatpush1.bf16.msra.mxu0 %v361
  %425 = vmatprep.subr.bf16.mxu0 %v367
  %426 = vmatpush1.bf16.msra.mxu0 %v366
  %427 = vmatprep.subr.bf16.mxu0 %v372
  %428 = vmatpush1.bf16.msra.mxu0 %v371
  %429 = vmatprep.subr.bf16.mxu0 %v410
  %430 = vmatpush1.bf16.msra.mxu0 %v407
  %431 = vmatprep.subr.bf16.mxu0 0
  %432 = vmatpush1.bf16.msra.mxu0 0
  %433 = vmatprep.subr.bf16.mxu0 0
  %434 = vmatpush1.bf16.msra.mxu0 0
  %435 = vmatprep.subr.bf16.mxu0 0
  %436 = vmatpush1.bf16.msra.mxu0 0
  %437 = vmatprep.subr.bf16.mxu0 0
  %438 = vmatpush1.bf16.msra.mxu0 0
  %439 = vmatprep.subr.bf16.mxu0 0
  %440 = vmatpush1.bf16.msra.mxu0 0
  %441 = vmatprep.subr.bf16.mxu0 0
  %442 = vmatpush1.bf16.msra.mxu0 0
  %443 = vmatprep.subr.bf16.mxu0 0
  %444 = vmatpush1.bf16.msra.mxu0 0
  %445 = vmatprep.subr.bf16.mxu0 0
  %446 = vmatpush1.bf16.msra.mxu0 0
  %447 = vmatprep.subr.bf16.mxu0 0
  %448 = vmatpush1.bf16.msra.mxu0 0
  %449 = vmatprep.subr.bf16.mxu0 0
  %450 = vmatpush1.bf16.msra.mxu0 0
  %451 = vmatprep.subr.bf16.mxu0 0
  %452 = vmatpush1.bf16.msra.mxu0 0
  %453 = vmatprep.mubr.bf16.mxu0 0
  %454 = vmatmul.mubr.bf16.gmra.mrb[0].mxu0 %v403
  %v455 = vpop.f32.mrb[0].mxu0
  %v456 = vadd.f32 %v272, %v455
  %v457 = vpop.f32.mrb[0].mxu0
  %v458 = vadd.f32 %v272, %v457
  %v459 = vpop.f32.mrb[0].mxu0
  %v460 = vadd.f32 %v277, %v459
  %v461 = vpop.f32.mrb[0].mxu0
  %v462 = vadd.f32 %v277, %v461
  %463 = vdwg.mxu0
  %464 = vmatprep.subr.bf16.mxu0 %v359
  %465 = vmatpush1.bf16.msra.mxu0 %v358
  %466 = vmatprep.subr.bf16.mxu0 %v364
  %467 = vmatpush1.bf16.msra.mxu0 %v363
  %468 = vmatprep.subr.bf16.mxu0 %v369
  %469 = vmatpush1.bf16.msra.mxu0 %v368
  %470 = vmatprep.subr.bf16.mxu0 %v374
  %471 = vmatpush1.bf16.msra.mxu0 %v373
  %472 = vmatprep.subr.bf16.mxu0 %v416
  %473 = vmatpush1.bf16.msra.mxu0 %v413
  %474 = vmatprep.subr.bf16.mxu0 0
  %475 = vmatpush1.bf16.msra.mxu0 0
  %476 = vmatprep.subr.bf16.mxu0 0
  %477 = vmatpush1.bf16.msra.mxu0 0
  %478 = vmatprep.subr.bf16.mxu0 0
  %479 = vmatpush1.bf16.msra.mxu0 0
  %480 = vmatprep.subr.bf16.mxu0 0
  %481 = vmatpush1.bf16.msra.mxu0 0
  %482 = vmatprep.subr.bf16.mxu0 0
  %483 = vmatpush1.bf16.msra.mxu0 0
  %484 = vmatprep.subr.bf16.mxu0 0
  %485 = vmatpush1.bf16.msra.mxu0 0
  %486 = vmatprep.subr.bf16.mxu0 0
  %487 = vmatpush1.bf16.msra.mxu0 0
  %488 = vmatprep.subr.bf16.mxu0 0
  %489 = vmatpush1.bf16.msra.mxu0 0
  %490 = vmatprep.subr.bf16.mxu0 0
  %491 = vmatpush1.bf16.msra.mxu0 0
  %492 = vmatprep.subr.bf16.mxu0 0
  %493 = vmatpush1.bf16.msra.mxu0 0
  %494 = vmatprep.subr.bf16.mxu0 0
  %495 = vmatpush1.bf16.msra.mxu0 0
  %496 = vmatprep.mubr.bf16.mxu0 0
  %497 = vmatmul.mubr.bf16.gmra.mrb[0].mxu0 %v403
  %v498 = vpop.f32.mrb[0].mxu0
  %v499 = vadd.f32 %v272, %v498
  %v500 = vpop.f32.mrb[0].mxu0
  %v501 = vadd.f32 %v272, %v500
  %v502 = vpop.f32.mrb[0].mxu0
  %v503 = vadd.f32 %v277, %v502
  %v504 = vpop.f32.mrb[0].mxu0
  %v505 = vadd.f32 %v277, %v504
  %506 = vdwg.mxu0
  %507 = vmatprep.subr.bf16.mxu0 0
  %508 = vmatpush1.bf16.msra.mxu0 %v360
  %509 = vmatprep.subr.bf16.mxu0 0
  %510 = vmatpush1.bf16.msra.mxu0 %v365
  %511 = vmatprep.subr.bf16.mxu0 0
  %512 = vmatpush1.bf16.msra.mxu0 %v370
  %513 = vmatprep.subr.bf16.mxu0 0
  %514 = vmatpush1.bf16.msra.mxu0 %v375
  %515 = vmatprep.subr.bf16.mxu0 0
  %516 = vmatpush1.bf16.msra.mxu0 %v419
  %517 = vmatprep.subr.bf16.mxu0 0
  %518 = vmatpush1.bf16.msra.mxu0 0
  %519 = vmatprep.subr.bf16.mxu0 0
  %520 = vmatpush1.bf16.msra.mxu0 0
  %521 = vmatprep.subr.bf16.mxu0 0
  %522 = vmatpush1.bf16.msra.mxu0 0
  %523 = vmatprep.subr.bf16.mxu0 0
  %524 = vmatpush1.bf16.msra.mxu0 0
  %525 = vmatprep.subr.bf16.mxu0 0
  %526 = vmatpush1.bf16.msra.mxu0 0
  %527 = vmatprep.subr.bf16.mxu0 0
  %528 = vmatpush1.bf16.msra.mxu0 0
  %529 = vmatprep.subr.bf16.mxu0 0
  %530 = vmatpush1.bf16.msra.mxu0 0
  %531 = vmatprep.subr.bf16.mxu0 0
  %532 = vmatpush1.bf16.msra.mxu0 0
  %533 = vmatprep.subr.bf16.mxu0 0
  %534 = vmatpush1.bf16.msra.mxu0 0
  %535 = vmatprep.subr.bf16.mxu0 0
  %536 = vmatpush1.bf16.msra.mxu0 0
  %537 = vmatprep.subr.bf16.mxu0 0
  %538 = vmatpush1.bf16.msra.mxu0 0
  %539 = vmatprep.mubr.bf16.mxu0 0
  %540 = vmatmul.mubr.bf16.gmra.mrb[0].mxu0 %v403
  %v541 = vpop.f32.mrb[0].mxu0
  %v542 = vadd.f32 %v272, %v541
  %v543 = vpop.f32.mrb[0].mxu0
  %v544 = vpop.f32.mrb[0].mxu0
  %v545 = vadd.f32 %v277, %v544
  %v546 = vpop.f32.mrb[0].mxu0
  %547 = vdwg.mxu0
  %v548 = vmax.f32 %v456, 0.0
  %v549 = vmax.f32 %v458, 0.0
  %v550 = vmax.f32 %v499, 0.0
  %v551 = vmax.f32 %v501, 0.0
  %v552 = vmax.f32 %v542, 0.0
  %v553 = vmax.f32 %v460, 0.0
  %v554 = vmax.f32 %v462, 0.0
  %v555 = vmax.f32 %v503, 0.0
  %v556 = vmax.f32 %v505, 0.0
  %v557 = vmax.f32 %v545, 0.0
  %v558 = vpack.c.bf16 %v553, %v548
  %v559 = vpack.c.bf16 %v554, %v549
  %v560 = vpack.c.bf16 %v555, %v550
  %v561 = vpack.c.bf16 %v556, %v551
  %v562 = vpack.c.bf16 %v557, %v552
  %v568 = vunpack.c.l.b16 %v558
  %v569 = vunpack.c.l.b16 %v559
  %v570 = vunpack.c.l.b16 %v560
  %v571 = vunpack.c.l.b16 %v561
  %v572 = vunpack.c.l.b16 %v562
  %v573 = vunpack.c.h.b16 %v558
  %v574 = vunpack.c.h.b16 %v559
  %v575 = vunpack.c.h.b16 %v560
  %v576 = vunpack.c.h.b16 %v561
  %v577 = vunpack.c.h.b16 %v562
  %v578 = vpack.c.b16 %v569, %v568
  %v579 = vpack.c.b16 %v571, %v570
  %v580 = vpack.c.b16 %v572, %v572
  %v581 = vpack.c.b16 %v574, %v573
  %v582 = vpack.c.b16 %v576, %v575
  %v583 = vpack.c.b16 %v577, %v577
  %590 = vst [vmem:[%s3] sm:$0xff] %v578
  %591 = vst [vmem:[%s3 + $0x8] sm:$0xff] %v579
  %592 = vst [vmem:[%s3 + $0x10] sm:$0xf] %v580
  %593 = vst [vmem:[%s3 + $0x14] sm:$0xff] %v581
  %594 = vst [vmem:[%s3 + $0x1c] sm:$0xff] %v582
  %595 = vst [vmem:[%s3 + $0x24] sm:$0xf] %v583
  // Predicated region
  $region14: #{resnet_encoder_forward.10} parent=0 // pred_check
    _
  $region15: #{resnet_encoder_forward.10} parent=0 // pred_check_branch
    %597 = sbr.rel (0) target = $region17
  $region16: #{resnet_encoder_forward.10} parent=0 // pred_region
    _
  $region17: #{resnet_encoder_forward.10} parent=0 // pred_fallthru
    _
  // Predicated region
  $region18: #{resnet_encoder_forward.10} parent=0 // pred_check
    _
  $region19: #{resnet_encoder_forward.10} parent=0 // pred_check_branch
    %599 = sbr.rel (0) target = $region21
  $region20: #{resnet_encoder_forward.10} parent=0 // pred_region
    _
  $region21: #{resnet_encoder_forward.10} parent=0 // pred_fallthru
    _

// kernel: resnet_encoder_forward.9
$region0: #{resnet_encoder_forward.9}
  #allocation0 [shape = 'u32[]', space=smem, size = 0x4, offset = 0x4, fixed_abs, tag = 'smem constant byte address 0x4 - core index']
  #allocation1 [shape = 'u32[144,128]{1,0:T(1,128)}', space=vmem, size = 0x12000, scoped, tag = 'internal scratch']
  #allocation2 [shape = 'bf16[392,896]{1,0:T(8,128)(2,1)}', space=vmem, size = 0xab800, scoped, tag = 'scratch operand']
  %s0 = inlined_call_operand.vmem [shape: bf16[8,1034], index: 0, kind: input, shape index: {}]
  %s1 = inlined_call_operand.vmem [shape: bf16[8,392], index: 1, kind: input, shape index: {}]
  %s2 = inlined_call_operand.vmem [shape: f32[8,1], index: 2, kind: input, shape index: {}]
  %s3 = inlined_call_operand.vmem [shape: bf16[8,896], index: 3, kind: output, shape index: {}]
  %s4 = sld [smem:[#allocation0]]
  $region22: #{resnet_encoder_forward.9} parent=0
    _
  %s6 = ssub.s32 1, %s4
  %s7 = scalar_select 0, %s6, %s4
  // Predicated region
  $region2: #{resnet_encoder_forward.9} parent=0 // pred_check
    _
  $region3: #{resnet_encoder_forward.9} parent=0 // pred_check_branch
    %9 = sbr.rel (0) target = $region5
  $region4: #{resnet_encoder_forward.9} parent=0 // pred_region
    _
  $region5: #{resnet_encoder_forward.9} parent=0 // pred_fallthru
    _
  // Predicated region
  $region6: #{resnet_encoder_forward.9} parent=0 // pred_check
    _
  $region7: #{resnet_encoder_forward.9} parent=0 // pred_check_branch
    %11 = sbr.rel (0) target = $region9
  $region8: #{resnet_encoder_forward.9} parent=0 // pred_region
    _
  $region9: #{resnet_encoder_forward.9} parent=0 // pred_fallthru
    _
  // Predicated region
  $region10: #{resnet_encoder_forward.9} parent=0 // pred_check
    _
  $region11: #{resnet_encoder_forward.9} parent=0 // pred_check_branch
    %13 = sbr.rel (0) target = $region13
  $region12: #{resnet_encoder_forward.9} parent=0 // pred_region
    _
  $region13: #{resnet_encoder_forward.9} parent=0 // pred_fallthru
    _
  %v15 = vld [vmem:[%s0] sm:$0xff]
  %v16 = vld [vmem:[%s0 + $0x8] sm:$0xff]
  %v17 = vld [vmem:[%s0 + $0x10] sm:$0xff]
  %v18 = vld [vmem:[%s0 + $0x18] sm:$0xf]
  %19 = vst [vmem:[#allocation2] sm:$0xff] %v15
  %20 = vst [vmem:[#allocation2 + $0x8] sm:$0xff] %v16
  %21 = vst [vmem:[#allocation2 + $0x10] sm:$0xff] %v17
  %22 = vst [vmem:[#allocation2 + $0x18] sm:$0xf] %v18
  %v23 = vld [vmem:[%s0] sm:$0xff]
  %v24 = vld [vmem:[%s0 + $0x8] sm:$0xff]
  %v25 = vld [vmem:[%s0 + $0x10] sm:$0xff]
  %v26 = vld [vmem:[%s0 + $0x18] sm:$0xff]
  %31 = vrot.lane.b32.xlu0 %v23, 127
  %v32 = vpop.permute.xlu0 %31
  %33 = vrot.lane.b32.xlu0 %v24, 127
  %v34 = vpop.permute.xlu0 %33
  %35 = vrot.lane.b32.xlu0 %v25, 127
  %v36 = vpop.permute.xlu0 %35
  %37 = vrot.lane.b32.xlu0 %v26, 127
  %v38 = vpop.permute.xlu0 %37
  %v39 = vrot.slane %v32, 4
  %v40 = vrot.slane %v34, 4
  %v41 = vrot.slane %v36, 4
  %v42 = vrot.slane %v38, 4
  %vm43 = vcmask 1043456
  %v44 = vsel %vm43, %v39, %v40
  %vm45 = vcmask 1039360
  %v46 = vsel %vm45, %v32, %v44
  %v47 = vsel %vm43, %v40, %v41
  %v48 = vsel %vm45, %v34, %v47
  %v49 = vsel %vm43, %v41, %v42
  %v50 = vsel %vm45, %v36, %v49
  %v51 = vsel %vm45, %v38, %v42
  %56 = vst [vmem:[#allocation2 + $0x1c] sm:$0xff] %v46
  %57 = vst [vmem:[#allocation2 + $0x24] sm:$0xff] %v48
  %58 = vst [vmem:[#allocation2 + $0x2c] sm:$0xff] %v50
  %59 = vst [vmem:[#allocation2 + $0x34] sm:$0xf] %v51
  %v60 = vld [vmem:[%s0] sm:$0xff]
  %v61 = vld [vmem:[%s0 + $0x8] sm:$0xff]
  %v62 = vld [vmem:[%s0 + $0x10] sm:$0xff]
  %v63 = vld [vmem:[%s0 + $0x18] sm:$0xff]
  %68 = vrot.lane.b32.xlu0 %v60, 126
  %v69 = vpop.permute.xlu0 %68
  %70 = vrot.lane.b32.xlu0 %v61, 126
  %v71 = vpop.permute.xlu0 %70
  %72 = vrot.lane.b32.xlu0 %v62, 126
  %v73 = vpop.permute.xlu0 %72
  %74 = vrot.lane.b32.xlu0 %v63, 126
  %v75 = vpop.permute.xlu0 %74
  %v76 = vrot.slane %v69, 4
  %v77 = vrot.slane %v71, 4
  %v78 = vrot.slane %v73, 4
  %v79 = vrot.slane %v75, 4
  %v80 = vsel %vm43, %v76, %v77
  %vm81 = vcmask 1031168
  %v82 = vsel %vm81, %v69, %v80
  %v83 = vsel %vm43, %v77, %v78
  %v84 = vsel %vm81, %v71, %v83
  %v85 = vsel %vm43, %v78, %v79
  %v86 = vsel %vm81, %v73, %v85
  %v87 = vsel %vm81, %v75, %v79
  %92 = vst [vmem:[#allocation2 + $0x38] sm:$0xff] %v82
  %93 = vst [vmem:[#allocation2 + $0x40] sm:$0xff] %v84
  %94 = vst [vmem:[#allocation2 + $0x48] sm:$0xff] %v86
  %95 = vst [vmem:[#allocation2 + $0x50] sm:$0xf] %v87
  %v96 = vld [vmem:[%s0] sm:$0xff]
  %v97 = vld [vmem:[%s0 + $0x8] sm:$0xff]
  %v98 = vld [vmem:[%s0 + $0x10] sm:$0xff]
  %v99 = vld [vmem:[%s0 + $0x18] sm:$0xff]
  %104 = vrot.lane.b32.xlu0 %v96, 125
  %v105 = vpop.permute.xlu0 %104
  %106 = vrot.lane.b32.xlu0 %v97, 125
  %v107 = vpop.permute.xlu0 %106
  %108 = vrot.lane.b32.xlu0 %v98, 125
  %v109 = vpop.permute.xlu0 %108
  %110 = vrot.lane.b32.xlu0 %v99, 125
  %v111 = vpop.permute.xlu0 %110
  %v112 = vrot.slane %v105, 4
  %v113 = vrot.slane %v107, 4
  %v114 = vrot.slane %v109, 4
  %v115 = vrot.slane %v111, 4
  %v116 = vsel %vm43, %v112, %v113
  %vm117 = vcmask 1022976
  %v118 = vsel %vm117, %v105, %v116
  %v119 = vsel %vm43, %v113, %v114
  %v120 = vsel %vm117, %v107, %v119
  %v121 = vsel %vm43, %v114, %v115
  %v122 = vsel %vm117, %v109, %v121
  %v123 = vsel %vm117, %v111, %v115
  %128 = vst [vmem:[#allocation2 + $0x54] sm:$0xff] %v118
  %129 = vst [vmem:[#allocation2 + $0x5c] sm:$0xff] %v120
  %130 = vst [vmem:[#allocation2 + $0x64] sm:$0xff] %v122
  %131 = vst [vmem:[#allocation2 + $0x6c] sm:$0xf] %v123
  %v132 = vld [vmem:[%s0] sm:$0xff]
  %v133 = vld [vmem:[%s0 + $0x8] sm:$0xff]
  %v134 = vld [vmem:[%s0 + $0x10] sm:$0xff]
  %v135 = vld [vmem:[%s0 + $0x18] sm:$0xff]
  %140 = vrot.lane.b32.xlu0 %v132, 124
  %v141 = vpop.permute.xlu0 %140
  %142 = vrot.lane.b32.xlu0 %v133, 124
  %v143 = vpop.permute.xlu0 %142
  %144 = vrot.lane.b32.xlu0 %v134, 124
  %v145 = vpop.permute.xlu0 %144
  %146 = vrot.lane.b32.xlu0 %v135, 124
  %v147 = vpop.permute.xlu0 %146
  %v148 = vrot.slane %v141, 4
  %v149 = vrot.slane %v143, 4
  %v150 = vrot.slane %v145, 4
  %v151 = vrot.slane %v147, 4
  %v152 = vsel %vm43, %v148, %v149
  %vm153 = vcmask 1014784
  %v154 = vsel %vm153, %v141, %v152
  %v155 = vsel %vm43, %v149, %v150
  %v156 = vsel %vm153, %v143, %v155
  %v157 = vsel %vm43, %v150, %v151
  %v158 = vsel %vm153, %v145, %v157
  %v159 = vsel %vm153, %v147, %v151
  %164 = vst [vmem:[#allocation2 + $0x70] sm:$0xff] %v154
  %165 = vst [vmem:[#allocation2 + $0x78] sm:$0xff] %v156
  %166 = vst [vmem:[#allocation2 + $0x80] sm:$0xff] %v158
  %167 = vst [vmem:[#allocation2 + $0x88] sm:$0xf] %v159
  %v168 = vld [vmem:[%s0] sm:$0xff]
  %v169 = vld [vmem:[%s0 + $0x8] sm:$0xff]
  %v170 = vld [vmem:[%s0 + $0x10] sm:$0xff]
  %v171 = vld [vmem:[%s0 + $0x18] sm:$0xff]
  %176 = vrot.lane.b32.xlu0 %v168, 123
  %v177 = vpop.permute.xlu0 %176
  %178 = vrot.lane.b32.xlu0 %v169, 123
  %v179 = vpop.permute.xlu0 %178
  %180 = vrot.lane.b32.xlu0 %v170, 123
  %v181 = vpop.permute.xlu0 %180
  %182 = vrot.lane.b32.xlu0 %v171, 123
  %v183 = vpop.permute.xlu0 %182
  %v184 = vrot.slane %v177, 4
  %v185 = vrot.slane %v179, 4
  %v186 = vrot.slane %v181, 4
  %v187 = vrot.slane %v183, 4
  %v188 = vsel %vm43, %v184, %v185
  %vm189 = vcmask 1006592
  %v190 = vsel %vm189, %v177, %v188
  %v191 = vsel %vm43, %v185, %v186
  %v192 = vsel %vm189, %v179, %v191
  %v193 = vsel %vm43, %v186, %v187
  %v194 = vsel %vm189, %v181, %v193
  %v195 = vsel %vm189, %v183, %v187
  %200 = vst [vmem:[#allocation2 + $0x8c] sm:$0xff] %v190
  %201 = vst [vmem:[#allocation2 + $0x94] sm:$0xff] %v192
  %202 = vst [vmem:[#allocation2 + $0x9c] sm:$0xff] %v194
  %203 = vst [vmem:[#allocation2 + $0xa4] sm:$0xf] %v195
  %v204 = vld [vmem:[%s0] sm:$0xff]
  %v205 = vld [vmem:[%s0 + $0x8] sm:$0xff]
  %v206 = vld [vmem:[%s0 + $0x10] sm:$0xff]
  %v207 = vld [vmem:[%s0 + $0x18] sm:$0xff]
  %212 = vrot.lane.b32.xlu0 %v204, 122
  %v213 = vpop.permute.xlu0 %212
  %214 = vrot.lane.b32.xlu0 %v205, 122
  %v215 = vpop.permute.xlu0 %214
  %216 = vrot.lane.b32.xlu0 %v206, 122
  %v217 = vpop.permute.xlu0 %216
  %218 = vrot.lane.b32.xlu0 %v207, 122
  %v219 = vpop.permute.xlu0 %218
  %v220 = vrot.slane %v213, 4
  %v221 = vrot.slane %v215, 4
  %v222 = vrot.slane %v217, 4
  %v223 = vrot.slane %v219, 4
  %v224 = vsel %vm43, %v220, %v221
  %vm225 = vcmask 998400
  %v226 = vsel %vm225, %v213, %v224
  %v227 = vsel %vm43, %v221, %v222
  %v228 = vsel %vm225, %v215, %v227
  %v229 = vsel %vm43, %v222, %v223
  %v230 = vsel %vm225, %v217, %v229
  %v231 = vsel %vm225, %v219, %v223
  %236 = vst [vmem:[#allocation2 + $0xa8] sm:$0xff] %v226
  %237 = vst [vmem:[#allocation2 + $0xb0] sm:$0xff] %v228
  %238 = vst [vmem:[#allocation2 + $0xb8] sm:$0xff] %v230
  %239 = vst [vmem:[#allocation2 + $0xc0] sm:$0xf] %v231
  %v240 = vld [vmem:[%s0] sm:$0xff]
  %v241 = vld [vmem:[%s0 + $0x8] sm:$0xff]
  %v242 = vld [vmem:[%s0 + $0x10] sm:$0xff]
  %v243 = vld [vmem:[%s0 + $0x18] sm:$0xff]
  %248 = vrot.lane.b32.xlu0 %v240, 106
  %v249 = vpop.permute.xlu0 %248
  %250 = vrot.lane.b32.xlu0 %v241, 106
  %v251 = vpop.permute.xlu0 %250
  %252 = vrot.lane.b32.xlu0 %v242, 106
  %v253 = vpop.permute.xlu0 %252
  %254 = vrot.lane.b32.xlu0 %v243, 106
  %v255 = vpop.permute.xlu0 %254
  %v256 = vrot.slane %v249, 4
  %v257 = vrot.slane %v251, 4
  %v258 = vrot.slane %v253, 4
  %v259 = vrot.slane %v255, 4
  %v260 = vsel %vm43, %v256, %v257
  %vm261 = vcmask 867328
  %v262 = vsel %vm261, %v249, %v260
  %v263 = vsel %vm43, %v257, %v258
  %v264 = vsel %vm261, %v251, %v263
  %v265 = vsel %vm43, %v258, %v259
  %v266 = vsel %vm261, %v253, %v265
  %v267 = vsel %vm261, %v255, %v259
  %272 = vst [vmem:[#allocation2 + $0xc4] sm:$0xff] %v262
  %273 = vst [vmem:[#allocation2 + $0xcc] sm:$0xff] %v264
  %274 = vst [vmem:[#allocation2 + $0xd4] sm:$0xff] %v266
  %275 = vst [vmem:[#allocation2 + $0xdc] sm:$0xf] %v267
  %v276 = vld [vmem:[%s0] sm:$0xff]
  %v277 = vld [vmem:[%s0 + $0x8] sm:$0xff]
  %v278 = vld [vmem:[%s0 + $0x10] sm:$0xff]
  %v279 = vld [vmem:[%s0 + $0x18] sm:$0xff]
  %284 = vrot.lane.b32.xlu0 %v276, 105
  %v285 = vpop.permute.xlu0 %284
  %286 = vrot.lane.b32.xlu0 %v277, 105
  %v287 = vpop.permute.xlu0 %286
  %288 = vrot.lane.b32.xlu0 %v278, 105
  %v289 = vpop.permute.xlu0 %288
  %290 = vrot.lane.b32.xlu0 %v279, 105
  %v291 = vpop.permute.xlu0 %290
  %v292 = vrot.slane %v285, 4
  %v293 = vrot.slane %v287, 4
  %v294 = vrot.slane %v289, 4
  %v295 = vrot.slane %v291, 4
  %v296 = vsel %vm43, %v292, %v293
  %vm297 = vcmask 859136
  %v298 = vsel %vm297, %v285, %v296
  %v299 = vsel %vm43, %v293, %v294
  %v300 = vsel %vm297, %v287, %v299
  %v301 = vsel %vm43, %v294, %v295
  %v302 = vsel %vm297, %v289, %v301
  %v303 = vsel %vm297, %v291, %v295
  %308 = vst [vmem:[#allocation2 + $0xe0] sm:$0xff] %v298
  %309 = vst [vmem:[#allocation2 + $0xe8] sm:$0xff] %v300
  %310 = vst [vmem:[#allocation2 + $0xf0] sm:$0xff] %v302
  %311 = vst [vmem:[#allocation2 + $0xf8] sm:$0xf] %v303
  %v312 = vld [vmem:[%s0] sm:$0xff]
  %v313 = vld [vmem:[%s0 + $0x8] sm:$0xff]
  %v314 = vld [vmem:[%s0 + $0x10] sm:$0xff]
  %v315 = vld [vmem:[%s0 + $0x18] sm:$0xff]
  %320 = vrot.lane.b32.xlu0 %v312, 104
  %v321 = vpop.permute.xlu0 %320
  %322 = vrot.lane.b32.xlu0 %v313, 104
  %v323 = vpop.permute.xlu0 %322
  %324 = vrot.lane.b32.xlu0 %v314, 104
  %v325 = vpop.permute.xlu0 %324
  %326 = vrot.lane.b32.xlu0 %v315, 104
  %v327 = vpop.permute.xlu0 %326
  %v328 = vrot.slane %v321, 4
  %v329 = vrot.slane %v323, 4
  %v330 = vrot.slane %v325, 4
  %v331 = vrot.slane %v327, 4
  %v332 = vsel %vm43, %v328, %v329
  %vm333 = vcmask 850944
  %v334 = vsel %vm333, %v321, %v332
  %v335 = vsel %vm43, %v329, %v330
  %v336 = vsel %vm333, %v323, %v335
  %v337 = vsel %vm43, %v330, %v331
  %v338 = vsel %vm333, %v325, %v337
  %v339 = vsel %vm333, %v327, %v331
  %344 = vst [vmem:[#allocation2 + $0xfc] sm:$0xff] %v334
  %345 = vst [vmem:[#allocation2 + $0x104] sm:$0xff] %v336
  %346 = vst [vmem:[#allocation2 + $0x10c] sm:$0xff] %v338
  %347 = vst [vmem:[#allocation2 + $0x114] sm:$0xf] %v339
  %v348 = vld [vmem:[%s0] sm:$0xff]
  %v349 = vld [vmem:[%s0 + $0x8] sm:$0xff]
  %v350 = vld [vmem:[%s0 + $0x10] sm:$0xff]
  %v351 = vld [vmem:[%s0 + $0x18] sm:$0xff]
  %356 = vrot.lane.b32.xlu0 %v348, 103
  %v357 = vpop.permute.xlu0 %356
  %358 = vrot.lane.b32.xlu0 %v349, 103
  %v359 = vpop.permute.xlu0 %358
  %360 = vrot.lane.b32.xlu0 %v350, 103
  %v361 = vpop.permute.xlu0 %360
  %362 = vrot.lane.b32.xlu0 %v351, 103
  %v363 = vpop.permute.xlu0 %362
  %v364 = vrot.slane %v357, 4
  %v365 = vrot.slane %v359, 4
  %v366 = vrot.slane %v361, 4
  %v367 = vrot.slane %v363, 4
  %v368 = vsel %vm43, %v364, %v365
  %vm369 = vcmask 842752
  %v370 = vsel %vm369, %v357, %v368
  %v371 = vsel %vm43, %v365, %v366
  %v372 = vsel %vm369, %v359, %v371
  %v373 = vsel %vm43, %v366, %v367
  %v374 = vsel %vm369, %v361, %v373
  %v375 = vsel %vm369, %v363, %v367
  %380 = vst [vmem:[#allocation2 + $0x118] sm:$0xff] %v370
  %381 = vst [vmem:[#allocation2 + $0x120] sm:$0xff] %v372
  %382 = vst [vmem:[#allocation2 + $0x128] sm:$0xff] %v374
  %383 = vst [vmem:[#allocation2 + $0x130] sm:$0xf] %v375
  %v384 = vld [vmem:[%s0] sm:$0xff]
  %v385 = vld [vmem:[%s0 + $0x8] sm:$0xff]
  %v386 = vld [vmem:[%s0 + $0x10] sm:$0xff]
  %v387 = vld [vmem:[%s0 + $0x18] sm:$0xff]
  %392 = vrot.lane.b32.xlu0 %v384, 102
  %v393 = vpop.permute.xlu0 %392
  %394 = vrot.lane.b32.xlu0 %v385, 102
  %v395 = vpop.permute.xlu0 %394
  %396 = vrot.lane.b32.xlu0 %v386, 102
  %v397 = vpop.permute.xlu0 %396
  %398 = vrot.lane.b32.xlu0 %v387, 102
  %v399 = vpop.permute.xlu0 %398
  %v400 = vrot.slane %v393, 4
  %v401 = vrot.slane %v395, 4
  %v402 = vrot.slane %v397, 4
  %v403 = vrot.slane %v399, 4
  %v404 = vsel %vm43, %v400, %v401
  %vm405 = vcmask 834560
  %v406 = vsel %vm405, %v393, %v404
  %v407 = vsel %vm43, %v401, %v402
  %v408 = vsel %vm405, %v395, %v407
  %v409 = vsel %vm43, %v402, %v403
  %v410 = vsel %vm405, %v397, %v409
  %v411 = vsel %vm405, %v399, %v403
  %416 = vst [vmem:[#allocation2 + $0x134] sm:$0xff] %v406
  %417 = vst [vmem:[#allocation2 + $0x13c] sm:$0xff] %v408
  %418 = vst [vmem:[#allocation2 + $0x144] sm:$0xff] %v410
  %419 = vst [vmem:[#allocation2 + $0x14c] sm:$0xf] %v411
  %v420 = vld [vmem:[%s0] sm:$0xff]
  %v421 = vld [vmem:[%s0 + $0x8] sm:$0xff]
  %v422 = vld [vmem:[%s0 + $0x10] sm:$0xff]
  %v423 = vld [vmem:[%s0 + $0x18] sm:$0xff]
  %428 = vrot.lane.b32.xlu0 %v420, 101
  %v429 = vpop.permute.xlu0 %428
  %430 = vrot.lane.b32.xlu0 %v421, 101
  %v431 = vpop.permute.xlu0 %430
  %432 = vrot.lane.b32.xlu0 %v422, 101
  %v433 = vpop.permute.xlu0 %432
  %434 = vrot.lane.b32.xlu0 %v423, 101
  %v435 = vpop.permute.xlu0 %434
  %v436 = vrot.slane %v429, 4
  %v437 = vrot.slane %v431, 4
  %v438 = vrot.slane %v433, 4
  %v439 = vrot.slane %v435, 4
  %v440 = vsel %vm43, %v436, %v437
  %vm441 = vcmask 826368
  %v442 = vsel %vm441, %v429, %v440
  %v443 = vsel %vm43, %v437, %v438
  %v444 = vsel %vm441, %v431, %v443
  %v445 = vsel %vm43, %v438, %v439
  %v446 = vsel %vm441, %v433, %v445
  %v447 = vsel %vm441, %v435, %v439
  %452 = vst [vmem:[#allocation2 + $0x150] sm:$0xff] %v442
  %453 = vst [vmem:[#allocation2 + $0x158] sm:$0xff] %v444
  %454 = vst [vmem:[#allocation2 + $0x160] sm:$0xff] %v446
  %455 = vst [vmem:[#allocation2 + $0x168] sm:$0xf] %v447
  %v456 = vld [vmem:[%s0] sm:$0xff]
  %v457 = vld [vmem:[%s0 + $0x8] sm:$0xff]
  %v458 = vld [vmem:[%s0 + $0x10] sm:$0xff]
  %v459 = vld [vmem:[%s0 + $0x18] sm:$0xff]
  %464 = vrot.lane.b32.xlu0 %v456, 100
  %v465 = vpop.permute.xlu0 %464
  %466 = vrot.lane.b32.xlu0 %v457, 100
  %v467 = vpop.permute.xlu0 %466
  %468 = vrot.lane.b32.xlu0 %v458, 100
  %v469 = vpop.permute.xlu0 %468
  %470 = vrot.lane.b32.xlu0 %v459, 100
  %v471 = vpop.permute.xlu0 %470
  %v472 = vrot.slane %v465, 4
  %v473 = vrot.slane %v467, 4
  %v474 = vrot.slane %v469, 4
  %v475 = vrot.slane %v471, 4
  %v476 = vsel %vm43, %v472, %v473
  %vm477 = vcmask 818176
  %v478 = vsel %vm477, %v465, %v476
  %v479 = vsel %vm43, %v473, %v474
  %v480 = vsel %vm477, %v467, %v479
  %v481 = vsel %vm43, %v474, %v475
  %v482 = vsel %vm477, %v469, %v481
  %v483 = vsel %vm477, %v471, %v475
  %488 = vst [vmem:[#allocation2 + $0x16c] sm:$0xff] %v478
  %489 = vst [vmem:[#allocation2 + $0x174] sm:$0xff] %v480
  %490 = vst [vmem:[#allocation2 + $0x17c] sm:$0xff] %v482
  %491 = vst [vmem:[#allocation2 + $0x184] sm:$0xf] %v483
  %v492 = vld [vmem:[%s0] sm:$0xff]
  %v493 = vld [vmem:[%s0 + $0x8] sm:$0xff]
  %v494 = vld [vmem:[%s0 + $0x10] sm:$0xff]
  %v495 = vld [vmem:[%s0 + $0x18] sm:$0xff]
  %500 = vrot.lane.b32.xlu0 %v492, 84
  %v501 = vpop.permute.xlu0 %500
  %502 = vrot.lane.b32.xlu0 %v493, 84
  %v503 = vpop.permute.xlu0 %502
  %504 = vrot.lane.b32.xlu0 %v494, 84
  %v505 = vpop.permute.xlu0 %504
  %506 = vrot.lane.b32.xlu0 %v495, 84
  %v507 = vpop.permute.xlu0 %506
  %v508 = vrot.slane %v501, 4
  %v509 = vrot.slane %v503, 4
  %v510 = vrot.slane %v505, 4
  %v511 = vrot.slane %v507, 4
  %v512 = vsel %vm43, %v508, %v509
  %vm513 = vcmask 687104
  %v514 = vsel %vm513, %v501, %v512
  %v515 = vsel %vm43, %v509, %v510
  %v516 = vsel %vm513, %v503, %v515
  %v517 = vsel %vm43, %v510, %v511
  %v518 = vsel %vm513, %v505, %v517
  %v519 = vsel %vm513, %v507, %v511
  %524 = vst [vmem:[#allocation2 + $0x188] sm:$0xff] %v514
  %525 = vst [vmem:[#allocation2 + $0x190] sm:$0xff] %v516
  %526 = vst [vmem:[#allocation2 + $0x198] sm:$0xff] %v518
  %527 = vst [vmem:[#allocation2 + $0x1a0] sm:$0xf] %v519
  %v528 = vld [vmem:[%s0] sm:$0xff]
  %v529 = vld [vmem:[%s0 + $0x8] sm:$0xff]
  %v530 = vld [vmem:[%s0 + $0x10] sm:$0xff]
  %v531 = vld [vmem:[%s0 + $0x18] sm:$0xff]
  %536 = vrot.lane.b32.xlu0 %v528, 83
  %v537 = vpop.permute.xlu0 %536
  %538 = vrot.lane.b32.xlu0 %v529, 83
  %v539 = vpop.permute.xlu0 %538
  %540 = vrot.lane.b32.xlu0 %v530, 83
  %v541 = vpop.permute.xlu0 %540
  %542 = vrot.lane.b32.xlu0 %v531, 83
  %v543 = vpop.permute.xlu0 %542
  %v544 = vrot.slane %v537, 4
  %v545 = vrot.slane %v539, 4
  %v546 = vrot.slane %v541, 4
  %v547 = vrot.slane %v543, 4
  %v548 = vsel %vm43, %v544, %v545
  %vm549 = vcmask 678912
  %v550 = vsel %vm549, %v537, %v548
  %v551 = vsel %vm43, %v545, %v546
  %v552 = vsel %vm549, %v539, %v551
  %v553 = vsel %vm43, %v546, %v547
  %v554 = vsel %vm549, %v541, %v553
  %v555 = vsel %vm549, %v543, %v547
  %560 = vst [vmem:[#allocation2 + $0x1a4] sm:$0xff] %v550
  %561 = vst [vmem:[#allocation2 + $0x1ac] sm:$0xff] %v552
  %562 = vst [vmem:[#allocation2 + $0x1b4] sm:$0xff] %v554
  %563 = vst [vmem:[#allocation2 + $0x1bc] sm:$0xf] %v555
  %v564 = vld [vmem:[%s0] sm:$0xff]
  %v565 = vld [vmem:[%s0 + $0x8] sm:$0xff]
  %v566 = vld [vmem:[%s0 + $0x10] sm:$0xff]
  %v567 = vld [vmem:[%s0 + $0x18] sm:$0xff]
  %572 = vrot.lane.b32.xlu0 %v564, 82
  %v573 = vpop.permute.xlu0 %572
  %574 = vrot.lane.b32.xlu0 %v565, 82
  %v575 = vpop.permute.xlu0 %574
  %576 = vrot.lane.b32.xlu0 %v566, 82
  %v577 = vpop.permute.xlu0 %576
  %578 = vrot.lane.b32.xlu0 %v567, 82
  %v579 = vpop.permute.xlu0 %578
  %v580 = vrot.slane %v573, 4
  %v581 = vrot.slane %v575, 4
  %v582 = vrot.slane %v577, 4
  %v583 = vrot.slane %v579, 4
  %v584 = vsel %vm43, %v580, %v581
  %vm585 = vcmask 670720
  %v586 = vsel %vm585, %v573, %v584
  %v587 = vsel %vm43, %v581, %v582
  %v588 = vsel %vm585, %v575, %v587
  %v589 = vsel %vm43, %v582, %v583
  %v590 = vsel %vm585, %v577, %v589
  %v591 = vsel %vm585, %v579, %v583
  %596 = vst [vmem:[#allocation2 + $0x1c0] sm:$0xff] %v586
  %597 = vst [vmem:[#allocation2 + $0x1c8] sm:$0xff] %v588
  %598 = vst [vmem:[#allocation2 + $0x1d0] sm:$0xff] %v590
  %599 = vst [vmem:[#allocation2 + $0x1d8] sm:$0xf] %v591
  %v600 = vld [vmem:[%s0] sm:$0xff]
  %v601 = vld [vmem:[%s0 + $0x8] sm:$0xff]
  %v602 = vld [vmem:[%s0 + $0x10] sm:$0xff]
  %v603 = vld [vmem:[%s0 + $0x18] sm:$0xff]
  %608 = vrot.lane.b32.xlu0 %v600, 81
  %v609 = vpop.permute.xlu0 %608
  %610 = vrot.lane.b32.xlu0 %v601, 81
  %v611 = vpop.permute.xlu0 %610
  %612 = vrot.lane.b32.xlu0 %v602, 81
  %v613 = vpop.permute.xlu0 %612
  %614 = vrot.lane.b32.xlu0 %v603, 81
  %v615 = vpop.permute.xlu0 %614
  %v616 = vrot.slane %v609, 4
  %v617 = vrot.slane %v611, 4
  %v618 = vrot.slane %v613, 4
  %v619 = vrot.slane %v615, 4
  %v620 = vsel %vm43, %v616, %v617
  %vm621 = vcmask 662528
  %v622 = vsel %vm621, %v609, %v620
  %v623 = vsel %vm43, %v617, %v618
  %v624 = vsel %vm621, %v611, %v623
  %v625 = vsel %vm43, %v618, %v619
  %v626 = vsel %vm621, %v613, %v625
  %v627 = vsel %vm621, %v615, %v619
  %632 = vst [vmem:[#allocation2 + $0x1dc] sm:$0xff] %v622
  %633 = vst [vmem:[#allocation2 + $0x1e4] sm:$0xff] %v624
  %634 = vst [vmem:[#allocation2 + $0x1ec] sm:$0xff] %v626
  %635 = vst [vmem:[#allocation2 + $0x1f4] sm:$0xf] %v627
  %v636 = vld [vmem:[%s0] sm:$0xff]
  %v637 = vld [vmem:[%s0 + $0x8] sm:$0xff]
  %v638 = vld [vmem:[%s0 + $0x10] sm:$0xff]
  %v639 = vld [vmem:[%s0 + $0x18] sm:$0xff]
  %644 = vrot.lane.b32.xlu0 %v636, 80
  %v645 = vpop.permute.xlu0 %644
  %646 = vrot.lane.b32.xlu0 %v637, 80
  %v647 = vpop.permute.xlu0 %646
  %648 = vrot.lane.b32.xlu0 %v638, 80
  %v649 = vpop.permute.xlu0 %648
  %650 = vrot.lane.b32.xlu0 %v639, 80
  %v651 = vpop.permute.xlu0 %650
  %v652 = vrot.slane %v645, 4
  %v653 = vrot.slane %v647, 4
  %v654 = vrot.slane %v649, 4
  %v655 = vrot.slane %v651, 4
  %v656 = vsel %vm43, %v652, %v653
  %vm657 = vcmask 654336
  %v658 = vsel %vm657, %v645, %v656
  %v659 = vsel %vm43, %v653, %v654
  %v660 = vsel %vm657, %v647, %v659
  %v661 = vsel %vm43, %v654, %v655
  %v662 = vsel %vm657, %v649, %v661
  %v663 = vsel %vm657, %v651, %v655
  %668 = vst [vmem:[#allocation2 + $0x1f8] sm:$0xff] %v658
  %669 = vst [vmem:[#allocation2 + $0x200] sm:$0xff] %v660
  %670 = vst [vmem:[#allocation2 + $0x208] sm:$0xff] %v662
  %671 = vst [vmem:[#allocation2 + $0x210] sm:$0xf] %v663
  %v672 = vld [vmem:[%s0] sm:$0xff]
  %v673 = vld [vmem:[%s0 + $0x8] sm:$0xff]
  %v674 = vld [vmem:[%s0 + $0x10] sm:$0xff]
  %v675 = vld [vmem:[%s0 + $0x18] sm:$0xff]
  %680 = vrot.lane.b32.xlu0 %v672, 79
  %v681 = vpop.permute.xlu0 %680
  %682 = vrot.lane.b32.xlu0 %v673, 79
  %v683 = vpop.permute.xlu0 %682
  %684 = vrot.lane.b32.xlu0 %v674, 79
  %v685 = vpop.permute.xlu0 %684
  %686 = vrot.lane.b32.xlu0 %v675, 79
  %v687 = vpop.permute.xlu0 %686
  %v688 = vrot.slane %v681, 4
  %v689 = vrot.slane %v683, 4
  %v690 = vrot.slane %v685, 4
  %v691 = vrot.slane %v687, 4
  %v692 = vsel %vm43, %v688, %v689
  %vm693 = vcmask 646144
  %v694 = vsel %vm693, %v681, %v692
  %v695 = vsel %vm43, %v689, %v690
  %v696 = vsel %vm693, %v683, %v695
  %v697 = vsel %vm43, %v690, %v691
  %v698 = vsel %vm693, %v685, %v697
  %v699 = vsel %vm693, %v687, %v691
  %704 = vst [vmem:[#allocation2 + $0x214] sm:$0xff] %v694
  %705 = vst [vmem:[#allocation2 + $0x21c] sm:$0xff] %v696
  %706 = vst [vmem:[#allocation2 + $0x224] sm:$0xff] %v698
  %707 = vst [vmem:[#allocation2 + $0x22c] sm:$0xf] %v699
  %v708 = vld [vmem:[%s0] sm:$0xff]
  %v709 = vld [vmem:[%s0 + $0x8] sm:$0xff]
  %v710 = vld [vmem:[%s0 + $0x10] sm:$0xff]
  %v711 = vld [vmem:[%s0 + $0x18] sm:$0xff]
  %716 = vrot.lane.b32.xlu0 %v708, 78
  %v717 = vpop.permute.xlu0 %716
  %718 = vrot.lane.b32.xlu0 %v709, 78
  %v719 = vpop.permute.xlu0 %718
  %720 = vrot.lane.b32.xlu0 %v710, 78
  %v721 = vpop.permute.xlu0 %720
  %722 = vrot.lane.b32.xlu0 %v711, 78
  %v723 = vpop.permute.xlu0 %722
  %v724 = vrot.slane %v717, 4
  %v725 = vrot.slane %v719, 4
  %v726 = vrot.slane %v721, 4
  %v727 = vrot.slane %v723, 4
  %v728 = vsel %vm43, %v724, %v725
  %vm729 = vcmask 637952
  %v730 = vsel %vm729, %v717, %v728
  %v731 = vsel %vm43, %v725, %v726
  %v732 = vsel %vm729, %v719, %v731
  %v733 = vsel %vm43, %v726, %v727
  %v734 = vsel %vm729, %v721, %v733
  %v735 = vsel %vm729, %v723, %v727
  %740 = vst [vmem:[#allocation2 + $0x230] sm:$0xff] %v730
  %741 = vst [vmem:[#allocation2 + $0x238] sm:$0xff] %v732
  %742 = vst [vmem:[#allocation2 + $0x240] sm:$0xff] %v734
  %743 = vst [vmem:[#allocation2 + $0x248] sm:$0xf] %v735
  %v744 = vld [vmem:[%s0] sm:$0xff]
  %v745 = vld [vmem:[%s0 + $0x8] sm:$0xff]
  %v746 = vld [vmem:[%s0 + $0x10] sm:$0xff]
  %v747 = vld [vmem:[%s0 + $0x18] sm:$0xff]
  %752 = vrot.lane.b32.xlu0 %v744, 62
  %v753 = vpop.permute.xlu0 %752
  %754 = vrot.lane.b32.xlu0 %v745, 62
  %v755 = vpop.permute.xlu0 %754
  %756 = vrot.lane.b32.xlu0 %v746, 62
  %v757 = vpop.permute.xlu0 %756
  %758 = vrot.lane.b32.xlu0 %v747, 62
  %v759 = vpop.permute.xlu0 %758
  %v760 = vrot.slane %v753, 4
  %v761 = vrot.slane %v755, 4
  %v762 = vrot.slane %v757, 4
  %v763 = vrot.slane %v759, 4
  %v764 = vsel %vm43, %v760, %v761
  %vm765 = vcmask 506880
  %v766 = vsel %vm765, %v753, %v764
  %v767 = vsel %vm43, %v761, %v762
  %v768 = vsel %vm765, %v755, %v767
  %v769 = vsel %vm43, %v762, %v763
  %v770 = vsel %vm765, %v757, %v769
  %v771 = vsel %vm765, %v759, %v763
  %776 = vst [vmem:[#allocation2 + $0x24c] sm:$0xff] %v766
  %777 = vst [vmem:[#allocation2 + $0x254] sm:$0xff] %v768
  %778 = vst [vmem:[#allocation2 + $0x25c] sm:$0xff] %v770
  %779 = vst [vmem:[#allocation2 + $0x264] sm:$0xf] %v771
  %v780 = vld [vmem:[%s0] sm:$0xff]
  %v781 = vld [vmem:[%s0 + $0x8] sm:$0xff]
  %v782 = vld [vmem:[%s0 + $0x10] sm:$0xff]
  %v783 = vld [vmem:[%s0 + $0x18] sm:$0xff]
  %788 = vrot.lane.b32.xlu0 %v780, 61
  %v789 = vpop.permute.xlu0 %788
  %790 = vrot.lane.b32.xlu0 %v781, 61
  %v791 = vpop.permute.xlu0 %790
  %792 = vrot.lane.b32.xlu0 %v782, 61
  %v793 = vpop.permute.xlu0 %792
  %794 = vrot.lane.b32.xlu0 %v783, 61
  %v795 = vpop.permute.xlu0 %794
  %v796 = vrot.slane %v789, 4
  %v797 = vrot.slane %v791, 4
  %v798 = vrot.slane %v793, 4
  %v799 = vrot.slane %v795, 4
  %v800 = vsel %vm43, %v796, %v797
  %vm801 = vcmask 498688
  %v802 = vsel %vm801, %v789, %v800
  %v803 = vsel %vm43, %v797, %v798
  %v804 = vsel %vm801, %v791, %v803
  %v805 = vsel %vm43, %v798, %v799
  %v806 = vsel %vm801, %v793, %v805
  %v807 = vsel %vm801, %v795, %v799
  %812 = vst [vmem:[#allocation2 + $0x268] sm:$0xff] %v802
  %813 = vst [vmem:[#allocation2 + $0x270] sm:$0xff] %v804
  %814 = vst [vmem:[#allocation2 + $0x278] sm:$0xff] %v806
  %815 = vst [vmem:[#allocation2 + $0x280] sm:$0xf] %v807
  %v816 = vld [vmem:[%s0] sm:$0xff]
  %v817 = vld [vmem:[%s0 + $0x8] sm:$0xff]
  %v818 = vld [vmem:[%s0 + $0x10] sm:$0xff]
  %v819 = vld [vmem:[%s0 + $0x18] sm:$0xff]
  %824 = vrot.lane.b32.xlu0 %v816, 60
  %v825 = vpop.permute.xlu0 %824
  %826 = vrot.lane.b32.xlu0 %v817, 60
  %v827 = vpop.permute.xlu0 %826
  %828 = vrot.lane.b32.xlu0 %v818, 60
  %v829 = vpop.permute.xlu0 %828
  %830 = vrot.lane.b32.xlu0 %v819, 60
  %v831 = vpop.permute.xlu0 %830
  %v832 = vrot.slane %v825, 4
  %v833 = vrot.slane %v827, 4
  %v834 = vrot.slane %v829, 4
  %v835 = vrot.slane %v831, 4
  %v836 = vsel %vm43, %v832, %v833
  %vm837 = vcmask 490496
  %v838 = vsel %vm837, %v825, %v836
  %v839 = vsel %vm43, %v833, %v834
  %v840 = vsel %vm837, %v827, %v839
  %v841 = vsel %vm43, %v834, %v835
  %v842 = vsel %vm837, %v829, %v841
  %v843 = vsel %vm837, %v831, %v835
  %848 = vst [vmem:[#allocation2 + $0x284] sm:$0xff] %v838
  %849 = vst [vmem:[#allocation2 + $0x28c] sm:$0xff] %v840
  %850 = vst [vmem:[#allocation2 + $0x294] sm:$0xff] %v842
  %851 = vst [vmem:[#allocation2 + $0x29c] sm:$0xf] %v843
  %v852 = vld [vmem:[%s0] sm:$0xff]
  %v853 = vld [vmem:[%s0 + $0x8] sm:$0xff]
  %v854 = vld [vmem:[%s0 + $0x10] sm:$0xff]
  %v855 = vld [vmem:[%s0 + $0x18] sm:$0xff]
  %860 = vrot.lane.b32.xlu0 %v852, 59
  %v861 = vpop.permute.xlu0 %860
  %862 = vrot.lane.b32.xlu0 %v853, 59
  %v863 = vpop.permute.xlu0 %862
  %864 = vrot.lane.b32.xlu0 %v854, 59
  %v865 = vpop.permute.xlu0 %864
  %866 = vrot.lane.b32.xlu0 %v855, 59
  %v867 = vpop.permute.xlu0 %866
  %v868 = vrot.slane %v861, 4
  %v869 = vrot.slane %v863, 4
  %v870 = vrot.slane %v865, 4
  %v871 = vrot.slane %v867, 4
  %v872 = vsel %vm43, %v868, %v869
  %vm873 = vcmask 482304
  %v874 = vsel %vm873, %v861, %v872
  %v875 = vsel %vm43, %v869, %v870
  %v876 = vsel %vm873, %v863, %v875
  %v877 = vsel %vm43, %v870, %v871
  %v878 = vsel %vm873, %v865, %v877
  %v879 = vsel %vm873, %v867, %v871
  %884 = vst [vmem:[#allocation2 + $0x2a0] sm:$0xff] %v874
  %885 = vst [vmem:[#allocation2 + $0x2a8] sm:$0xff] %v876
  %886 = vst [vmem:[#allocation2 + $0x2b0] sm:$0xff] %v878
  %887 = vst [vmem:[#allocation2 + $0x2b8] sm:$0xf] %v879
  %v888 = vld [vmem:[%s0] sm:$0xff]
  %v889 = vld [vmem:[%s0 + $0x8] sm:$0xff]
  %v890 = vld [vmem:[%s0 + $0x10] sm:$0xff]
  %v891 = vld [vmem:[%s0 + $0x18] sm:$0xff]
  %896 = vrot.lane.b32.xlu0 %v888, 58
  %v897 = vpop.permute.xlu0 %896
  %898 = vrot.lane.b32.xlu0 %v889, 58
  %v899 = vpop.permute.xlu0 %898
  %900 = vrot.lane.b32.xlu0 %v890, 58
  %v901 = vpop.permute.xlu0 %900
  %902 = vrot.lane.b32.xlu0 %v891, 58
  %v903 = vpop.permute.xlu0 %902
  %v904 = vrot.slane %v897, 4
  %v905 = vrot.slane %v899, 4
  %v906 = vrot.slane %v901, 4
  %v907 = vrot.slane %v903, 4
  %v908 = vsel %vm43, %v904, %v905
  %vm909 = vcmask 474112
  %v910 = vsel %vm909, %v897, %v908
  %v911 = vsel %vm43, %v905, %v906
  %v912 = vsel %vm909, %v899, %v911
  %v913 = vsel %vm43, %v906, %v907
  %v914 = vsel %vm909, %v901, %v913
  %v915 = vsel %vm909, %v903, %v907
  %920 = vst [vmem:[#allocation2 + $0x2bc] sm:$0xff] %v910
  %921 = vst [vmem:[#allocation2 + $0x2c4] sm:$0xff] %v912
  %922 = vst [vmem:[#allocation2 + $0x2cc] sm:$0xff] %v914
  %923 = vst [vmem:[#allocation2 + $0x2d4] sm:$0xf] %v915
  %v924 = vld [vmem:[%s0] sm:$0xff]
  %v925 = vld [vmem:[%s0 + $0x8] sm:$0xff]
  %v926 = vld [vmem:[%s0 + $0x10] sm:$0xff]
  %v927 = vld [vmem:[%s0 + $0x18] sm:$0xff]
  %932 = vrot.lane.b32.xlu0 %v924, 57
  %v933 = vpop.permute.xlu0 %932
  %934 = vrot.lane.b32.xlu0 %v925, 57
  %v935 = vpop.permute.xlu0 %934
  %936 = vrot.lane.b32.xlu0 %v926, 57
  %v937 = vpop.permute.xlu0 %936
  %938 = vrot.lane.b32.xlu0 %v927, 57
  %v939 = vpop.permute.xlu0 %938
  %v940 = vrot.slane %v933, 4
  %v941 = vrot.slane %v935, 4
  %v942 = vrot.slane %v937, 4
  %v943 = vrot.slane %v939, 4
  %v944 = vsel %vm43, %v940, %v941
  %vm945 = vcmask 465920
  %v946 = vsel %vm945, %v933, %v944
  %v947 = vsel %vm43, %v941, %v942
  %v948 = vsel %vm945, %v935, %v947
  %v949 = vsel %vm43, %v942, %v943
  %v950 = vsel %vm945, %v937, %v949
  %v951 = vsel %vm945, %v939, %v943
  %956 = vst [vmem:[#allocation2 + $0x2d8] sm:$0xff] %v946
  %957 = vst [vmem:[#allocation2 + $0x2e0] sm:$0xff] %v948
  %958 = vst [vmem:[#allocation2 + $0x2e8] sm:$0xff] %v950
  %959 = vst [vmem:[#allocation2 + $0x2f0] sm:$0xf] %v951
  %v960 = vld [vmem:[%s0] sm:$0xff]
  %v961 = vld [vmem:[%s0 + $0x8] sm:$0xff]
  %v962 = vld [vmem:[%s0 + $0x10] sm:$0xff]
  %v963 = vld [vmem:[%s0 + $0x18] sm:$0xff]
  %968 = vrot.lane.b32.xlu0 %v960, 56
  %v969 = vpop.permute.xlu0 %968
  %970 = vrot.lane.b32.xlu0 %v961, 56
  %v971 = vpop.permute.xlu0 %970
  %972 = vrot.lane.b32.xlu0 %v962, 56
  %v973 = vpop.permute.xlu0 %972
  %974 = vrot.lane.b32.xlu0 %v963, 56
  %v975 = vpop.permute.xlu0 %974
  %v976 = vrot.slane %v969, 4
  %v977 = vrot.slane %v971, 4
  %v978 = vrot.slane %v973, 4
  %v979 = vrot.slane %v975, 4
  %v980 = vsel %vm43, %v976, %v977
  %vm981 = vcmask 457728
  %v982 = vsel %vm981, %v969, %v980
  %v983 = vsel %vm43, %v977, %v978
  %v984 = vsel %vm981, %v971, %v983
  %v985 = vsel %vm43, %v978, %v979
  %v986 = vsel %vm981, %v973, %v985
  %v987 = vsel %vm981, %v975, %v979
  %992 = vst [vmem:[#allocation2 + $0x2f4] sm:$0xff] %v982
  %993 = vst [vmem:[#allocation2 + $0x2fc] sm:$0xff] %v984
  %994 = vst [vmem:[#allocation2 + $0x304] sm:$0xff] %v986
  %995 = vst [vmem:[#allocation2 + $0x30c] sm:$0xf] %v987
  %v996 = vld [vmem:[%s0] sm:$0xff]
  %v997 = vld [vmem:[%s0 + $0x8] sm:$0xff]
  %v998 = vld [vmem:[%s0 + $0x10] sm:$0xff]
  %v999 = vld [vmem:[%s0 + $0x18] sm:$0xff]
  %1004 = vrot.lane.b32.xlu0 %v996, 40
  %v1005 = vpop.permute.xlu0 %1004
  %1006 = vrot.lane.b32.xlu0 %v997, 40
  %v1007 = vpop.permute.xlu0 %1006
  %1008 = vrot.lane.b32.xlu0 %v998, 40
  %v1009 = vpop.permute.xlu0 %1008
  %1010 = vrot.lane.b32.xlu0 %v999, 40
  %v1011 = vpop.permute.xlu0 %1010
  %v1012 = vrot.slane %v1005, 4
  %v1013 = vrot.slane %v1007, 4
  %v1014 = vrot.slane %v1009, 4
  %v1015 = vrot.slane %v1011, 4
  %v1016 = vsel %vm43, %v1012, %v1013
  %vm1017 = vcmask 326656
  %v1018 = vsel %vm1017, %v1005, %v1016
  %v1019 = vsel %vm43, %v1013, %v1014
  %v1020 = vsel %vm1017, %v1007, %v1019
  %v1021 = vsel %vm43, %v1014, %v1015
  %v1022 = vsel %vm1017, %v1009, %v1021
  %v1023 = vsel %vm1017, %v1011, %v1015
  %1028 = vst [vmem:[#allocation2 + $0x310] sm:$0xff] %v1018
  %1029 = vst [vmem:[#allocation2 + $0x318] sm:$0xff] %v1020
  %1030 = vst [vmem:[#allocation2 + $0x320] sm:$0xff] %v1022
  %1031 = vst [vmem:[#allocation2 + $0x328] sm:$0xf] %v1023
  %v1032 = vld [vmem:[%s0] sm:$0xff]
  %v1033 = vld [vmem:[%s0 + $0x8] sm:$0xff]
  %v1034 = vld [vmem:[%s0 + $0x10] sm:$0xff]
  %v1035 = vld [vmem:[%s0 + $0x18] sm:$0xff]
  %1040 = vrot.lane.b32.xlu0 %v1032, 39
  %v1041 = vpop.permute.xlu0 %1040
  %1042 = vrot.lane.b32.xlu0 %v1033, 39
  %v1043 = vpop.permute.xlu0 %1042
  %1044 = vrot.lane.b32.xlu0 %v1034, 39
  %v1045 = vpop.permute.xlu0 %1044
  %1046 = vrot.lane.b32.xlu0 %v1035, 39
  %v1047 = vpop.permute.xlu0 %1046
  %v1048 = vrot.slane %v1041, 4
  %v1049 = vrot.slane %v1043, 4
  %v1050 = vrot.slane %v1045, 4
  %v1051 = vrot.slane %v1047, 4
  %v1052 = vsel %vm43, %v1048, %v1049
  %vm1053 = vcmask 318464
  %v1054 = vsel %vm1053, %v1041, %v1052
  %v1055 = vsel %vm43, %v1049, %v1050
  %v1056 = vsel %vm1053, %v1043, %v1055
  %v1057 = vsel %vm43, %v1050, %v1051
  %v1058 = vsel %vm1053, %v1045, %v1057
  %v1059 = vsel %vm1053, %v1047, %v1051
  %1064 = vst [vmem:[#allocation2 + $0x32c] sm:$0xff] %v1054
  %1065 = vst [vmem:[#allocation2 + $0x334] sm:$0xff] %v1056
  %1066 = vst [vmem:[#allocation2 + $0x33c] sm:$0xff] %v1058
  %1067 = vst [vmem:[#allocation2 + $0x344] sm:$0xf] %v1059
  %v1068 = vld [vmem:[%s0] sm:$0xff]
  %v1069 = vld [vmem:[%s0 + $0x8] sm:$0xff]
  %v1070 = vld [vmem:[%s0 + $0x10] sm:$0xff]
  %v1071 = vld [vmem:[%s0 + $0x18] sm:$0xff]
  %1076 = vrot.lane.b32.xlu0 %v1068, 38
  %v1077 = vpop.permute.xlu0 %1076
  %1078 = vrot.lane.b32.xlu0 %v1069, 38
  %v1079 = vpop.permute.xlu0 %1078
  %1080 = vrot.lane.b32.xlu0 %v1070, 38
  %v1081 = vpop.permute.xlu0 %1080
  %1082 = vrot.lane.b32.xlu0 %v1071, 38
  %v1083 = vpop.permute.xlu0 %1082
  %v1084 = vrot.slane %v1077, 4
  %v1085 = vrot.slane %v1079, 4
  %v1086 = vrot.slane %v1081, 4
  %v1087 = vrot.slane %v1083, 4
  %v1088 = vsel %vm43, %v1084, %v1085
  %vm1089 = vcmask 310272
  %v1090 = vsel %vm1089, %v1077, %v1088
  %v1091 = vsel %vm43, %v1085, %v1086
  %v1092 = vsel %vm1089, %v1079, %v1091
  %v1093 = vsel %vm43, %v1086, %v1087
  %v1094 = vsel %vm1089, %v1081, %v1093
  %v1095 = vsel %vm1089, %v1083, %v1087
  %1100 = vst [vmem:[#allocation2 + $0x348] sm:$0xff] %v1090
  %1101 = vst [vmem:[#allocation2 + $0x350] sm:$0xff] %v1092
  %1102 = vst [vmem:[#allocation2 + $0x358] sm:$0xff] %v1094
  %1103 = vst [vmem:[#allocation2 + $0x360] sm:$0xf] %v1095
  %v1104 = vld [vmem:[%s0] sm:$0xff]
  %v1105 = vld [vmem:[%s0 + $0x8] sm:$0xff]
  %v1106 = vld [vmem:[%s0 + $0x10] sm:$0xff]
  %v1107 = vld [vmem:[%s0 + $0x18] sm:$0xff]
  %1112 = vrot.lane.b32.xlu0 %v1104, 37
  %v1113 = vpop.permute.xlu0 %1112
  %1114 = vrot.lane.b32.xlu0 %v1105, 37
  %v1115 = vpop.permute.xlu0 %1114
  %1116 = vrot.lane.b32.xlu0 %v1106, 37
  %v1117 = vpop.permute.xlu0 %1116
  %1118 = vrot.lane.b32.xlu0 %v1107, 37
  %v1119 = vpop.permute.xlu0 %1118
  %v1120 = vrot.slane %v1113, 4
  %v1121 = vrot.slane %v1115, 4
  %v1122 = vrot.slane %v1117, 4
  %v1123 = vrot.slane %v1119, 4
  %v1124 = vsel %vm43, %v1120, %v1121
  %vm1125 = vcmask 302080
  %v1126 = vsel %vm1125, %v1113, %v1124
  %v1127 = vsel %vm43, %v1121, %v1122
  %v1128 = vsel %vm1125, %v1115, %v1127
  %v1129 = vsel %vm43, %v1122, %v1123
  %v1130 = vsel %vm1125, %v1117, %v1129
  %v1131 = vsel %vm1125, %v1119, %v1123
  %1136 = vst [vmem:[#allocation2 + $0x364] sm:$0xff] %v1126
  %1137 = vst [vmem:[#allocation2 + $0x36c] sm:$0xff] %v1128
  %1138 = vst [vmem:[#allocation2 + $0x374] sm:$0xff] %v1130
  %1139 = vst [vmem:[#allocation2 + $0x37c] sm:$0xf] %v1131
  %v1140 = vld [vmem:[%s0] sm:$0xff]
  %v1141 = vld [vmem:[%s0 + $0x8] sm:$0xff]
  %v1142 = vld [vmem:[%s0 + $0x10] sm:$0xff]
  %v1143 = vld [vmem:[%s0 + $0x18] sm:$0xff]
  %1148 = vrot.lane.b32.xlu0 %v1140, 36
  %v1149 = vpop.permute.xlu0 %1148
  %1150 = vrot.lane.b32.xlu0 %v1141, 36
  %v1151 = vpop.permute.xlu0 %1150
  %1152 = vrot.lane.b32.xlu0 %v1142, 36
  %v1153 = vpop.permute.xlu0 %1152
  %1154 = vrot.lane.b32.xlu0 %v1143, 36
  %v1155 = vpop.permute.xlu0 %1154
  %v1156 = vrot.slane %v1149, 4
  %v1157 = vrot.slane %v1151, 4
  %v1158 = vrot.slane %v1153, 4
  %v1159 = vrot.slane %v1155, 4
  %v1160 = vsel %vm43, %v1156, %v1157
  %vm1161 = vcmask 293888
  %v1162 = vsel %vm1161, %v1149, %v1160
  %v1163 = vsel %vm43, %v1157, %v1158
  %v1164 = vsel %vm1161, %v1151, %v1163
  %v1165 = vsel %vm43, %v1158, %v1159
  %v1166 = vsel %vm1161, %v1153, %v1165
  %v1167 = vsel %vm1161, %v1155, %v1159
  %1172 = vst [vmem:[#allocation2 + $0x380] sm:$0xff] %v1162
  %1173 = vst [vmem:[#allocation2 + $0x388] sm:$0xff] %v1164
  %1174 = vst [vmem:[#allocation2 + $0x390] sm:$0xff] %v1166
  %1175 = vst [vmem:[#allocation2 + $0x398] sm:$0xf] %v1167
  %v1176 = vld [vmem:[%s0] sm:$0xff]
  %v1177 = vld [vmem:[%s0 + $0x8] sm:$0xff]
  %v1178 = vld [vmem:[%s0 + $0x10] sm:$0xff]
  %v1179 = vld [vmem:[%s0 + $0x18] sm:$0xff]
  %1184 = vrot.lane.b32.xlu0 %v1176, 35
  %v1185 = vpop.permute.xlu0 %1184
  %1186 = vrot.lane.b32.xlu0 %v1177, 35
  %v1187 = vpop.permute.xlu0 %1186
  %1188 = vrot.lane.b32.xlu0 %v1178, 35
  %v1189 = vpop.permute.xlu0 %1188
  %1190 = vrot.lane.b32.xlu0 %v1179, 35
  %v1191 = vpop.permute.xlu0 %1190
  %v1192 = vrot.slane %v1185, 4
  %v1193 = vrot.slane %v1187, 4
  %v1194 = vrot.slane %v1189, 4
  %v1195 = vrot.slane %v1191, 4
  %v1196 = vsel %vm43, %v1192, %v1193
  %vm1197 = vcmask 285696
  %v1198 = vsel %vm1197, %v1185, %v1196
  %v1199 = vsel %vm43, %v1193, %v1194
  %v1200 = vsel %vm1197, %v1187, %v1199
  %v1201 = vsel %vm43, %v1194, %v1195
  %v1202 = vsel %vm1197, %v1189, %v1201
  %v1203 = vsel %vm1197, %v1191, %v1195
  %1208 = vst [vmem:[#allocation2 + $0x39c] sm:$0xff] %v1198
  %1209 = vst [vmem:[#allocation2 + $0x3a4] sm:$0xff] %v1200
  %1210 = vst [vmem:[#allocation2 + $0x3ac] sm:$0xff] %v1202
  %1211 = vst [vmem:[#allocation2 + $0x3b4] sm:$0xf] %v1203
  %v1212 = vld [vmem:[%s0] sm:$0xff]
  %v1213 = vld [vmem:[%s0 + $0x8] sm:$0xff]
  %v1214 = vld [vmem:[%s0 + $0x10] sm:$0xff]
  %v1215 = vld [vmem:[%s0 + $0x18] sm:$0xff]
  %1220 = vrot.lane.b32.xlu0 %v1212, 34
  %v1221 = vpop.permute.xlu0 %1220
  %1222 = vrot.lane.b32.xlu0 %v1213, 34
  %v1223 = vpop.permute.xlu0 %1222
  %1224 = vrot.lane.b32.xlu0 %v1214, 34
  %v1225 = vpop.permute.xlu0 %1224
  %1226 = vrot.lane.b32.xlu0 %v1215, 34
  %v1227 = vpop.permute.xlu0 %1226
  %v1228 = vrot.slane %v1221, 4
  %v1229 = vrot.slane %v1223, 4
  %v1230 = vrot.slane %v1225, 4
  %v1231 = vrot.slane %v1227, 4
  %v1232 = vsel %vm43, %v1228, %v1229
  %vm1233 = vcmask 277504
  %v1234 = vsel %vm1233, %v1221, %v1232
  %v1235 = vsel %vm43, %v1229, %v1230
  %v1236 = vsel %vm1233, %v1223, %v1235
  %v1237 = vsel %vm43, %v1230, %v1231
  %v1238 = vsel %vm1233, %v1225, %v1237
  %v1239 = vsel %vm1233, %v1227, %v1231
  %1244 = vst [vmem:[#allocation2 + $0x3b8] sm:$0xff] %v1234
  %1245 = vst [vmem:[#allocation2 + $0x3c0] sm:$0xff] %v1236
  %1246 = vst [vmem:[#allocation2 + $0x3c8] sm:$0xff] %v1238
  %1247 = vst [vmem:[#allocation2 + $0x3d0] sm:$0xf] %v1239
  %v1248 = vld [vmem:[%s0] sm:$0xff]
  %v1249 = vld [vmem:[%s0 + $0x8] sm:$0xff]
  %v1250 = vld [vmem:[%s0 + $0x10] sm:$0xff]
  %v1251 = vld [vmem:[%s0 + $0x18] sm:$0xff]
  %1256 = vrot.lane.b32.xlu0 %v1248, 18
  %v1257 = vpop.permute.xlu0 %1256
  %1258 = vrot.lane.b32.xlu0 %v1249, 18
  %v1259 = vpop.permute.xlu0 %1258
  %1260 = vrot.lane.b32.xlu0 %v1250, 18
  %v1261 = vpop.permute.xlu0 %1260
  %1262 = vrot.lane.b32.xlu0 %v1251, 18
  %v1263 = vpop.permute.xlu0 %1262
  %v1264 = vrot.slane %v1257, 4
  %v1265 = vrot.slane %v1259, 4
  %v1266 = vrot.slane %v1261, 4
  %v1267 = vrot.slane %v1263, 4
  %v1268 = vsel %vm43, %v1264, %v1265
  %vm1269 = vcmask 146432
  %v1270 = vsel %vm1269, %v1257, %v1268
  %v1271 = vsel %vm43, %v1265, %v1266
  %v1272 = vsel %vm1269, %v1259, %v1271
  %v1273 = vsel %vm43, %v1266, %v1267
  %v1274 = vsel %vm1269, %v1261, %v1273
  %v1275 = vsel %vm1269, %v1263, %v1267
  %1280 = vst [vmem:[#allocation2 + $0x3d4] sm:$0xff] %v1270
  %1281 = vst [vmem:[#allocation2 + $0x3dc] sm:$0xff] %v1272
  %1282 = vst [vmem:[#allocation2 + $0x3e4] sm:$0xff] %v1274
  %1283 = vst [vmem:[#allocation2 + $0x3ec] sm:$0xf] %v1275
  %v1284 = vld [vmem:[%s0] sm:$0xff]
  %v1285 = vld [vmem:[%s0 + $0x8] sm:$0xff]
  %v1286 = vld [vmem:[%s0 + $0x10] sm:$0xff]
  %v1287 = vld [vmem:[%s0 + $0x18] sm:$0xff]
  %1292 = vrot.lane.b32.xlu0 %v1284, 17
  %v1293 = vpop.permute.xlu0 %1292
  %1294 = vrot.lane.b32.xlu0 %v1285, 17
  %v1295 = vpop.permute.xlu0 %1294
  %1296 = vrot.lane.b32.xlu0 %v1286, 17
  %v1297 = vpop.permute.xlu0 %1296
  %1298 = vrot.lane.b32.xlu0 %v1287, 17
  %v1299 = vpop.permute.xlu0 %1298
  %v1300 = vrot.slane %v1293, 4
  %v1301 = vrot.slane %v1295, 4
  %v1302 = vrot.slane %v1297, 4
  %v1303 = vrot.slane %v1299, 4
  %v1304 = vsel %vm43, %v1300, %v1301
  %vm1305 = vcmask 138240
  %v1306 = vsel %vm1305, %v1293, %v1304
  %v1307 = vsel %vm43, %v1301, %v1302
  %v1308 = vsel %vm1305, %v1295, %v1307
  %v1309 = vsel %vm43, %v1302, %v1303
  %v1310 = vsel %vm1305, %v1297, %v1309
  %v1311 = vsel %vm1305, %v1299, %v1303
  %1316 = vst [vmem:[#allocation2 + $0x3f0] sm:$0xff] %v1306
  %1317 = vst [vmem:[#allocation2 + $0x3f8] sm:$0xff] %v1308
  %1318 = vst [vmem:[#allocation2 + $0x400] sm:$0xff] %v1310
  %1319 = vst [vmem:[#allocation2 + $0x408] sm:$0xf] %v1311
  %v1320 = vld [vmem:[%s0] sm:$0xff]
  %v1321 = vld [vmem:[%s0 + $0x8] sm:$0xff]
  %v1322 = vld [vmem:[%s0 + $0x10] sm:$0xff]
  %v1323 = vld [vmem:[%s0 + $0x18] sm:$0xff]
  %1328 = vrot.lane.b32.xlu0 %v1320, 16
  %v1329 = vpop.permute.xlu0 %1328
  %1330 = vrot.lane.b32.xlu0 %v1321, 16
  %v1331 = vpop.permute.xlu0 %1330
  %1332 = vrot.lane.b32.xlu0 %v1322, 16
  %v1333 = vpop.permute.xlu0 %1332
  %1334 = vrot.lane.b32.xlu0 %v1323, 16
  %v1335 = vpop.permute.xlu0 %1334
  %v1336 = vrot.slane %v1329, 4
  %v1337 = vrot.slane %v1331, 4
  %v1338 = vrot.slane %v1333, 4
  %v1339 = vrot.slane %v1335, 4
  %v1340 = vsel %vm43, %v1336, %v1337
  %vm1341 = vcmask 130048
  %v1342 = vsel %vm1341, %v1329, %v1340
  %v1343 = vsel %vm43, %v1337, %v1338
  %v1344 = vsel %vm1341, %v1331, %v1343
  %v1345 = vsel %vm43, %v1338, %v1339
  %v1346 = vsel %vm1341, %v1333, %v1345
  %v1347 = vsel %vm1341, %v1335, %v1339
  %1352 = vst [vmem:[#allocation2 + $0x40c] sm:$0xff] %v1342
  %1353 = vst [vmem:[#allocation2 + $0x414] sm:$0xff] %v1344
  %1354 = vst [vmem:[#allocation2 + $0x41c] sm:$0xff] %v1346
  %1355 = vst [vmem:[#allocation2 + $0x424] sm:$0xf] %v1347
  %v1356 = vld [vmem:[%s0] sm:$0xff]
  %v1357 = vld [vmem:[%s0 + $0x8] sm:$0xff]
  %v1358 = vld [vmem:[%s0 + $0x10] sm:$0xff]
  %v1359 = vld [vmem:[%s0 + $0x18] sm:$0xff]
  %1364 = vrot.lane.b32.xlu0 %v1356, 15
  %v1365 = vpop.permute.xlu0 %1364
  %1366 = vrot.lane.b32.xlu0 %v1357, 15
  %v1367 = vpop.permute.xlu0 %1366
  %1368 = vrot.lane.b32.xlu0 %v1358, 15
  %v1369 = vpop.permute.xlu0 %1368
  %1370 = vrot.lane.b32.xlu0 %v1359, 15
  %v1371 = vpop.permute.xlu0 %1370
  %v1372 = vrot.slane %v1365, 4
  %v1373 = vrot.slane %v1367, 4
  %v1374 = vrot.slane %v1369, 4
  %v1375 = vrot.slane %v1371, 4
  %v1376 = vsel %vm43, %v1372, %v1373
  %vm1377 = vcmask 121856
  %v1378 = vsel %vm1377, %v1365, %v1376
  %v1379 = vsel %vm43, %v1373, %v1374
  %v1380 = vsel %vm1377, %v1367, %v1379
  %v1381 = vsel %vm43, %v1374, %v1375
  %v1382 = vsel %vm1377, %v1369, %v1381
  %v1383 = vsel %vm1377, %v1371, %v1375
  %1388 = vst [vmem:[#allocation2 + $0x428] sm:$0xff] %v1378
  %1389 = vst [vmem:[#allocation2 + $0x430] sm:$0xff] %v1380
  %1390 = vst [vmem:[#allocation2 + $0x438] sm:$0xff] %v1382
  %1391 = vst [vmem:[#allocation2 + $0x440] sm:$0xf] %v1383
  %v1392 = vld [vmem:[%s0] sm:$0xff]
  %v1393 = vld [vmem:[%s0 + $0x8] sm:$0xff]
  %v1394 = vld [vmem:[%s0 + $0x10] sm:$0xff]
  %v1395 = vld [vmem:[%s0 + $0x18] sm:$0xff]
  %1400 = vrot.lane.b32.xlu0 %v1392, 14
  %v1401 = vpop.permute.xlu0 %1400
  %1402 = vrot.lane.b32.xlu0 %v1393, 14
  %v1403 = vpop.permute.xlu0 %1402
  %1404 = vrot.lane.b32.xlu0 %v1394, 14
  %v1405 = vpop.permute.xlu0 %1404
  %1406 = vrot.lane.b32.xlu0 %v1395, 14
  %v1407 = vpop.permute.xlu0 %1406
  %v1408 = vrot.slane %v1401, 4
  %v1409 = vrot.slane %v1403, 4
  %v1410 = vrot.slane %v1405, 4
  %v1411 = vrot.slane %v1407, 4
  %v1412 = vsel %vm43, %v1408, %v1409
  %vm1413 = vcmask 113664
  %v1414 = vsel %vm1413, %v1401, %v1412
  %v1415 = vsel %vm43, %v1409, %v1410
  %v1416 = vsel %vm1413, %v1403, %v1415
  %v1417 = vsel %vm43, %v1410, %v1411
  %v1418 = vsel %vm1413, %v1405, %v1417
  %v1419 = vsel %vm1413, %v1407, %v1411
  %1424 = vst [vmem:[#allocation2 + $0x444] sm:$0xff] %v1414
  %1425 = vst [vmem:[#allocation2 + $0x44c] sm:$0xff] %v1416
  %1426 = vst [vmem:[#allocation2 + $0x454] sm:$0xff] %v1418
  %1427 = vst [vmem:[#allocation2 + $0x45c] sm:$0xf] %v1419
  %v1428 = vld [vmem:[%s0] sm:$0xff]
  %v1429 = vld [vmem:[%s0 + $0x8] sm:$0xff]
  %v1430 = vld [vmem:[%s0 + $0x10] sm:$0xff]
  %v1431 = vld [vmem:[%s0 + $0x18] sm:$0xff]
  %1436 = vrot.lane.b32.xlu0 %v1428, 13
  %v1437 = vpop.permute.xlu0 %1436
  %1438 = vrot.lane.b32.xlu0 %v1429, 13
  %v1439 = vpop.permute.xlu0 %1438
  %1440 = vrot.lane.b32.xlu0 %v1430, 13
  %v1441 = vpop.permute.xlu0 %1440
  %1442 = vrot.lane.b32.xlu0 %v1431, 13
  %v1443 = vpop.permute.xlu0 %1442
  %v1444 = vrot.slane %v1437, 4
  %v1445 = vrot.slane %v1439, 4
  %v1446 = vrot.slane %v1441, 4
  %v1447 = vrot.slane %v1443, 4
  %v1448 = vsel %vm43, %v1444, %v1445
  %vm1449 = vcmask 105472
  %v1450 = vsel %vm1449, %v1437, %v1448
  %v1451 = vsel %vm43, %v1445, %v1446
  %v1452 = vsel %vm1449, %v1439, %v1451
  %v1453 = vsel %vm43, %v1446, %v1447
  %v1454 = vsel %vm1449, %v1441, %v1453
  %v1455 = vsel %vm1449, %v1443, %v1447
  %1460 = vst [vmem:[#allocation2 + $0x460] sm:$0xff] %v1450
  %1461 = vst [vmem:[#allocation2 + $0x468] sm:$0xff] %v1452
  %1462 = vst [vmem:[#allocation2 + $0x470] sm:$0xff] %v1454
  %1463 = vst [vmem:[#allocation2 + $0x478] sm:$0xf] %v1455
  %v1464 = vld [vmem:[%s0] sm:$0xff]
  %v1465 = vld [vmem:[%s0 + $0x8] sm:$0xff]
  %v1466 = vld [vmem:[%s0 + $0x10] sm:$0xff]
  %v1467 = vld [vmem:[%s0 + $0x18] sm:$0xff]
  %1472 = vrot.lane.b32.xlu0 %v1464, 12
  %v1473 = vpop.permute.xlu0 %1472
  %1474 = vrot.lane.b32.xlu0 %v1465, 12
  %v1475 = vpop.permute.xlu0 %1474
  %1476 = vrot.lane.b32.xlu0 %v1466, 12
  %v1477 = vpop.permute.xlu0 %1476
  %1478 = vrot.lane.b32.xlu0 %v1467, 12
  %v1479 = vpop.permute.xlu0 %1478
  %v1480 = vrot.slane %v1473, 4
  %v1481 = vrot.slane %v1475, 4
  %v1482 = vrot.slane %v1477, 4
  %v1483 = vrot.slane %v1479, 4
  %v1484 = vsel %vm43, %v1480, %v1481
  %vm1485 = vcmask 97280
  %v1486 = vsel %vm1485, %v1473, %v1484
  %v1487 = vsel %vm43, %v1481, %v1482
  %v1488 = vsel %vm1485, %v1475, %v1487
  %v1489 = vsel %vm43, %v1482, %v1483
  %v1490 = vsel %vm1485, %v1477, %v1489
  %v1491 = vsel %vm1485, %v1479, %v1483
  %1496 = vst [vmem:[#allocation2 + $0x47c] sm:$0xff] %v1486
  %1497 = vst [vmem:[#allocation2 + $0x484] sm:$0xff] %v1488
  %1498 = vst [vmem:[#allocation2 + $0x48c] sm:$0xff] %v1490
  %1499 = vst [vmem:[#allocation2 + $0x494] sm:$0xf] %v1491
  %v1500 = vld [vmem:[%s0 + $0x4] sm:$0xff]
  %v1501 = vld [vmem:[%s0 + $0xc] sm:$0xff]
  %v1502 = vld [vmem:[%s0 + $0x14] sm:$0xff]
  %v1503 = vld [vmem:[%s0 + $0x1c] sm:$0xff]
  %1508 = vrot.lane.b32.xlu0 %v1500, 124
  %v1509 = vpop.permute.xlu0 %1508
  %1510 = vrot.lane.b32.xlu0 %v1501, 124
  %v1511 = vpop.permute.xlu0 %1510
  %1512 = vrot.lane.b32.xlu0 %v1502, 124
  %v1513 = vpop.permute.xlu0 %1512
  %1514 = vrot.lane.b32.xlu0 %v1503, 124
  %v1515 = vpop.permute.xlu0 %1514
  %v1516 = vrot.slane %v1509, 4
  %v1517 = vrot.slane %v1511, 4
  %v1518 = vrot.slane %v1513, 4
  %v1519 = vrot.slane %v1515, 4
  %v1520 = vsel %vm43, %v1516, %v1517
  %v1521 = vsel %vm153, %v1509, %v1520
  %v1522 = vsel %vm43, %v1517, %v1518
  %v1523 = vsel %vm153, %v1511, %v1522
  %v1524 = vsel %vm43, %v1518, %v1519
  %v1525 = vsel %vm153, %v1513, %v1524
  %v1526 = vsel %vm153, %v1515, %v1519
  %1531 = vst [vmem:[#allocation2 + $0x498] sm:$0xff] %v1521
  %1532 = vst [vmem:[#allocation2 + $0x4a0] sm:$0xff] %v1523
  %1533 = vst [vmem:[#allocation2 + $0x4a8] sm:$0xff] %v1525
  %1534 = vst [vmem:[#allocation2 + $0x4b0] sm:$0xf] %v1526
  %v1535 = vld [vmem:[%s0 + $0x4] sm:$0xff]
  %v1536 = vld [vmem:[%s0 + $0xc] sm:$0xff]
  %v1537 = vld [vmem:[%s0 + $0x14] sm:$0xff]
  %v1538 = vld [vmem:[%s0 + $0x1c] sm:$0xff]
  %1543 = vrot.lane.b32.xlu0 %v1535, 123
  %v1544 = vpop.permute.xlu0 %1543
  %1545 = vrot.lane.b32.xlu0 %v1536, 123
  %v1546 = vpop.permute.xlu0 %1545
  %1547 = vrot.lane.b32.xlu0 %v1537, 123
  %v1548 = vpop.permute.xlu0 %1547
  %1549 = vrot.lane.b32.xlu0 %v1538, 123
  %v1550 = vpop.permute.xlu0 %1549
  %v1551 = vrot.slane %v1544, 4
  %v1552 = vrot.slane %v1546, 4
  %v1553 = vrot.slane %v1548, 4
  %v1554 = vrot.slane %v1550, 4
  %v1555 = vsel %vm43, %v1551, %v1552
  %v1556 = vsel %vm189, %v1544, %v1555
  %v1557 = vsel %vm43, %v1552, %v1553
  %v1558 = vsel %vm189, %v1546, %v1557
  %v1559 = vsel %vm43, %v1553, %v1554
  %v1560 = vsel %vm189, %v1548, %v1559
  %v1561 = vsel %vm189, %v1550, %v1554
  %1566 = vst [vmem:[#allocation2 + $0x4b4] sm:$0xff] %v1556
  %1567 = vst [vmem:[#allocation2 + $0x4bc] sm:$0xff] %v1558
  %1568 = vst [vmem:[#allocation2 + $0x4c4] sm:$0xff] %v1560
  %1569 = vst [vmem:[#allocation2 + $0x4cc] sm:$0xf] %v1561
  %v1570 = vld [vmem:[%s0 + $0x4] sm:$0xff]
  %v1571 = vld [vmem:[%s0 + $0xc] sm:$0xff]
  %v1572 = vld [vmem:[%s0 + $0x14] sm:$0xff]
  %v1573 = vld [vmem:[%s0 + $0x1c] sm:$0xff]
  %1578 = vrot.lane.b32.xlu0 %v1570, 122
  %v1579 = vpop.permute.xlu0 %1578
  %1580 = vrot.lane.b32.xlu0 %v1571, 122
  %v1581 = vpop.permute.xlu0 %1580
  %1582 = vrot.lane.b32.xlu0 %v1572, 122
  %v1583 = vpop.permute.xlu0 %1582
  %1584 = vrot.lane.b32.xlu0 %v1573, 122
  %v1585 = vpop.permute.xlu0 %1584
  %v1586 = vrot.slane %v1579, 4
  %v1587 = vrot.slane %v1581, 4
  %v1588 = vrot.slane %v1583, 4
  %v1589 = vrot.slane %v1585, 4
  %v1590 = vsel %vm43, %v1586, %v1587
  %v1591 = vsel %vm225, %v1579, %v1590
  %v1592 = vsel %vm43, %v1587, %v1588
  %v1593 = vsel %vm225, %v1581, %v1592
  %v1594 = vsel %vm43, %v1588, %v1589
  %v1595 = vsel %vm225, %v1583, %v1594
  %v1596 = vsel %vm225, %v1585, %v1589
  %1601 = vst [vmem:[#allocation2 + $0x4d0] sm:$0xff] %v1591
  %1602 = vst [vmem:[#allocation2 + $0x4d8] sm:$0xff] %v1593
  %1603 = vst [vmem:[#allocation2 + $0x4e0] sm:$0xff] %v1595
  %1604 = vst [vmem:[#allocation2 + $0x4e8] sm:$0xf] %v1596
  %v1605 = vld [vmem:[%s0 + $0x4] sm:$0xff]
  %v1606 = vld [vmem:[%s0 + $0xc] sm:$0xff]
  %v1607 = vld [vmem:[%s0 + $0x14] sm:$0xff]
  %v1608 = vld [vmem:[%s0 + $0x1c] sm:$0xff]
  %1613 = vrot.lane.b32.xlu0 %v1605, 121
  %v1614 = vpop.permute.xlu0 %1613
  %1615 = vrot.lane.b32.xlu0 %v1606, 121
  %v1616 = vpop.permute.xlu0 %1615
  %1617 = vrot.lane.b32.xlu0 %v1607, 121
  %v1618 = vpop.permute.xlu0 %1617
  %1619 = vrot.lane.b32.xlu0 %v1608, 121
  %v1620 = vpop.permute.xlu0 %1619
  %v1621 = vrot.slane %v1614, 4
  %v1622 = vrot.slane %v1616, 4
  %v1623 = vrot.slane %v1618, 4
  %v1624 = vrot.slane %v1620, 4
  %v1625 = vsel %vm43, %v1621, %v1622
  %vm1626 = vcmask 990208
  %v1627 = vsel %vm1626, %v1614, %v1625
  %v1628 = vsel %vm43, %v1622, %v1623
  %v1629 = vsel %vm1626, %v1616, %v1628
  %v1630 = vsel %vm43, %v1623, %v1624
  %v1631 = vsel %vm1626, %v1618, %v1630
  %v1632 = vsel %vm1626, %v1620, %v1624
  %1637 = vst [vmem:[#allocation2 + $0x4ec] sm:$0xff] %v1627
  %1638 = vst [vmem:[#allocation2 + $0x4f4] sm:$0xff] %v1629
  %1639 = vst [vmem:[#allocation2 + $0x4fc] sm:$0xff] %v1631
  %1640 = vst [vmem:[#allocation2 + $0x504] sm:$0xf] %v1632
  %v1641 = vld [vmem:[%s0 + $0x4] sm:$0xff]
  %v1642 = vld [vmem:[%s0 + $0xc] sm:$0xff]
  %v1643 = vld [vmem:[%s0 + $0x14] sm:$0xff]
  %v1644 = vld [vmem:[%s0 + $0x1c] sm:$0xff]
  %1649 = vrot.lane.b32.xlu0 %v1641, 120
  %v1650 = vpop.permute.xlu0 %1649
  %1651 = vrot.lane.b32.xlu0 %v1642, 120
  %v1652 = vpop.permute.xlu0 %1651
  %1653 = vrot.lane.b32.xlu0 %v1643, 120
  %v1654 = vpop.permute.xlu0 %1653
  %1655 = vrot.lane.b32.xlu0 %v1644, 120
  %v1656 = vpop.permute.xlu0 %1655
  %v1657 = vrot.slane %v1650, 4
  %v1658 = vrot.slane %v1652, 4
  %v1659 = vrot.slane %v1654, 4
  %v1660 = vrot.slane %v1656, 4
  %v1661 = vsel %vm43, %v1657, %v1658
  %vm1662 = vcmask 982016
  %v1663 = vsel %vm1662, %v1650, %v1661
  %v1664 = vsel %vm43, %v1658, %v1659
  %v1665 = vsel %vm1662, %v1652, %v1664
  %v1666 = vsel %vm43, %v1659, %v1660
  %v1667 = vsel %vm1662, %v1654, %v1666
  %v1668 = vsel %vm1662, %v1656, %v1660
  %1673 = vst [vmem:[#allocation2 + $0x508] sm:$0xff] %v1663
  %1674 = vst [vmem:[#allocation2 + $0x510] sm:$0xff] %v1665
  %1675 = vst [vmem:[#allocation2 + $0x518] sm:$0xff] %v1667
  %1676 = vst [vmem:[#allocation2 + $0x520] sm:$0xf] %v1668
  %v1677 = vld [vmem:[%s0 + $0x4] sm:$0xff]
  %v1678 = vld [vmem:[%s0 + $0xc] sm:$0xff]
  %v1679 = vld [vmem:[%s0 + $0x14] sm:$0xff]
  %v1680 = vld [vmem:[%s0 + $0x1c] sm:$0xff]
  %1685 = vrot.lane.b32.xlu0 %v1677, 119
  %v1686 = vpop.permute.xlu0 %1685
  %1687 = vrot.lane.b32.xlu0 %v1678, 119
  %v1688 = vpop.permute.xlu0 %1687
  %1689 = vrot.lane.b32.xlu0 %v1679, 119
  %v1690 = vpop.permute.xlu0 %1689
  %1691 = vrot.lane.b32.xlu0 %v1680, 119
  %v1692 = vpop.permute.xlu0 %1691
  %v1693 = vrot.slane %v1686, 4
  %v1694 = vrot.slane %v1688, 4
  %v1695 = vrot.slane %v1690, 4
  %v1696 = vrot.slane %v1692, 4
  %v1697 = vsel %vm43, %v1693, %v1694
  %vm1698 = vcmask 973824
  %v1699 = vsel %vm1698, %v1686, %v1697
  %v1700 = vsel %vm43, %v1694, %v1695
  %v1701 = vsel %vm1698, %v1688, %v1700
  %v1702 = vsel %vm43, %v1695, %v1696
  %v1703 = vsel %vm1698, %v1690, %v1702
  %v1704 = vsel %vm1698, %v1692, %v1696
  %1709 = vst [vmem:[#allocation2 + $0x524] sm:$0xff] %v1699
  %1710 = vst [vmem:[#allocation2 + $0x52c] sm:$0xff] %v1701
  %1711 = vst [vmem:[#allocation2 + $0x534] sm:$0xff] %v1703
  %1712 = vst [vmem:[#allocation2 + $0x53c] sm:$0xf] %v1704
  %v1713 = vld [vmem:[%s0 + $0x4] sm:$0xff]
  %v1714 = vld [vmem:[%s0 + $0xc] sm:$0xff]
  %v1715 = vld [vmem:[%s0 + $0x14] sm:$0xff]
  %v1716 = vld [vmem:[%s0 + $0x1c] sm:$0xff]
  %1721 = vrot.lane.b32.xlu0 %v1713, 118
  %v1722 = vpop.permute.xlu0 %1721
  %1723 = vrot.lane.b32.xlu0 %v1714, 118
  %v1724 = vpop.permute.xlu0 %1723
  %1725 = vrot.lane.b32.xlu0 %v1715, 118
  %v1726 = vpop.permute.xlu0 %1725
  %1727 = vrot.lane.b32.xlu0 %v1716, 118
  %v1728 = vpop.permute.xlu0 %1727
  %v1729 = vrot.slane %v1722, 4
  %v1730 = vrot.slane %v1724, 4
  %v1731 = vrot.slane %v1726, 4
  %v1732 = vrot.slane %v1728, 4
  %v1733 = vsel %vm43, %v1729, %v1730
  %vm1734 = vcmask 965632
  %v1735 = vsel %vm1734, %v1722, %v1733
  %v1736 = vsel %vm43, %v1730, %v1731
  %v1737 = vsel %vm1734, %v1724, %v1736
  %v1738 = vsel %vm43, %v1731, %v1732
  %v1739 = vsel %vm1734, %v1726, %v1738
  %v1740 = vsel %vm1734, %v1728, %v1732
  %1745 = vst [vmem:[#allocation2 + $0x540] sm:$0xff] %v1735
  %1746 = vst [vmem:[#allocation2 + $0x548] sm:$0xff] %v1737
  %1747 = vst [vmem:[#allocation2 + $0x550] sm:$0xff] %v1739
  %1748 = vst [vmem:[#allocation2 + $0x558] sm:$0xf] %v1740
  %v1749 = vld [vmem:[%s1] sm:$0xff]
  %v1750 = vld [vmem:[%s1 + $0x8] sm:$0xff]
  %v1751 = vld [vmem:[#allocation2] sm:$0xff]
  %v1752 = vld [vmem:[#allocation2 + $0x8] sm:$0xff]
  %v1753 = vld [vmem:[#allocation2 + $0x10] sm:$0xff]
  %v1754 = vld [vmem:[#allocation2 + $0x18] sm:$0xf]
  %v1755 = vld [vmem:[#allocation2 + $0x1c] sm:$0xff]
  %v1756 = vld [vmem:[#allocation2 + $0x24] sm:$0xff]
  %v1757 = vld [vmem:[#allocation2 + $0x2c] sm:$0xff]
  %v1758 = vld [vmem:[#allocation2 + $0x34] sm:$0xf]
  %v1759 = vld [vmem:[#allocation2 + $0x38] sm:$0xff]
  %v1760 = vld [vmem:[#allocation2 + $0x40] sm:$0xff]
  %v1761 = vld [vmem:[#allocation2 + $0x48] sm:$0xff]
  %v1762 = vld [vmem:[#allocation2 + $0x50] sm:$0xf]
  %v1763 = vld [vmem:[#allocation2 + $0x54] sm:$0xff]
  %v1764 = vld [vmem:[#allocation2 + $0x5c] sm:$0xff]
  %v1765 = vld [vmem:[#allocation2 + $0x64] sm:$0xff]
  %v1766 = vld [vmem:[#allocation2 + $0x6c] sm:$0xf]
  %v1767 = vld [vmem:[#allocation2 + $0x70] sm:$0xff]
  %v1768 = vld [vmem:[#allocation2 + $0x78] sm:$0xff]
  %v1769 = vld [vmem:[#allocation2 + $0x80] sm:$0xff]
  %v1770 = vld [vmem:[#allocation2 + $0x88] sm:$0xf]
  %v1771 = vld [vmem:[#allocation2 + $0x8c] sm:$0xff]
  %v1772 = vld [vmem:[#allocation2 + $0x94] sm:$0xff]
  %v1773 = vld [vmem:[#allocation2 + $0x9c] sm:$0xff]
  %v1774 = vld [vmem:[#allocation2 + $0xa4] sm:$0xf]
  %v1775 = vld [vmem:[#allocation2 + $0xa8] sm:$0xff]
  %v1776 = vld [vmem:[#allocation2 + $0xb0] sm:$0xff]
  %v1777 = vld [vmem:[#allocation2 + $0xb8] sm:$0xff]
  %v1778 = vld [vmem:[#allocation2 + $0xc0] sm:$0xf]
  %v1779 = vld [vmem:[#allocation2 + $0xc4] sm:$0xff]
  %v1780 = vld [vmem:[#allocation2 + $0xcc] sm:$0xff]
  %v1781 = vld [vmem:[#allocation2 + $0xd4] sm:$0xff]
  %v1782 = vld [vmem:[#allocation2 + $0xdc] sm:$0xf]
  %v1783 = vld [vmem:[#allocation2 + $0xe0] sm:$0xff]
  %v1784 = vld [vmem:[#allocation2 + $0xe8] sm:$0xff]
  %v1785 = vld [vmem:[#allocation2 + $0xf0] sm:$0xff]
  %v1786 = vld [vmem:[#allocation2 + $0xf8] sm:$0xf]
  %v1787 = vld [vmem:[#allocation2 + $0xfc] sm:$0xff]
  %v1788 = vld [vmem:[#allocation2 + $0x104] sm:$0xff]
  %v1789 = vld [vmem:[#allocation2 + $0x10c] sm:$0xff]
  %v1790 = vld [vmem:[#allocation2 + $0x114] sm:$0xf]
  %v1791 = vld [vmem:[#allocation2 + $0x118] sm:$0xff]
  %v1792 = vld [vmem:[#allocation2 + $0x120] sm:$0xff]
  %v1793 = vld [vmem:[#allocation2 + $0x128] sm:$0xff]
  %v1794 = vld [vmem:[#allocation2 + $0x130] sm:$0xf]
  %v1795 = vld [vmem:[#allocation2 + $0x134] sm:$0xff]
  %v1796 = vld [vmem:[#allocation2 + $0x13c] sm:$0xff]
  %v1797 = vld [vmem:[#allocation2 + $0x144] sm:$0xff]
  %v1798 = vld [vmem:[#allocation2 + $0x14c] sm:$0xf]
  %v1799 = vld [vmem:[#allocation2 + $0x150] sm:$0xff]
  %v1800 = vld [vmem:[#allocation2 + $0x158] sm:$0xff]
  %v1801 = vld [vmem:[#allocation2 + $0x160] sm:$0xff]
  %v1802 = vld [vmem:[#allocation2 + $0x168] sm:$0xf]
  %v1803 = vld [vmem:[#allocation2 + $0x16c] sm:$0xff]
  %v1804 = vld [vmem:[#allocation2 + $0x174] sm:$0xff]
  %v1805 = vld [vmem:[#allocation2 + $0x17c] sm:$0xff]
  %v1806 = vld [vmem:[#allocation2 + $0x184] sm:$0xf]
  %v1807 = vld [vmem:[#allocation2 + $0x188] sm:$0xff]
  %v1808 = vld [vmem:[#allocation2 + $0x190] sm:$0xff]
  %v1809 = vld [vmem:[#allocation2 + $0x198] sm:$0xff]
  %v1810 = vld [vmem:[#allocation2 + $0x1a0] sm:$0xf]
  %v1811 = vld [vmem:[#allocation2 + $0x1a4] sm:$0xff]
  %v1812 = vld [vmem:[#allocation2 + $0x1ac] sm:$0xff]
  %v1813 = vld [vmem:[#allocation2 + $0x1b4] sm:$0xff]
  %v1814 = vld [vmem:[#allocation2 + $0x1bc] sm:$0xf]
  %v1815 = vld [vmem:[#allocation2 + $0x1c0] sm:$0xff]
  %v1816 = vld [vmem:[#allocation2 + $0x1c8] sm:$0xff]
  %v1817 = vld [vmem:[#allocation2 + $0x1d0] sm:$0xff]
  %v1818 = vld [vmem:[#allocation2 + $0x1d8] sm:$0xf]
  %v1819 = vld [vmem:[#allocation2 + $0x1dc] sm:$0xff]
  %v1820 = vld [vmem:[#allocation2 + $0x1e4] sm:$0xff]
  %v1821 = vld [vmem:[#allocation2 + $0x1ec] sm:$0xff]
  %v1822 = vld [vmem:[#allocation2 + $0x1f4] sm:$0xf]
  %v1823 = vld [vmem:[#allocation2 + $0x1f8] sm:$0xff]
  %v1824 = vld [vmem:[#allocation2 + $0x200] sm:$0xff]
  %v1825 = vld [vmem:[#allocation2 + $0x208] sm:$0xff]
  %v1826 = vld [vmem:[#allocation2 + $0x210] sm:$0xf]
  %v1827 = vld [vmem:[#allocation2 + $0x214] sm:$0xff]
  %v1828 = vld [vmem:[#allocation2 + $0x21c] sm:$0xff]
  %v1829 = vld [vmem:[#allocation2 + $0x224] sm:$0xff]
  %v1830 = vld [vmem:[#allocation2 + $0x22c] sm:$0xf]
  %v1831 = vld [vmem:[#allocation2 + $0x230] sm:$0xff]
  %v1832 = vld [vmem:[#allocation2 + $0x238] sm:$0xff]
  %v1833 = vld [vmem:[#allocation2 + $0x240] sm:$0xff]
  %v1834 = vld [vmem:[#allocation2 + $0x248] sm:$0xf]
  %v1835 = vld [vmem:[#allocation2 + $0x24c] sm:$0xff]
  %v1836 = vld [vmem:[#allocation2 + $0x254] sm:$0xff]
  %v1837 = vld [vmem:[#allocation2 + $0x25c] sm:$0xff]
  %v1838 = vld [vmem:[#allocation2 + $0x264] sm:$0xf]
  %v1839 = vld [vmem:[#allocation2 + $0x268] sm:$0xff]
  %v1840 = vld [vmem:[#allocation2 + $0x270] sm:$0xff]
  %v1841 = vld [vmem:[#allocation2 + $0x278] sm:$0xff]
  %v1842 = vld [vmem:[#allocation2 + $0x280] sm:$0xf]
  %v1843 = vld [vmem:[#allocation2 + $0x284] sm:$0xff]
  %v1844 = vld [vmem:[#allocation2 + $0x28c] sm:$0xff]
  %v1845 = vld [vmem:[#allocation2 + $0x294] sm:$0xff]
  %v1846 = vld [vmem:[#allocation2 + $0x29c] sm:$0xf]
  %v1847 = vld [vmem:[#allocation2 + $0x2a0] sm:$0xff]
  %v1848 = vld [vmem:[#allocation2 + $0x2a8] sm:$0xff]
  %v1849 = vld [vmem:[#allocation2 + $0x2b0] sm:$0xff]
  %v1850 = vld [vmem:[#allocation2 + $0x2b8] sm:$0xf]
  %v1851 = vld [vmem:[#allocation2 + $0x2bc] sm:$0xff]
  %v1852 = vld [vmem:[#allocation2 + $0x2c4] sm:$0xff]
  %v1853 = vld [vmem:[#allocation2 + $0x2cc] sm:$0xff]
  %v1854 = vld [vmem:[#allocation2 + $0x2d4] sm:$0xf]
  %v1855 = vld [vmem:[#allocation2 + $0x2d8] sm:$0xff]
  %v1856 = vld [vmem:[#allocation2 + $0x2e0] sm:$0xff]
  %v1857 = vld [vmem:[#allocation2 + $0x2e8] sm:$0xff]
  %v1858 = vld [vmem:[#allocation2 + $0x2f0] sm:$0xf]
  %v1859 = vld [vmem:[#allocation2 + $0x2f4] sm:$0xff]
  %v1860 = vld [vmem:[#allocation2 + $0x2fc] sm:$0xff]
  %v1861 = vld [vmem:[#allocation2 + $0x304] sm:$0xff]
  %v1862 = vld [vmem:[#allocation2 + $0x30c] sm:$0xf]
  %v1863 = vld [vmem:[#allocation2 + $0x310] sm:$0xff]
  %v1864 = vld [vmem:[#allocation2 + $0x318] sm:$0xff]
  %v1865 = vld [vmem:[#allocation2 + $0x320] sm:$0xff]
  %v1866 = vld [vmem:[#allocation2 + $0x328] sm:$0xf]
  %v1867 = vld [vmem:[#allocation2 + $0x32c] sm:$0xff]
  %v1868 = vld [vmem:[#allocation2 + $0x334] sm:$0xff]
  %v1869 = vld [vmem:[#allocation2 + $0x33c] sm:$0xff]
  %v1870 = vld [vmem:[#allocation2 + $0x344] sm:$0xf]
  %v1871 = vld [vmem:[#allocation2 + $0x348] sm:$0xff]
  %v1872 = vld [vmem:[#allocation2 + $0x350] sm:$0xff]
  %v1873 = vld [vmem:[#allocation2 + $0x358] sm:$0xff]
  %v1874 = vld [vmem:[#allocation2 + $0x360] sm:$0xf]
  %v1875 = vld [vmem:[#allocation2 + $0x364] sm:$0xff]
  %v1876 = vld [vmem:[#allocation2 + $0x36c] sm:$0xff]
  %v1877 = vld [vmem:[#allocation2 + $0x374] sm:$0xff]
  %v1878 = vld [vmem:[#allocation2 + $0x37c] sm:$0xf]
  %v1879 = vld [vmem:[#allocation2 + $0x380] sm:$0xff]
  %v1880 = vld [vmem:[#allocation2 + $0x388] sm:$0xff]
  %v1881 = vld [vmem:[#allocation2 + $0x390] sm:$0xff]
  %v1882 = vld [vmem:[#allocation2 + $0x398] sm:$0xf]
  %v1883 = vld [vmem:[#allocation2 + $0x39c] sm:$0xff]
  %v1884 = vld [vmem:[#allocation2 + $0x3a4] sm:$0xff]
  %v1885 = vld [vmem:[#allocation2 + $0x3ac] sm:$0xff]
  %v1886 = vld [vmem:[#allocation2 + $0x3b4] sm:$0xf]
  %v1887 = vld [vmem:[#allocation2 + $0x3b8] sm:$0xff]
  %v1888 = vld [vmem:[#allocation2 + $0x3c0] sm:$0xff]
  %v1889 = vld [vmem:[#allocation2 + $0x3c8] sm:$0xff]
  %v1890 = vld [vmem:[#allocation2 + $0x3d0] sm:$0xf]
  %v1891 = vld [vmem:[#allocation2 + $0x3d4] sm:$0xff]
  %v1892 = vld [vmem:[#allocation2 + $0x3dc] sm:$0xff]
  %v1893 = vld [vmem:[#allocation2 + $0x3e4] sm:$0xff]
  %v1894 = vld [vmem:[#allocation2 + $0x3ec] sm:$0xf]
  %v1895 = vld [vmem:[#allocation2 + $0x3f0] sm:$0xff]
  %v1896 = vld [vmem:[#allocation2 + $0x3f8] sm:$0xff]
  %v1897 = vld [vmem:[#allocation2 + $0x400] sm:$0xff]
  %v1898 = vld [vmem:[#allocation2 + $0x408] sm:$0xf]
  %v1899 = vld [vmem:[#allocation2 + $0x40c] sm:$0xff]
  %v1900 = vld [vmem:[#allocation2 + $0x414] sm:$0xff]
  %v1901 = vld [vmem:[#allocation2 + $0x41c] sm:$0xff]
  %v1902 = vld [vmem:[#allocation2 + $0x424] sm:$0xf]
  %v1903 = vld [vmem:[#allocation2 + $0x428] sm:$0xff]
  %v1904 = vld [vmem:[#allocation2 + $0x430] sm:$0xff]
  %v1905 = vld [vmem:[#allocation2 + $0x438] sm:$0xff]
  %v1906 = vld [vmem:[#allocation2 + $0x440] sm:$0xf]
  %v1907 = vld [vmem:[#allocation2 + $0x444] sm:$0xff]
  %v1908 = vld [vmem:[#allocation2 + $0x44c] sm:$0xff]
  %v1909 = vld [vmem:[#allocation2 + $0x454] sm:$0xff]
  %v1910 = vld [vmem:[#allocation2 + $0x45c] sm:$0xf]
  %v1911 = vld [vmem:[#allocation2 + $0x460] sm:$0xff]
  %v1912 = vld [vmem:[#allocation2 + $0x468] sm:$0xff]
  %v1913 = vld [vmem:[#allocation2 + $0x470] sm:$0xff]
  %v1914 = vld [vmem:[#allocation2 + $0x478] sm:$0xf]
  %v1915 = vld [vmem:[#allocation2 + $0x47c] sm:$0xff]
  %v1916 = vld [vmem:[#allocation2 + $0x484] sm:$0xff]
  %v1917 = vld [vmem:[#allocation2 + $0x48c] sm:$0xff]
  %v1918 = vld [vmem:[#allocation2 + $0x494] sm:$0xf]
  %v1919 = vld [vmem:[#allocation2 + $0x498] sm:$0xff]
  %v1920 = vld [vmem:[#allocation2 + $0x4a0] sm:$0xff]
  %v1921 = vld [vmem:[#allocation2 + $0x4a8] sm:$0xff]
  %v1922 = vld [vmem:[#allocation2 + $0x4b0] sm:$0xf]
  %v1923 = vld [vmem:[#allocation2 + $0x4b4] sm:$0xff]
  %v1924 = vld [vmem:[#allocation2 + $0x4bc] sm:$0xff]
  %v1925 = vld [vmem:[#allocation2 + $0x4c4] sm:$0xff]
  %v1926 = vld [vmem:[#allocation2 + $0x4cc] sm:$0xf]
  %v1927 = vld [vmem:[#allocation2 + $0x4d0] sm:$0xff]
  %v1928 = vld [vmem:[#allocation2 + $0x4d8] sm:$0xff]
  %v1929 = vld [vmem:[#allocation2 + $0x4e0] sm:$0xff]
  %v1930 = vld [vmem:[#allocation2 + $0x4e8] sm:$0xf]
  %v1931 = vld [vmem:[#allocation2 + $0x4ec] sm:$0xff]
  %v1932 = vld [vmem:[#allocation2 + $0x4f4] sm:$0xff]
  %v1933 = vld [vmem:[#allocation2 + $0x4fc] sm:$0xff]
  %v1934 = vld [vmem:[#allocation2 + $0x504] sm:$0xf]
  %v1935 = vld [vmem:[#allocation2 + $0x508] sm:$0xff]
  %v1936 = vld [vmem:[#allocation2 + $0x510] sm:$0xff]
  %v1937 = vld [vmem:[#allocation2 + $0x518] sm:$0xff]
  %v1938 = vld [vmem:[#allocation2 + $0x520] sm:$0xf]
  %v1939 = vld [vmem:[#allocation2 + $0x524] sm:$0xff]
  %v1940 = vld [vmem:[#allocation2 + $0x52c] sm:$0xff]
  %v1941 = vld [vmem:[#allocation2 + $0x534] sm:$0xff]
  %v1942 = vld [vmem:[#allocation2 + $0x53c] sm:$0xf]
  %v1943 = vld [vmem:[#allocation2 + $0x540] sm:$0xff]
  %v1944 = vld [vmem:[#allocation2 + $0x548] sm:$0xff]
  %v1945 = vld [vmem:[#allocation2 + $0x550] sm:$0xff]
  %v1946 = vld [vmem:[#allocation2 + $0x558] sm:$0xf]
  %v1947 = vld [vmem:[%s2] sm:$0xff]
  %1949 = vset.pattern.permute.xlu0 0
  %1950 = vperm.xlu0 %1949, %v1947
  %v1951 = vpop.permute.xlu0 %1950
  %v1955 = vunpack.c.l.b16 %v1749
  %v1956 = vunpack.c.h.b16 %v1749
  %v1957 = vunpack.c.l.b16 %v1750
  %v1958 = vunpack.c.h.b16 %v1750
  %v1959 = vpack.c.b16 %v1955, %v1955
  %v1960 = vpack.c.b16 %v1956, %v1956
  %v1961 = vpack.c.b16 %v1957, %v1957
  %v1962 = vpack.c.b16 %v1958, %v1958
  %v2162 = vunpack.c.l.b16 %v1751
  %v2163 = vunpack.c.h.b16 %v1751
  %v2164 = vunpack.c.l.b16 %v1752
  %v2165 = vunpack.c.h.b16 %v1752
  %v2166 = vunpack.c.l.b16 %v1753
  %v2167 = vunpack.c.h.b16 %v1753
  %v2168 = vunpack.c.l.b16 %v1754
  %v2169 = vunpack.c.l.b16 %v1755
  %v2170 = vunpack.c.h.b16 %v1755
  %v2171 = vunpack.c.l.b16 %v1756
  %v2172 = vunpack.c.h.b16 %v1756
  %v2173 = vunpack.c.l.b16 %v1757
  %v2174 = vunpack.c.h.b16 %v1757
  %v2175 = vunpack.c.l.b16 %v1758
  %v2176 = vunpack.c.l.b16 %v1759
  %v2177 = vunpack.c.h.b16 %v1759
  %v2178 = vunpack.c.l.b16 %v1760
  %v2179 = vunpack.c.h.b16 %v1760
  %v2180 = vunpack.c.l.b16 %v1761
  %v2181 = vunpack.c.h.b16 %v1761
  %v2182 = vunpack.c.l.b16 %v1762
  %v2183 = vunpack.c.l.b16 %v1763
  %v2184 = vunpack.c.h.b16 %v1763
  %v2185 = vunpack.c.l.b16 %v1764
  %v2186 = vunpack.c.h.b16 %v1764
  %v2187 = vunpack.c.l.b16 %v1765
  %v2188 = vunpack.c.h.b16 %v1765
  %v2189 = vunpack.c.l.b16 %v1766
  %v2190 = vunpack.c.l.b16 %v1767
  %v2191 = vunpack.c.h.b16 %v1767
  %v2192 = vunpack.c.l.b16 %v1768
  %v2193 = vunpack.c.h.b16 %v1768
  %v2194 = vunpack.c.l.b16 %v1769
  %v2195 = vunpack.c.h.b16 %v1769
  %v2196 = vunpack.c.l.b16 %v1770
  %v2197 = vunpack.c.l.b16 %v1771
  %v2198 = vunpack.c.h.b16 %v1771
  %v2199 = vunpack.c.l.b16 %v1772
  %v2200 = vunpack.c.h.b16 %v1772
  %v2201 = vunpack.c.l.b16 %v1773
  %v2202 = vunpack.c.h.b16 %v1773
  %v2203 = vunpack.c.l.b16 %v1774
  %v2204 = vunpack.c.l.b16 %v1775
  %v2205 = vunpack.c.h.b16 %v1775
  %v2206 = vunpack.c.l.b16 %v1776
  %v2207 = vunpack.c.h.b16 %v1776
  %v2208 = vunpack.c.l.b16 %v1777
  %v2209 = vunpack.c.h.b16 %v1777
  %v2210 = vunpack.c.l.b16 %v1778
  %v2211 = vunpack.c.l.b16 %v1779
  %v2212 = vunpack.c.h.b16 %v1779
  %v2213 = vunpack.c.l.b16 %v1780
  %v2214 = vunpack.c.h.b16 %v1780
  %v2215 = vunpack.c.l.b16 %v1781
  %v2216 = vunpack.c.h.b16 %v1781
  %v2217 = vunpack.c.l.b16 %v1782
  %v2218 = vunpack.c.l.b16 %v1783
  %v2219 = vunpack.c.h.b16 %v1783
  %v2220 = vunpack.c.l.b16 %v1784
  %v2221 = vunpack.c.h.b16 %v1784
  %v2222 = vunpack.c.l.b16 %v1785
  %v2223 = vunpack.c.h.b16 %v1785
  %v2224 = vunpack.c.l.b16 %v1786
  %v2225 = vunpack.c.l.b16 %v1787
  %v2226 = vunpack.c.h.b16 %v1787
  %v2227 = vunpack.c.l.b16 %v1788
  %v2228 = vunpack.c.h.b16 %v1788
  %v2229 = vunpack.c.l.b16 %v1789
  %v2230 = vunpack.c.h.b16 %v1789
  %v2231 = vunpack.c.l.b16 %v1790
  %v2232 = vunpack.c.l.b16 %v1791
  %v2233 = vunpack.c.h.b16 %v1791
  %v2234 = vunpack.c.l.b16 %v1792
  %v2235 = vunpack.c.h.b16 %v1792
  %v2236 = vunpack.c.l.b16 %v1793
  %v2237 = vunpack.c.h.b16 %v1793
  %v2238 = vunpack.c.l.b16 %v1794
  %v2239 = vunpack.c.l.b16 %v1795
  %v2240 = vunpack.c.h.b16 %v1795
  %v2241 = vunpack.c.l.b16 %v1796
  %v2242 = vunpack.c.h.b16 %v1796
  %v2243 = vunpack.c.l.b16 %v1797
  %v2244 = vunpack.c.h.b16 %v1797
  %v2245 = vunpack.c.l.b16 %v1798
  %v2246 = vunpack.c.l.b16 %v1799
  %v2247 = vunpack.c.h.b16 %v1799
  %v2248 = vunpack.c.l.b16 %v1800
  %v2249 = vunpack.c.h.b16 %v1800
  %v2250 = vunpack.c.l.b16 %v1801
  %v2251 = vunpack.c.h.b16 %v1801
  %v2252 = vunpack.c.l.b16 %v1802
  %v2253 = vunpack.c.l.b16 %v1803
  %v2254 = vunpack.c.h.b16 %v1803
  %v2255 = vunpack.c.l.b16 %v1804
  %v2256 = vunpack.c.h.b16 %v1804
  %v2257 = vunpack.c.l.b16 %v1805
  %v2258 = vunpack.c.h.b16 %v1805
  %v2259 = vunpack.c.l.b16 %v1806
  %v2260 = vunpack.c.l.b16 %v1807
  %v2261 = vunpack.c.h.b16 %v1807
  %v2262 = vunpack.c.l.b16 %v1808
  %v2263 = vunpack.c.h.b16 %v1808
  %v2264 = vunpack.c.l.b16 %v1809
  %v2265 = vunpack.c.h.b16 %v1809
  %v2266 = vunpack.c.l.b16 %v1810
  %v2267 = vunpack.c.l.b16 %v1811
  %v2268 = vunpack.c.h.b16 %v1811
  %v2269 = vunpack.c.l.b16 %v1812
  %v2270 = vunpack.c.h.b16 %v1812
  %v2271 = vunpack.c.l.b16 %v1813
  %v2272 = vunpack.c.h.b16 %v1813
  %v2273 = vunpack.c.l.b16 %v1814
  %v2274 = vunpack.c.l.b16 %v1815
  %v2275 = vunpack.c.h.b16 %v1815
  %v2276 = vunpack.c.l.b16 %v1816
  %v2277 = vunpack.c.h.b16 %v1816
  %v2278 = vunpack.c.l.b16 %v1817
  %v2279 = vunpack.c.h.b16 %v1817
  %v2280 = vunpack.c.l.b16 %v1818
  %v2281 = vunpack.c.l.b16 %v1819
  %v2282 = vunpack.c.h.b16 %v1819
  %v2283 = vunpack.c.l.b16 %v1820
  %v2284 = vunpack.c.h.b16 %v1820
  %v2285 = vunpack.c.l.b16 %v1821
  %v2286 = vunpack.c.h.b16 %v1821
  %v2287 = vunpack.c.l.b16 %v1822
  %v2288 = vunpack.c.l.b16 %v1823
  %v2289 = vunpack.c.h.b16 %v1823
  %v2290 = vunpack.c.l.b16 %v1824
  %v2291 = vunpack.c.h.b16 %v1824
  %v2292 = vunpack.c.l.b16 %v1825
  %v2293 = vunpack.c.h.b16 %v1825
  %v2294 = vunpack.c.l.b16 %v1826
  %v2295 = vunpack.c.l.b16 %v1827
  %v2296 = vunpack.c.h.b16 %v1827
  %v2297 = vunpack.c.l.b16 %v1828
  %v2298 = vunpack.c.h.b16 %v1828
  %v2299 = vunpack.c.l.b16 %v1829
  %v2300 = vunpack.c.h.b16 %v1829
  %v2301 = vunpack.c.l.b16 %v1830
  %v2302 = vunpack.c.l.b16 %v1831
  %v2303 = vunpack.c.h.b16 %v1831
  %v2304 = vunpack.c.l.b16 %v1832
  %v2305 = vunpack.c.h.b16 %v1832
  %v2306 = vunpack.c.l.b16 %v1833
  %v2307 = vunpack.c.h.b16 %v1833
  %v2308 = vunpack.c.l.b16 %v1834
  %v2309 = vunpack.c.l.b16 %v1835
  %v2310 = vunpack.c.h.b16 %v1835
  %v2311 = vunpack.c.l.b16 %v1836
  %v2312 = vunpack.c.h.b16 %v1836
  %v2313 = vunpack.c.l.b16 %v1837
  %v2314 = vunpack.c.h.b16 %v1837
  %v2315 = vunpack.c.l.b16 %v1838
  %v2316 = vunpack.c.l.b16 %v1839
  %v2317 = vunpack.c.h.b16 %v1839
  %v2318 = vunpack.c.l.b16 %v1840
  %v2319 = vunpack.c.h.b16 %v1840
  %v2320 = vunpack.c.l.b16 %v1841
  %v2321 = vunpack.c.h.b16 %v1841
  %v2322 = vunpack.c.l.b16 %v1842
  %v2323 = vunpack.c.l.b16 %v1843
  %v2324 = vunpack.c.h.b16 %v1843
  %v2325 = vunpack.c.l.b16 %v1844
  %v2326 = vunpack.c.h.b16 %v1844
  %v2327 = vunpack.c.l.b16 %v1845
  %v2328 = vunpack.c.h.b16 %v1845
  %v2329 = vunpack.c.l.b16 %v1846
  %v2330 = vunpack.c.l.b16 %v1847
  %v2331 = vunpack.c.h.b16 %v1847
  %v2332 = vunpack.c.l.b16 %v1848
  %v2333 = vunpack.c.h.b16 %v1848
  %v2334 = vunpack.c.l.b16 %v1849
  %v2335 = vunpack.c.h.b16 %v1849
  %v2336 = vunpack.c.l.b16 %v1850
  %v2337 = vunpack.c.l.b16 %v1851
  %v2338 = vunpack.c.h.b16 %v1851
  %v2339 = vunpack.c.l.b16 %v1852
  %v2340 = vunpack.c.h.b16 %v1852
  %v2341 = vunpack.c.l.b16 %v1853
  %v2342 = vunpack.c.h.b16 %v1853
  %v2343 = vunpack.c.l.b16 %v1854
  %v2344 = vunpack.c.l.b16 %v1855
  %v2345 = vunpack.c.h.b16 %v1855
  %v2346 = vunpack.c.l.b16 %v1856
  %v2347 = vunpack.c.h.b16 %v1856
  %v2348 = vunpack.c.l.b16 %v1857
  %v2349 = vunpack.c.h.b16 %v1857
  %v2350 = vunpack.c.l.b16 %v1858
  %v2351 = vunpack.c.l.b16 %v1859
  %v2352 = vunpack.c.h.b16 %v1859
  %v2353 = vunpack.c.l.b16 %v1860
  %v2354 = vunpack.c.h.b16 %v1860
  %v2355 = vunpack.c.l.b16 %v1861
  %v2356 = vunpack.c.h.b16 %v1861
  %v2357 = vunpack.c.l.b16 %v1862
  %v2358 = vunpack.c.l.b16 %v1863
  %v2359 = vunpack.c.h.b16 %v1863
  %v2360 = vunpack.c.l.b16 %v1864
  %v2361 = vunpack.c.h.b16 %v1864
  %v2362 = vunpack.c.l.b16 %v1865
  %v2363 = vunpack.c.h.b16 %v1865
  %v2364 = vunpack.c.l.b16 %v1866
  %v2365 = vunpack.c.l.b16 %v1867
  %v2366 = vunpack.c.h.b16 %v1867
  %v2367 = vunpack.c.l.b16 %v1868
  %v2368 = vunpack.c.h.b16 %v1868
  %v2369 = vunpack.c.l.b16 %v1869
  %v2370 = vunpack.c.h.b16 %v1869
  %v2371 = vunpack.c.l.b16 %v1870
  %v2372 = vunpack.c.l.b16 %v1871
  %v2373 = vunpack.c.h.b16 %v1871
  %v2374 = vunpack.c.l.b16 %v1872
  %v2375 = vunpack.c.h.b16 %v1872
  %v2376 = vunpack.c.l.b16 %v1873
  %v2377 = vunpack.c.h.b16 %v1873
  %v2378 = vunpack.c.l.b16 %v1874
  %v2379 = vunpack.c.l.b16 %v1875
  %v2380 = vunpack.c.h.b16 %v1875
  %v2381 = vunpack.c.l.b16 %v1876
  %v2382 = vunpack.c.h.b16 %v1876
  %v2383 = vunpack.c.l.b16 %v1877
  %v2384 = vunpack.c.h.b16 %v1877
  %v2385 = vunpack.c.l.b16 %v1878
  %v2386 = vunpack.c.l.b16 %v1879
  %v2387 = vunpack.c.h.b16 %v1879
  %v2388 = vunpack.c.l.b16 %v1880
  %v2389 = vunpack.c.h.b16 %v1880
  %v2390 = vunpack.c.l.b16 %v1881
  %v2391 = vunpack.c.h.b16 %v1881
  %v2392 = vunpack.c.l.b16 %v1882
  %v2393 = vunpack.c.l.b16 %v1883
  %v2394 = vunpack.c.h.b16 %v1883
  %v2395 = vunpack.c.l.b16 %v1884
  %v2396 = vunpack.c.h.b16 %v1884
  %v2397 = vunpack.c.l.b16 %v1885
  %v2398 = vunpack.c.h.b16 %v1885
  %v2399 = vunpack.c.l.b16 %v1886
  %v2400 = vunpack.c.l.b16 %v1887
  %v2401 = vunpack.c.h.b16 %v1887
  %v2402 = vunpack.c.l.b16 %v1888
  %v2403 = vunpack.c.h.b16 %v1888
  %v2404 = vunpack.c.l.b16 %v1889
  %v2405 = vunpack.c.h.b16 %v1889
  %v2406 = vunpack.c.l.b16 %v1890
  %v2407 = vunpack.c.l.b16 %v1891
  %v2408 = vunpack.c.h.b16 %v1891
  %v2409 = vunpack.c.l.b16 %v1892
  %v2410 = vunpack.c.h.b16 %v1892
  %v2411 = vunpack.c.l.b16 %v1893
  %v2412 = vunpack.c.h.b16 %v1893
  %v2413 = vunpack.c.l.b16 %v1894
  %v2414 = vunpack.c.l.b16 %v1895
  %v2415 = vunpack.c.h.b16 %v1895
  %v2416 = vunpack.c.l.b16 %v1896
  %v2417 = vunpack.c.h.b16 %v1896
  %v2418 = vunpack.c.l.b16 %v1897
  %v2419 = vunpack.c.h.b16 %v1897
  %v2420 = vunpack.c.l.b16 %v1898
  %v2421 = vunpack.c.l.b16 %v1899
  %v2422 = vunpack.c.h.b16 %v1899
  %v2423 = vunpack.c.l.b16 %v1900
  %v2424 = vunpack.c.h.b16 %v1900
  %v2425 = vunpack.c.l.b16 %v1901
  %v2426 = vunpack.c.h.b16 %v1901
  %v2427 = vunpack.c.l.b16 %v1902
  %v2428 = vunpack.c.l.b16 %v1903
  %v2429 = vunpack.c.h.b16 %v1903
  %v2430 = vunpack.c.l.b16 %v1904
  %v2431 = vunpack.c.h.b16 %v1904
  %v2432 = vunpack.c.l.b16 %v1905
  %v2433 = vunpack.c.h.b16 %v1905
  %v2434 = vunpack.c.l.b16 %v1906
  %v2435 = vunpack.c.l.b16 %v1907
  %v2436 = vunpack.c.h.b16 %v1907
  %v2437 = vunpack.c.l.b16 %v1908
  %v2438 = vunpack.c.h.b16 %v1908
  %v2439 = vunpack.c.l.b16 %v1909
  %v2440 = vunpack.c.h.b16 %v1909
  %v2441 = vunpack.c.l.b16 %v1910
  %v2442 = vunpack.c.l.b16 %v1911
  %v2443 = vunpack.c.h.b16 %v1911
  %v2444 = vunpack.c.l.b16 %v1912
  %v2445 = vunpack.c.h.b16 %v1912
  %v2446 = vunpack.c.l.b16 %v1913
  %v2447 = vunpack.c.h.b16 %v1913
  %v2448 = vunpack.c.l.b16 %v1914
  %v2449 = vunpack.c.l.b16 %v1915
  %v2450 = vunpack.c.h.b16 %v1915
  %v2451 = vunpack.c.l.b16 %v1916
  %v2452 = vunpack.c.h.b16 %v1916
  %v2453 = vunpack.c.l.b16 %v1917
  %v2454 = vunpack.c.h.b16 %v1917
  %v2455 = vunpack.c.l.b16 %v1918
  %v2456 = vunpack.c.l.b16 %v1919
  %v2457 = vunpack.c.h.b16 %v1919
  %v2458 = vunpack.c.l.b16 %v1920
  %v2459 = vunpack.c.h.b16 %v1920
  %v2460 = vunpack.c.l.b16 %v1921
  %v2461 = vunpack.c.h.b16 %v1921
  %v2462 = vunpack.c.l.b16 %v1922
  %v2463 = vunpack.c.l.b16 %v1923
  %v2464 = vunpack.c.h.b16 %v1923
  %v2465 = vunpack.c.l.b16 %v1924
  %v2466 = vunpack.c.h.b16 %v1924
  %v2467 = vunpack.c.l.b16 %v1925
  %v2468 = vunpack.c.h.b16 %v1925
  %v2469 = vunpack.c.l.b16 %v1926
  %v2470 = vunpack.c.l.b16 %v1927
  %v2471 = vunpack.c.h.b16 %v1927
  %v2472 = vunpack.c.l.b16 %v1928
  %v2473 = vunpack.c.h.b16 %v1928
  %v2474 = vunpack.c.l.b16 %v1929
  %v2475 = vunpack.c.h.b16 %v1929
  %v2476 = vunpack.c.l.b16 %v1930
  %v2477 = vunpack.c.l.b16 %v1931
  %v2478 = vunpack.c.h.b16 %v1931
  %v2479 = vunpack.c.l.b16 %v1932
  %v2480 = vunpack.c.h.b16 %v1932
  %v2481 = vunpack.c.l.b16 %v1933
  %v2482 = vunpack.c.h.b16 %v1933
  %v2483 = vunpack.c.l.b16 %v1934
  %v2484 = vunpack.c.l.b16 %v1935
  %v2485 = vunpack.c.h.b16 %v1935
  %v2486 = vunpack.c.l.b16 %v1936
  %v2487 = vunpack.c.h.b16 %v1936
  %v2488 = vunpack.c.l.b16 %v1937
  %v2489 = vunpack.c.h.b16 %v1937
  %v2490 = vunpack.c.l.b16 %v1938
  %v2491 = vunpack.c.l.b16 %v1939
  %v2492 = vunpack.c.h.b16 %v1939
  %v2493 = vunpack.c.l.b16 %v1940
  %v2494 = vunpack.c.h.b16 %v1940
  %v2495 = vunpack.c.l.b16 %v1941
  %v2496 = vunpack.c.h.b16 %v1941
  %v2497 = vunpack.c.l.b16 %v1942
  %v2498 = vunpack.c.l.b16 %v1943
  %v2499 = vunpack.c.h.b16 %v1943
  %v2500 = vunpack.c.l.b16 %v1944
  %v2501 = vunpack.c.h.b16 %v1944
  %v2502 = vunpack.c.l.b16 %v1945
  %v2503 = vunpack.c.h.b16 %v1945
  %v2504 = vunpack.c.l.b16 %v1946
  %v2505 = vpack.c.b16 %v2169, %v2162
  %v2506 = vpack.c.b16 %v2170, %v2163
  %v2507 = vpack.c.b16 %v2171, %v2164
  %v2508 = vpack.c.b16 %v2172, %v2165
  %v2509 = vpack.c.b16 %v2173, %v2166
  %v2510 = vpack.c.b16 %v2174, %v2167
  %v2511 = vpack.c.b16 %v2175, %v2168
  %v2512 = vpack.c.b16 %v2183, %v2176
  %v2513 = vpack.c.b16 %v2184, %v2177
  %v2514 = vpack.c.b16 %v2185, %v2178
  %v2515 = vpack.c.b16 %v2186, %v2179
  %v2516 = vpack.c.b16 %v2187, %v2180
  %v2517 = vpack.c.b16 %v2188, %v2181
  %v2518 = vpack.c.b16 %v2189, %v2182
  %v2519 = vpack.c.b16 %v2197, %v2190
  %v2520 = vpack.c.b16 %v2198, %v2191
  %v2521 = vpack.c.b16 %v2199, %v2192
  %v2522 = vpack.c.b16 %v2200, %v2193
  %v2523 = vpack.c.b16 %v2201, %v2194
  %v2524 = vpack.c.b16 %v2202, %v2195
  %v2525 = vpack.c.b16 %v2203, %v2196
  %v2526 = vpack.c.b16 %v2211, %v2204
  %v2527 = vpack.c.b16 %v2212, %v2205
  %v2528 = vpack.c.b16 %v2213, %v2206
  %v2529 = vpack.c.b16 %v2214, %v2207
  %v2530 = vpack.c.b16 %v2215, %v2208
  %v2531 = vpack.c.b16 %v2216, %v2209
  %v2532 = vpack.c.b16 %v2217, %v2210
  %v2533 = vpack.c.b16 %v2225, %v2218
  %v2534 = vpack.c.b16 %v2226, %v2219
  %v2535 = vpack.c.b16 %v2227, %v2220
  %v2536 = vpack.c.b16 %v2228, %v2221
  %v2537 = vpack.c.b16 %v2229, %v2222
  %v2538 = vpack.c.b16 %v2230, %v2223
  %v2539 = vpack.c.b16 %v2231, %v2224
  %v2540 = vpack.c.b16 %v2239, %v2232
  %v2541 = vpack.c.b16 %v2240, %v2233
  %v2542 = vpack.c.b16 %v2241, %v2234
  %v2543 = vpack.c.b16 %v2242, %v2235
  %v2544 = vpack.c.b16 %v2243, %v2236
  %v2545 = vpack.c.b16 %v2244, %v2237
  %v2546 = vpack.c.b16 %v2245, %v2238
  %v2547 = vpack.c.b16 %v2253, %v2246
  %v2548 = vpack.c.b16 %v2254, %v2247
  %v2549 = vpack.c.b16 %v2255, %v2248
  %v2550 = vpack.c.b16 %v2256, %v2249
  %v2551 = vpack.c.b16 %v2257, %v2250
  %v2552 = vpack.c.b16 %v2258, %v2251
  %v2553 = vpack.c.b16 %v2259, %v2252
  %v2554 = vpack.c.b16 %v2267, %v2260
  %v2555 = vpack.c.b16 %v2268, %v2261
  %v2556 = vpack.c.b16 %v2269, %v2262
  %v2557 = vpack.c.b16 %v2270, %v2263
  %v2558 = vpack.c.b16 %v2271, %v2264
  %v2559 = vpack.c.b16 %v2272, %v2265
  %v2560 = vpack.c.b16 %v2273, %v2266
  %v2561 = vpack.c.b16 %v2281, %v2274
  %v2562 = vpack.c.b16 %v2282, %v2275
  %v2563 = vpack.c.b16 %v2283, %v2276
  %v2564 = vpack.c.b16 %v2284, %v2277
  %v2565 = vpack.c.b16 %v2285, %v2278
  %v2566 = vpack.c.b16 %v2286, %v2279
  %v2567 = vpack.c.b16 %v2287, %v2280
  %v2568 = vpack.c.b16 %v2295, %v2288
  %v2569 = vpack.c.b16 %v2296, %v2289
  %v2570 = vpack.c.b16 %v2297, %v2290
  %v2571 = vpack.c.b16 %v2298, %v2291
  %v2572 = vpack.c.b16 %v2299, %v2292
  %v2573 = vpack.c.b16 %v2300, %v2293
  %v2574 = vpack.c.b16 %v2301, %v2294
  %v2575 = vpack.c.b16 %v2309, %v2302
  %v2576 = vpack.c.b16 %v2310, %v2303
  %v2577 = vpack.c.b16 %v2311, %v2304
  %v2578 = vpack.c.b16 %v2312, %v2305
  %v2579 = vpack.c.b16 %v2313, %v2306
  %v2580 = vpack.c.b16 %v2314, %v2307
  %v2581 = vpack.c.b16 %v2315, %v2308
  %v2582 = vpack.c.b16 %v2323, %v2316
  %v2583 = vpack.c.b16 %v2324, %v2317
  %v2584 = vpack.c.b16 %v2325, %v2318
  %v2585 = vpack.c.b16 %v2326, %v2319
  %v2586 = vpack.c.b16 %v2327, %v2320
  %v2587 = vpack.c.b16 %v2328, %v2321
  %v2588 = vpack.c.b16 %v2329, %v2322
  %v2589 = vpack.c.b16 %v2337, %v2330
  %v2590 = vpack.c.b16 %v2338, %v2331
  %v2591 = vpack.c.b16 %v2339, %v2332
  %v2592 = vpack.c.b16 %v2340, %v2333
  %v2593 = vpack.c.b16 %v2341, %v2334
  %v2594 = vpack.c.b16 %v2342, %v2335
  %v2595 = vpack.c.b16 %v2343, %v2336
  %v2596 = vpack.c.b16 %v2351, %v2344
  %v2597 = vpack.c.b16 %v2352, %v2345
  %v2598 = vpack.c.b16 %v2353, %v2346
  %v2599 = vpack.c.b16 %v2354, %v2347
  %v2600 = vpack.c.b16 %v2355, %v2348
  %v2601 = vpack.c.b16 %v2356, %v2349
  %v2602 = vpack.c.b16 %v2357, %v2350
  %v2603 = vpack.c.b16 %v2365, %v2358
  %v2604 = vpack.c.b16 %v2366, %v2359
  %v2605 = vpack.c.b16 %v2367, %v2360
  %v2606 = vpack.c.b16 %v2368, %v2361
  %v2607 = vpack.c.b16 %v2369, %v2362
  %v2608 = vpack.c.b16 %v2370, %v2363
  %v2609 = vpack.c.b16 %v2371, %v2364
  %v2610 = vpack.c.b16 %v2379, %v2372
  %v2611 = vpack.c.b16 %v2380, %v2373
  %v2612 = vpack.c.b16 %v2381, %v2374
  %v2613 = vpack.c.b16 %v2382, %v2375
  %v2614 = vpack.c.b16 %v2383, %v2376
  %v2615 = vpack.c.b16 %v2384, %v2377
  %v2616 = vpack.c.b16 %v2385, %v2378
  %v2617 = vpack.c.b16 %v2393, %v2386
  %v2618 = vpack.c.b16 %v2394, %v2387
  %v2619 = vpack.c.b16 %v2395, %v2388
  %v2620 = vpack.c.b16 %v2396, %v2389
  %v2621 = vpack.c.b16 %v2397, %v2390
  %v2622 = vpack.c.b16 %v2398, %v2391
  %v2623 = vpack.c.b16 %v2399, %v2392
  %v2624 = vpack.c.b16 %v2407, %v2400
  %v2625 = vpack.c.b16 %v2408, %v2401
  %v2626 = vpack.c.b16 %v2409, %v2402
  %v2627 = vpack.c.b16 %v2410, %v2403
  %v2628 = vpack.c.b16 %v2411, %v2404
  %v2629 = vpack.c.b16 %v2412, %v2405
  %v2630 = vpack.c.b16 %v2413, %v2406
  %v2631 = vpack.c.b16 %v2421, %v2414
  %v2632 = vpack.c.b16 %v2422, %v2415
  %v2633 = vpack.c.b16 %v2423, %v2416
  %v2634 = vpack.c.b16 %v2424, %v2417
  %v2635 = vpack.c.b16 %v2425, %v2418
  %v2636 = vpack.c.b16 %v2426, %v2419
  %v2637 = vpack.c.b16 %v2427, %v2420
  %v2638 = vpack.c.b16 %v2435, %v2428
  %v2639 = vpack.c.b16 %v2436, %v2429
  %v2640 = vpack.c.b16 %v2437, %v2430
  %v2641 = vpack.c.b16 %v2438, %v2431
  %v2642 = vpack.c.b16 %v2439, %v2432
  %v2643 = vpack.c.b16 %v2440, %v2433
  %v2644 = vpack.c.b16 %v2441, %v2434
  %v2645 = vpack.c.b16 %v2449, %v2442
  %v2646 = vpack.c.b16 %v2450, %v2443
  %v2647 = vpack.c.b16 %v2451, %v2444
  %v2648 = vpack.c.b16 %v2452, %v2445
  %v2649 = vpack.c.b16 %v2453, %v2446
  %v2650 = vpack.c.b16 %v2454, %v2447
  %v2651 = vpack.c.b16 %v2455, %v2448
  %v2652 = vpack.c.b16 %v2463, %v2456
  %v2653 = vpack.c.b16 %v2464, %v2457
  %v2654 = vpack.c.b16 %v2465, %v2458
  %v2655 = vpack.c.b16 %v2466, %v2459
  %v2656 = vpack.c.b16 %v2467, %v2460
  %v2657 = vpack.c.b16 %v2468, %v2461
  %v2658 = vpack.c.b16 %v2469, %v2462
  %v2659 = vpack.c.b16 %v2477, %v2470
  %v2660 = vpack.c.b16 %v2478, %v2471
  %v2661 = vpack.c.b16 %v2479, %v2472
  %v2662 = vpack.c.b16 %v2480, %v2473
  %v2663 = vpack.c.b16 %v2481, %v2474
  %v2664 = vpack.c.b16 %v2482, %v2475
  %v2665 = vpack.c.b16 %v2483, %v2476
  %v2666 = vpack.c.b16 %v2491, %v2484
  %v2667 = vpack.c.b16 %v2492, %v2485
  %v2668 = vpack.c.b16 %v2493, %v2486
  %v2669 = vpack.c.b16 %v2494, %v2487
  %v2670 = vpack.c.b16 %v2495, %v2488
  %v2671 = vpack.c.b16 %v2496, %v2489
  %v2672 = vpack.c.b16 %v2497, %v2490
  %v2673 = vpack.c.b16 %v2498, %v2498
  %v2674 = vpack.c.b16 %v2499, %v2499
  %v2675 = vpack.c.b16 %v2500, %v2500
  %v2676 = vpack.c.b16 %v2501, %v2501
  %v2677 = vpack.c.b16 %v2502, %v2502
  %v2678 = vpack.c.b16 %v2503, %v2503
  %v2679 = vpack.c.b16 %v2504, %v2504
  %vm2848 = vcmask 64512
  %v2850 = vsel %vm2848, %v1962, 0
  %vm2852 = vcmask 1043456
  %v2854 = vsel %vm2852, %v2673, 0
  %v2857 = vsel %vm2852, %v2674, 0
  %v2860 = vsel %vm2852, %v2675, 0
  %v2863 = vsel %vm2852, %v2676, 0
  %v2866 = vsel %vm2852, %v2677, 0
  %v2869 = vsel %vm2852, %v2678, 0
  %v2872 = vsel %vm2852, %v2679, 0
  %2874 = vmatprep.subr.bf16.mxu0 %v2506
  %2875 = vmatpush1.bf16.msra.mxu0 %v2505
  %2876 = vmatprep.subr.bf16.mxu0 %v2513
  %2877 = vmatpush1.bf16.msra.mxu0 %v2512
  %2878 = vmatprep.subr.bf16.mxu0 %v2520
  %2879 = vmatpush1.bf16.msra.mxu0 %v2519
  %2880 = vmatprep.subr.bf16.mxu0 %v2527
  %2881 = vmatpush1.bf16.msra.mxu0 %v2526
  %2882 = vmatprep.subr.bf16.mxu0 %v2534
  %2883 = vmatpush1.bf16.msra.mxu0 %v2533
  %2884 = vmatprep.subr.bf16.mxu0 %v2541
  %2885 = vmatpush1.bf16.msra.mxu0 %v2540
  %2886 = vmatprep.subr.bf16.mxu0 %v2548
  %2887 = vmatpush1.bf16.msra.mxu0 %v2547
  %2888 = vmatprep.subr.bf16.mxu0 %v2555
  %2889 = vmatpush1.bf16.msra.mxu0 %v2554
  %2890 = vmatprep.subr.bf16.mxu0 %v2562
  %2891 = vmatpush1.bf16.msra.mxu0 %v2561
  %2892 = vmatprep.subr.bf16.mxu0 %v2569
  %2893 = vmatpush1.bf16.msra.mxu0 %v2568
  %2894 = vmatprep.subr.bf16.mxu0 %v2576
  %2895 = vmatpush1.bf16.msra.mxu0 %v2575
  %2896 = vmatprep.subr.bf16.mxu0 %v2583
  %2897 = vmatpush1.bf16.msra.mxu0 %v2582
  %2898 = vmatprep.subr.bf16.mxu0 %v2590
  %2899 = vmatpush1.bf16.msra.mxu0 %v2589
  %2900 = vmatprep.subr.bf16.mxu0 %v2597
  %2901 = vmatpush1.bf16.msra.mxu0 %v2596
  %2902 = vmatprep.subr.bf16.mxu0 %v2604
  %2903 = vmatpush1.bf16.msra.mxu0 %v2603
  %2904 = vmatprep.subr.bf16.mxu0 %v2611
  %2905 = vmatpush1.bf16.msra.mxu0 %v2610
  %2906 = vmatprep.mubr.bf16.mxu0 %v1960
  %2907 = vmatmul.mubr.bf16.gmra.mrb[0].mxu0 %v1959
  %v2908 = vpop.f32.mrb[0].mxu0
  %v2909 = vadd.f32 %v1951, %v2908
  %v2910 = vpop.f32.mrb[0].mxu0
  %v2911 = vadd.f32 %v1951, %v2910
  %v2912 = vpop.f32.mrb[0].mxu0
  %v2913 = vpop.f32.mrb[0].mxu0
  %2914 = vdwg.mxu0
  %2915 = vmatprep.subr.bf16.mxu0 %v2618
  %2916 = vmatpush1.bf16.msra.mxu0 %v2617
  %2917 = vmatprep.subr.bf16.mxu0 %v2625
  %2918 = vmatpush1.bf16.msra.mxu0 %v2624
  %2919 = vmatprep.subr.bf16.mxu0 %v2632
  %2920 = vmatpush1.bf16.msra.mxu0 %v2631
  %2921 = vmatprep.subr.bf16.mxu0 %v2639
  %2922 = vmatpush1.bf16.msra.mxu0 %v2638
  %2923 = vmatprep.subr.bf16.mxu0 %v2646
  %2924 = vmatpush1.bf16.msra.mxu0 %v2645
  %2925 = vmatprep.subr.bf16.mxu0 %v2653
  %2926 = vmatpush1.bf16.msra.mxu0 %v2652
  %2927 = vmatprep.subr.bf16.mxu0 %v2660
  %2928 = vmatpush1.bf16.msra.mxu0 %v2659
  %2929 = vmatprep.subr.bf16.mxu0 %v2667
  %2930 = vmatpush1.bf16.msra.mxu0 %v2666
  %2931 = vmatprep.subr.bf16.mxu0 %v2857
  %2932 = vmatpush1.bf16.msra.mxu0 %v2854
  %2933 = vmatprep.subr.bf16.mxu0 0
  %2934 = vmatpush1.bf16.msra.mxu0 0
  %2935 = vmatprep.subr.bf16.mxu0 0
  %2936 = vmatpush1.bf16.msra.mxu0 0
  %2937 = vmatprep.subr.bf16.mxu0 0
  %2938 = vmatpush1.bf16.msra.mxu0 0
  %2939 = vmatprep.subr.bf16.mxu0 0
  %2940 = vmatpush1.bf16.msra.mxu0 0
  %2941 = vmatprep.subr.bf16.mxu0 0
  %2942 = vmatpush1.bf16.msra.mxu0 0
  %2943 = vmatprep.subr.bf16.mxu0 0
  %2944 = vmatpush1.bf16.msra.mxu0 0
  %2945 = vmatprep.subr.bf16.mxu0 0
  %2946 = vmatpush1.bf16.msra.mxu0 0
  %2947 = vmatprep.mubr.bf16.mxu0 %v2850
  %2948 = vmatmul.mubr.bf16.gmra.mrb[0].mxu0 %v1961
  %v2949 = vpop.f32.mrb[0].mxu0
  %v2950 = vadd.f32 %v2909, %v2949
  %v2951 = vpop.f32.mrb[0].mxu0
  %v2952 = vadd.f32 %v2911, %v2951
  %v2953 = vpop.f32.mrb[0].mxu0
  %v2954 = vpop.f32.mrb[0].mxu0
  %2955 = vdwg.mxu0
  %2956 = vmatprep.subr.bf16.mxu0 %v2508
  %2957 = vmatpush1.bf16.msra.mxu0 %v2507
  %2958 = vmatprep.subr.bf16.mxu0 %v2515
  %2959 = vmatpush1.bf16.msra.mxu0 %v2514
  %2960 = vmatprep.subr.bf16.mxu0 %v2522
  %2961 = vmatpush1.bf16.msra.mxu0 %v2521
  %2962 = vmatprep.subr.bf16.mxu0 %v2529
  %2963 = vmatpush1.bf16.msra.mxu0 %v2528
  %2964 = vmatprep.subr.bf16.mxu0 %v2536
  %2965 = vmatpush1.bf16.msra.mxu0 %v2535
  %2966 = vmatprep.subr.bf16.mxu0 %v2543
  %2967 = vmatpush1.bf16.msra.mxu0 %v2542
  %2968 = vmatprep.subr.bf16.mxu0 %v2550
  %2969 = vmatpush1.bf16.msra.mxu0 %v2549
  %2970 = vmatprep.subr.bf16.mxu0 %v2557
  %2971 = vmatpush1.bf16.msra.mxu0 %v2556
  %2972 = vmatprep.subr.bf16.mxu0 %v2564
  %2973 = vmatpush1.bf16.msra.mxu0 %v2563
  %2974 = vmatprep.subr.bf16.mxu0 %v2571
  %2975 = vmatpush1.bf16.msra.mxu0 %v2570
  %2976 = vmatprep.subr.bf16.mxu0 %v2578
  %2977 = vmatpush1.bf16.msra.mxu0 %v2577
  %2978 = vmatprep.subr.bf16.mxu0 %v2585
  %2979 = vmatpush1.bf16.msra.mxu0 %v2584
  %2980 = vmatprep.subr.bf16.mxu0 %v2592
  %2981 = vmatpush1.bf16.msra.mxu0 %v2591
  %2982 = vmatprep.subr.bf16.mxu0 %v2599
  %2983 = vmatpush1.bf16.msra.mxu0 %v2598
  %2984 = vmatprep.subr.bf16.mxu0 %v2606
  %2985 = vmatpush1.bf16.msra.mxu0 %v2605
  %2986 = vmatprep.subr.bf16.mxu0 %v2613
  %2987 = vmatpush1.bf16.msra.mxu0 %v2612
  %2988 = vmatprep.mubr.bf16.mxu0 %v1960
  %2989 = vmatmul.mubr.bf16.gmra.mrb[0].mxu0 %v1959
  %v2990 = vpop.f32.mrb[0].mxu0
  %v2991 = vadd.f32 %v1951, %v2990
  %v2992 = vpop.f32.mrb[0].mxu0
  %v2993 = vadd.f32 %v1951, %v2992
  %v2994 = vpop.f32.mrb[0].mxu0
  %v2995 = vpop.f32.mrb[0].mxu0
  %2996 = vdwg.mxu0
  %2997 = vmatprep.subr.bf16.mxu0 %v2620
  %2998 = vmatpush1.bf16.msra.mxu0 %v2619
  %2999 = vmatprep.subr.bf16.mxu0 %v2627
  %3000 = vmatpush1.bf16.msra.mxu0 %v2626
  %3001 = vmatprep.subr.bf16.mxu0 %v2634
  %3002 = vmatpush1.bf16.msra.mxu0 %v2633
  %3003 = vmatprep.subr.bf16.mxu0 %v2641
  %3004 = vmatpush1.bf16.msra.mxu0 %v2640
  %3005 = vmatprep.subr.bf16.mxu0 %v2648
  %3006 = vmatpush1.bf16.msra.mxu0 %v2647
  %3007 = vmatprep.subr.bf16.mxu0 %v2655
  %3008 = vmatpush1.bf16.msra.mxu0 %v2654
  %3009 = vmatprep.subr.bf16.mxu0 %v2662
  %3010 = vmatpush1.bf16.msra.mxu0 %v2661
  %3011 = vmatprep.subr.bf16.mxu0 %v2669
  %3012 = vmatpush1.bf16.msra.mxu0 %v2668
  %3013 = vmatprep.subr.bf16.mxu0 %v2863
  %3014 = vmatpush1.bf16.msra.mxu0 %v2860
  %3015 = vmatprep.subr.bf16.mxu0 0
  %3016 = vmatpush1.bf16.msra.mxu0 0
  %3017 = vmatprep.subr.bf16.mxu0 0
  %3018 = vmatpush1.bf16.msra.mxu0 0
  %3019 = vmatprep.subr.bf16.mxu0 0
  %3020 = vmatpush1.bf16.msra.mxu0 0
  %3021 = vmatprep.subr.bf16.mxu0 0
  %3022 = vmatpush1.bf16.msra.mxu0 0
  %3023 = vmatprep.subr.bf16.mxu0 0
  %3024 = vmatpush1.bf16.msra.mxu0 0
  %3025 = vmatprep.subr.bf16.mxu0 0
  %3026 = vmatpush1.bf16.msra.mxu0 0
  %3027 = vmatprep.subr.bf16.mxu0 0
  %3028 = vmatpush1.bf16.msra.mxu0 0
  %3029 = vmatprep.mubr.bf16.mxu0 %v2850
  %3030 = vmatmul.mubr.bf16.gmra.mrb[0].mxu0 %v1961
  %v3031 = vpop.f32.mrb[0].mxu0
  %v3032 = vadd.f32 %v2991, %v3031
  %v3033 = vpop.f32.mrb[0].mxu0
  %v3034 = vadd.f32 %v2993, %v3033
  %v3035 = vpop.f32.mrb[0].mxu0
  %v3036 = vpop.f32.mrb[0].mxu0
  %3037 = vdwg.mxu0
  %3038 = vmatprep.subr.bf16.mxu0 %v2510
  %3039 = vmatpush1.bf16.msra.mxu0 %v2509
  %3040 = vmatprep.subr.bf16.mxu0 %v2517
  %3041 = vmatpush1.bf16.msra.mxu0 %v2516
  %3042 = vmatprep.subr.bf16.mxu0 %v2524
  %3043 = vmatpush1.bf16.msra.mxu0 %v2523
  %3044 = vmatprep.subr.bf16.mxu0 %v2531
  %3045 = vmatpush1.bf16.msra.mxu0 %v2530
  %3046 = vmatprep.subr.bf16.mxu0 %v2538
  %3047 = vmatpush1.bf16.msra.mxu0 %v2537
  %3048 = vmatprep.subr.bf16.mxu0 %v2545
  %3049 = vmatpush1.bf16.msra.mxu0 %v2544
  %3050 = vmatprep.subr.bf16.mxu0 %v2552
  %3051 = vmatpush1.bf16.msra.mxu0 %v2551
  %3052 = vmatprep.subr.bf16.mxu0 %v2559
  %3053 = vmatpush1.bf16.msra.mxu0 %v2558
  %3054 = vmatprep.subr.bf16.mxu0 %v2566
  %3055 = vmatpush1.bf16.msra.mxu0 %v2565
  %3056 = vmatprep.subr.bf16.mxu0 %v2573
  %3057 = vmatpush1.bf16.msra.mxu0 %v2572
  %3058 = vmatprep.subr.bf16.mxu0 %v2580
  %3059 = vmatpush1.bf16.msra.mxu0 %v2579
  %3060 = vmatprep.subr.bf16.mxu0 %v2587
  %3061 = vmatpush1.bf16.msra.mxu0 %v2586
  %3062 = vmatprep.subr.bf16.mxu0 %v2594
  %3063 = vmatpush1.bf16.msra.mxu0 %v2593
  %3064 = vmatprep.subr.bf16.mxu0 %v2601
  %3065 = vmatpush1.bf16.msra.mxu0 %v2600
  %3066 = vmatprep.subr.bf16.mxu0 %v2608
  %3067 = vmatpush1.bf16.msra.mxu0 %v2607
  %3068 = vmatprep.subr.bf16.mxu0 %v2615
  %3069 = vmatpush1.bf16.msra.mxu0 %v2614
  %3070 = vmatprep.mubr.bf16.mxu0 %v1960
  %3071 = vmatmul.mubr.bf16.gmra.mrb[0].mxu0 %v1959
  %v3072 = vpop.f32.mrb[0].mxu0
  %v3073 = vadd.f32 %v1951, %v3072
  %v3074 = vpop.f32.mrb[0].mxu0
  %v3075 = vadd.f32 %v1951, %v3074
  %v3076 = vpop.f32.mrb[0].mxu0
  %v3077 = vpop.f32.mrb[0].mxu0
  %3078 = vdwg.mxu0
  %3079 = vmatprep.subr.bf16.mxu0 %v2622
  %3080 = vmatpush1.bf16.msra.mxu0 %v2621
  %3081 = vmatprep.subr.bf16.mxu0 %v2629
  %3082 = vmatpush1.bf16.msra.mxu0 %v2628
  %3083 = vmatprep.subr.bf16.mxu0 %v2636
  %3084 = vmatpush1.bf16.msra.mxu0 %v2635
  %3085 = vmatprep.subr.bf16.mxu0 %v2643
  %3086 = vmatpush1.bf16.msra.mxu0 %v2642
  %3087 = vmatprep.subr.bf16.mxu0 %v2650
  %3088 = vmatpush1.bf16.msra.mxu0 %v2649
  %3089 = vmatprep.subr.bf16.mxu0 %v2657
  %3090 = vmatpush1.bf16.msra.mxu0 %v2656
  %3091 = vmatprep.subr.bf16.mxu0 %v2664
  %3092 = vmatpush1.bf16.msra.mxu0 %v2663
  %3093 = vmatprep.subr.bf16.mxu0 %v2671
  %3094 = vmatpush1.bf16.msra.mxu0 %v2670
  %3095 = vmatprep.subr.bf16.mxu0 %v2869
  %3096 = vmatpush1.bf16.msra.mxu0 %v2866
  %3097 = vmatprep.subr.bf16.mxu0 0
  %3098 = vmatpush1.bf16.msra.mxu0 0
  %3099 = vmatprep.subr.bf16.mxu0 0
  %3100 = vmatpush1.bf16.msra.mxu0 0
  %3101 = vmatprep.subr.bf16.mxu0 0
  %3102 = vmatpush1.bf16.msra.mxu0 0
  %3103 = vmatprep.subr.bf16.mxu0 0
  %3104 = vmatpush1.bf16.msra.mxu0 0
  %3105 = vmatprep.subr.bf16.mxu0 0
  %3106 = vmatpush1.bf16.msra.mxu0 0
  %3107 = vmatprep.subr.bf16.mxu0 0
  %3108 = vmatpush1.bf16.msra.mxu0 0
  %3109 = vmatprep.subr.bf16.mxu0 0
  %3110 = vmatpush1.bf16.msra.mxu0 0
  %3111 = vmatprep.mubr.bf16.mxu0 %v2850
  %3112 = vmatmul.mubr.bf16.gmra.mrb[0].mxu0 %v1961
  %v3113 = vpop.f32.mrb[0].mxu0
  %v3114 = vadd.f32 %v3073, %v3113
  %v3115 = vpop.f32.mrb[0].mxu0
  %v3116 = vadd.f32 %v3075, %v3115
  %v3117 = vpop.f32.mrb[0].mxu0
  %v3118 = vpop.f32.mrb[0].mxu0
  %3119 = vdwg.mxu0
  %3120 = vmatprep.subr.bf16.mxu0 0
  %3121 = vmatpush1.bf16.msra.mxu0 %v2511
  %3122 = vmatprep.subr.bf16.mxu0 0
  %3123 = vmatpush1.bf16.msra.mxu0 %v2518
  %3124 = vmatprep.subr.bf16.mxu0 0
  %3125 = vmatpush1.bf16.msra.mxu0 %v2525
  %3126 = vmatprep.subr.bf16.mxu0 0
  %3127 = vmatpush1.bf16.msra.mxu0 %v2532
  %3128 = vmatprep.subr.bf16.mxu0 0
  %3129 = vmatpush1.bf16.msra.mxu0 %v2539
  %3130 = vmatprep.subr.bf16.mxu0 0
  %3131 = vmatpush1.bf16.msra.mxu0 %v2546
  %3132 = vmatprep.subr.bf16.mxu0 0
  %3133 = vmatpush1.bf16.msra.mxu0 %v2553
  %3134 = vmatprep.subr.bf16.mxu0 0
  %3135 = vmatpush1.bf16.msra.mxu0 %v2560
  %3136 = vmatprep.subr.bf16.mxu0 0
  %3137 = vmatpush1.bf16.msra.mxu0 %v2567
  %3138 = vmatprep.subr.bf16.mxu0 0
  %3139 = vmatpush1.bf16.msra.mxu0 %v2574
  %3140 = vmatprep.subr.bf16.mxu0 0
  %3141 = vmatpush1.bf16.msra.mxu0 %v2581
  %3142 = vmatprep.subr.bf16.mxu0 0
  %3143 = vmatpush1.bf16.msra.mxu0 %v2588
  %3144 = vmatprep.subr.bf16.mxu0 0
  %3145 = vmatpush1.bf16.msra.mxu0 %v2595
  %3146 = vmatprep.subr.bf16.mxu0 0
  %3147 = vmatpush1.bf16.msra.mxu0 %v2602
  %3148 = vmatprep.subr.bf16.mxu0 0
  %3149 = vmatpush1.bf16.msra.mxu0 %v2609
  %3150 = vmatprep.subr.bf16.mxu0 0
  %3151 = vmatpush1.bf16.msra.mxu0 %v2616
  %3152 = vmatprep.mubr.bf16.mxu0 %v1960
  %3153 = vmatmul.mubr.bf16.gmra.mrb[0].mxu0 %v1959
  %v3154 = vpop.f32.mrb[0].mxu0
  %v3155 = vadd.f32 %v1951, %v3154
  %v3156 = vpop.f32.mrb[0].mxu0
  %v3157 = vpop.f32.mrb[0].mxu0
  %v3158 = vpop.f32.mrb[0].mxu0
  %3159 = vdwg.mxu0
  %3160 = vmatprep.subr.bf16.mxu0 0
  %3161 = vmatpush1.bf16.msra.mxu0 %v2623
  %3162 = vmatprep.subr.bf16.mxu0 0
  %3163 = vmatpush1.bf16.msra.mxu0 %v2630
  %3164 = vmatprep.subr.bf16.mxu0 0
  %3165 = vmatpush1.bf16.msra.mxu0 %v2637
  %3166 = vmatprep.subr.bf16.mxu0 0
  %3167 = vmatpush1.bf16.msra.mxu0 %v2644
  %3168 = vmatprep.subr.bf16.mxu0 0
  %3169 = vmatpush1.bf16.msra.mxu0 %v2651
  %3170 = vmatprep.subr.bf16.mxu0 0
  %3171 = vmatpush1.bf16.msra.mxu0 %v2658
  %3172 = vmatprep.subr.bf16.mxu0 0
  %3173 = vmatpush1.bf16.msra.mxu0 %v2665
  %3174 = vmatprep.subr.bf16.mxu0 0
  %3175 = vmatpush1.bf16.msra.mxu0 %v2672
  %3176 = vmatprep.subr.bf16.mxu0 0
  %3177 = vmatpush1.bf16.msra.mxu0 %v2872
  %3178 = vmatprep.subr.bf16.mxu0 0
  %3179 = vmatpush1.bf16.msra.mxu0 0
  %3180 = vmatprep.subr.bf16.mxu0 0
  %3181 = vmatpush1.bf16.msra.mxu0 0
  %3182 = vmatprep.subr.bf16.mxu0 0
  %3183 = vmatpush1.bf16.msra.mxu0 0
  %3184 = vmatprep.subr.bf16.mxu0 0
  %3185 = vmatpush1.bf16.msra.mxu0 0
  %3186 = vmatprep.subr.bf16.mxu0 0
  %3187 = vmatpush1.bf16.msra.mxu0 0
  %3188 = vmatprep.subr.bf16.mxu0 0
  %3189 = vmatpush1.bf16.msra.mxu0 0
  %3190 = vmatprep.subr.bf16.mxu0 0
  %3191 = vmatpush1.bf16.msra.mxu0 0
  %3192 = vmatprep.mubr.bf16.mxu0 %v2850
  %3193 = vmatmul.mubr.bf16.gmra.mrb[0].mxu0 %v1961
  %v3194 = vpop.f32.mrb[0].mxu0
  %v3195 = vadd.f32 %v3155, %v3194
  %v3196 = vpop.f32.mrb[0].mxu0
  %v3197 = vpop.f32.mrb[0].mxu0
  %v3198 = vpop.f32.mrb[0].mxu0
  %3199 = vdwg.mxu0
  %v3200 = vmax.f32 %v2950, 0.0
  %v3201 = vmax.f32 %v2952, 0.0
  %v3202 = vmax.f32 %v3032, 0.0
  %v3203 = vmax.f32 %v3034, 0.0
  %v3204 = vmax.f32 %v3114, 0.0
  %v3205 = vmax.f32 %v3116, 0.0
  %v3206 = vmax.f32 %v3195, 0.0
  %v3207 = vpack.c.bf16 %v3200, %v3200
  %v3208 = vpack.c.bf16 %v3201, %v3201
  %v3209 = vpack.c.bf16 %v3202, %v3202
  %v3210 = vpack.c.bf16 %v3203, %v3203
  %v3211 = vpack.c.bf16 %v3204, %v3204
  %v3212 = vpack.c.bf16 %v3205, %v3205
  %v3213 = vpack.c.bf16 %v3206, %v3206
  %v3221 = vunpack.c.l.b16 %v3207
  %v3222 = vunpack.c.l.b16 %v3208
  %v3223 = vunpack.c.l.b16 %v3209
  %v3224 = vunpack.c.l.b16 %v3210
  %v3225 = vunpack.c.l.b16 %v3211
  %v3226 = vunpack.c.l.b16 %v3212
  %v3227 = vunpack.c.l.b16 %v3213
  %v3228 = vpack.c.b16 %v3222, %v3221
  %v3229 = vpack.c.b16 %v3224, %v3223
  %v3230 = vpack.c.b16 %v3226, %v3225
  %v3231 = vpack.c.b16 %v3227, %v3227
  %3236 = vst [vmem:[%s3] sm:$0xff] %v3228
  %3237 = vst [vmem:[%s3 + $0x8] sm:$0xff] %v3229
  %3238 = vst [vmem:[%s3 + $0x10] sm:$0xff] %v3230
  %3239 = vst [vmem:[%s3 + $0x18] sm:$0xf] %v3231
  // Predicated region
  $region14: #{resnet_encoder_forward.9} parent=0 // pred_check
    _
  $region15: #{resnet_encoder_forward.9} parent=0 // pred_check_branch
    %3241 = sbr.rel (0) target = $region17
  $region16: #{resnet_encoder_forward.9} parent=0 // pred_region
    _
  $region17: #{resnet_encoder_forward.9} parent=0 // pred_fallthru
    _
  // Predicated region
  $region18: #{resnet_encoder_forward.9} parent=0 // pred_check
    _
  $region19: #{resnet_encoder_forward.9} parent=0 // pred_check_branch
    %3243 = sbr.rel (0) target = $region21
  $region20: #{resnet_encoder_forward.9} parent=0 // pred_region
    _
  $region21: #{resnet_encoder_forward.9} parent=0 // pred_fallthru
    _

// kernel: resnet_encoder_forward.11
$region0: #{resnet_encoder_forward.11}
  #allocation0 [shape = 'u32[]', space=smem, size = 0x4, offset = 0x4, fixed_abs, tag = 'smem constant byte address 0x4 - core index']
  #allocation1 [shape = 'u32[144,128]{1,0:T(1,128)}', space=vmem, size = 0x12000, scoped, tag = 'internal scratch']
  %s0 = inlined_call_operand.vmem [shape: bf16[16,18,36], index: 0, kind: input, shape index: {}]
  %s1 = inlined_call_operand.vmem [shape: bf16[16,17,16], index: 1, kind: output, shape index: {}]
  %s2 = sld [smem:[#allocation0]]
  $region14: #{resnet_encoder_forward.11} parent=0
    _
  %s4 = ssub.s32 1, %s2
  %s5 = scalar_select 0, %s4, %s2
  // Predicated region
  $region2: #{resnet_encoder_forward.11} parent=0 // pred_check
    _
  $region3: #{resnet_encoder_forward.11} parent=0 // pred_check_branch
    %7 = sbr.rel (0) target = $region5
  $region4: #{resnet_encoder_forward.11} parent=0 // pred_region
    _
  $region5: #{resnet_encoder_forward.11} parent=0 // pred_fallthru
    _
  %v8 = vld [vmem:[%s0] sm:$0xf]
  %v9 = vld [vmem:[%s0 + $0x4] sm:$0xf]
  %v10 = vld [vmem:[%s0 + $0x8] sm:$0x1]
  %v11 = vld [vmem:[%s0 + $0xc] sm:$0xf]
  %v12 = vld [vmem:[%s0 + $0x10] sm:$0xf]
  %v13 = vld [vmem:[%s0 + $0x14] sm:$0x1]
  %v14 = vld [vmem:[%s0 + $0x18] sm:$0xf]
  %v15 = vld [vmem:[%s0 + $0x1c] sm:$0xf]
  %v16 = vld [vmem:[%s0 + $0x20] sm:$0x1]
  %v17 = vld [vmem:[%s0 + $0x24] sm:$0xf]
  %v18 = vld [vmem:[%s0 + $0x28] sm:$0xf]
  %v19 = vld [vmem:[%s0 + $0x2c] sm:$0x1]
  %v20 = vld [vmem:[%s0 + $0x30] sm:$0xf]
  %v21 = vld [vmem:[%s0 + $0x34] sm:$0xf]
  %v22 = vld [vmem:[%s0 + $0x38] sm:$0x1]
  %v23 = vld [vmem:[%s0 + $0x3c] sm:$0xf]
  %v24 = vld [vmem:[%s0 + $0x40] sm:$0xf]
  %v25 = vld [vmem:[%s0 + $0x44] sm:$0x1]
  %v26 = vld [vmem:[%s0 + $0x48] sm:$0xf]
  %v27 = vld [vmem:[%s0 + $0x4c] sm:$0xf]
  %v28 = vld [vmem:[%s0 + $0x50] sm:$0x1]
  %v29 = vld [vmem:[%s0 + $0x54] sm:$0xf]
  %v30 = vld [vmem:[%s0 + $0x58] sm:$0xf]
  %v31 = vld [vmem:[%s0 + $0x5c] sm:$0x1]
  %v32 = vld [vmem:[%s0 + $0x60] sm:$0xf]
  %v33 = vld [vmem:[%s0 + $0x64] sm:$0xf]
  %v34 = vld [vmem:[%s0 + $0x68] sm:$0x1]
  %v35 = vld [vmem:[%s0 + $0x6c] sm:$0xf]
  %v36 = vld [vmem:[%s0 + $0x70] sm:$0xf]
  %v37 = vld [vmem:[%s0 + $0x74] sm:$0x1]
  %v38 = vld [vmem:[%s0 + $0x78] sm:$0xf]
  %v39 = vld [vmem:[%s0 + $0x7c] sm:$0xf]
  %v40 = vld [vmem:[%s0 + $0x80] sm:$0x1]
  %v41 = vld [vmem:[%s0 + $0x84] sm:$0xf]
  %v42 = vld [vmem:[%s0 + $0x88] sm:$0xf]
  %v43 = vld [vmem:[%s0 + $0x8c] sm:$0x1]
  %v44 = vld [vmem:[%s0 + $0x90] sm:$0xf]
  %v45 = vld [vmem:[%s0 + $0x94] sm:$0xf]
  %v46 = vld [vmem:[%s0 + $0x98] sm:$0x1]
  %v47 = vld [vmem:[%s0 + $0x9c] sm:$0xf]
  %v48 = vld [vmem:[%s0 + $0xa0] sm:$0xf]
  %v49 = vld [vmem:[%s0 + $0xa4] sm:$0x1]
  %v50 = vld [vmem:[%s0 + $0xa8] sm:$0xf]
  %v51 = vld [vmem:[%s0 + $0xac] sm:$0xf]
  %v52 = vld [vmem:[%s0 + $0xb0] sm:$0x1]
  %v53 = vld [vmem:[%s0 + $0xb4] sm:$0xf]
  %v54 = vld [vmem:[%s0 + $0xb8] sm:$0xf]
  %v55 = vld [vmem:[%s0 + $0xbc] sm:$0x1]
  %v56 = vunpack.c.l.bf16 %v8
  %v57 = vunpack.c.l.bf16 %v9
  %v58 = vunpack.c.l.bf16 %v10
  %v59 = vunpack.c.l.bf16 %v11
  %v60 = vunpack.c.l.bf16 %v12
  %v61 = vunpack.c.l.bf16 %v13
  %v62 = vunpack.c.l.bf16 %v14
  %v63 = vunpack.c.l.bf16 %v15
  %v64 = vunpack.c.l.bf16 %v16
  %v65 = vunpack.c.l.bf16 %v17
  %v66 = vunpack.c.l.bf16 %v18
  %v67 = vunpack.c.l.bf16 %v19
  %v68 = vunpack.c.l.bf16 %v20
  %v69 = vunpack.c.l.bf16 %v21
  %v70 = vunpack.c.l.bf16 %v22
  %v71 = vunpack.c.l.bf16 %v23
  %v72 = vunpack.c.l.bf16 %v24
  %v73 = vunpack.c.l.bf16 %v25
  %v74 = vunpack.c.l.bf16 %v26
  %v75 = vunpack.c.l.bf16 %v27
  %v76 = vunpack.c.l.bf16 %v28
  %v77 = vunpack.c.l.bf16 %v29
  %v78 = vunpack.c.l.bf16 %v30
  %v79 = vunpack.c.l.bf16 %v31
  %v80 = vunpack.c.l.bf16 %v32
  %v81 = vunpack.c.l.bf16 %v33
  %v82 = vunpack.c.l.bf16 %v34
  %v83 = vunpack.c.l.bf16 %v35
  %v84 = vunpack.c.l.bf16 %v36
  %v85 = vunpack.c.l.bf16 %v37
  %v86 = vunpack.c.l.bf16 %v38
  %v87 = vunpack.c.l.bf16 %v39
  %v88 = vunpack.c.l.bf16 %v40
  %v89 = vunpack.c.l.bf16 %v41
  %v90 = vunpack.c.l.bf16 %v42
  %v91 = vunpack.c.l.bf16 %v43
  %v92 = vunpack.c.l.bf16 %v44
  %v93 = vunpack.c.l.bf16 %v45
  %v94 = vunpack.c.l.bf16 %v46
  %v95 = vunpack.c.l.bf16 %v47
  %v96 = vunpack.c.l.bf16 %v48
  %v97 = vunpack.c.l.bf16 %v49
  %v98 = vunpack.c.l.bf16 %v50
  %v99 = vunpack.c.l.bf16 %v51
  %v100 = vunpack.c.l.bf16 %v52
  %v101 = vunpack.c.l.bf16 %v53
  %v102 = vunpack.c.l.bf16 %v54
  %v103 = vunpack.c.l.bf16 %v55
  %v104 = vmul.f32 %v56, 2.0
  %v105 = vmul.f32 %v57, 2.0
  %v106 = vmul.f32 %v58, 2.0
  %v107 = vmul.f32 %v59, 2.0
  %v108 = vmul.f32 %v60, 2.0
  %v109 = vmul.f32 %v61, 2.0
  %v110 = vmul.f32 %v62, 2.0
  %v111 = vmul.f32 %v63, 2.0
  %v112 = vmul.f32 %v64, 2.0
  %v113 = vmul.f32 %v65, 2.0
  %v114 = vmul.f32 %v66, 2.0
  %v115 = vmul.f32 %v67, 2.0
  %v116 = vmul.f32 %v68, 2.0
  %v117 = vmul.f32 %v69, 2.0
  %v118 = vmul.f32 %v70, 2.0
  %v119 = vmul.f32 %v71, 2.0
  %v120 = vmul.f32 %v72, 2.0
  %v121 = vmul.f32 %v73, 2.0
  %v122 = vmul.f32 %v74, 2.0
  %v123 = vmul.f32 %v75, 2.0
  %v124 = vmul.f32 %v76, 2.0
  %v125 = vmul.f32 %v77, 2.0
  %v126 = vmul.f32 %v78, 2.0
  %v127 = vmul.f32 %v79, 2.0
  %v128 = vmul.f32 %v80, 2.0
  %v129 = vmul.f32 %v81, 2.0
  %v130 = vmul.f32 %v82, 2.0
  %v131 = vmul.f32 %v83, 2.0
  %v132 = vmul.f32 %v84, 2.0
  %v133 = vmul.f32 %v85, 2.0
  %v134 = vmul.f32 %v86, 2.0
  %v135 = vmul.f32 %v87, 2.0
  %v136 = vmul.f32 %v88, 2.0
  %v137 = vmul.f32 %v89, 2.0
  %v138 = vmul.f32 %v90, 2.0
  %v139 = vmul.f32 %v91, 2.0
  %v140 = vmul.f32 %v92, 2.0
  %v141 = vmul.f32 %v93, 2.0
  %v142 = vmul.f32 %v94, 2.0
  %v143 = vmul.f32 %v95, 2.0
  %v144 = vmul.f32 %v96, 2.0
  %v145 = vmul.f32 %v97, 2.0
  %v146 = vmul.f32 %v98, 2.0
  %v147 = vmul.f32 %v99, 2.0
  %v148 = vmul.f32 %v100, 2.0
  %v149 = vmul.f32 %v101, 2.0
  %v150 = vmul.f32 %v102, 2.0
  %v151 = vmul.f32 %v103, 2.0
  %200 = vrot.lane.b32.xlu0 %v104, 110
  %v201 = vpop.permute.xlu0 %200
  %202 = vrot.lane.b32.xlu0 %v105, 110
  %v203 = vpop.permute.xlu0 %202
  %204 = vrot.lane.b32.xlu0 %v106, 110
  %v205 = vpop.permute.xlu0 %204
  %206 = vrot.lane.b32.xlu0 %v107, 110
  %v207 = vpop.permute.xlu0 %206
  %208 = vrot.lane.b32.xlu0 %v108, 110
  %v209 = vpop.permute.xlu0 %208
  %210 = vrot.lane.b32.xlu0 %v109, 110
  %v211 = vpop.permute.xlu0 %210
  %212 = vrot.lane.b32.xlu0 %v110, 110
  %v213 = vpop.permute.xlu0 %212
  %214 = vrot.lane.b32.xlu0 %v111, 110
  %v215 = vpop.permute.xlu0 %214
  %216 = vrot.lane.b32.xlu0 %v112, 110
  %v217 = vpop.permute.xlu0 %216
  %218 = vrot.lane.b32.xlu0 %v113, 110
  %v219 = vpop.permute.xlu0 %218
  %220 = vrot.lane.b32.xlu0 %v114, 110
  %v221 = vpop.permute.xlu0 %220
  %222 = vrot.lane.b32.xlu0 %v115, 110
  %v223 = vpop.permute.xlu0 %222
  %224 = vrot.lane.b32.xlu0 %v116, 110
  %v225 = vpop.permute.xlu0 %224
  %226 = vrot.lane.b32.xlu0 %v117, 110
  %v227 = vpop.permute.xlu0 %226
  %228 = vrot.lane.b32.xlu0 %v118, 110
  %v229 = vpop.permute.xlu0 %228
  %230 = vrot.lane.b32.xlu0 %v119, 110
  %v231 = vpop.permute.xlu0 %230
  %232 = vrot.lane.b32.xlu0 %v120, 110
  %v233 = vpop.permute.xlu0 %232
  %234 = vrot.lane.b32.xlu0 %v121, 110
  %v235 = vpop.permute.xlu0 %234
  %236 = vrot.lane.b32.xlu0 %v122, 110
  %v237 = vpop.permute.xlu0 %236
  %238 = vrot.lane.b32.xlu0 %v123, 110
  %v239 = vpop.permute.xlu0 %238
  %240 = vrot.lane.b32.xlu0 %v124, 110
  %v241 = vpop.permute.xlu0 %240
  %242 = vrot.lane.b32.xlu0 %v125, 110
  %v243 = vpop.permute.xlu0 %242
  %244 = vrot.lane.b32.xlu0 %v126, 110
  %v245 = vpop.permute.xlu0 %244
  %246 = vrot.lane.b32.xlu0 %v127, 110
  %v247 = vpop.permute.xlu0 %246
  %248 = vrot.lane.b32.xlu0 %v128, 110
  %v249 = vpop.permute.xlu0 %248
  %250 = vrot.lane.b32.xlu0 %v129, 110
  %v251 = vpop.permute.xlu0 %250
  %252 = vrot.lane.b32.xlu0 %v130, 110
  %v253 = vpop.permute.xlu0 %252
  %254 = vrot.lane.b32.xlu0 %v131, 110
  %v255 = vpop.permute.xlu0 %254
  %256 = vrot.lane.b32.xlu0 %v132, 110
  %v257 = vpop.permute.xlu0 %256
  %258 = vrot.lane.b32.xlu0 %v133, 110
  %v259 = vpop.permute.xlu0 %258
  %260 = vrot.lane.b32.xlu0 %v134, 110
  %v261 = vpop.permute.xlu0 %260
  %262 = vrot.lane.b32.xlu0 %v135, 110
  %v263 = vpop.permute.xlu0 %262
  %264 = vrot.lane.b32.xlu0 %v136, 110
  %v265 = vpop.permute.xlu0 %264
  %266 = vrot.lane.b32.xlu0 %v137, 110
  %v267 = vpop.permute.xlu0 %266
  %268 = vrot.lane.b32.xlu0 %v138, 110
  %v269 = vpop.permute.xlu0 %268
  %270 = vrot.lane.b32.xlu0 %v139, 110
  %v271 = vpop.permute.xlu0 %270
  %272 = vrot.lane.b32.xlu0 %v140, 110
  %v273 = vpop.permute.xlu0 %272
  %274 = vrot.lane.b32.xlu0 %v141, 110
  %v275 = vpop.permute.xlu0 %274
  %276 = vrot.lane.b32.xlu0 %v142, 110
  %v277 = vpop.permute.xlu0 %276
  %278 = vrot.lane.b32.xlu0 %v143, 110
  %v279 = vpop.permute.xlu0 %278
  %280 = vrot.lane.b32.xlu0 %v144, 110
  %v281 = vpop.permute.xlu0 %280
  %282 = vrot.lane.b32.xlu0 %v145, 110
  %v283 = vpop.permute.xlu0 %282
  %284 = vrot.lane.b32.xlu0 %v146, 110
  %v285 = vpop.permute.xlu0 %284
  %286 = vrot.lane.b32.xlu0 %v147, 110
  %v287 = vpop.permute.xlu0 %286
  %288 = vrot.lane.b32.xlu0 %v148, 110
  %v289 = vpop.permute.xlu0 %288
  %290 = vrot.lane.b32.xlu0 %v149, 110
  %v291 = vpop.permute.xlu0 %290
  %292 = vrot.lane.b32.xlu0 %v150, 110
  %v293 = vpop.permute.xlu0 %292
  %294 = vrot.lane.b32.xlu0 %v151, 110
  %v295 = vpop.permute.xlu0 %294
  %v344 = vadd.f32 %v56, %v201
  %v345 = vadd.f32 %v57, %v203
  %v346 = vadd.f32 %v58, %v205
  %v347 = vadd.f32 %v59, %v207
  %v348 = vadd.f32 %v60, %v209
  %v349 = vadd.f32 %v61, %v211
  %v350 = vadd.f32 %v62, %v213
  %v351 = vadd.f32 %v63, %v215
  %v352 = vadd.f32 %v64, %v217
  %v353 = vadd.f32 %v65, %v219
  %v354 = vadd.f32 %v66, %v221
  %v355 = vadd.f32 %v67, %v223
  %v356 = vadd.f32 %v68, %v225
  %v357 = vadd.f32 %v69, %v227
  %v358 = vadd.f32 %v70, %v229
  %v359 = vadd.f32 %v71, %v231
  %v360 = vadd.f32 %v72, %v233
  %v361 = vadd.f32 %v73, %v235
  %v362 = vadd.f32 %v74, %v237
  %v363 = vadd.f32 %v75, %v239
  %v364 = vadd.f32 %v76, %v241
  %v365 = vadd.f32 %v77, %v243
  %v366 = vadd.f32 %v78, %v245
  %v367 = vadd.f32 %v79, %v247
  %v368 = vadd.f32 %v80, %v249
  %v369 = vadd.f32 %v81, %v251
  %v370 = vadd.f32 %v82, %v253
  %v371 = vadd.f32 %v83, %v255
  %v372 = vadd.f32 %v84, %v257
  %v373 = vadd.f32 %v85, %v259
  %v374 = vadd.f32 %v86, %v261
  %v375 = vadd.f32 %v87, %v263
  %v376 = vadd.f32 %v88, %v265
  %v377 = vadd.f32 %v89, %v267
  %v378 = vadd.f32 %v90, %v269
  %v379 = vadd.f32 %v91, %v271
  %v380 = vadd.f32 %v92, %v273
  %v381 = vadd.f32 %v93, %v275
  %v382 = vadd.f32 %v94, %v277
  %v383 = vadd.f32 %v95, %v279
  %v384 = vadd.f32 %v96, %v281
  %v385 = vadd.f32 %v97, %v283
  %v386 = vadd.f32 %v98, %v285
  %v387 = vadd.f32 %v99, %v287
  %v388 = vadd.f32 %v100, %v289
  %v389 = vadd.f32 %v101, %v291
  %v390 = vadd.f32 %v102, %v293
  %v391 = vadd.f32 %v103, %v295
  %vm440 = vcmask 1046528
  %v441 = vrot.slane %v56, 1
  %v442 = vrot.slane %v57, 1
  %v443 = vsel %vm440, %v441, %v442
  %v444 = vrot.slane %v58, 1
  %v445 = vsel %vm440, %v442, %v444
  %v446 = vrot.slane %v59, 1
  %v447 = vrot.slane %v60, 1
  %v448 = vsel %vm440, %v446, %v447
  %v449 = vrot.slane %v61, 1
  %v450 = vsel %vm440, %v447, %v449
  %v451 = vrot.slane %v62, 1
  %v452 = vrot.slane %v63, 1
  %v453 = vsel %vm440, %v451, %v452
  %v454 = vrot.slane %v64, 1
  %v455 = vsel %vm440, %v452, %v454
  %v456 = vrot.slane %v65, 1
  %v457 = vrot.slane %v66, 1
  %v458 = vsel %vm440, %v456, %v457
  %v459 = vrot.slane %v67, 1
  %v460 = vsel %vm440, %v457, %v459
  %v461 = vrot.slane %v68, 1
  %v462 = vrot.slane %v69, 1
  %v463 = vsel %vm440, %v461, %v462
  %v464 = vrot.slane %v70, 1
  %v465 = vsel %vm440, %v462, %v464
  %v466 = vrot.slane %v71, 1
  %v467 = vrot.slane %v72, 1
  %v468 = vsel %vm440, %v466, %v467
  %v469 = vrot.slane %v73, 1
  %v470 = vsel %vm440, %v467, %v469
  %v471 = vrot.slane %v74, 1
  %v472 = vrot.slane %v75, 1
  %v473 = vsel %vm440, %v471, %v472
  %v474 = vrot.slane %v76, 1
  %v475 = vsel %vm440, %v472, %v474
  %v476 = vrot.slane %v77, 1
  %v477 = vrot.slane %v78, 1
  %v478 = vsel %vm440, %v476, %v477
  %v479 = vrot.slane %v79, 1
  %v480 = vsel %vm440, %v477, %v479
  %v481 = vrot.slane %v80, 1
  %v482 = vrot.slane %v81, 1
  %v483 = vsel %vm440, %v481, %v482
  %v484 = vrot.slane %v82, 1
  %v485 = vsel %vm440, %v482, %v484
  %v486 = vrot.slane %v83, 1
  %v487 = vrot.slane %v84, 1
  %v488 = vsel %vm440, %v486, %v487
  %v489 = vrot.slane %v85, 1
  %v490 = vsel %vm440, %v487, %v489
  %v491 = vrot.slane %v86, 1
  %v492 = vrot.slane %v87, 1
  %v493 = vsel %vm440, %v491, %v492
  %v494 = vrot.slane %v88, 1
  %v495 = vsel %vm440, %v492, %v494
  %v496 = vrot.slane %v89, 1
  %v497 = vrot.slane %v90, 1
  %v498 = vsel %vm440, %v496, %v497
  %v499 = vrot.slane %v91, 1
  %v500 = vsel %vm440, %v497, %v499
  %v501 = vrot.slane %v92, 1
  %v502 = vrot.slane %v93, 1
  %v503 = vsel %vm440, %v501, %v502
  %v504 = vrot.slane %v94, 1
  %v505 = vsel %vm440, %v502, %v504
  %v506 = vrot.slane %v95, 1
  %v507 = vrot.slane %v96, 1
  %v508 = vsel %vm440, %v506, %v507
  %v509 = vrot.slane %v97, 1
  %v510 = vsel %vm440, %v507, %v509
  %v511 = vrot.slane %v98, 1
  %v512 = vrot.slane %v99, 1
  %v513 = vsel %vm440, %v511, %v512
  %v514 = vrot.slane %v100, 1
  %v515 = vsel %vm440, %v512, %v514
  %v516 = vrot.slane %v101, 1
  %v517 = vrot.slane %v102, 1
  %v518 = vsel %vm440, %v516, %v517
  %v519 = vrot.slane %v103, 1
  %v520 = vsel %vm440, %v517, %v519
  %v569 = vadd.f32 %v344, %v443
  %v570 = vadd.f32 %v345, %v445
  %v571 = vadd.f32 %v346, %v444
  %v572 = vadd.f32 %v347, %v448
  %v573 = vadd.f32 %v348, %v450
  %v574 = vadd.f32 %v349, %v449
  %v575 = vadd.f32 %v350, %v453
  %v576 = vadd.f32 %v351, %v455
  %v577 = vadd.f32 %v352, %v454
  %v578 = vadd.f32 %v353, %v458
  %v579 = vadd.f32 %v354, %v460
  %v580 = vadd.f32 %v355, %v459
  %v581 = vadd.f32 %v356, %v463
  %v582 = vadd.f32 %v357, %v465
  %v583 = vadd.f32 %v358, %v464
  %v584 = vadd.f32 %v359, %v468
  %v585 = vadd.f32 %v360, %v470
  %v586 = vadd.f32 %v361, %v469
  %v587 = vadd.f32 %v362, %v473
  %v588 = vadd.f32 %v363, %v475
  %v589 = vadd.f32 %v364, %v474
  %v590 = vadd.f32 %v365, %v478
  %v591 = vadd.f32 %v366, %v480
  %v592 = vadd.f32 %v367, %v479
  %v593 = vadd.f32 %v368, %v483
  %v594 = vadd.f32 %v369, %v485
  %v595 = vadd.f32 %v370, %v484
  %v596 = vadd.f32 %v371, %v488
  %v597 = vadd.f32 %v372, %v490
  %v598 = vadd.f32 %v373, %v489
  %v599 = vadd.f32 %v374, %v493
  %v600 = vadd.f32 %v375, %v495
  %v601 = vadd.f32 %v376, %v494
  %v602 = vadd.f32 %v377, %v498
  %v603 = vadd.f32 %v378, %v500
  %v604 = vadd.f32 %v379, %v499
  %v605 = vadd.f32 %v380, %v503
  %v606 = vadd.f32 %v381, %v505
  %v607 = vadd.f32 %v382, %v504
  %v608 = vadd.f32 %v383, %v508
  %v609 = vadd.f32 %v384, %v510
  %v610 = vadd.f32 %v385, %v509
  %v611 = vadd.f32 %v386, %v513
  %v612 = vadd.f32 %v387, %v515
  %v613 = vadd.f32 %v388, %v514
  %v614 = vadd.f32 %v389, %v518
  %v615 = vadd.f32 %v390, %v520
  %v616 = vadd.f32 %v391, %v519
  %v617 = vmul.f32 %v569, 2.0
  %v618 = vmul.f32 %v570, 2.0
  %v619 = vmul.f32 %v571, 2.0
  %v620 = vmul.f32 %v572, 2.0
  %v621 = vmul.f32 %v573, 2.0
  %v622 = vmul.f32 %v574, 2.0
  %v623 = vmul.f32 %v575, 2.0
  %v624 = vmul.f32 %v576, 2.0
  %v625 = vmul.f32 %v577, 2.0
  %v626 = vmul.f32 %v578, 2.0
  %v627 = vmul.f32 %v579, 2.0
  %v628 = vmul.f32 %v580, 2.0
  %v629 = vmul.f32 %v581, 2.0
  %v630 = vmul.f32 %v582, 2.0
  %v631 = vmul.f32 %v583, 2.0
  %v632 = vmul.f32 %v584, 2.0
  %v633 = vmul.f32 %v585, 2.0
  %v634 = vmul.f32 %v586, 2.0
  %v635 = vmul.f32 %v587, 2.0
  %v636 = vmul.f32 %v588, 2.0
  %v637 = vmul.f32 %v589, 2.0
  %v638 = vmul.f32 %v590, 2.0
  %v639 = vmul.f32 %v591, 2.0
  %v640 = vmul.f32 %v592, 2.0
  %v641 = vmul.f32 %v593, 2.0
  %v642 = vmul.f32 %v594, 2.0
  %v643 = vmul.f32 %v595, 2.0
  %v644 = vmul.f32 %v596, 2.0
  %v645 = vmul.f32 %v597, 2.0
  %v646 = vmul.f32 %v598, 2.0
  %v647 = vmul.f32 %v599, 2.0
  %v648 = vmul.f32 %v600, 2.0
  %v649 = vmul.f32 %v601, 2.0
  %v650 = vmul.f32 %v602, 2.0
  %v651 = vmul.f32 %v603, 2.0
  %v652 = vmul.f32 %v604, 2.0
  %v653 = vmul.f32 %v605, 2.0
  %v654 = vmul.f32 %v606, 2.0
  %v655 = vmul.f32 %v607, 2.0
  %v656 = vmul.f32 %v608, 2.0
  %v657 = vmul.f32 %v609, 2.0
  %v658 = vmul.f32 %v610, 2.0
  %v659 = vmul.f32 %v611, 2.0
  %v660 = vmul.f32 %v612, 2.0
  %v661 = vmul.f32 %v613, 2.0
  %v662 = vmul.f32 %v614, 2.0
  %v663 = vmul.f32 %v615, 2.0
  %v664 = vmul.f32 %v616, 2.0
  %713 = vrot.lane.b32.xlu0 %v617, 127
  %v714 = vpop.permute.xlu0 %713
  %715 = vrot.lane.b32.xlu0 %v618, 127
  %v716 = vpop.permute.xlu0 %715
  %717 = vrot.lane.b32.xlu0 %v619, 127
  %v718 = vpop.permute.xlu0 %717
  %719 = vrot.lane.b32.xlu0 %v620, 127
  %v720 = vpop.permute.xlu0 %719
  %721 = vrot.lane.b32.xlu0 %v621, 127
  %v722 = vpop.permute.xlu0 %721
  %723 = vrot.lane.b32.xlu0 %v622, 127
  %v724 = vpop.permute.xlu0 %723
  %725 = vrot.lane.b32.xlu0 %v623, 127
  %v726 = vpop.permute.xlu0 %725
  %727 = vrot.lane.b32.xlu0 %v624, 127
  %v728 = vpop.permute.xlu0 %727
  %729 = vrot.lane.b32.xlu0 %v625, 127
  %v730 = vpop.permute.xlu0 %729
  %731 = vrot.lane.b32.xlu0 %v626, 127
  %v732 = vpop.permute.xlu0 %731
  %733 = vrot.lane.b32.xlu0 %v627, 127
  %v734 = vpop.permute.xlu0 %733
  %735 = vrot.lane.b32.xlu0 %v628, 127
  %v736 = vpop.permute.xlu0 %735
  %737 = vrot.lane.b32.xlu0 %v629, 127
  %v738 = vpop.permute.xlu0 %737
  %739 = vrot.lane.b32.xlu0 %v630, 127
  %v740 = vpop.permute.xlu0 %739
  %741 = vrot.lane.b32.xlu0 %v631, 127
  %v742 = vpop.permute.xlu0 %741
  %743 = vrot.lane.b32.xlu0 %v632, 127
  %v744 = vpop.permute.xlu0 %743
  %745 = vrot.lane.b32.xlu0 %v633, 127
  %v746 = vpop.permute.xlu0 %745
  %747 = vrot.lane.b32.xlu0 %v634, 127
  %v748 = vpop.permute.xlu0 %747
  %749 = vrot.lane.b32.xlu0 %v635, 127
  %v750 = vpop.permute.xlu0 %749
  %751 = vrot.lane.b32.xlu0 %v636, 127
  %v752 = vpop.permute.xlu0 %751
  %753 = vrot.lane.b32.xlu0 %v637, 127
  %v754 = vpop.permute.xlu0 %753
  %755 = vrot.lane.b32.xlu0 %v638, 127
  %v756 = vpop.permute.xlu0 %755
  %757 = vrot.lane.b32.xlu0 %v639, 127
  %v758 = vpop.permute.xlu0 %757
  %759 = vrot.lane.b32.xlu0 %v640, 127
  %v760 = vpop.permute.xlu0 %759
  %761 = vrot.lane.b32.xlu0 %v641, 127
  %v762 = vpop.permute.xlu0 %761
  %763 = vrot.lane.b32.xlu0 %v642, 127
  %v764 = vpop.permute.xlu0 %763
  %765 = vrot.lane.b32.xlu0 %v643, 127
  %v766 = vpop.permute.xlu0 %765
  %767 = vrot.lane.b32.xlu0 %v644, 127
  %v768 = vpop.permute.xlu0 %767
  %769 = vrot.lane.b32.xlu0 %v645, 127
  %v770 = vpop.permute.xlu0 %769
  %771 = vrot.lane.b32.xlu0 %v646, 127
  %v772 = vpop.permute.xlu0 %771
  %773 = vrot.lane.b32.xlu0 %v647, 127
  %v774 = vpop.permute.xlu0 %773
  %775 = vrot.lane.b32.xlu0 %v648, 127
  %v776 = vpop.permute.xlu0 %775
  %777 = vrot.lane.b32.xlu0 %v649, 127
  %v778 = vpop.permute.xlu0 %777
  %779 = vrot.lane.b32.xlu0 %v650, 127
  %v780 = vpop.permute.xlu0 %779
  %781 = vrot.lane.b32.xlu0 %v651, 127
  %v782 = vpop.permute.xlu0 %781
  %783 = vrot.lane.b32.xlu0 %v652, 127
  %v784 = vpop.permute.xlu0 %783
  %785 = vrot.lane.b32.xlu0 %v653, 127
  %v786 = vpop.permute.xlu0 %785
  %787 = vrot.lane.b32.xlu0 %v654, 127
  %v788 = vpop.permute.xlu0 %787
  %789 = vrot.lane.b32.xlu0 %v655, 127
  %v790 = vpop.permute.xlu0 %789
  %791 = vrot.lane.b32.xlu0 %v656, 127
  %v792 = vpop.permute.xlu0 %791
  %793 = vrot.lane.b32.xlu0 %v657, 127
  %v794 = vpop.permute.xlu0 %793
  %795 = vrot.lane.b32.xlu0 %v658, 127
  %v796 = vpop.permute.xlu0 %795
  %797 = vrot.lane.b32.xlu0 %v659, 127
  %v798 = vpop.permute.xlu0 %797
  %799 = vrot.lane.b32.xlu0 %v660, 127
  %v800 = vpop.permute.xlu0 %799
  %801 = vrot.lane.b32.xlu0 %v661, 127
  %v802 = vpop.permute.xlu0 %801
  %803 = vrot.lane.b32.xlu0 %v662, 127
  %v804 = vpop.permute.xlu0 %803
  %805 = vrot.lane.b32.xlu0 %v663, 127
  %v806 = vpop.permute.xlu0 %805
  %807 = vrot.lane.b32.xlu0 %v664, 127
  %v808 = vpop.permute.xlu0 %807
  %v857 = vadd.f32 %v569, %v714
  %v858 = vadd.f32 %v570, %v716
  %v859 = vadd.f32 %v571, %v718
  %v860 = vadd.f32 %v572, %v720
  %v861 = vadd.f32 %v573, %v722
  %v862 = vadd.f32 %v574, %v724
  %v863 = vadd.f32 %v575, %v726
  %v864 = vadd.f32 %v576, %v728
  %v865 = vadd.f32 %v577, %v730
  %v866 = vadd.f32 %v578, %v732
  %v867 = vadd.f32 %v579, %v734
  %v868 = vadd.f32 %v580, %v736
  %v869 = vadd.f32 %v581, %v738
  %v870 = vadd.f32 %v582, %v740
  %v871 = vadd.f32 %v583, %v742
  %v872 = vadd.f32 %v584, %v744
  %v873 = vadd.f32 %v585, %v746
  %v874 = vadd.f32 %v586, %v748
  %v875 = vadd.f32 %v587, %v750
  %v876 = vadd.f32 %v588, %v752
  %v877 = vadd.f32 %v589, %v754
  %v878 = vadd.f32 %v590, %v756
  %v879 = vadd.f32 %v591, %v758
  %v880 = vadd.f32 %v592, %v760
  %v881 = vadd.f32 %v593, %v762
  %v882 = vadd.f32 %v594, %v764
  %v883 = vadd.f32 %v595, %v766
  %v884 = vadd.f32 %v596, %v768
  %v885 = vadd.f32 %v597, %v770
  %v886 = vadd.f32 %v598, %v772
  %v887 = vadd.f32 %v599, %v774
  %v888 = vadd.f32 %v600, %v776
  %v889 = vadd.f32 %v601, %v778
  %v890 = vadd.f32 %v602, %v780
  %v891 = vadd.f32 %v603, %v782
  %v892 = vadd.f32 %v604, %v784
  %v893 = vadd.f32 %v605, %v786
  %v894 = vadd.f32 %v606, %v788
  %v895 = vadd.f32 %v607, %v790
  %v896 = vadd.f32 %v608, %v792
  %v897 = vadd.f32 %v609, %v794
  %v898 = vadd.f32 %v610, %v796
  %v899 = vadd.f32 %v611, %v798
  %v900 = vadd.f32 %v612, %v800
  %v901 = vadd.f32 %v613, %v802
  %v902 = vadd.f32 %v614, %v804
  %v903 = vadd.f32 %v615, %v806
  %v904 = vadd.f32 %v616, %v808
  %953 = vrot.lane.b32.xlu0 %v569, 126
  %v954 = vpop.permute.xlu0 %953
  %955 = vrot.lane.b32.xlu0 %v570, 126
  %v956 = vpop.permute.xlu0 %955
  %957 = vrot.lane.b32.xlu0 %v571, 126
  %v958 = vpop.permute.xlu0 %957
  %959 = vrot.lane.b32.xlu0 %v572, 126
  %v960 = vpop.permute.xlu0 %959
  %961 = vrot.lane.b32.xlu0 %v573, 126
  %v962 = vpop.permute.xlu0 %961
  %963 = vrot.lane.b32.xlu0 %v574, 126
  %v964 = vpop.permute.xlu0 %963
  %965 = vrot.lane.b32.xlu0 %v575, 126
  %v966 = vpop.permute.xlu0 %965
  %967 = vrot.lane.b32.xlu0 %v576, 126
  %v968 = vpop.permute.xlu0 %967
  %969 = vrot.lane.b32.xlu0 %v577, 126
  %v970 = vpop.permute.xlu0 %969
  %971 = vrot.lane.b32.xlu0 %v578, 126
  %v972 = vpop.permute.xlu0 %971
  %973 = vrot.lane.b32.xlu0 %v579, 126
  %v974 = vpop.permute.xlu0 %973
  %975 = vrot.lane.b32.xlu0 %v580, 126
  %v976 = vpop.permute.xlu0 %975
  %977 = vrot.lane.b32.xlu0 %v581, 126
  %v978 = vpop.permute.xlu0 %977
  %979 = vrot.lane.b32.xlu0 %v582, 126
  %v980 = vpop.permute.xlu0 %979
  %981 = vrot.lane.b32.xlu0 %v583, 126
  %v982 = vpop.permute.xlu0 %981
  %983 = vrot.lane.b32.xlu0 %v584, 126
  %v984 = vpop.permute.xlu0 %983
  %985 = vrot.lane.b32.xlu0 %v585, 126
  %v986 = vpop.permute.xlu0 %985
  %987 = vrot.lane.b32.xlu0 %v586, 126
  %v988 = vpop.permute.xlu0 %987
  %989 = vrot.lane.b32.xlu0 %v587, 126
  %v990 = vpop.permute.xlu0 %989
  %991 = vrot.lane.b32.xlu0 %v588, 126
  %v992 = vpop.permute.xlu0 %991
  %993 = vrot.lane.b32.xlu0 %v589, 126
  %v994 = vpop.permute.xlu0 %993
  %995 = vrot.lane.b32.xlu0 %v590, 126
  %v996 = vpop.permute.xlu0 %995
  %997 = vrot.lane.b32.xlu0 %v591, 126
  %v998 = vpop.permute.xlu0 %997
  %999 = vrot.lane.b32.xlu0 %v592, 126
  %v1000 = vpop.permute.xlu0 %999
  %1001 = vrot.lane.b32.xlu0 %v593, 126
  %v1002 = vpop.permute.xlu0 %1001
  %1003 = vrot.lane.b32.xlu0 %v594, 126
  %v1004 = vpop.permute.xlu0 %1003
  %1005 = vrot.lane.b32.xlu0 %v595, 126
  %v1006 = vpop.permute.xlu0 %1005
  %1007 = vrot.lane.b32.xlu0 %v596, 126
  %v1008 = vpop.permute.xlu0 %1007
  %1009 = vrot.lane.b32.xlu0 %v597, 126
  %v1010 = vpop.permute.xlu0 %1009
  %1011 = vrot.lane.b32.xlu0 %v598, 126
  %v1012 = vpop.permute.xlu0 %1011
  %1013 = vrot.lane.b32.xlu0 %v599, 126
  %v1014 = vpop.permute.xlu0 %1013
  %1015 = vrot.lane.b32.xlu0 %v600, 126
  %v1016 = vpop.permute.xlu0 %1015
  %1017 = vrot.lane.b32.xlu0 %v601, 126
  %v1018 = vpop.permute.xlu0 %1017
  %1019 = vrot.lane.b32.xlu0 %v602, 126
  %v1020 = vpop.permute.xlu0 %1019
  %1021 = vrot.lane.b32.xlu0 %v603, 126
  %v1022 = vpop.permute.xlu0 %1021
  %1023 = vrot.lane.b32.xlu0 %v604, 126
  %v1024 = vpop.permute.xlu0 %1023
  %1025 = vrot.lane.b32.xlu0 %v605, 126
  %v1026 = vpop.permute.xlu0 %1025
  %1027 = vrot.lane.b32.xlu0 %v606, 126
  %v1028 = vpop.permute.xlu0 %1027
  %1029 = vrot.lane.b32.xlu0 %v607, 126
  %v1030 = vpop.permute.xlu0 %1029
  %1031 = vrot.lane.b32.xlu0 %v608, 126
  %v1032 = vpop.permute.xlu0 %1031
  %1033 = vrot.lane.b32.xlu0 %v609, 126
  %v1034 = vpop.permute.xlu0 %1033
  %1035 = vrot.lane.b32.xlu0 %v610, 126
  %v1036 = vpop.permute.xlu0 %1035
  %1037 = vrot.lane.b32.xlu0 %v611, 126
  %v1038 = vpop.permute.xlu0 %1037
  %1039 = vrot.lane.b32.xlu0 %v612, 126
  %v1040 = vpop.permute.xlu0 %1039
  %1041 = vrot.lane.b32.xlu0 %v613, 126
  %v1042 = vpop.permute.xlu0 %1041
  %1043 = vrot.lane.b32.xlu0 %v614, 126
  %v1044 = vpop.permute.xlu0 %1043
  %1045 = vrot.lane.b32.xlu0 %v615, 126
  %v1046 = vpop.permute.xlu0 %1045
  %1047 = vrot.lane.b32.xlu0 %v616, 126
  %v1048 = vpop.permute.xlu0 %1047
  %v1097 = vadd.f32 %v857, %v954
  %v1098 = vadd.f32 %v858, %v956
  %v1099 = vadd.f32 %v859, %v958
  %v1100 = vadd.f32 %v860, %v960
  %v1101 = vadd.f32 %v861, %v962
  %v1102 = vadd.f32 %v862, %v964
  %v1103 = vadd.f32 %v863, %v966
  %v1104 = vadd.f32 %v864, %v968
  %v1105 = vadd.f32 %v865, %v970
  %v1106 = vadd.f32 %v866, %v972
  %v1107 = vadd.f32 %v867, %v974
  %v1108 = vadd.f32 %v868, %v976
  %v1109 = vadd.f32 %v869, %v978
  %v1110 = vadd.f32 %v870, %v980
  %v1111 = vadd.f32 %v871, %v982
  %v1112 = vadd.f32 %v872, %v984
  %v1113 = vadd.f32 %v873, %v986
  %v1114 = vadd.f32 %v874, %v988
  %v1115 = vadd.f32 %v875, %v990
  %v1116 = vadd.f32 %v876, %v992
  %v1117 = vadd.f32 %v877, %v994
  %v1118 = vadd.f32 %v878, %v996
  %v1119 = vadd.f32 %v879, %v998
  %v1120 = vadd.f32 %v880, %v1000
  %v1121 = vadd.f32 %v881, %v1002
  %v1122 = vadd.f32 %v882, %v1004
  %v1123 = vadd.f32 %v883, %v1006
  %v1124 = vadd.f32 %v884, %v1008
  %v1125 = vadd.f32 %v885, %v1010
  %v1126 = vadd.f32 %v886, %v1012
  %v1127 = vadd.f32 %v887, %v1014
  %v1128 = vadd.f32 %v888, %v1016
  %v1129 = vadd.f32 %v889, %v1018
  %v1130 = vadd.f32 %v890, %v1020
  %v1131 = vadd.f32 %v891, %v1022
  %v1132 = vadd.f32 %v892, %v1024
  %v1133 = vadd.f32 %v893, %v1026
  %v1134 = vadd.f32 %v894, %v1028
  %v1135 = vadd.f32 %v895, %v1030
  %v1136 = vadd.f32 %v896, %v1032
  %v1137 = vadd.f32 %v897, %v1034
  %v1138 = vadd.f32 %v898, %v1036
  %v1139 = vadd.f32 %v899, %v1038
  %v1140 = vadd.f32 %v900, %v1040
  %v1141 = vadd.f32 %v901, %v1042
  %v1142 = vadd.f32 %v902, %v1044
  %v1143 = vadd.f32 %v903, %v1046
  %v1144 = vadd.f32 %v904, %v1048
  %v1145 = vmul.f32 %v1097, 0.0625
  %v1146 = vmul.f32 %v1098, 0.0625
  %v1147 = vmul.f32 %v1099, 0.0625
  %v1148 = vmul.f32 %v1100, 0.0625
  %v1149 = vmul.f32 %v1101, 0.0625
  %v1150 = vmul.f32 %v1102, 0.0625
  %v1151 = vmul.f32 %v1103, 0.0625
  %v1152 = vmul.f32 %v1104, 0.0625
  %v1153 = vmul.f32 %v1105, 0.0625
  %v1154 = vmul.f32 %v1106, 0.0625
  %v1155 = vmul.f32 %v1107, 0.0625
  %v1156 = vmul.f32 %v1108, 0.0625
  %v1157 = vmul.f32 %v1109, 0.0625
  %v1158 = vmul.f32 %v1110, 0.0625
  %v1159 = vmul.f32 %v1111, 0.0625
  %v1160 = vmul.f32 %v1112, 0.0625
  %v1161 = vmul.f32 %v1113, 0.0625
  %v1162 = vmul.f32 %v1114, 0.0625
  %v1163 = vmul.f32 %v1115, 0.0625
  %v1164 = vmul.f32 %v1116, 0.0625
  %v1165 = vmul.f32 %v1117, 0.0625
  %v1166 = vmul.f32 %v1118, 0.0625
  %v1167 = vmul.f32 %v1119, 0.0625
  %v1168 = vmul.f32 %v1120, 0.0625
  %v1169 = vmul.f32 %v1121, 0.0625
  %v1170 = vmul.f32 %v1122, 0.0625
  %v1171 = vmul.f32 %v1123, 0.0625
  %v1172 = vmul.f32 %v1124, 0.0625
  %v1173 = vmul.f32 %v1125, 0.0625
  %v1174 = vmul.f32 %v1126, 0.0625
  %v1175 = vmul.f32 %v1127, 0.0625
  %v1176 = vmul.f32 %v1128, 0.0625
  %v1177 = vmul.f32 %v1129, 0.0625
  %v1178 = vmul.f32 %v1130, 0.0625
  %v1179 = vmul.f32 %v1131, 0.0625
  %v1180 = vmul.f32 %v1132, 0.0625
  %v1181 = vmul.f32 %v1133, 0.0625
  %v1182 = vmul.f32 %v1134, 0.0625
  %v1183 = vmul.f32 %v1135, 0.0625
  %v1184 = vmul.f32 %v1136, 0.0625
  %v1185 = vmul.f32 %v1137, 0.0625
  %v1186 = vmul.f32 %v1138, 0.0625
  %v1187 = vmul.f32 %v1139, 0.0625
  %v1188 = vmul.f32 %v1140, 0.0625
  %v1189 = vmul.f32 %v1141, 0.0625
  %v1190 = vmul.f32 %v1142, 0.0625
  %v1191 = vmul.f32 %v1143, 0.0625
  %v1192 = vmul.f32 %v1144, 0.0625
  %v1193 = vpack.c.bf16 %v1146, %v1145
  %v1194 = vpack.c.bf16 %v1147, %v1147
  %v1195 = vpack.c.bf16 %v1149, %v1148
  %v1196 = vpack.c.bf16 %v1150, %v1150
  %v1197 = vpack.c.bf16 %v1152, %v1151
  %v1198 = vpack.c.bf16 %v1153, %v1153
  %v1199 = vpack.c.bf16 %v1155, %v1154
  %v1200 = vpack.c.bf16 %v1156, %v1156
  %v1201 = vpack.c.bf16 %v1158, %v1157
  %v1202 = vpack.c.bf16 %v1159, %v1159
  %v1203 = vpack.c.bf16 %v1161, %v1160
  %v1204 = vpack.c.bf16 %v1162, %v1162
  %v1205 = vpack.c.bf16 %v1164, %v1163
  %v1206 = vpack.c.bf16 %v1165, %v1165
  %v1207 = vpack.c.bf16 %v1167, %v1166
  %v1208 = vpack.c.bf16 %v1168, %v1168
  %v1209 = vpack.c.bf16 %v1170, %v1169
  %v1210 = vpack.c.bf16 %v1171, %v1171
  %v1211 = vpack.c.bf16 %v1173, %v1172
  %v1212 = vpack.c.bf16 %v1174, %v1174
  %v1213 = vpack.c.bf16 %v1176, %v1175
  %v1214 = vpack.c.bf16 %v1177, %v1177
  %v1215 = vpack.c.bf16 %v1179, %v1178
  %v1216 = vpack.c.bf16 %v1180, %v1180
  %v1217 = vpack.c.bf16 %v1182, %v1181
  %v1218 = vpack.c.bf16 %v1183, %v1183
  %v1219 = vpack.c.bf16 %v1185, %v1184
  %v1220 = vpack.c.bf16 %v1186, %v1186
  %v1221 = vpack.c.bf16 %v1188, %v1187
  %v1222 = vpack.c.bf16 %v1189, %v1189
  %v1223 = vpack.c.bf16 %v1191, %v1190
  %v1224 = vpack.c.bf16 %v1192, %v1192
  %v1257 = vunpack.c.l.b16 %v1193
  %v1258 = vunpack.c.h.b16 %v1193
  %v1259 = vunpack.c.l.b16 %v1194
  %v1260 = vunpack.c.l.b16 %v1195
  %v1261 = vunpack.c.h.b16 %v1195
  %v1262 = vunpack.c.l.b16 %v1196
  %v1263 = vunpack.c.l.b16 %v1197
  %v1264 = vunpack.c.h.b16 %v1197
  %v1265 = vunpack.c.l.b16 %v1198
  %v1266 = vunpack.c.l.b16 %v1199
  %v1267 = vunpack.c.h.b16 %v1199
  %v1268 = vunpack.c.l.b16 %v1200
  %v1269 = vunpack.c.l.b16 %v1201
  %v1270 = vunpack.c.h.b16 %v1201
  %v1271 = vunpack.c.l.b16 %v1202
  %v1272 = vunpack.c.l.b16 %v1203
  %v1273 = vunpack.c.h.b16 %v1203
  %v1274 = vunpack.c.l.b16 %v1204
  %v1275 = vunpack.c.l.b16 %v1205
  %v1276 = vunpack.c.h.b16 %v1205
  %v1277 = vunpack.c.l.b16 %v1206
  %v1278 = vunpack.c.l.b16 %v1207
  %v1279 = vunpack.c.h.b16 %v1207
  %v1280 = vunpack.c.l.b16 %v1208
  %v1281 = vunpack.c.l.b16 %v1209
  %v1282 = vunpack.c.h.b16 %v1209
  %v1283 = vunpack.c.l.b16 %v1210
  %v1284 = vunpack.c.l.b16 %v1211
  %v1285 = vunpack.c.h.b16 %v1211
  %v1286 = vunpack.c.l.b16 %v1212
  %v1287 = vunpack.c.l.b16 %v1213
  %v1288 = vunpack.c.h.b16 %v1213
  %v1289 = vunpack.c.l.b16 %v1214
  %v1290 = vunpack.c.l.b16 %v1215
  %v1291 = vunpack.c.h.b16 %v1215
  %v1292 = vunpack.c.l.b16 %v1216
  %v1293 = vunpack.c.l.b16 %v1217
  %v1294 = vunpack.c.h.b16 %v1217
  %v1295 = vunpack.c.l.b16 %v1218
  %v1296 = vunpack.c.l.b16 %v1219
  %v1297 = vunpack.c.h.b16 %v1219
  %v1298 = vunpack.c.l.b16 %v1220
  %v1299 = vunpack.c.l.b16 %v1221
  %v1300 = vunpack.c.h.b16 %v1221
  %v1301 = vunpack.c.l.b16 %v1222
  %v1302 = vunpack.c.l.b16 %v1223
  %v1303 = vunpack.c.h.b16 %v1223
  %v1304 = vunpack.c.l.b16 %v1224
  %v1305 = vpack.c.b16 %v1257, %v1257
  %v1306 = vpack.c.b16 %v1258, %v1258
  %v1307 = vpack.c.b16 %v1259, %v1259
  %v1308 = vpack.c.b16 %v1260, %v1260
  %v1309 = vpack.c.b16 %v1261, %v1261
  %v1310 = vpack.c.b16 %v1262, %v1262
  %v1311 = vpack.c.b16 %v1263, %v1263
  %v1312 = vpack.c.b16 %v1264, %v1264
  %v1313 = vpack.c.b16 %v1265, %v1265
  %v1314 = vpack.c.b16 %v1266, %v1266
  %v1315 = vpack.c.b16 %v1267, %v1267
  %v1316 = vpack.c.b16 %v1268, %v1268
  %v1317 = vpack.c.b16 %v1269, %v1269
  %v1318 = vpack.c.b16 %v1270, %v1270
  %v1319 = vpack.c.b16 %v1271, %v1271
  %v1320 = vpack.c.b16 %v1272, %v1272
  %v1321 = vpack.c.b16 %v1273, %v1273
  %v1322 = vpack.c.b16 %v1274, %v1274
  %v1323 = vpack.c.b16 %v1275, %v1275
  %v1324 = vpack.c.b16 %v1276, %v1276
  %v1325 = vpack.c.b16 %v1277, %v1277
  %v1326 = vpack.c.b16 %v1278, %v1278
  %v1327 = vpack.c.b16 %v1279, %v1279
  %v1328 = vpack.c.b16 %v1280, %v1280
  %v1329 = vpack.c.b16 %v1281, %v1281
  %v1330 = vpack.c.b16 %v1282, %v1282
  %v1331 = vpack.c.b16 %v1283, %v1283
  %v1332 = vpack.c.b16 %v1284, %v1284
  %v1333 = vpack.c.b16 %v1285, %v1285
  %v1334 = vpack.c.b16 %v1286, %v1286
  %v1335 = vpack.c.b16 %v1287, %v1287
  %v1336 = vpack.c.b16 %v1288, %v1288
  %v1337 = vpack.c.b16 %v1289, %v1289
  %v1338 = vpack.c.b16 %v1290, %v1290
  %v1339 = vpack.c.b16 %v1291, %v1291
  %v1340 = vpack.c.b16 %v1292, %v1292
  %v1341 = vpack.c.b16 %v1293, %v1293
  %v1342 = vpack.c.b16 %v1294, %v1294
  %v1343 = vpack.c.b16 %v1295, %v1295
  %v1344 = vpack.c.b16 %v1296, %v1296
  %v1345 = vpack.c.b16 %v1297, %v1297
  %v1346 = vpack.c.b16 %v1298, %v1298
  %v1347 = vpack.c.b16 %v1299, %v1299
  %v1348 = vpack.c.b16 %v1300, %v1300
  %v1349 = vpack.c.b16 %v1301, %v1301
  %v1350 = vpack.c.b16 %v1302, %v1302
  %v1351 = vpack.c.b16 %v1303, %v1303
  %v1352 = vpack.c.b16 %v1304, %v1304
  %vm1401 = vcmask 125952
  %1402 = vst.msk [vmem:[%s1] sm:$0xf] %vm1401, %v1305
  %1403 = vst.msk [vmem:[%s1 + $0x4] sm:$0xf] %vm1401, %v1306
  %vm1404 = vcmask 122880
  %vm1405 = vsmask.f32 256
  %vm1406 = vmand %vm1404, %vm1405
  %v1407 = vld [vmem:[%s1 + $0x8] sm:$0x1]
  %v1408 = vsel %vm1406, %v1307, %v1407
  %1409 = vst [vmem:[%s1 + $0x8] sm:$0x1] %v1408
  %1410 = vst.msk [vmem:[%s1 + $0xc] sm:$0xf] %vm1401, %v1308
  %1411 = vst.msk [vmem:[%s1 + $0x10] sm:$0xf] %vm1401, %v1309
  %v1412 = vld [vmem:[%s1 + $0x14] sm:$0x1]
  %v1413 = vsel %vm1406, %v1310, %v1412
  %1414 = vst [vmem:[%s1 + $0x14] sm:$0x1] %v1413
  %1415 = vst.msk [vmem:[%s1 + $0x18] sm:$0xf] %vm1401, %v1311
  %1416 = vst.msk [vmem:[%s1 + $0x1c] sm:$0xf] %vm1401, %v1312
  %v1417 = vld [vmem:[%s1 + $0x20] sm:$0x1]
  %v1418 = vsel %vm1406, %v1313, %v1417
  %1419 = vst [vmem:[%s1 + $0x20] sm:$0x1] %v1418
  %1420 = vst.msk [vmem:[%s1 + $0x24] sm:$0xf] %vm1401, %v1314
  %1421 = vst.msk [vmem:[%s1 + $0x28] sm:$0xf] %vm1401, %v1315
  %v1422 = vld [vmem:[%s1 + $0x2c] sm:$0x1]
  %v1423 = vsel %vm1406, %v1316, %v1422
  %1424 = vst [vmem:[%s1 + $0x2c] sm:$0x1] %v1423
  %1425 = vst.msk [vmem:[%s1 + $0x30] sm:$0xf] %vm1401, %v1317
  %1426 = vst.msk [vmem:[%s1 + $0x34] sm:$0xf] %vm1401, %v1318
  %v1427 = vld [vmem:[%s1 + $0x38] sm:$0x1]
  %v1428 = vsel %vm1406, %v1319, %v1427
  %1429 = vst [vmem:[%s1 + $0x38] sm:$0x1] %v1428
  %1430 = vst.msk [vmem:[%s1 + $0x3c] sm:$0xf] %vm1401, %v1320
  %1431 = vst.msk [vmem:[%s1 + $0x40] sm:$0xf] %vm1401, %v1321
  %v1432 = vld [vmem:[%s1 + $0x44] sm:$0x1]
  %v1433 = vsel %vm1406, %v1322, %v1432
  %1434 = vst [vmem:[%s1 + $0x44] sm:$0x1] %v1433
  %1435 = vst.msk [vmem:[%s1 + $0x48] sm:$0xf] %vm1401, %v1323
  %1436 = vst.msk [vmem:[%s1 + $0x4c] sm:$0xf] %vm1401, %v1324
  %v1437 = vld [vmem:[%s1 + $0x50] sm:$0x1]
  %v1438 = vsel %vm1406, %v1325, %v1437
  %1439 = vst [vmem:[%s1 + $0x50] sm:$0x1] %v1438
  %1440 = vst.msk [vmem:[%s1 + $0x54] sm:$0xf] %vm1401, %v1326
  %1441 = vst.msk [vmem:[%s1 + $0x58] sm:$0xf] %vm1401, %v1327
  %v1442 = vld [vmem:[%s1 + $0x5c] sm:$0x1]
  %v1443 = vsel %vm1406, %v1328, %v1442
  %1444 = vst [vmem:[%s1 + $0x5c] sm:$0x1] %v1443
  %1445 = vst.msk [vmem:[%s1 + $0x60] sm:$0xf] %vm1401, %v1329
  %1446 = vst.msk [vmem:[%s1 + $0x64] sm:$0xf] %vm1401, %v1330
  %v1447 = vld [vmem:[%s1 + $0x68] sm:$0x1]
  %v1448 = vsel %vm1406, %v1331, %v1447
  %1449 = vst [vmem:[%s1 + $0x68] sm:$0x1] %v1448
  %1450 = vst.msk [vmem:[%s1 + $0x6c] sm:$0xf] %vm1401, %v1332
  %1451 = vst.msk [vmem:[%s1 + $0x70] sm:$0xf] %vm1401, %v1333
  %v1452 = vld [vmem:[%s1 + $0x74] sm:$0x1]
  %v1453 = vsel %vm1406, %v1334, %v1452
  %1454 = vst [vmem:[%s1 + $0x74] sm:$0x1] %v1453
  %1455 = vst.msk [vmem:[%s1 + $0x78] sm:$0xf] %vm1401, %v1335
  %1456 = vst.msk [vmem:[%s1 + $0x7c] sm:$0xf] %vm1401, %v1336
  %v1457 = vld [vmem:[%s1 + $0x80] sm:$0x1]
  %v1458 = vsel %vm1406, %v1337, %v1457
  %1459 = vst [vmem:[%s1 + $0x80] sm:$0x1] %v1458
  %1460 = vst.msk [vmem:[%s1 + $0x84] sm:$0xf] %vm1401, %v1338
  %1461 = vst.msk [vmem:[%s1 + $0x88] sm:$0xf] %vm1401, %v1339
  %v1462 = vld [vmem:[%s1 + $0x8c] sm:$0x1]
  %v1463 = vsel %vm1406, %v1340, %v1462
  %1464 = vst [vmem:[%s1 + $0x8c] sm:$0x1] %v1463
  %1465 = vst.msk [vmem:[%s1 + $0x90] sm:$0xf] %vm1401, %v1341
  %1466 = vst.msk [vmem:[%s1 + $0x94] sm:$0xf] %vm1401, %v1342
  %v1467 = vld [vmem:[%s1 + $0x98] sm:$0x1]
  %v1468 = vsel %vm1406, %v1343, %v1467
  %1469 = vst [vmem:[%s1 + $0x98] sm:$0x1] %v1468
  %1470 = vst.msk [vmem:[%s1 + $0x9c] sm:$0xf] %vm1401, %v1344
  %1471 = vst.msk [vmem:[%s1 + $0xa0] sm:$0xf] %vm1401, %v1345
  %v1472 = vld [vmem:[%s1 + $0xa4] sm:$0x1]
  %v1473 = vsel %vm1406, %v1346, %v1472
  %1474 = vst [vmem:[%s1 + $0xa4] sm:$0x1] %v1473
  %1475 = vst.msk [vmem:[%s1 + $0xa8] sm:$0xf] %vm1401, %v1347
  %1476 = vst.msk [vmem:[%s1 + $0xac] sm:$0xf] %vm1401, %v1348
  %v1477 = vld [vmem:[%s1 + $0xb0] sm:$0x1]
  %v1478 = vsel %vm1406, %v1349, %v1477
  %1479 = vst [vmem:[%s1 + $0xb0] sm:$0x1] %v1478
  %1480 = vst.msk [vmem:[%s1 + $0xb4] sm:$0xf] %vm1401, %v1350
  %1481 = vst.msk [vmem:[%s1 + $0xb8] sm:$0xf] %vm1401, %v1351
  %v1482 = vld [vmem:[%s1 + $0xbc] sm:$0x1]
  %v1483 = vsel %vm1406, %v1352, %v1482
  %1484 = vst [vmem:[%s1 + $0xbc] sm:$0x1] %v1483
  // Predicated region
  $region6: #{resnet_encoder_forward.11} parent=0 // pred_check
    _
  $region7: #{resnet_encoder_forward.11} parent=0 // pred_check_branch
    %1486 = sbr.rel (0) target = $region9
  $region8: #{resnet_encoder_forward.11} parent=0 // pred_region
    _
  $region9: #{resnet_encoder_forward.11} parent=0 // pred_fallthru
    _
  // Predicated region
  $region10: #{resnet_encoder_forward.11} parent=0 // pred_check
    _
  $region11: #{resnet_encoder_forward.11} parent=0 // pred_check_branch
    %1488 = sbr.rel (0) target = $region13
  $region12: #{resnet_encoder_forward.11} parent=0 // pred_region
    _
  $region13: #{resnet_encoder_forward.11} parent=0 // pred_fallthru
    _

// kernel: resnet_encoder_forward.12
$region0: #{resnet_encoder_forward.12}
  #allocation0 [shape = 'u32[]', space=smem, size = 0x4, offset = 0x4, fixed_abs, tag = 'smem constant byte address 0x4 - core index']
  #allocation1 [shape = 'u32[144,128]{1,0:T(1,128)}', space=vmem, size = 0x12000, scoped, tag = 'internal scratch']
  #allocation2 [shape = 'bf16[144,256]{1,0:T(16,128)(2,1)}', space=vmem, size = 0x12000, scoped, tag = 'scratch operand']
  %s0 = inlined_call_operand.vmem [shape: bf16[16,278], index: 0, kind: input, shape index: {}]
  %s1 = inlined_call_operand.vmem [shape: bf16[32,144], index: 1, kind: input, shape index: {}]
  %s2 = inlined_call_operand.vmem [shape: f32[32,1], index: 2, kind: input, shape index: {}]
  %s3 = inlined_call_operand.vmem [shape: bf16[32,256], index: 3, kind: output, shape index: {}]
  %s4 = sld [smem:[#allocation0]]
  $region22: #{resnet_encoder_forward.12} parent=0
    _
  %s6 = ssub.s32 1, %s4
  %s7 = scalar_select 0, %s6, %s4
  // Predicated region
  $region2: #{resnet_encoder_forward.12} parent=0 // pred_check
    _
  $region3: #{resnet_encoder_forward.12} parent=0 // pred_check_branch
    %9 = sbr.rel (0) target = $region5
  $region4: #{resnet_encoder_forward.12} parent=0 // pred_region
    _
  $region5: #{resnet_encoder_forward.12} parent=0 // pred_fallthru
    _
  // Predicated region
  $region6: #{resnet_encoder_forward.12} parent=0 // pred_check
    _
  $region7: #{resnet_encoder_forward.12} parent=0 // pred_check_branch
    %11 = sbr.rel (0) target = $region9
  $region8: #{resnet_encoder_forward.12} parent=0 // pred_region
    _
  $region9: #{resnet_encoder_forward.12} parent=0 // pred_fallthru
    _
  // Predicated region
  $region10: #{resnet_encoder_forward.12} parent=0 // pred_check
    _
  $region11: #{resnet_encoder_forward.12} parent=0 // pred_check_branch
    %13 = sbr.rel (0) target = $region13
  $region12: #{resnet_encoder_forward.12} parent=0 // pred_region
    _
  $region13: #{resnet_encoder_forward.12} parent=0 // pred_fallthru
    _
  %v15 = vld [vmem:[%s0] sm:$0xff]
  %v16 = vld [vmem:[%s0 + $0xc] sm:$0xff]
  %v19 = vunpack.c.l.b16 %v15
  %v20 = vunpack.c.h.b16 %v15
  %v21 = vunpack.c.l.b16 %v16
  %v22 = vunpack.c.h.b16 %v16
  %v23 = vpack.c.b16 %v21, %v19
  %v24 = vpack.c.b16 %v22, %v20
  %27 = vst [vmem:[#allocation2] sm:$0xff] %v23
  %28 = vst [vmem:[#allocation2 + $0x8] sm:$0xff] %v24
  %v29 = vld [vmem:[%s0] sm:$0xff]
  %v30 = vld [vmem:[%s0 + $0x8] sm:$0xf]
  %v31 = vld [vmem:[%s0 + $0xc] sm:$0xff]
  %v32 = vld [vmem:[%s0 + $0x14] sm:$0xf]
  %v37 = vunpack.c.l.b16 %v29
  %v38 = vunpack.c.h.b16 %v29
  %v39 = vunpack.c.l.b16 %v30
  %v40 = vunpack.c.l.b16 %v31
  %v41 = vunpack.c.h.b16 %v31
  %v42 = vunpack.c.l.b16 %v32
  %v43 = vpack.c.b16 %v40, %v37
  %v44 = vpack.c.b16 %v41, %v38
  %v45 = vpack.c.b16 %v42, %v39
  %46 = vrot.lane.b32.xlu0 %v43, 127
  %v47 = vpop.permute.xlu0 %46
  %48 = vrot.lane.b32.xlu0 %v44, 127
  %v49 = vpop.permute.xlu0 %48
  %50 = vrot.lane.b32.xlu0 %v45, 127
  %v51 = vpop.permute.xlu0 %50
  %vm52 = vcmask 1039360
  %v53 = vsel %vm52, %v47, %v49
  %v54 = vsel %vm52, %v49, %v51
  %57 = vst [vmem:[#allocation2 + $0x10] sm:$0xff] %v53
  %58 = vst [vmem:[#allocation2 + $0x18] sm:$0xff] %v54
  %v59 = vld [vmem:[%s0] sm:$0xff]
  %v60 = vld [vmem:[%s0 + $0x8] sm:$0xf]
  %v61 = vld [vmem:[%s0 + $0xc] sm:$0xff]
  %v62 = vld [vmem:[%s0 + $0x14] sm:$0xf]
  %v67 = vunpack.c.l.b16 %v59
  %v68 = vunpack.c.h.b16 %v59
  %v69 = vunpack.c.l.b16 %v60
  %v70 = vunpack.c.l.b16 %v61
  %v71 = vunpack.c.h.b16 %v61
  %v72 = vunpack.c.l.b16 %v62
  %v73 = vpack.c.b16 %v70, %v67
  %v74 = vpack.c.b16 %v71, %v68
  %v75 = vpack.c.b16 %v72, %v69
  %76 = vrot.lane.b32.xlu0 %v73, 126
  %v77 = vpop.permute.xlu0 %76
  %78 = vrot.lane.b32.xlu0 %v74, 126
  %v79 = vpop.permute.xlu0 %78
  %80 = vrot.lane.b32.xlu0 %v75, 126
  %v81 = vpop.permute.xlu0 %80
  %vm82 = vcmask 1031168
  %v83 = vsel %vm82, %v77, %v79
  %v84 = vsel %vm82, %v79, %v81
  %87 = vst [vmem:[#allocation2 + $0x20] sm:$0xff] %v83
  %88 = vst [vmem:[#allocation2 + $0x28] sm:$0xff] %v84
  %v89 = vld [vmem:[%s0] sm:$0xff]
  %v90 = vld [vmem:[%s0 + $0x8] sm:$0xf]
  %v91 = vld [vmem:[%s0 + $0xc] sm:$0xff]
  %v92 = vld [vmem:[%s0 + $0x14] sm:$0xf]
  %v97 = vunpack.c.l.b16 %v89
  %v98 = vunpack.c.h.b16 %v89
  %v99 = vunpack.c.l.b16 %v90
  %v100 = vunpack.c.l.b16 %v91
  %v101 = vunpack.c.h.b16 %v91
  %v102 = vunpack.c.l.b16 %v92
  %v103 = vpack.c.b16 %v100, %v97
  %v104 = vpack.c.b16 %v101, %v98
  %v105 = vpack.c.b16 %v102, %v99
  %106 = vrot.lane.b32.xlu0 %v103, 118
  %v107 = vpop.permute.xlu0 %106
  %108 = vrot.lane.b32.xlu0 %v104, 118
  %v109 = vpop.permute.xlu0 %108
  %110 = vrot.lane.b32.xlu0 %v105, 118
  %v111 = vpop.permute.xlu0 %110
  %vm112 = vcmask 965632
  %v113 = vsel %vm112, %v107, %v109
  %v114 = vsel %vm112, %v109, %v111
  %117 = vst [vmem:[#allocation2 + $0x30] sm:$0xff] %v113
  %118 = vst [vmem:[#allocation2 + $0x38] sm:$0xff] %v114
  %v119 = vld [vmem:[%s0] sm:$0xff]
  %v120 = vld [vmem:[%s0 + $0x8] sm:$0xf]
  %v121 = vld [vmem:[%s0 + $0xc] sm:$0xff]
  %v122 = vld [vmem:[%s0 + $0x14] sm:$0xf]
  %v127 = vunpack.c.l.b16 %v119
  %v128 = vunpack.c.h.b16 %v119
  %v129 = vunpack.c.l.b16 %v120
  %v130 = vunpack.c.l.b16 %v121
  %v131 = vunpack.c.h.b16 %v121
  %v132 = vunpack.c.l.b16 %v122
  %v133 = vpack.c.b16 %v130, %v127
  %v134 = vpack.c.b16 %v131, %v128
  %v135 = vpack.c.b16 %v132, %v129
  %136 = vrot.lane.b32.xlu0 %v133, 117
  %v137 = vpop.permute.xlu0 %136
  %138 = vrot.lane.b32.xlu0 %v134, 117
  %v139 = vpop.permute.xlu0 %138
  %140 = vrot.lane.b32.xlu0 %v135, 117
  %v141 = vpop.permute.xlu0 %140
  %vm142 = vcmask 957440
  %v143 = vsel %vm142, %v137, %v139
  %v144 = vsel %vm142, %v139, %v141
  %147 = vst [vmem:[#allocation2 + $0x40] sm:$0xff] %v143
  %148 = vst [vmem:[#allocation2 + $0x48] sm:$0xff] %v144
  %v149 = vld [vmem:[%s0] sm:$0xff]
  %v150 = vld [vmem:[%s0 + $0x8] sm:$0xf]
  %v151 = vld [vmem:[%s0 + $0xc] sm:$0xff]
  %v152 = vld [vmem:[%s0 + $0x14] sm:$0xf]
  %v157 = vunpack.c.l.b16 %v149
  %v158 = vunpack.c.h.b16 %v149
  %v159 = vunpack.c.l.b16 %v150
  %v160 = vunpack.c.l.b16 %v151
  %v161 = vunpack.c.h.b16 %v151
  %v162 = vunpack.c.l.b16 %v152
  %v163 = vpack.c.b16 %v160, %v157
  %v164 = vpack.c.b16 %v161, %v158
  %v165 = vpack.c.b16 %v162, %v159
  %166 = vrot.lane.b32.xlu0 %v163, 116
  %v167 = vpop.permute.xlu0 %166
  %168 = vrot.lane.b32.xlu0 %v164, 116
  %v169 = vpop.permute.xlu0 %168
  %170 = vrot.lane.b32.xlu0 %v165, 116
  %v171 = vpop.permute.xlu0 %170
  %vm172 = vcmask 949248
  %v173 = vsel %vm172, %v167, %v169
  %v174 = vsel %vm172, %v169, %v171
  %177 = vst [vmem:[#allocation2 + $0x50] sm:$0xff] %v173
  %178 = vst [vmem:[#allocation2 + $0x58] sm:$0xff] %v174
  %v179 = vld [vmem:[%s0] sm:$0xff]
  %v180 = vld [vmem:[%s0 + $0x8] sm:$0xf]
  %v181 = vld [vmem:[%s0 + $0xc] sm:$0xff]
  %v182 = vld [vmem:[%s0 + $0x14] sm:$0xf]
  %v187 = vunpack.c.l.b16 %v179
  %v188 = vunpack.c.h.b16 %v179
  %v189 = vunpack.c.l.b16 %v180
  %v190 = vunpack.c.l.b16 %v181
  %v191 = vunpack.c.h.b16 %v181
  %v192 = vunpack.c.l.b16 %v182
  %v193 = vpack.c.b16 %v190, %v187
  %v194 = vpack.c.b16 %v191, %v188
  %v195 = vpack.c.b16 %v192, %v189
  %196 = vrot.lane.b32.xlu0 %v193, 108
  %v197 = vpop.permute.xlu0 %196
  %198 = vrot.lane.b32.xlu0 %v194, 108
  %v199 = vpop.permute.xlu0 %198
  %200 = vrot.lane.b32.xlu0 %v195, 108
  %v201 = vpop.permute.xlu0 %200
  %vm202 = vcmask 883712
  %v203 = vsel %vm202, %v197, %v199
  %v204 = vsel %vm202, %v199, %v201
  %207 = vst [vmem:[#allocation2 + $0x60] sm:$0xff] %v203
  %208 = vst [vmem:[#allocation2 + $0x68] sm:$0xff] %v204
  %v209 = vld [vmem:[%s0] sm:$0xff]
  %v210 = vld [vmem:[%s0 + $0x8] sm:$0xf]
  %v211 = vld [vmem:[%s0 + $0xc] sm:$0xff]
  %v212 = vld [vmem:[%s0 + $0x14] sm:$0xf]
  %v217 = vunpack.c.l.b16 %v209
  %v218 = vunpack.c.h.b16 %v209
  %v219 = vunpack.c.l.b16 %v210
  %v220 = vunpack.c.l.b16 %v211
  %v221 = vunpack.c.h.b16 %v211
  %v222 = vunpack.c.l.b16 %v212
  %v223 = vpack.c.b16 %v220, %v217
  %v224 = vpack.c.b16 %v221, %v218
  %v225 = vpack.c.b16 %v222, %v219
  %226 = vrot.lane.b32.xlu0 %v223, 107
  %v227 = vpop.permute.xlu0 %226
  %228 = vrot.lane.b32.xlu0 %v224, 107
  %v229 = vpop.permute.xlu0 %228
  %230 = vrot.lane.b32.xlu0 %v225, 107
  %v231 = vpop.permute.xlu0 %230
  %vm232 = vcmask 875520
  %v233 = vsel %vm232, %v227, %v229
  %v234 = vsel %vm232, %v229, %v231
  %237 = vst [vmem:[#allocation2 + $0x70] sm:$0xff] %v233
  %238 = vst [vmem:[#allocation2 + $0x78] sm:$0xff] %v234
  %v239 = vld [vmem:[%s0] sm:$0xff]
  %v240 = vld [vmem:[%s0 + $0x8] sm:$0xf]
  %v241 = vld [vmem:[%s0 + $0xc] sm:$0xff]
  %v242 = vld [vmem:[%s0 + $0x14] sm:$0xf]
  %v247 = vunpack.c.l.b16 %v239
  %v248 = vunpack.c.h.b16 %v239
  %v249 = vunpack.c.l.b16 %v240
  %v250 = vunpack.c.l.b16 %v241
  %v251 = vunpack.c.h.b16 %v241
  %v252 = vunpack.c.l.b16 %v242
  %v253 = vpack.c.b16 %v250, %v247
  %v254 = vpack.c.b16 %v251, %v248
  %v255 = vpack.c.b16 %v252, %v249
  %256 = vrot.lane.b32.xlu0 %v253, 106
  %v257 = vpop.permute.xlu0 %256
  %258 = vrot.lane.b32.xlu0 %v254, 106
  %v259 = vpop.permute.xlu0 %258
  %260 = vrot.lane.b32.xlu0 %v255, 106
  %v261 = vpop.permute.xlu0 %260
  %vm262 = vcmask 867328
  %v263 = vsel %vm262, %v257, %v259
  %v264 = vsel %vm262, %v259, %v261
  %267 = vst [vmem:[#allocation2 + $0x80] sm:$0xff] %v263
  %268 = vst [vmem:[#allocation2 + $0x88] sm:$0xff] %v264
  %v269 = vld [vmem:[%s1] sm:$0xff]
  %v270 = vld [vmem:[%s1 + $0x8] sm:$0xff]
  %v271 = vld [vmem:[%s1 + $0x10] sm:$0xff]
  %v272 = vld [vmem:[%s1 + $0x18] sm:$0xff]
  %v273 = vld [vmem:[#allocation2] sm:$0xff]
  %v274 = vld [vmem:[#allocation2 + $0x8] sm:$0xff]
  %v275 = vld [vmem:[#allocation2 + $0x10] sm:$0xff]
  %v276 = vld [vmem:[#allocation2 + $0x18] sm:$0xff]
  %v277 = vld [vmem:[#allocation2 + $0x20] sm:$0xff]
  %v278 = vld [vmem:[#allocation2 + $0x28] sm:$0xff]
  %v279 = vld [vmem:[#allocation2 + $0x30] sm:$0xff]
  %v280 = vld [vmem:[#allocation2 + $0x38] sm:$0xff]
  %v281 = vld [vmem:[#allocation2 + $0x40] sm:$0xff]
  %v282 = vld [vmem:[#allocation2 + $0x48] sm:$0xff]
  %v283 = vld [vmem:[#allocation2 + $0x50] sm:$0xff]
  %v284 = vld [vmem:[#allocation2 + $0x58] sm:$0xff]
  %v285 = vld [vmem:[#allocation2 + $0x60] sm:$0xff]
  %v286 = vld [vmem:[#allocation2 + $0x68] sm:$0xff]
  %v287 = vld [vmem:[#allocation2 + $0x70] sm:$0xff]
  %v288 = vld [vmem:[#allocation2 + $0x78] sm:$0xff]
  %v289 = vld [vmem:[#allocation2 + $0x80] sm:$0xff]
  %v290 = vld [vmem:[#allocation2 + $0x88] sm:$0xff]
  %v291 = vld [vmem:[%s2] sm:$0xff]
  %v292 = vld [vmem:[%s2 + $0x8] sm:$0xff]
  %v293 = vld [vmem:[%s2 + $0x10] sm:$0xff]
  %v294 = vld [vmem:[%s2 + $0x18] sm:$0xff]
  %296 = vset.pattern.permute.xlu0 0
  %297 = vperm.xlu0 %296, %v291
  %v298 = vpop.permute.xlu0 %297
  %301 = vset.pattern.permute.xlu0 0
  %302 = vperm.xlu0 %301, %v292
  %v303 = vpop.permute.xlu0 %302
  %306 = vset.pattern.permute.xlu0 0
  %307 = vperm.xlu0 %306, %v293
  %v308 = vpop.permute.xlu0 %307
  %311 = vset.pattern.permute.xlu0 0
  %312 = vperm.xlu0 %311, %v294
  %v313 = vpop.permute.xlu0 %312
  %v319 = vunpack.c.l.b16 %v269
  %v320 = vunpack.c.h.b16 %v269
  %v321 = vunpack.c.l.b16 %v270
  %v322 = vunpack.c.h.b16 %v270
  %v323 = vunpack.c.l.b16 %v271
  %v324 = vunpack.c.h.b16 %v271
  %v325 = vunpack.c.l.b16 %v272
  %v326 = vunpack.c.h.b16 %v272
  %v327 = vpack.c.b16 %v321, %v319
  %v328 = vpack.c.b16 %v322, %v320
  %v329 = vpack.c.b16 %v325, %v323
  %v330 = vpack.c.b16 %v326, %v324
  %vm333 = vcmask 130048
  %v335 = vsel %vm333, %v328, 0
  %v338 = vsel %vm333, %v330, 0
  %340 = vmatprep.subr.bf16.mxu0 %v274
  %341 = vmatpush1.bf16.msra.mxu0 %v273
  %342 = vmatprep.subr.bf16.mxu0 %v276
  %343 = vmatpush1.bf16.msra.mxu0 %v275
  %344 = vmatprep.subr.bf16.mxu0 %v278
  %345 = vmatpush1.bf16.msra.mxu0 %v277
  %346 = vmatprep.subr.bf16.mxu0 %v280
  %347 = vmatpush1.bf16.msra.mxu0 %v279
  %348 = vmatprep.subr.bf16.mxu0 %v282
  %349 = vmatpush1.bf16.msra.mxu0 %v281
  %350 = vmatprep.subr.bf16.mxu0 %v284
  %351 = vmatpush1.bf16.msra.mxu0 %v283
  %352 = vmatprep.subr.bf16.mxu0 %v286
  %353 = vmatpush1.bf16.msra.mxu0 %v285
  %354 = vmatprep.subr.bf16.mxu0 %v288
  %355 = vmatpush1.bf16.msra.mxu0 %v287
  %356 = vmatprep.subr.bf16.mxu0 %v290
  %357 = vmatpush1.bf16.msra.mxu0 %v289
  %358 = vmatprep.subr.bf16.mxu0 0
  %359 = vmatpush1.bf16.msra.mxu0 0
  %360 = vmatprep.subr.bf16.mxu0 0
  %361 = vmatpush1.bf16.msra.mxu0 0
  %362 = vmatprep.subr.bf16.mxu0 0
  %363 = vmatpush1.bf16.msra.mxu0 0
  %364 = vmatprep.subr.bf16.mxu0 0
  %365 = vmatpush1.bf16.msra.mxu0 0
  %366 = vmatprep.subr.bf16.mxu0 0
  %367 = vmatpush1.bf16.msra.mxu0 0
  %368 = vmatprep.subr.bf16.mxu0 0
  %369 = vmatpush1.bf16.msra.mxu0 0
  %370 = vmatprep.subr.bf16.mxu0 0
  %371 = vmatpush1.bf16.msra.mxu0 0
  %372 = vmatprep.mubr.bf16.mxu0 %v335
  %373 = vmatmul.mubr.bf16.gmra.mrb[0].mxu0 %v327
  %v374 = vpop.f32.mrb[0].mxu0
  %v375 = vadd.f32 %v298, %v374
  %v376 = vpop.f32.mrb[0].mxu0
  %v377 = vadd.f32 %v298, %v376
  %v378 = vpop.f32.mrb[0].mxu0
  %v379 = vadd.f32 %v303, %v378
  %v380 = vpop.f32.mrb[0].mxu0
  %v381 = vadd.f32 %v303, %v380
  %382 = vmatprep.mubr.bf16.mxu0 %v338
  %383 = vmatmul.mubr.bf16.gmra.mrb[0].mxu0 %v329
  %v384 = vpop.f32.mrb[0].mxu0
  %v385 = vadd.f32 %v308, %v384
  %v386 = vpop.f32.mrb[0].mxu0
  %v387 = vadd.f32 %v308, %v386
  %v388 = vpop.f32.mrb[0].mxu0
  %v389 = vadd.f32 %v313, %v388
  %v390 = vpop.f32.mrb[0].mxu0
  %v391 = vadd.f32 %v313, %v390
  %392 = vdwg.mxu0
  %v393 = vmax.f32 %v375, 0.0
  %v394 = vmax.f32 %v377, 0.0
  %v395 = vmax.f32 %v379, 0.0
  %v396 = vmax.f32 %v381, 0.0
  %v397 = vmax.f32 %v385, 0.0
  %v398 = vmax.f32 %v387, 0.0
  %v399 = vmax.f32 %v389, 0.0
  %v400 = vmax.f32 %v391, 0.0
  %v401 = vpack.c.bf16 %v395, %v393
  %v402 = vpack.c.bf16 %v396, %v394
  %v403 = vpack.c.bf16 %v399, %v397
  %v404 = vpack.c.bf16 %v400, %v398
  %v409 = vunpack.c.l.b16 %v401
  %v410 = vunpack.c.l.b16 %v402
  %v411 = vunpack.c.h.b16 %v401
  %v412 = vunpack.c.h.b16 %v402
  %v413 = vunpack.c.l.b16 %v403
  %v414 = vunpack.c.l.b16 %v404
  %v415 = vunpack.c.h.b16 %v403
  %v416 = vunpack.c.h.b16 %v404
  %v417 = vpack.c.b16 %v410, %v409
  %v418 = vpack.c.b16 %v412, %v411
  %v419 = vpack.c.b16 %v414, %v413
  %v420 = vpack.c.b16 %v416, %v415
  %425 = vst [vmem:[%s3] sm:$0xff] %v417
  %426 = vst [vmem:[%s3 + $0x8] sm:$0xff] %v418
  %427 = vst [vmem:[%s3 + $0x10] sm:$0xff] %v419
  %428 = vst [vmem:[%s3 + $0x18] sm:$0xff] %v420
  // Predicated region
  $region14: #{resnet_encoder_forward.12} parent=0 // pred_check
    _
  $region15: #{resnet_encoder_forward.12} parent=0 // pred_check_branch
    %430 = sbr.rel (0) target = $region17
  $region16: #{resnet_encoder_forward.12} parent=0 // pred_region
    _
  $region17: #{resnet_encoder_forward.12} parent=0 // pred_fallthru
    _
  // Predicated region
  $region18: #{resnet_encoder_forward.12} parent=0 // pred_check
    _
  $region19: #{resnet_encoder_forward.12} parent=0 // pred_check_branch
    %432 = sbr.rel (0) target = $region21
  $region20: #{resnet_encoder_forward.12} parent=0 // pred_region
    _
  $region21: #{resnet_encoder_forward.12} parent=0 // pred_fallthru
    _

// kernel: resnet_encoder_forward.13
$region0: #{resnet_encoder_forward.13}
  #allocation0 [shape = 'u32[]', space=smem, size = 0x4, offset = 0x4, fixed_abs, tag = 'smem constant byte address 0x4 - core index']
  #allocation1 [shape = 'u32[144,128]{1,0:T(1,128)}', space=vmem, size = 0x12000, scoped, tag = 'internal scratch']
  %s0 = inlined_call_operand.vmem [shape: bf16[32,10,20], index: 0, kind: input, shape index: {}]
  %s1 = inlined_call_operand.vmem [shape: bf16[32,9,8], index: 1, kind: output, shape index: {}]
  %s2 = sld [smem:[#allocation0]]
  $region14: #{resnet_encoder_forward.13} parent=0
    _
  %s4 = ssub.s32 1, %s2
  %s5 = scalar_select 0, %s4, %s2
  // Predicated region
  $region2: #{resnet_encoder_forward.13} parent=0 // pred_check
    _
  $region3: #{resnet_encoder_forward.13} parent=0 // pred_check_branch
    %7 = sbr.rel (0) target = $region5
  $region4: #{resnet_encoder_forward.13} parent=0 // pred_region
    _
  $region5: #{resnet_encoder_forward.13} parent=0 // pred_fallthru
    _
  %v8 = vld [vmem:[%s0] sm:$0xf]
  %v9 = vld [vmem:[%s0 + $0x4] sm:$0x1]
  %v10 = vld [vmem:[%s0 + $0x8] sm:$0xf]
  %v11 = vld [vmem:[%s0 + $0xc] sm:$0x1]
  %v12 = vld [vmem:[%s0 + $0x10] sm:$0xf]
  %v13 = vld [vmem:[%s0 + $0x14] sm:$0x1]
  %v14 = vld [vmem:[%s0 + $0x18] sm:$0xf]
  %v15 = vld [vmem:[%s0 + $0x1c] sm:$0x1]
  %v16 = vld [vmem:[%s0 + $0x20] sm:$0xf]
  %v17 = vld [vmem:[%s0 + $0x24] sm:$0x1]
  %v18 = vld [vmem:[%s0 + $0x28] sm:$0xf]
  %v19 = vld [vmem:[%s0 + $0x2c] sm:$0x1]
  %v20 = vld [vmem:[%s0 + $0x30] sm:$0xf]
  %v21 = vld [vmem:[%s0 + $0x34] sm:$0x1]
  %v22 = vld [vmem:[%s0 + $0x38] sm:$0xf]
  %v23 = vld [vmem:[%s0 + $0x3c] sm:$0x1]
  %v24 = vld [vmem:[%s0 + $0x40] sm:$0xf]
  %v25 = vld [vmem:[%s0 + $0x44] sm:$0x1]
  %v26 = vld [vmem:[%s0 + $0x48] sm:$0xf]
  %v27 = vld [vmem:[%s0 + $0x4c] sm:$0x1]
  %v28 = vld [vmem:[%s0 + $0x50] sm:$0xf]
  %v29 = vld [vmem:[%s0 + $0x54] sm:$0x1]
  %v30 = vld [vmem:[%s0 + $0x58] sm:$0xf]
  %v31 = vld [vmem:[%s0 + $0x5c] sm:$0x1]
  %v32 = vld [vmem:[%s0 + $0x60] sm:$0xf]
  %v33 = vld [vmem:[%s0 + $0x64] sm:$0x1]
  %v34 = vld [vmem:[%s0 + $0x68] sm:$0xf]
  %v35 = vld [vmem:[%s0 + $0x6c] sm:$0x1]
  %v36 = vld [vmem:[%s0 + $0x70] sm:$0xf]
  %v37 = vld [vmem:[%s0 + $0x74] sm:$0x1]
  %v38 = vld [vmem:[%s0 + $0x78] sm:$0xf]
  %v39 = vld [vmem:[%s0 + $0x7c] sm:$0x1]
  %v40 = vld [vmem:[%s0 + $0x80] sm:$0xf]
  %v41 = vld [vmem:[%s0 + $0x84] sm:$0x1]
  %v42 = vld [vmem:[%s0 + $0x88] sm:$0xf]
  %v43 = vld [vmem:[%s0 + $0x8c] sm:$0x1]
  %v44 = vld [vmem:[%s0 + $0x90] sm:$0xf]
  %v45 = vld [vmem:[%s0 + $0x94] sm:$0x1]
  %v46 = vld [vmem:[%s0 + $0x98] sm:$0xf]
  %v47 = vld [vmem:[%s0 + $0x9c] sm:$0x1]
  %v48 = vld [vmem:[%s0 + $0xa0] sm:$0xf]
  %v49 = vld [vmem:[%s0 + $0xa4] sm:$0x1]
  %v50 = vld [vmem:[%s0 + $0xa8] sm:$0xf]
  %v51 = vld [vmem:[%s0 + $0xac] sm:$0x1]
  %v52 = vld [vmem:[%s0 + $0xb0] sm:$0xf]
  %v53 = vld [vmem:[%s0 + $0xb4] sm:$0x1]
  %v54 = vld [vmem:[%s0 + $0xb8] sm:$0xf]
  %v55 = vld [vmem:[%s0 + $0xbc] sm:$0x1]
  %v56 = vld [vmem:[%s0 + $0xc0] sm:$0xf]
  %v57 = vld [vmem:[%s0 + $0xc4] sm:$0x1]
  %v58 = vld [vmem:[%s0 + $0xc8] sm:$0xf]
  %v59 = vld [vmem:[%s0 + $0xcc] sm:$0x1]
  %v60 = vld [vmem:[%s0 + $0xd0] sm:$0xf]
  %v61 = vld [vmem:[%s0 + $0xd4] sm:$0x1]
  %v62 = vld [vmem:[%s0 + $0xd8] sm:$0xf]
  %v63 = vld [vmem:[%s0 + $0xdc] sm:$0x1]
  %v64 = vld [vmem:[%s0 + $0xe0] sm:$0xf]
  %v65 = vld [vmem:[%s0 + $0xe4] sm:$0x1]
  %v66 = vld [vmem:[%s0 + $0xe8] sm:$0xf]
  %v67 = vld [vmem:[%s0 + $0xec] sm:$0x1]
  %v68 = vld [vmem:[%s0 + $0xf0] sm:$0xf]
  %v69 = vld [vmem:[%s0 + $0xf4] sm:$0x1]
  %v70 = vld [vmem:[%s0 + $0xf8] sm:$0xf]
  %v71 = vld [vmem:[%s0 + $0xfc] sm:$0x1]
  %v72 = vunpack.c.l.bf16 %v8
  %v73 = vunpack.c.l.bf16 %v9
  %v74 = vunpack.c.l.bf16 %v10
  %v75 = vunpack.c.l.bf16 %v11
  %v76 = vunpack.c.l.bf16 %v12
  %v77 = vunpack.c.l.bf16 %v13
  %v78 = vunpack.c.l.bf16 %v14
  %v79 = vunpack.c.l.bf16 %v15
  %v80 = vunpack.c.l.bf16 %v16
  %v81 = vunpack.c.l.bf16 %v17
  %v82 = vunpack.c.l.bf16 %v18
  %v83 = vunpack.c.l.bf16 %v19
  %v84 = vunpack.c.l.bf16 %v20
  %v85 = vunpack.c.l.bf16 %v21
  %v86 = vunpack.c.l.bf16 %v22
  %v87 = vunpack.c.l.bf16 %v23
  %v88 = vunpack.c.l.bf16 %v24
  %v89 = vunpack.c.l.bf16 %v25
  %v90 = vunpack.c.l.bf16 %v26
  %v91 = vunpack.c.l.bf16 %v27
  %v92 = vunpack.c.l.bf16 %v28
  %v93 = vunpack.c.l.bf16 %v29
  %v94 = vunpack.c.l.bf16 %v30
  %v95 = vunpack.c.l.bf16 %v31
  %v96 = vunpack.c.l.bf16 %v32
  %v97 = vunpack.c.l.bf16 %v33
  %v98 = vunpack.c.l.bf16 %v34
  %v99 = vunpack.c.l.bf16 %v35
  %v100 = vunpack.c.l.bf16 %v36
  %v101 = vunpack.c.l.bf16 %v37
  %v102 = vunpack.c.l.bf16 %v38
  %v103 = vunpack.c.l.bf16 %v39
  %v104 = vunpack.c.l.bf16 %v40
  %v105 = vunpack.c.l.bf16 %v41
  %v106 = vunpack.c.l.bf16 %v42
  %v107 = vunpack.c.l.bf16 %v43
  %v108 = vunpack.c.l.bf16 %v44
  %v109 = vunpack.c.l.bf16 %v45
  %v110 = vunpack.c.l.bf16 %v46
  %v111 = vunpack.c.l.bf16 %v47
  %v112 = vunpack.c.l.bf16 %v48
  %v113 = vunpack.c.l.bf16 %v49
  %v114 = vunpack.c.l.bf16 %v50
  %v115 = vunpack.c.l.bf16 %v51
  %v116 = vunpack.c.l.bf16 %v52
  %v117 = vunpack.c.l.bf16 %v53
  %v118 = vunpack.c.l.bf16 %v54
  %v119 = vunpack.c.l.bf16 %v55
  %v120 = vunpack.c.l.bf16 %v56
  %v121 = vunpack.c.l.bf16 %v57
  %v122 = vunpack.c.l.bf16 %v58
  %v123 = vunpack.c.l.bf16 %v59
  %v124 = vunpack.c.l.bf16 %v60
  %v125 = vunpack.c.l.bf16 %v61
  %v126 = vunpack.c.l.bf16 %v62
  %v127 = vunpack.c.l.bf16 %v63
  %v128 = vunpack.c.l.bf16 %v64
  %v129 = vunpack.c.l.bf16 %v65
  %v130 = vunpack.c.l.bf16 %v66
  %v131 = vunpack.c.l.bf16 %v67
  %v132 = vunpack.c.l.bf16 %v68
  %v133 = vunpack.c.l.bf16 %v69
  %v134 = vunpack.c.l.bf16 %v70
  %v135 = vunpack.c.l.bf16 %v71
  %v136 = vmul.f32 %v72, 2.0
  %v137 = vmul.f32 %v73, 2.0
  %v138 = vmul.f32 %v74, 2.0
  %v139 = vmul.f32 %v75, 2.0
  %v140 = vmul.f32 %v76, 2.0
  %v141 = vmul.f32 %v77, 2.0
  %v142 = vmul.f32 %v78, 2.0
  %v143 = vmul.f32 %v79, 2.0
  %v144 = vmul.f32 %v80, 2.0
  %v145 = vmul.f32 %v81, 2.0
  %v146 = vmul.f32 %v82, 2.0
  %v147 = vmul.f32 %v83, 2.0
  %v148 = vmul.f32 %v84, 2.0
  %v149 = vmul.f32 %v85, 2.0
  %v150 = vmul.f32 %v86, 2.0
  %v151 = vmul.f32 %v87, 2.0
  %v152 = vmul.f32 %v88, 2.0
  %v153 = vmul.f32 %v89, 2.0
  %v154 = vmul.f32 %v90, 2.0
  %v155 = vmul.f32 %v91, 2.0
  %v156 = vmul.f32 %v92, 2.0
  %v157 = vmul.f32 %v93, 2.0
  %v158 = vmul.f32 %v94, 2.0
  %v159 = vmul.f32 %v95, 2.0
  %v160 = vmul.f32 %v96, 2.0
  %v161 = vmul.f32 %v97, 2.0
  %v162 = vmul.f32 %v98, 2.0
  %v163 = vmul.f32 %v99, 2.0
  %v164 = vmul.f32 %v100, 2.0
  %v165 = vmul.f32 %v101, 2.0
  %v166 = vmul.f32 %v102, 2.0
  %v167 = vmul.f32 %v103, 2.0
  %v168 = vmul.f32 %v104, 2.0
  %v169 = vmul.f32 %v105, 2.0
  %v170 = vmul.f32 %v106, 2.0
  %v171 = vmul.f32 %v107, 2.0
  %v172 = vmul.f32 %v108, 2.0
  %v173 = vmul.f32 %v109, 2.0
  %v174 = vmul.f32 %v110, 2.0
  %v175 = vmul.f32 %v111, 2.0
  %v176 = vmul.f32 %v112, 2.0
  %v177 = vmul.f32 %v113, 2.0
  %v178 = vmul.f32 %v114, 2.0
  %v179 = vmul.f32 %v115, 2.0
  %v180 = vmul.f32 %v116, 2.0
  %v181 = vmul.f32 %v117, 2.0
  %v182 = vmul.f32 %v118, 2.0
  %v183 = vmul.f32 %v119, 2.0
  %v184 = vmul.f32 %v120, 2.0
  %v185 = vmul.f32 %v121, 2.0
  %v186 = vmul.f32 %v122, 2.0
  %v187 = vmul.f32 %v123, 2.0
  %v188 = vmul.f32 %v124, 2.0
  %v189 = vmul.f32 %v125, 2.0
  %v190 = vmul.f32 %v126, 2.0
  %v191 = vmul.f32 %v127, 2.0
  %v192 = vmul.f32 %v128, 2.0
  %v193 = vmul.f32 %v129, 2.0
  %v194 = vmul.f32 %v130, 2.0
  %v195 = vmul.f32 %v131, 2.0
  %v196 = vmul.f32 %v132, 2.0
  %v197 = vmul.f32 %v133, 2.0
  %v198 = vmul.f32 %v134, 2.0
  %v199 = vmul.f32 %v135, 2.0
  %264 = vrot.lane.b32.xlu0 %v136, 118
  %v265 = vpop.permute.xlu0 %264
  %266 = vrot.lane.b32.xlu0 %v137, 118
  %v267 = vpop.permute.xlu0 %266
  %268 = vrot.lane.b32.xlu0 %v138, 118
  %v269 = vpop.permute.xlu0 %268
  %270 = vrot.lane.b32.xlu0 %v139, 118
  %v271 = vpop.permute.xlu0 %270
  %272 = vrot.lane.b32.xlu0 %v140, 118
  %v273 = vpop.permute.xlu0 %272
  %274 = vrot.lane.b32.xlu0 %v141, 118
  %v275 = vpop.permute.xlu0 %274
  %276 = vrot.lane.b32.xlu0 %v142, 118
  %v277 = vpop.permute.xlu0 %276
  %278 = vrot.lane.b32.xlu0 %v143, 118
  %v279 = vpop.permute.xlu0 %278
  %280 = vrot.lane.b32.xlu0 %v144, 118
  %v281 = vpop.permute.xlu0 %280
  %282 = vrot.lane.b32.xlu0 %v145, 118
  %v283 = vpop.permute.xlu0 %282
  %284 = vrot.lane.b32.xlu0 %v146, 118
  %v285 = vpop.permute.xlu0 %284
  %286 = vrot.lane.b32.xlu0 %v147, 118
  %v287 = vpop.permute.xlu0 %286
  %288 = vrot.lane.b32.xlu0 %v148, 118
  %v289 = vpop.permute.xlu0 %288
  %290 = vrot.lane.b32.xlu0 %v149, 118
  %v291 = vpop.permute.xlu0 %290
  %292 = vrot.lane.b32.xlu0 %v150, 118
  %v293 = vpop.permute.xlu0 %292
  %294 = vrot.lane.b32.xlu0 %v151, 118
  %v295 = vpop.permute.xlu0 %294
  %296 = vrot.lane.b32.xlu0 %v152, 118
  %v297 = vpop.permute.xlu0 %296
  %298 = vrot.lane.b32.xlu0 %v153, 118
  %v299 = vpop.permute.xlu0 %298
  %300 = vrot.lane.b32.xlu0 %v154, 118
  %v301 = vpop.permute.xlu0 %300
  %302 = vrot.lane.b32.xlu0 %v155, 118
  %v303 = vpop.permute.xlu0 %302
  %304 = vrot.lane.b32.xlu0 %v156, 118
  %v305 = vpop.permute.xlu0 %304
  %306 = vrot.lane.b32.xlu0 %v157, 118
  %v307 = vpop.permute.xlu0 %306
  %308 = vrot.lane.b32.xlu0 %v158, 118
  %v309 = vpop.permute.xlu0 %308
  %310 = vrot.lane.b32.xlu0 %v159, 118
  %v311 = vpop.permute.xlu0 %310
  %312 = vrot.lane.b32.xlu0 %v160, 118
  %v313 = vpop.permute.xlu0 %312
  %314 = vrot.lane.b32.xlu0 %v161, 118
  %v315 = vpop.permute.xlu0 %314
  %316 = vrot.lane.b32.xlu0 %v162, 118
  %v317 = vpop.permute.xlu0 %316
  %318 = vrot.lane.b32.xlu0 %v163, 118
  %v319 = vpop.permute.xlu0 %318
  %320 = vrot.lane.b32.xlu0 %v164, 118
  %v321 = vpop.permute.xlu0 %320
  %322 = vrot.lane.b32.xlu0 %v165, 118
  %v323 = vpop.permute.xlu0 %322
  %324 = vrot.lane.b32.xlu0 %v166, 118
  %v325 = vpop.permute.xlu0 %324
  %326 = vrot.lane.b32.xlu0 %v167, 118
  %v327 = vpop.permute.xlu0 %326
  %328 = vrot.lane.b32.xlu0 %v168, 118
  %v329 = vpop.permute.xlu0 %328
  %330 = vrot.lane.b32.xlu0 %v169, 118
  %v331 = vpop.permute.xlu0 %330
  %332 = vrot.lane.b32.xlu0 %v170, 118
  %v333 = vpop.permute.xlu0 %332
  %334 = vrot.lane.b32.xlu0 %v171, 118
  %v335 = vpop.permute.xlu0 %334
  %336 = vrot.lane.b32.xlu0 %v172, 118
  %v337 = vpop.permute.xlu0 %336
  %338 = vrot.lane.b32.xlu0 %v173, 118
  %v339 = vpop.permute.xlu0 %338
  %340 = vrot.lane.b32.xlu0 %v174, 118
  %v341 = vpop.permute.xlu0 %340
  %342 = vrot.lane.b32.xlu0 %v175, 118
  %v343 = vpop.permute.xlu0 %342
  %344 = vrot.lane.b32.xlu0 %v176, 118
  %v345 = vpop.permute.xlu0 %344
  %346 = vrot.lane.b32.xlu0 %v177, 118
  %v347 = vpop.permute.xlu0 %346
  %348 = vrot.lane.b32.xlu0 %v178, 118
  %v349 = vpop.permute.xlu0 %348
  %350 = vrot.lane.b32.xlu0 %v179, 118
  %v351 = vpop.permute.xlu0 %350
  %352 = vrot.lane.b32.xlu0 %v180, 118
  %v353 = vpop.permute.xlu0 %352
  %354 = vrot.lane.b32.xlu0 %v181, 118
  %v355 = vpop.permute.xlu0 %354
  %356 = vrot.lane.b32.xlu0 %v182, 118
  %v357 = vpop.permute.xlu0 %356
  %358 = vrot.lane.b32.xlu0 %v183, 118
  %v359 = vpop.permute.xlu0 %358
  %360 = vrot.lane.b32.xlu0 %v184, 118
  %v361 = vpop.permute.xlu0 %360
  %362 = vrot.lane.b32.xlu0 %v185, 118
  %v363 = vpop.permute.xlu0 %362
  %364 = vrot.lane.b32.xlu0 %v186, 118
  %v365 = vpop.permute.xlu0 %364
  %366 = vrot.lane.b32.xlu0 %v187, 118
  %v367 = vpop.permute.xlu0 %366
  %368 = vrot.lane.b32.xlu0 %v188, 118
  %v369 = vpop.permute.xlu0 %368
  %370 = vrot.lane.b32.xlu0 %v189, 118
  %v371 = vpop.permute.xlu0 %370
  %372 = vrot.lane.b32.xlu0 %v190, 118
  %v373 = vpop.permute.xlu0 %372
  %374 = vrot.lane.b32.xlu0 %v191, 118
  %v375 = vpop.permute.xlu0 %374
  %376 = vrot.lane.b32.xlu0 %v192, 118
  %v377 = vpop.permute.xlu0 %376
  %378 = vrot.lane.b32.xlu0 %v193, 118
  %v379 = vpop.permute.xlu0 %378
  %380 = vrot.lane.b32.xlu0 %v194, 118
  %v381 = vpop.permute.xlu0 %380
  %382 = vrot.lane.b32.xlu0 %v195, 118
  %v383 = vpop.permute.xlu0 %382
  %384 = vrot.lane.b32.xlu0 %v196, 118
  %v385 = vpop.permute.xlu0 %384
  %386 = vrot.lane.b32.xlu0 %v197, 118
  %v387 = vpop.permute.xlu0 %386
  %388 = vrot.lane.b32.xlu0 %v198, 118
  %v389 = vpop.permute.xlu0 %388
  %390 = vrot.lane.b32.xlu0 %v199, 118
  %v391 = vpop.permute.xlu0 %390
  %v456 = vadd.f32 %v72, %v265
  %v457 = vadd.f32 %v73, %v267
  %v458 = vadd.f32 %v74, %v269
  %v459 = vadd.f32 %v75, %v271
  %v460 = vadd.f32 %v76, %v273
  %v461 = vadd.f32 %v77, %v275
  %v462 = vadd.f32 %v78, %v277
  %v463 = vadd.f32 %v79, %v279
  %v464 = vadd.f32 %v80, %v281
  %v465 = vadd.f32 %v81, %v283
  %v466 = vadd.f32 %v82, %v285
  %v467 = vadd.f32 %v83, %v287
  %v468 = vadd.f32 %v84, %v289
  %v469 = vadd.f32 %v85, %v291
  %v470 = vadd.f32 %v86, %v293
  %v471 = vadd.f32 %v87, %v295
  %v472 = vadd.f32 %v88, %v297
  %v473 = vadd.f32 %v89, %v299
  %v474 = vadd.f32 %v90, %v301
  %v475 = vadd.f32 %v91, %v303
  %v476 = vadd.f32 %v92, %v305
  %v477 = vadd.f32 %v93, %v307
  %v478 = vadd.f32 %v94, %v309
  %v479 = vadd.f32 %v95, %v311
  %v480 = vadd.f32 %v96, %v313
  %v481 = vadd.f32 %v97, %v315
  %v482 = vadd.f32 %v98, %v317
  %v483 = vadd.f32 %v99, %v319
  %v484 = vadd.f32 %v100, %v321
  %v485 = vadd.f32 %v101, %v323
  %v486 = vadd.f32 %v102, %v325
  %v487 = vadd.f32 %v103, %v327
  %v488 = vadd.f32 %v104, %v329
  %v489 = vadd.f32 %v105, %v331
  %v490 = vadd.f32 %v106, %v333
  %v491 = vadd.f32 %v107, %v335
  %v492 = vadd.f32 %v108, %v337
  %v493 = vadd.f32 %v109, %v339
  %v494 = vadd.f32 %v110, %v341
  %v495 = vadd.f32 %v111, %v343
  %v496 = vadd.f32 %v112, %v345
  %v497 = vadd.f32 %v113, %v347
  %v498 = vadd.f32 %v114, %v349
  %v499 = vadd.f32 %v115, %v351
  %v500 = vadd.f32 %v116, %v353
  %v501 = vadd.f32 %v117, %v355
  %v502 = vadd.f32 %v118, %v357
  %v503 = vadd.f32 %v119, %v359
  %v504 = vadd.f32 %v120, %v361
  %v505 = vadd.f32 %v121, %v363
  %v506 = vadd.f32 %v122, %v365
  %v507 = vadd.f32 %v123, %v367
  %v508 = vadd.f32 %v124, %v369
  %v509 = vadd.f32 %v125, %v371
  %v510 = vadd.f32 %v126, %v373
  %v511 = vadd.f32 %v127, %v375
  %v512 = vadd.f32 %v128, %v377
  %v513 = vadd.f32 %v129, %v379
  %v514 = vadd.f32 %v130, %v381
  %v515 = vadd.f32 %v131, %v383
  %v516 = vadd.f32 %v132, %v385
  %v517 = vadd.f32 %v133, %v387
  %v518 = vadd.f32 %v134, %v389
  %v519 = vadd.f32 %v135, %v391
  %vm584 = vcmask 1046528
  %v585 = vrot.slane %v72, 1
  %v586 = vrot.slane %v73, 1
  %v587 = vsel %vm584, %v585, %v586
  %v588 = vrot.slane %v74, 1
  %v589 = vrot.slane %v75, 1
  %v590 = vsel %vm584, %v588, %v589
  %v591 = vrot.slane %v76, 1
  %v592 = vrot.slane %v77, 1
  %v593 = vsel %vm584, %v591, %v592
  %v594 = vrot.slane %v78, 1
  %v595 = vrot.slane %v79, 1
  %v596 = vsel %vm584, %v594, %v595
  %v597 = vrot.slane %v80, 1
  %v598 = vrot.slane %v81, 1
  %v599 = vsel %vm584, %v597, %v598
  %v600 = vrot.slane %v82, 1
  %v601 = vrot.slane %v83, 1
  %v602 = vsel %vm584, %v600, %v601
  %v603 = vrot.slane %v84, 1
  %v604 = vrot.slane %v85, 1
  %v605 = vsel %vm584, %v603, %v604
  %v606 = vrot.slane %v86, 1
  %v607 = vrot.slane %v87, 1
  %v608 = vsel %vm584, %v606, %v607
  %v609 = vrot.slane %v88, 1
  %v610 = vrot.slane %v89, 1
  %v611 = vsel %vm584, %v609, %v610
  %v612 = vrot.slane %v90, 1
  %v613 = vrot.slane %v91, 1
  %v614 = vsel %vm584, %v612, %v613
  %v615 = vrot.slane %v92, 1
  %v616 = vrot.slane %v93, 1
  %v617 = vsel %vm584, %v615, %v616
  %v618 = vrot.slane %v94, 1
  %v619 = vrot.slane %v95, 1
  %v620 = vsel %vm584, %v618, %v619
  %v621 = vrot.slane %v96, 1
  %v622 = vrot.slane %v97, 1
  %v623 = vsel %vm584, %v621, %v622
  %v624 = vrot.slane %v98, 1
  %v625 = vrot.slane %v99, 1
  %v626 = vsel %vm584, %v624, %v625
  %v627 = vrot.slane %v100, 1
  %v628 = vrot.slane %v101, 1
  %v629 = vsel %vm584, %v627, %v628
  %v630 = vrot.slane %v102, 1
  %v631 = vrot.slane %v103, 1
  %v632 = vsel %vm584, %v630, %v631
  %v633 = vrot.slane %v104, 1
  %v634 = vrot.slane %v105, 1
  %v635 = vsel %vm584, %v633, %v634
  %v636 = vrot.slane %v106, 1
  %v637 = vrot.slane %v107, 1
  %v638 = vsel %vm584, %v636, %v637
  %v639 = vrot.slane %v108, 1
  %v640 = vrot.slane %v109, 1
  %v641 = vsel %vm584, %v639, %v640
  %v642 = vrot.slane %v110, 1
  %v643 = vrot.slane %v111, 1
  %v644 = vsel %vm584, %v642, %v643
  %v645 = vrot.slane %v112, 1
  %v646 = vrot.slane %v113, 1
  %v647 = vsel %vm584, %v645, %v646
  %v648 = vrot.slane %v114, 1
  %v649 = vrot.slane %v115, 1
  %v650 = vsel %vm584, %v648, %v649
  %v651 = vrot.slane %v116, 1
  %v652 = vrot.slane %v117, 1
  %v653 = vsel %vm584, %v651, %v652
  %v654 = vrot.slane %v118, 1
  %v655 = vrot.slane %v119, 1
  %v656 = vsel %vm584, %v654, %v655
  %v657 = vrot.slane %v120, 1
  %v658 = vrot.slane %v121, 1
  %v659 = vsel %vm584, %v657, %v658
  %v660 = vrot.slane %v122, 1
  %v661 = vrot.slane %v123, 1
  %v662 = vsel %vm584, %v660, %v661
  %v663 = vrot.slane %v124, 1
  %v664 = vrot.slane %v125, 1
  %v665 = vsel %vm584, %v663, %v664
  %v666 = vrot.slane %v126, 1
  %v667 = vrot.slane %v127, 1
  %v668 = vsel %vm584, %v666, %v667
  %v669 = vrot.slane %v128, 1
  %v670 = vrot.slane %v129, 1
  %v671 = vsel %vm584, %v669, %v670
  %v672 = vrot.slane %v130, 1
  %v673 = vrot.slane %v131, 1
  %v674 = vsel %vm584, %v672, %v673
  %v675 = vrot.slane %v132, 1
  %v676 = vrot.slane %v133, 1
  %v677 = vsel %vm584, %v675, %v676
  %v678 = vrot.slane %v134, 1
  %v679 = vrot.slane %v135, 1
  %v680 = vsel %vm584, %v678, %v679
  %v745 = vadd.f32 %v456, %v587
  %v746 = vadd.f32 %v457, %v586
  %v747 = vadd.f32 %v458, %v590
  %v748 = vadd.f32 %v459, %v589
  %v749 = vadd.f32 %v460, %v593
  %v750 = vadd.f32 %v461, %v592
  %v751 = vadd.f32 %v462, %v596
  %v752 = vadd.f32 %v463, %v595
  %v753 = vadd.f32 %v464, %v599
  %v754 = vadd.f32 %v465, %v598
  %v755 = vadd.f32 %v466, %v602
  %v756 = vadd.f32 %v467, %v601
  %v757 = vadd.f32 %v468, %v605
  %v758 = vadd.f32 %v469, %v604
  %v759 = vadd.f32 %v470, %v608
  %v760 = vadd.f32 %v471, %v607
  %v761 = vadd.f32 %v472, %v611
  %v762 = vadd.f32 %v473, %v610
  %v763 = vadd.f32 %v474, %v614
  %v764 = vadd.f32 %v475, %v613
  %v765 = vadd.f32 %v476, %v617
  %v766 = vadd.f32 %v477, %v616
  %v767 = vadd.f32 %v478, %v620
  %v768 = vadd.f32 %v479, %v619
  %v769 = vadd.f32 %v480, %v623
  %v770 = vadd.f32 %v481, %v622
  %v771 = vadd.f32 %v482, %v626
  %v772 = vadd.f32 %v483, %v625
  %v773 = vadd.f32 %v484, %v629
  %v774 = vadd.f32 %v485, %v628
  %v775 = vadd.f32 %v486, %v632
  %v776 = vadd.f32 %v487, %v631
  %v777 = vadd.f32 %v488, %v635
  %v778 = vadd.f32 %v489, %v634
  %v779 = vadd.f32 %v490, %v638
  %v780 = vadd.f32 %v491, %v637
  %v781 = vadd.f32 %v492, %v641
  %v782 = vadd.f32 %v493, %v640
  %v783 = vadd.f32 %v494, %v644
  %v784 = vadd.f32 %v495, %v643
  %v785 = vadd.f32 %v496, %v647
  %v786 = vadd.f32 %v497, %v646
  %v787 = vadd.f32 %v498, %v650
  %v788 = vadd.f32 %v499, %v649
  %v789 = vadd.f32 %v500, %v653
  %v790 = vadd.f32 %v501, %v652
  %v791 = vadd.f32 %v502, %v656
  %v792 = vadd.f32 %v503, %v655
  %v793 = vadd.f32 %v504, %v659
  %v794 = vadd.f32 %v505, %v658
  %v795 = vadd.f32 %v506, %v662
  %v796 = vadd.f32 %v507, %v661
  %v797 = vadd.f32 %v508, %v665
  %v798 = vadd.f32 %v509, %v664
  %v799 = vadd.f32 %v510, %v668
  %v800 = vadd.f32 %v511, %v667
  %v801 = vadd.f32 %v512, %v671
  %v802 = vadd.f32 %v513, %v670
  %v803 = vadd.f32 %v514, %v674
  %v804 = vadd.f32 %v515, %v673
  %v805 = vadd.f32 %v516, %v677
  %v806 = vadd.f32 %v517, %v676
  %v807 = vadd.f32 %v518, %v680
  %v808 = vadd.f32 %v519, %v679
  %v809 = vmul.f32 %v745, 2.0
  %v810 = vmul.f32 %v746, 2.0
  %v811 = vmul.f32 %v747, 2.0
  %v812 = vmul.f32 %v748, 2.0
  %v813 = vmul.f32 %v749, 2.0
  %v814 = vmul.f32 %v750, 2.0
  %v815 = vmul.f32 %v751, 2.0
  %v816 = vmul.f32 %v752, 2.0
  %v817 = vmul.f32 %v753, 2.0
  %v818 = vmul.f32 %v754, 2.0
  %v819 = vmul.f32 %v755, 2.0
  %v820 = vmul.f32 %v756, 2.0
  %v821 = vmul.f32 %v757, 2.0
  %v822 = vmul.f32 %v758, 2.0
  %v823 = vmul.f32 %v759, 2.0
  %v824 = vmul.f32 %v760, 2.0
  %v825 = vmul.f32 %v761, 2.0
  %v826 = vmul.f32 %v762, 2.0
  %v827 = vmul.f32 %v763, 2.0
  %v828 = vmul.f32 %v764, 2.0
  %v829 = vmul.f32 %v765, 2.0
  %v830 = vmul.f32 %v766, 2.0
  %v831 = vmul.f32 %v767, 2.0
  %v832 = vmul.f32 %v768, 2.0
  %v833 = vmul.f32 %v769, 2.0
  %v834 = vmul.f32 %v770, 2.0
  %v835 = vmul.f32 %v771, 2.0
  %v836 = vmul.f32 %v772, 2.0
  %v837 = vmul.f32 %v773, 2.0
  %v838 = vmul.f32 %v774, 2.0
  %v839 = vmul.f32 %v775, 2.0
  %v840 = vmul.f32 %v776, 2.0
  %v841 = vmul.f32 %v777, 2.0
  %v842 = vmul.f32 %v778, 2.0
  %v843 = vmul.f32 %v779, 2.0
  %v844 = vmul.f32 %v780, 2.0
  %v845 = vmul.f32 %v781, 2.0
  %v846 = vmul.f32 %v782, 2.0
  %v847 = vmul.f32 %v783, 2.0
  %v848 = vmul.f32 %v784, 2.0
  %v849 = vmul.f32 %v785, 2.0
  %v850 = vmul.f32 %v786, 2.0
  %v851 = vmul.f32 %v787, 2.0
  %v852 = vmul.f32 %v788, 2.0
  %v853 = vmul.f32 %v789, 2.0
  %v854 = vmul.f32 %v790, 2.0
  %v855 = vmul.f32 %v791, 2.0
  %v856 = vmul.f32 %v792, 2.0
  %v857 = vmul.f32 %v793, 2.0
  %v858 = vmul.f32 %v794, 2.0
  %v859 = vmul.f32 %v795, 2.0
  %v860 = vmul.f32 %v796, 2.0
  %v861 = vmul.f32 %v797, 2.0
  %v862 = vmul.f32 %v798, 2.0
  %v863 = vmul.f32 %v799, 2.0
  %v864 = vmul.f32 %v800, 2.0
  %v865 = vmul.f32 %v801, 2.0
  %v866 = vmul.f32 %v802, 2.0
  %v867 = vmul.f32 %v803, 2.0
  %v868 = vmul.f32 %v804, 2.0
  %v869 = vmul.f32 %v805, 2.0
  %v870 = vmul.f32 %v806, 2.0
  %v871 = vmul.f32 %v807, 2.0
  %v872 = vmul.f32 %v808, 2.0
  %937 = vrot.lane.b32.xlu0 %v809, 127
  %v938 = vpop.permute.xlu0 %937
  %939 = vrot.lane.b32.xlu0 %v810, 127
  %v940 = vpop.permute.xlu0 %939
  %941 = vrot.lane.b32.xlu0 %v811, 127
  %v942 = vpop.permute.xlu0 %941
  %943 = vrot.lane.b32.xlu0 %v812, 127
  %v944 = vpop.permute.xlu0 %943
  %945 = vrot.lane.b32.xlu0 %v813, 127
  %v946 = vpop.permute.xlu0 %945
  %947 = vrot.lane.b32.xlu0 %v814, 127
  %v948 = vpop.permute.xlu0 %947
  %949 = vrot.lane.b32.xlu0 %v815, 127
  %v950 = vpop.permute.xlu0 %949
  %951 = vrot.lane.b32.xlu0 %v816, 127
  %v952 = vpop.permute.xlu0 %951
  %953 = vrot.lane.b32.xlu0 %v817, 127
  %v954 = vpop.permute.xlu0 %953
  %955 = vrot.lane.b32.xlu0 %v818, 127
  %v956 = vpop.permute.xlu0 %955
  %957 = vrot.lane.b32.xlu0 %v819, 127
  %v958 = vpop.permute.xlu0 %957
  %959 = vrot.lane.b32.xlu0 %v820, 127
  %v960 = vpop.permute.xlu0 %959
  %961 = vrot.lane.b32.xlu0 %v821, 127
  %v962 = vpop.permute.xlu0 %961
  %963 = vrot.lane.b32.xlu0 %v822, 127
  %v964 = vpop.permute.xlu0 %963
  %965 = vrot.lane.b32.xlu0 %v823, 127
  %v966 = vpop.permute.xlu0 %965
  %967 = vrot.lane.b32.xlu0 %v824, 127
  %v968 = vpop.permute.xlu0 %967
  %969 = vrot.lane.b32.xlu0 %v825, 127
  %v970 = vpop.permute.xlu0 %969
  %971 = vrot.lane.b32.xlu0 %v826, 127
  %v972 = vpop.permute.xlu0 %971
  %973 = vrot.lane.b32.xlu0 %v827, 127
  %v974 = vpop.permute.xlu0 %973
  %975 = vrot.lane.b32.xlu0 %v828, 127
  %v976 = vpop.permute.xlu0 %975
  %977 = vrot.lane.b32.xlu0 %v829, 127
  %v978 = vpop.permute.xlu0 %977
  %979 = vrot.lane.b32.xlu0 %v830, 127
  %v980 = vpop.permute.xlu0 %979
  %981 = vrot.lane.b32.xlu0 %v831, 127
  %v982 = vpop.permute.xlu0 %981
  %983 = vrot.lane.b32.xlu0 %v832, 127
  %v984 = vpop.permute.xlu0 %983
  %985 = vrot.lane.b32.xlu0 %v833, 127
  %v986 = vpop.permute.xlu0 %985
  %987 = vrot.lane.b32.xlu0 %v834, 127
  %v988 = vpop.permute.xlu0 %987
  %989 = vrot.lane.b32.xlu0 %v835, 127
  %v990 = vpop.permute.xlu0 %989
  %991 = vrot.lane.b32.xlu0 %v836, 127
  %v992 = vpop.permute.xlu0 %991
  %993 = vrot.lane.b32.xlu0 %v837, 127
  %v994 = vpop.permute.xlu0 %993
  %995 = vrot.lane.b32.xlu0 %v838, 127
  %v996 = vpop.permute.xlu0 %995
  %997 = vrot.lane.b32.xlu0 %v839, 127
  %v998 = vpop.permute.xlu0 %997
  %999 = vrot.lane.b32.xlu0 %v840, 127
  %v1000 = vpop.permute.xlu0 %999
  %1001 = vrot.lane.b32.xlu0 %v841, 127
  %v1002 = vpop.permute.xlu0 %1001
  %1003 = vrot.lane.b32.xlu0 %v842, 127
  %v1004 = vpop.permute.xlu0 %1003
  %1005 = vrot.lane.b32.xlu0 %v843, 127
  %v1006 = vpop.permute.xlu0 %1005
  %1007 = vrot.lane.b32.xlu0 %v844, 127
  %v1008 = vpop.permute.xlu0 %1007
  %1009 = vrot.lane.b32.xlu0 %v845, 127
  %v1010 = vpop.permute.xlu0 %1009
  %1011 = vrot.lane.b32.xlu0 %v846, 127
  %v1012 = vpop.permute.xlu0 %1011
  %1013 = vrot.lane.b32.xlu0 %v847, 127
  %v1014 = vpop.permute.xlu0 %1013
  %1015 = vrot.lane.b32.xlu0 %v848, 127
  %v1016 = vpop.permute.xlu0 %1015
  %1017 = vrot.lane.b32.xlu0 %v849, 127
  %v1018 = vpop.permute.xlu0 %1017
  %1019 = vrot.lane.b32.xlu0 %v850, 127
  %v1020 = vpop.permute.xlu0 %1019
  %1021 = vrot.lane.b32.xlu0 %v851, 127
  %v1022 = vpop.permute.xlu0 %1021
  %1023 = vrot.lane.b32.xlu0 %v852, 127
  %v1024 = vpop.permute.xlu0 %1023
  %1025 = vrot.lane.b32.xlu0 %v853, 127
  %v1026 = vpop.permute.xlu0 %1025
  %1027 = vrot.lane.b32.xlu0 %v854, 127
  %v1028 = vpop.permute.xlu0 %1027
  %1029 = vrot.lane.b32.xlu0 %v855, 127
  %v1030 = vpop.permute.xlu0 %1029
  %1031 = vrot.lane.b32.xlu0 %v856, 127
  %v1032 = vpop.permute.xlu0 %1031
  %1033 = vrot.lane.b32.xlu0 %v857, 127
  %v1034 = vpop.permute.xlu0 %1033
  %1035 = vrot.lane.b32.xlu0 %v858, 127
  %v1036 = vpop.permute.xlu0 %1035
  %1037 = vrot.lane.b32.xlu0 %v859, 127
  %v1038 = vpop.permute.xlu0 %1037
  %1039 = vrot.lane.b32.xlu0 %v860, 127
  %v1040 = vpop.permute.xlu0 %1039
  %1041 = vrot.lane.b32.xlu0 %v861, 127
  %v1042 = vpop.permute.xlu0 %1041
  %1043 = vrot.lane.b32.xlu0 %v862, 127
  %v1044 = vpop.permute.xlu0 %1043
  %1045 = vrot.lane.b32.xlu0 %v863, 127
  %v1046 = vpop.permute.xlu0 %1045
  %1047 = vrot.lane.b32.xlu0 %v864, 127
  %v1048 = vpop.permute.xlu0 %1047
  %1049 = vrot.lane.b32.xlu0 %v865, 127
  %v1050 = vpop.permute.xlu0 %1049
  %1051 = vrot.lane.b32.xlu0 %v866, 127
  %v1052 = vpop.permute.xlu0 %1051
  %1053 = vrot.lane.b32.xlu0 %v867, 127
  %v1054 = vpop.permute.xlu0 %1053
  %1055 = vrot.lane.b32.xlu0 %v868, 127
  %v1056 = vpop.permute.xlu0 %1055
  %1057 = vrot.lane.b32.xlu0 %v869, 127
  %v1058 = vpop.permute.xlu0 %1057
  %1059 = vrot.lane.b32.xlu0 %v870, 127
  %v1060 = vpop.permute.xlu0 %1059
  %1061 = vrot.lane.b32.xlu0 %v871, 127
  %v1062 = vpop.permute.xlu0 %1061
  %1063 = vrot.lane.b32.xlu0 %v872, 127
  %v1064 = vpop.permute.xlu0 %1063
  %v1129 = vadd.f32 %v745, %v938
  %v1130 = vadd.f32 %v746, %v940
  %v1131 = vadd.f32 %v747, %v942
  %v1132 = vadd.f32 %v748, %v944
  %v1133 = vadd.f32 %v749, %v946
  %v1134 = vadd.f32 %v750, %v948
  %v1135 = vadd.f32 %v751, %v950
  %v1136 = vadd.f32 %v752, %v952
  %v1137 = vadd.f32 %v753, %v954
  %v1138 = vadd.f32 %v754, %v956
  %v1139 = vadd.f32 %v755, %v958
  %v1140 = vadd.f32 %v756, %v960
  %v1141 = vadd.f32 %v757, %v962
  %v1142 = vadd.f32 %v758, %v964
  %v1143 = vadd.f32 %v759, %v966
  %v1144 = vadd.f32 %v760, %v968
  %v1145 = vadd.f32 %v761, %v970
  %v1146 = vadd.f32 %v762, %v972
  %v1147 = vadd.f32 %v763, %v974
  %v1148 = vadd.f32 %v764, %v976
  %v1149 = vadd.f32 %v765, %v978
  %v1150 = vadd.f32 %v766, %v980
  %v1151 = vadd.f32 %v767, %v982
  %v1152 = vadd.f32 %v768, %v984
  %v1153 = vadd.f32 %v769, %v986
  %v1154 = vadd.f32 %v770, %v988
  %v1155 = vadd.f32 %v771, %v990
  %v1156 = vadd.f32 %v772, %v992
  %v1157 = vadd.f32 %v773, %v994
  %v1158 = vadd.f32 %v774, %v996
  %v1159 = vadd.f32 %v775, %v998
  %v1160 = vadd.f32 %v776, %v1000
  %v1161 = vadd.f32 %v777, %v1002
  %v1162 = vadd.f32 %v778, %v1004
  %v1163 = vadd.f32 %v779, %v1006
  %v1164 = vadd.f32 %v780, %v1008
  %v1165 = vadd.f32 %v781, %v1010
  %v1166 = vadd.f32 %v782, %v1012
  %v1167 = vadd.f32 %v783, %v1014
  %v1168 = vadd.f32 %v784, %v1016
  %v1169 = vadd.f32 %v785, %v1018
  %v1170 = vadd.f32 %v786, %v1020
  %v1171 = vadd.f32 %v787, %v1022
  %v1172 = vadd.f32 %v788, %v1024
  %v1173 = vadd.f32 %v789, %v1026
  %v1174 = vadd.f32 %v790, %v1028
  %v1175 = vadd.f32 %v791, %v1030
  %v1176 = vadd.f32 %v792, %v1032
  %v1177 = vadd.f32 %v793, %v1034
  %v1178 = vadd.f32 %v794, %v1036
  %v1179 = vadd.f32 %v795, %v1038
  %v1180 = vadd.f32 %v796, %v1040
  %v1181 = vadd.f32 %v797, %v1042
  %v1182 = vadd.f32 %v798, %v1044
  %v1183 = vadd.f32 %v799, %v1046
  %v1184 = vadd.f32 %v800, %v1048
  %v1185 = vadd.f32 %v801, %v1050
  %v1186 = vadd.f32 %v802, %v1052
  %v1187 = vadd.f32 %v803, %v1054
  %v1188 = vadd.f32 %v804, %v1056
  %v1189 = vadd.f32 %v805, %v1058
  %v1190 = vadd.f32 %v806, %v1060
  %v1191 = vadd.f32 %v807, %v1062
  %v1192 = vadd.f32 %v808, %v1064
  %1257 = vrot.lane.b32.xlu0 %v745, 126
  %v1258 = vpop.permute.xlu0 %1257
  %1259 = vrot.lane.b32.xlu0 %v746, 126
  %v1260 = vpop.permute.xlu0 %1259
  %1261 = vrot.lane.b32.xlu0 %v747, 126
  %v1262 = vpop.permute.xlu0 %1261
  %1263 = vrot.lane.b32.xlu0 %v748, 126
  %v1264 = vpop.permute.xlu0 %1263
  %1265 = vrot.lane.b32.xlu0 %v749, 126
  %v1266 = vpop.permute.xlu0 %1265
  %1267 = vrot.lane.b32.xlu0 %v750, 126
  %v1268 = vpop.permute.xlu0 %1267
  %1269 = vrot.lane.b32.xlu0 %v751, 126
  %v1270 = vpop.permute.xlu0 %1269
  %1271 = vrot.lane.b32.xlu0 %v752, 126
  %v1272 = vpop.permute.xlu0 %1271
  %1273 = vrot.lane.b32.xlu0 %v753, 126
  %v1274 = vpop.permute.xlu0 %1273
  %1275 = vrot.lane.b32.xlu0 %v754, 126
  %v1276 = vpop.permute.xlu0 %1275
  %1277 = vrot.lane.b32.xlu0 %v755, 126
  %v1278 = vpop.permute.xlu0 %1277
  %1279 = vrot.lane.b32.xlu0 %v756, 126
  %v1280 = vpop.permute.xlu0 %1279
  %1281 = vrot.lane.b32.xlu0 %v757, 126
  %v1282 = vpop.permute.xlu0 %1281
  %1283 = vrot.lane.b32.xlu0 %v758, 126
  %v1284 = vpop.permute.xlu0 %1283
  %1285 = vrot.lane.b32.xlu0 %v759, 126
  %v1286 = vpop.permute.xlu0 %1285
  %1287 = vrot.lane.b32.xlu0 %v760, 126
  %v1288 = vpop.permute.xlu0 %1287
  %1289 = vrot.lane.b32.xlu0 %v761, 126
  %v1290 = vpop.permute.xlu0 %1289
  %1291 = vrot.lane.b32.xlu0 %v762, 126
  %v1292 = vpop.permute.xlu0 %1291
  %1293 = vrot.lane.b32.xlu0 %v763, 126
  %v1294 = vpop.permute.xlu0 %1293
  %1295 = vrot.lane.b32.xlu0 %v764, 126
  %v1296 = vpop.permute.xlu0 %1295
  %1297 = vrot.lane.b32.xlu0 %v765, 126
  %v1298 = vpop.permute.xlu0 %1297
  %1299 = vrot.lane.b32.xlu0 %v766, 126
  %v1300 = vpop.permute.xlu0 %1299
  %1301 = vrot.lane.b32.xlu0 %v767, 126
  %v1302 = vpop.permute.xlu0 %1301
  %1303 = vrot.lane.b32.xlu0 %v768, 126
  %v1304 = vpop.permute.xlu0 %1303
  %1305 = vrot.lane.b32.xlu0 %v769, 126
  %v1306 = vpop.permute.xlu0 %1305
  %1307 = vrot.lane.b32.xlu0 %v770, 126
  %v1308 = vpop.permute.xlu0 %1307
  %1309 = vrot.lane.b32.xlu0 %v771, 126
  %v1310 = vpop.permute.xlu0 %1309
  %1311 = vrot.lane.b32.xlu0 %v772, 126
  %v1312 = vpop.permute.xlu0 %1311
  %1313 = vrot.lane.b32.xlu0 %v773, 126
  %v1314 = vpop.permute.xlu0 %1313
  %1315 = vrot.lane.b32.xlu0 %v774, 126
  %v1316 = vpop.permute.xlu0 %1315
  %1317 = vrot.lane.b32.xlu0 %v775, 126
  %v1318 = vpop.permute.xlu0 %1317
  %1319 = vrot.lane.b32.xlu0 %v776, 126
  %v1320 = vpop.permute.xlu0 %1319
  %1321 = vrot.lane.b32.xlu0 %v777, 126
  %v1322 = vpop.permute.xlu0 %1321
  %1323 = vrot.lane.b32.xlu0 %v778, 126
  %v1324 = vpop.permute.xlu0 %1323
  %1325 = vrot.lane.b32.xlu0 %v779, 126
  %v1326 = vpop.permute.xlu0 %1325
  %1327 = vrot.lane.b32.xlu0 %v780, 126
  %v1328 = vpop.permute.xlu0 %1327
  %1329 = vrot.lane.b32.xlu0 %v781, 126
  %v1330 = vpop.permute.xlu0 %1329
  %1331 = vrot.lane.b32.xlu0 %v782, 126
  %v1332 = vpop.permute.xlu0 %1331
  %1333 = vrot.lane.b32.xlu0 %v783, 126
  %v1334 = vpop.permute.xlu0 %1333
  %1335 = vrot.lane.b32.xlu0 %v784, 126
  %v1336 = vpop.permute.xlu0 %1335
  %1337 = vrot.lane.b32.xlu0 %v785, 126
  %v1338 = vpop.permute.xlu0 %1337
  %1339 = vrot.lane.b32.xlu0 %v786, 126
  %v1340 = vpop.permute.xlu0 %1339
  %1341 = vrot.lane.b32.xlu0 %v787, 126
  %v1342 = vpop.permute.xlu0 %1341
  %1343 = vrot.lane.b32.xlu0 %v788, 126
  %v1344 = vpop.permute.xlu0 %1343
  %1345 = vrot.lane.b32.xlu0 %v789, 126
  %v1346 = vpop.permute.xlu0 %1345
  %1347 = vrot.lane.b32.xlu0 %v790, 126
  %v1348 = vpop.permute.xlu0 %1347
  %1349 = vrot.lane.b32.xlu0 %v791, 126
  %v1350 = vpop.permute.xlu0 %1349
  %1351 = vrot.lane.b32.xlu0 %v792, 126
  %v1352 = vpop.permute.xlu0 %1351
  %1353 = vrot.lane.b32.xlu0 %v793, 126
  %v1354 = vpop.permute.xlu0 %1353
  %1355 = vrot.lane.b32.xlu0 %v794, 126
  %v1356 = vpop.permute.xlu0 %1355
  %1357 = vrot.lane.b32.xlu0 %v795, 126
  %v1358 = vpop.permute.xlu0 %1357
  %1359 = vrot.lane.b32.xlu0 %v796, 126
  %v1360 = vpop.permute.xlu0 %1359
  %1361 = vrot.lane.b32.xlu0 %v797, 126
  %v1362 = vpop.permute.xlu0 %1361
  %1363 = vrot.lane.b32.xlu0 %v798, 126
  %v1364 = vpop.permute.xlu0 %1363
  %1365 = vrot.lane.b32.xlu0 %v799, 126
  %v1366 = vpop.permute.xlu0 %1365
  %1367 = vrot.lane.b32.xlu0 %v800, 126
  %v1368 = vpop.permute.xlu0 %1367
  %1369 = vrot.lane.b32.xlu0 %v801, 126
  %v1370 = vpop.permute.xlu0 %1369
  %1371 = vrot.lane.b32.xlu0 %v802, 126
  %v1372 = vpop.permute.xlu0 %1371
  %1373 = vrot.lane.b32.xlu0 %v803, 126
  %v1374 = vpop.permute.xlu0 %1373
  %1375 = vrot.lane.b32.xlu0 %v804, 126
  %v1376 = vpop.permute.xlu0 %1375
  %1377 = vrot.lane.b32.xlu0 %v805, 126
  %v1378 = vpop.permute.xlu0 %1377
  %1379 = vrot.lane.b32.xlu0 %v806, 126
  %v1380 = vpop.permute.xlu0 %1379
  %1381 = vrot.lane.b32.xlu0 %v807, 126
  %v1382 = vpop.permute.xlu0 %1381
  %1383 = vrot.lane.b32.xlu0 %v808, 126
  %v1384 = vpop.permute.xlu0 %1383
  %v1449 = vadd.f32 %v1129, %v1258
  %v1450 = vadd.f32 %v1130, %v1260
  %v1451 = vadd.f32 %v1131, %v1262
  %v1452 = vadd.f32 %v1132, %v1264
  %v1453 = vadd.f32 %v1133, %v1266
  %v1454 = vadd.f32 %v1134, %v1268
  %v1455 = vadd.f32 %v1135, %v1270
  %v1456 = vadd.f32 %v1136, %v1272
  %v1457 = vadd.f32 %v1137, %v1274
  %v1458 = vadd.f32 %v1138, %v1276
  %v1459 = vadd.f32 %v1139, %v1278
  %v1460 = vadd.f32 %v1140, %v1280
  %v1461 = vadd.f32 %v1141, %v1282
  %v1462 = vadd.f32 %v1142, %v1284
  %v1463 = vadd.f32 %v1143, %v1286
  %v1464 = vadd.f32 %v1144, %v1288
  %v1465 = vadd.f32 %v1145, %v1290
  %v1466 = vadd.f32 %v1146, %v1292
  %v1467 = vadd.f32 %v1147, %v1294
  %v1468 = vadd.f32 %v1148, %v1296
  %v1469 = vadd.f32 %v1149, %v1298
  %v1470 = vadd.f32 %v1150, %v1300
  %v1471 = vadd.f32 %v1151, %v1302
  %v1472 = vadd.f32 %v1152, %v1304
  %v1473 = vadd.f32 %v1153, %v1306
  %v1474 = vadd.f32 %v1154, %v1308
  %v1475 = vadd.f32 %v1155, %v1310
  %v1476 = vadd.f32 %v1156, %v1312
  %v1477 = vadd.f32 %v1157, %v1314
  %v1478 = vadd.f32 %v1158, %v1316
  %v1479 = vadd.f32 %v1159, %v1318
  %v1480 = vadd.f32 %v1160, %v1320
  %v1481 = vadd.f32 %v1161, %v1322
  %v1482 = vadd.f32 %v1162, %v1324
  %v1483 = vadd.f32 %v1163, %v1326
  %v1484 = vadd.f32 %v1164, %v1328
  %v1485 = vadd.f32 %v1165, %v1330
  %v1486 = vadd.f32 %v1166, %v1332
  %v1487 = vadd.f32 %v1167, %v1334
  %v1488 = vadd.f32 %v1168, %v1336
  %v1489 = vadd.f32 %v1169, %v1338
  %v1490 = vadd.f32 %v1170, %v1340
  %v1491 = vadd.f32 %v1171, %v1342
  %v1492 = vadd.f32 %v1172, %v1344
  %v1493 = vadd.f32 %v1173, %v1346
  %v1494 = vadd.f32 %v1174, %v1348
  %v1495 = vadd.f32 %v1175, %v1350
  %v1496 = vadd.f32 %v1176, %v1352
  %v1497 = vadd.f32 %v1177, %v1354
  %v1498 = vadd.f32 %v1178, %v1356
  %v1499 = vadd.f32 %v1179, %v1358
  %v1500 = vadd.f32 %v1180, %v1360
  %v1501 = vadd.f32 %v1181, %v1362
  %v1502 = vadd.f32 %v1182, %v1364
  %v1503 = vadd.f32 %v1183, %v1366
  %v1504 = vadd.f32 %v1184, %v1368
  %v1505 = vadd.f32 %v1185, %v1370
  %v1506 = vadd.f32 %v1186, %v1372
  %v1507 = vadd.f32 %v1187, %v1374
  %v1508 = vadd.f32 %v1188, %v1376
  %v1509 = vadd.f32 %v1189, %v1378
  %v1510 = vadd.f32 %v1190, %v1380
  %v1511 = vadd.f32 %v1191, %v1382
  %v1512 = vadd.f32 %v1192, %v1384
  %v1513 = vmul.f32 %v1449, 0.0625
  %v1514 = vmul.f32 %v1450, 0.0625
  %v1515 = vmul.f32 %v1451, 0.0625
  %v1516 = vmul.f32 %v1452, 0.0625
  %v1517 = vmul.f32 %v1453, 0.0625
  %v1518 = vmul.f32 %v1454, 0.0625
  %v1519 = vmul.f32 %v1455, 0.0625
  %v1520 = vmul.f32 %v1456, 0.0625
  %v1521 = vmul.f32 %v1457, 0.0625
  %v1522 = vmul.f32 %v1458, 0.0625
  %v1523 = vmul.f32 %v1459, 0.0625
  %v1524 = vmul.f32 %v1460, 0.0625
  %v1525 = vmul.f32 %v1461, 0.0625
  %v1526 = vmul.f32 %v1462, 0.0625
  %v1527 = vmul.f32 %v1463, 0.0625
  %v1528 = vmul.f32 %v1464, 0.0625
  %v1529 = vmul.f32 %v1465, 0.0625
  %v1530 = vmul.f32 %v1466, 0.0625
  %v1531 = vmul.f32 %v1467, 0.0625
  %v1532 = vmul.f32 %v1468, 0.0625
  %v1533 = vmul.f32 %v1469, 0.0625
  %v1534 = vmul.f32 %v1470, 0.0625
  %v1535 = vmul.f32 %v1471, 0.0625
  %v1536 = vmul.f32 %v1472, 0.0625
  %v1537 = vmul.f32 %v1473, 0.0625
  %v1538 = vmul.f32 %v1474, 0.0625
  %v1539 = vmul.f32 %v1475, 0.0625
  %v1540 = vmul.f32 %v1476, 0.0625
  %v1541 = vmul.f32 %v1477, 0.0625
  %v1542 = vmul.f32 %v1478, 0.0625
  %v1543 = vmul.f32 %v1479, 0.0625
  %v1544 = vmul.f32 %v1480, 0.0625
  %v1545 = vmul.f32 %v1481, 0.0625
  %v1546 = vmul.f32 %v1482, 0.0625
  %v1547 = vmul.f32 %v1483, 0.0625
  %v1548 = vmul.f32 %v1484, 0.0625
  %v1549 = vmul.f32 %v1485, 0.0625
  %v1550 = vmul.f32 %v1486, 0.0625
  %v1551 = vmul.f32 %v1487, 0.0625
  %v1552 = vmul.f32 %v1488, 0.0625
  %v1553 = vmul.f32 %v1489, 0.0625
  %v1554 = vmul.f32 %v1490, 0.0625
  %v1555 = vmul.f32 %v1491, 0.0625
  %v1556 = vmul.f32 %v1492, 0.0625
  %v1557 = vmul.f32 %v1493, 0.0625
  %v1558 = vmul.f32 %v1494, 0.0625
  %v1559 = vmul.f32 %v1495, 0.0625
  %v1560 = vmul.f32 %v1496, 0.0625
  %v1561 = vmul.f32 %v1497, 0.0625
  %v1562 = vmul.f32 %v1498, 0.0625
  %v1563 = vmul.f32 %v1499, 0.0625
  %v1564 = vmul.f32 %v1500, 0.0625
  %v1565 = vmul.f32 %v1501, 0.0625
  %v1566 = vmul.f32 %v1502, 0.0625
  %v1567 = vmul.f32 %v1503, 0.0625
  %v1568 = vmul.f32 %v1504, 0.0625
  %v1569 = vmul.f32 %v1505, 0.0625
  %v1570 = vmul.f32 %v1506, 0.0625
  %v1571 = vmul.f32 %v1507, 0.0625
  %v1572 = vmul.f32 %v1508, 0.0625
  %v1573 = vmul.f32 %v1509, 0.0625
  %v1574 = vmul.f32 %v1510, 0.0625
  %v1575 = vmul.f32 %v1511, 0.0625
  %v1576 = vmul.f32 %v1512, 0.0625
  %v1577 = vpack.c.bf16 %v1514, %v1513
  %v1578 = vpack.c.bf16 %v1516, %v1515
  %v1579 = vpack.c.bf16 %v1518, %v1517
  %v1580 = vpack.c.bf16 %v1520, %v1519
  %v1581 = vpack.c.bf16 %v1522, %v1521
  %v1582 = vpack.c.bf16 %v1524, %v1523
  %v1583 = vpack.c.bf16 %v1526, %v1525
  %v1584 = vpack.c.bf16 %v1528, %v1527
  %v1585 = vpack.c.bf16 %v1530, %v1529
  %v1586 = vpack.c.bf16 %v1532, %v1531
  %v1587 = vpack.c.bf16 %v1534, %v1533
  %v1588 = vpack.c.bf16 %v1536, %v1535
  %v1589 = vpack.c.bf16 %v1538, %v1537
  %v1590 = vpack.c.bf16 %v1540, %v1539
  %v1591 = vpack.c.bf16 %v1542, %v1541
  %v1592 = vpack.c.bf16 %v1544, %v1543
  %v1593 = vpack.c.bf16 %v1546, %v1545
  %v1594 = vpack.c.bf16 %v1548, %v1547
  %v1595 = vpack.c.bf16 %v1550, %v1549
  %v1596 = vpack.c.bf16 %v1552, %v1551
  %v1597 = vpack.c.bf16 %v1554, %v1553
  %v1598 = vpack.c.bf16 %v1556, %v1555
  %v1599 = vpack.c.bf16 %v1558, %v1557
  %v1600 = vpack.c.bf16 %v1560, %v1559
  %v1601 = vpack.c.bf16 %v1562, %v1561
  %v1602 = vpack.c.bf16 %v1564, %v1563
  %v1603 = vpack.c.bf16 %v1566, %v1565
  %v1604 = vpack.c.bf16 %v1568, %v1567
  %v1605 = vpack.c.bf16 %v1570, %v1569
  %v1606 = vpack.c.bf16 %v1572, %v1571
  %v1607 = vpack.c.bf16 %v1574, %v1573
  %v1608 = vpack.c.bf16 %v1576, %v1575
  %v1641 = vunpack.c.l.b16 %v1577
  %v1642 = vunpack.c.h.b16 %v1577
  %v1643 = vunpack.c.l.b16 %v1578
  %v1644 = vunpack.c.h.b16 %v1578
  %v1645 = vunpack.c.l.b16 %v1579
  %v1646 = vunpack.c.h.b16 %v1579
  %v1647 = vunpack.c.l.b16 %v1580
  %v1648 = vunpack.c.h.b16 %v1580
  %v1649 = vunpack.c.l.b16 %v1581
  %v1650 = vunpack.c.h.b16 %v1581
  %v1651 = vunpack.c.l.b16 %v1582
  %v1652 = vunpack.c.h.b16 %v1582
  %v1653 = vunpack.c.l.b16 %v1583
  %v1654 = vunpack.c.h.b16 %v1583
  %v1655 = vunpack.c.l.b16 %v1584
  %v1656 = vunpack.c.h.b16 %v1584
  %v1657 = vunpack.c.l.b16 %v1585
  %v1658 = vunpack.c.h.b16 %v1585
  %v1659 = vunpack.c.l.b16 %v1586
  %v1660 = vunpack.c.h.b16 %v1586
  %v1661 = vunpack.c.l.b16 %v1587
  %v1662 = vunpack.c.h.b16 %v1587
  %v1663 = vunpack.c.l.b16 %v1588
  %v1664 = vunpack.c.h.b16 %v1588
  %v1665 = vunpack.c.l.b16 %v1589
  %v1666 = vunpack.c.h.b16 %v1589
  %v1667 = vunpack.c.l.b16 %v1590
  %v1668 = vunpack.c.h.b16 %v1590
  %v1669 = vunpack.c.l.b16 %v1591
  %v1670 = vunpack.c.h.b16 %v1591
  %v1671 = vunpack.c.l.b16 %v1592
  %v1672 = vunpack.c.h.b16 %v1592
  %v1673 = vunpack.c.l.b16 %v1593
  %v1674 = vunpack.c.h.b16 %v1593
  %v1675 = vunpack.c.l.b16 %v1594
  %v1676 = vunpack.c.h.b16 %v1594
  %v1677 = vunpack.c.l.b16 %v1595
  %v1678 = vunpack.c.h.b16 %v1595
  %v1679 = vunpack.c.l.b16 %v1596
  %v1680 = vunpack.c.h.b16 %v1596
  %v1681 = vunpack.c.l.b16 %v1597
  %v1682 = vunpack.c.h.b16 %v1597
  %v1683 = vunpack.c.l.b16 %v1598
  %v1684 = vunpack.c.h.b16 %v1598
  %v1685 = vunpack.c.l.b16 %v1599
  %v1686 = vunpack.c.h.b16 %v1599
  %v1687 = vunpack.c.l.b16 %v1600
  %v1688 = vunpack.c.h.b16 %v1600
  %v1689 = vunpack.c.l.b16 %v1601
  %v1690 = vunpack.c.h.b16 %v1601
  %v1691 = vunpack.c.l.b16 %v1602
  %v1692 = vunpack.c.h.b16 %v1602
  %v1693 = vunpack.c.l.b16 %v1603
  %v1694 = vunpack.c.h.b16 %v1603
  %v1695 = vunpack.c.l.b16 %v1604
  %v1696 = vunpack.c.h.b16 %v1604
  %v1697 = vunpack.c.l.b16 %v1605
  %v1698 = vunpack.c.h.b16 %v1605
  %v1699 = vunpack.c.l.b16 %v1606
  %v1700 = vunpack.c.h.b16 %v1606
  %v1701 = vunpack.c.l.b16 %v1607
  %v1702 = vunpack.c.h.b16 %v1607
  %v1703 = vunpack.c.l.b16 %v1608
  %v1704 = vunpack.c.h.b16 %v1608
  %v1705 = vpack.c.b16 %v1641, %v1641
  %v1706 = vpack.c.b16 %v1642, %v1642
  %v1707 = vpack.c.b16 %v1643, %v1643
  %v1708 = vpack.c.b16 %v1644, %v1644
  %v1709 = vpack.c.b16 %v1645, %v1645
  %v1710 = vpack.c.b16 %v1646, %v1646
  %v1711 = vpack.c.b16 %v1647, %v1647
  %v1712 = vpack.c.b16 %v1648, %v1648
  %v1713 = vpack.c.b16 %v1649, %v1649
  %v1714 = vpack.c.b16 %v1650, %v1650
  %v1715 = vpack.c.b16 %v1651, %v1651
  %v1716 = vpack.c.b16 %v1652, %v1652
  %v1717 = vpack.c.b16 %v1653, %v1653
  %v1718 = vpack.c.b16 %v1654, %v1654
  %v1719 = vpack.c.b16 %v1655, %v1655
  %v1720 = vpack.c.b16 %v1656, %v1656
  %v1721 = vpack.c.b16 %v1657, %v1657
  %v1722 = vpack.c.b16 %v1658, %v1658
  %v1723 = vpack.c.b16 %v1659, %v1659
  %v1724 = vpack.c.b16 %v1660, %v1660
  %v1725 = vpack.c.b16 %v1661, %v1661
  %v1726 = vpack.c.b16 %v1662, %v1662
  %v1727 = vpack.c.b16 %v1663, %v1663
  %v1728 = vpack.c.b16 %v1664, %v1664
  %v1729 = vpack.c.b16 %v1665, %v1665
  %v1730 = vpack.c.b16 %v1666, %v1666
  %v1731 = vpack.c.b16 %v1667, %v1667
  %v1732 = vpack.c.b16 %v1668, %v1668
  %v1733 = vpack.c.b16 %v1669, %v1669
  %v1734 = vpack.c.b16 %v1670, %v1670
  %v1735 = vpack.c.b16 %v1671, %v1671
  %v1736 = vpack.c.b16 %v1672, %v1672
  %v1737 = vpack.c.b16 %v1673, %v1673
  %v1738 = vpack.c.b16 %v1674, %v1674
  %v1739 = vpack.c.b16 %v1675, %v1675
  %v1740 = vpack.c.b16 %v1676, %v1676
  %v1741 = vpack.c.b16 %v1677, %v1677
  %v1742 = vpack.c.b16 %v1678, %v1678
  %v1743 = vpack.c.b16 %v1679, %v1679
  %v1744 = vpack.c.b16 %v1680, %v1680
  %v1745 = vpack.c.b16 %v1681, %v1681
  %v1746 = vpack.c.b16 %v1682, %v1682
  %v1747 = vpack.c.b16 %v1683, %v1683
  %v1748 = vpack.c.b16 %v1684, %v1684
  %v1749 = vpack.c.b16 %v1685, %v1685
  %v1750 = vpack.c.b16 %v1686, %v1686
  %v1751 = vpack.c.b16 %v1687, %v1687
  %v1752 = vpack.c.b16 %v1688, %v1688
  %v1753 = vpack.c.b16 %v1689, %v1689
  %v1754 = vpack.c.b16 %v1690, %v1690
  %v1755 = vpack.c.b16 %v1691, %v1691
  %v1756 = vpack.c.b16 %v1692, %v1692
  %v1757 = vpack.c.b16 %v1693, %v1693
  %v1758 = vpack.c.b16 %v1694, %v1694
  %v1759 = vpack.c.b16 %v1695, %v1695
  %v1760 = vpack.c.b16 %v1696, %v1696
  %v1761 = vpack.c.b16 %v1697, %v1697
  %v1762 = vpack.c.b16 %v1698, %v1698
  %v1763 = vpack.c.b16 %v1699, %v1699
  %v1764 = vpack.c.b16 %v1700, %v1700
  %v1765 = vpack.c.b16 %v1701, %v1701
  %v1766 = vpack.c.b16 %v1702, %v1702
  %v1767 = vpack.c.b16 %v1703, %v1703
  %v1768 = vpack.c.b16 %v1704, %v1704
  %vm1833 = vcmask 60416
  %1834 = vst.msk [vmem:[%s1] sm:$0xf] %vm1833, %v1705
  %vm1835 = vcmask 57344
  %vm1836 = vsmask.f32 256
  %vm1837 = vmand %vm1835, %vm1836
  %v1838 = vld [vmem:[%s1 + $0x4] sm:$0x1]
  %v1839 = vsel %vm1837, %v1706, %v1838
  %1840 = vst [vmem:[%s1 + $0x4] sm:$0x1] %v1839
  %1841 = vst.msk [vmem:[%s1 + $0x8] sm:$0xf] %vm1833, %v1707
  %v1842 = vld [vmem:[%s1 + $0xc] sm:$0x1]
  %v1843 = vsel %vm1837, %v1708, %v1842
  %1844 = vst [vmem:[%s1 + $0xc] sm:$0x1] %v1843
  %1845 = vst.msk [vmem:[%s1 + $0x10] sm:$0xf] %vm1833, %v1709
  %v1846 = vld [vmem:[%s1 + $0x14] sm:$0x1]
  %v1847 = vsel %vm1837, %v1710, %v1846
  %1848 = vst [vmem:[%s1 + $0x14] sm:$0x1] %v1847
  %1849 = vst.msk [vmem:[%s1 + $0x18] sm:$0xf] %vm1833, %v1711
  %v1850 = vld [vmem:[%s1 + $0x1c] sm:$0x1]
  %v1851 = vsel %vm1837, %v1712, %v1850
  %1852 = vst [vmem:[%s1 + $0x1c] sm:$0x1] %v1851
  %1853 = vst.msk [vmem:[%s1 + $0x20] sm:$0xf] %vm1833, %v1713
  %v1854 = vld [vmem:[%s1 + $0x24] sm:$0x1]
  %v1855 = vsel %vm1837, %v1714, %v1854
  %1856 = vst [vmem:[%s1 + $0x24] sm:$0x1] %v1855
  %1857 = vst.msk [vmem:[%s1 + $0x28] sm:$0xf] %vm1833, %v1715
  %v1858 = vld [vmem:[%s1 + $0x2c] sm:$0x1]
  %v1859 = vsel %vm1837, %v1716, %v1858
  %1860 = vst [vmem:[%s1 + $0x2c] sm:$0x1] %v1859
  %1861 = vst.msk [vmem:[%s1 + $0x30] sm:$0xf] %vm1833, %v1717
  %v1862 = vld [vmem:[%s1 + $0x34] sm:$0x1]
  %v1863 = vsel %vm1837, %v1718, %v1862
  %1864 = vst [vmem:[%s1 + $0x34] sm:$0x1] %v1863
  %1865 = vst.msk [vmem:[%s1 + $0x38] sm:$0xf] %vm1833, %v1719
  %v1866 = vld [vmem:[%s1 + $0x3c] sm:$0x1]
  %v1867 = vsel %vm1837, %v1720, %v1866
  %1868 = vst [vmem:[%s1 + $0x3c] sm:$0x1] %v1867
  %1869 = vst.msk [vmem:[%s1 + $0x40] sm:$0xf] %vm1833, %v1721
  %v1870 = vld [vmem:[%s1 + $0x44] sm:$0x1]
  %v1871 = vsel %vm1837, %v1722, %v1870
  %1872 = vst [vmem:[%s1 + $0x44] sm:$0x1] %v1871
  %1873 = vst.msk [vmem:[%s1 + $0x48] sm:$0xf] %vm1833, %v1723
  %v1874 = vld [vmem:[%s1 + $0x4c] sm:$0x1]
  %v1875 = vsel %vm1837, %v1724, %v1874
  %1876 = vst [vmem:[%s1 + $0x4c] sm:$0x1] %v1875
  %1877 = vst.msk [vmem:[%s1 + $0x50] sm:$0xf] %vm1833, %v1725
  %v1878 = vld [vmem:[%s1 + $0x54] sm:$0x1]
  %v1879 = vsel %vm1837, %v1726, %v1878
  %1880 = vst [vmem:[%s1 + $0x54] sm:$0x1] %v1879
  %1881 = vst.msk [vmem:[%s1 + $0x58] sm:$0xf] %vm1833, %v1727
  %v1882 = vld [vmem:[%s1 + $0x5c] sm:$0x1]
  %v1883 = vsel %vm1837, %v1728, %v1882
  %1884 = vst [vmem:[%s1 + $0x5c] sm:$0x1] %v1883
  %1885 = vst.msk [vmem:[%s1 + $0x60] sm:$0xf] %vm1833, %v1729
  %v1886 = vld [vmem:[%s1 + $0x64] sm:$0x1]
  %v1887 = vsel %vm1837, %v1730, %v1886
  %1888 = vst [vmem:[%s1 + $0x64] sm:$0x1] %v1887
  %1889 = vst.msk [vmem:[%s1 + $0x68] sm:$0xf] %vm1833, %v1731
  %v1890 = vld [vmem:[%s1 + $0x6c] sm:$0x1]
  %v1891 = vsel %vm1837, %v1732, %v1890
  %1892 = vst [vmem:[%s1 + $0x6c] sm:$0x1] %v1891
  %1893 = vst.msk [vmem:[%s1 + $0x70] sm:$0xf] %vm1833, %v1733
  %v1894 = vld [vmem:[%s1 + $0x74] sm:$0x1]
  %v1895 = vsel %vm1837, %v1734, %v1894
  %1896 = vst [vmem:[%s1 + $0x74] sm:$0x1] %v1895
  %1897 = vst.msk [vmem:[%s1 + $0x78] sm:$0xf] %vm1833, %v1735
  %v1898 = vld [vmem:[%s1 + $0x7c] sm:$0x1]
  %v1899 = vsel %vm1837, %v1736, %v1898
  %1900 = vst [vmem:[%s1 + $0x7c] sm:$0x1] %v1899
  %1901 = vst.msk [vmem:[%s1 + $0x80] sm:$0xf] %vm1833, %v1737
  %v1902 = vld [vmem:[%s1 + $0x84] sm:$0x1]
  %v1903 = vsel %vm1837, %v1738, %v1902
  %1904 = vst [vmem:[%s1 + $0x84] sm:$0x1] %v1903
  %1905 = vst.msk [vmem:[%s1 + $0x88] sm:$0xf] %vm1833, %v1739
  %v1906 = vld [vmem:[%s1 + $0x8c] sm:$0x1]
  %v1907 = vsel %vm1837, %v1740, %v1906
  %1908 = vst [vmem:[%s1 + $0x8c] sm:$0x1] %v1907
  %1909 = vst.msk [vmem:[%s1 + $0x90] sm:$0xf] %vm1833, %v1741
  %v1910 = vld [vmem:[%s1 + $0x94] sm:$0x1]
  %v1911 = vsel %vm1837, %v1742, %v1910
  %1912 = vst [vmem:[%s1 + $0x94] sm:$0x1] %v1911
  %1913 = vst.msk [vmem:[%s1 + $0x98] sm:$0xf] %vm1833, %v1743
  %v1914 = vld [vmem:[%s1 + $0x9c] sm:$0x1]
  %v1915 = vsel %vm1837, %v1744, %v1914
  %1916 = vst [vmem:[%s1 + $0x9c] sm:$0x1] %v1915
  %1917 = vst.msk [vmem:[%s1 + $0xa0] sm:$0xf] %vm1833, %v1745
  %v1918 = vld [vmem:[%s1 + $0xa4] sm:$0x1]
  %v1919 = vsel %vm1837, %v1746, %v1918
  %1920 = vst [vmem:[%s1 + $0xa4] sm:$0x1] %v1919
  %1921 = vst.msk [vmem:[%s1 + $0xa8] sm:$0xf] %vm1833, %v1747
  %v1922 = vld [vmem:[%s1 + $0xac] sm:$0x1]
  %v1923 = vsel %vm1837, %v1748, %v1922
  %1924 = vst [vmem:[%s1 + $0xac] sm:$0x1] %v1923
  %1925 = vst.msk [vmem:[%s1 + $0xb0] sm:$0xf] %vm1833, %v1749
  %v1926 = vld [vmem:[%s1 + $0xb4] sm:$0x1]
  %v1927 = vsel %vm1837, %v1750, %v1926
  %1928 = vst [vmem:[%s1 + $0xb4] sm:$0x1] %v1927
  %1929 = vst.msk [vmem:[%s1 + $0xb8] sm:$0xf] %vm1833, %v1751
  %v1930 = vld [vmem:[%s1 + $0xbc] sm:$0x1]
  %v1931 = vsel %vm1837, %v1752, %v1930
  %1932 = vst [vmem:[%s1 + $0xbc] sm:$0x1] %v1931
  %1933 = vst.msk [vmem:[%s1 + $0xc0] sm:$0xf] %vm1833, %v1753
  %v1934 = vld [vmem:[%s1 + $0xc4] sm:$0x1]
  %v1935 = vsel %vm1837, %v1754, %v1934
  %1936 = vst [vmem:[%s1 + $0xc4] sm:$0x1] %v1935
  %1937 = vst.msk [vmem:[%s1 + $0xc8] sm:$0xf] %vm1833, %v1755
  %v1938 = vld [vmem:[%s1 + $0xcc] sm:$0x1]
  %v1939 = vsel %vm1837, %v1756, %v1938
  %1940 = vst [vmem:[%s1 + $0xcc] sm:$0x1] %v1939
  %1941 = vst.msk [vmem:[%s1 + $0xd0] sm:$0xf] %vm1833, %v1757
  %v1942 = vld [vmem:[%s1 + $0xd4] sm:$0x1]
  %v1943 = vsel %vm1837, %v1758, %v1942
  %1944 = vst [vmem:[%s1 + $0xd4] sm:$0x1] %v1943
  %1945 = vst.msk [vmem:[%s1 + $0xd8] sm:$0xf] %vm1833, %v1759
  %v1946 = vld [vmem:[%s1 + $0xdc] sm:$0x1]
  %v1947 = vsel %vm1837, %v1760, %v1946
  %1948 = vst [vmem:[%s1 + $0xdc] sm:$0x1] %v1947
  %1949 = vst.msk [vmem:[%s1 + $0xe0] sm:$0xf] %vm1833, %v1761
  %v1950 = vld [vmem:[%s1 + $0xe4] sm:$0x1]
  %v1951 = vsel %vm1837, %v1762, %v1950
  %1952 = vst [vmem:[%s1 + $0xe4] sm:$0x1] %v1951
  %1953 = vst.msk [vmem:[%s1 + $0xe8] sm:$0xf] %vm1833, %v1763
  %v1954 = vld [vmem:[%s1 + $0xec] sm:$0x1]
  %v1955 = vsel %vm1837, %v1764, %v1954
  %1956 = vst [vmem:[%s1 + $0xec] sm:$0x1] %v1955
  %1957 = vst.msk [vmem:[%s1 + $0xf0] sm:$0xf] %vm1833, %v1765
  %v1958 = vld [vmem:[%s1 + $0xf4] sm:$0x1]
  %v1959 = vsel %vm1837, %v1766, %v1958
  %1960 = vst [vmem:[%s1 + $0xf4] sm:$0x1] %v1959
  %1961 = vst.msk [vmem:[%s1 + $0xf8] sm:$0xf] %vm1833, %v1767
  %v1962 = vld [vmem:[%s1 + $0xfc] sm:$0x1]
  %v1963 = vsel %vm1837, %v1768, %v1962
  %1964 = vst [vmem:[%s1 + $0xfc] sm:$0x1] %v1963
  // Predicated region
  $region6: #{resnet_encoder_forward.13} parent=0 // pred_check
    _
  $region7: #{resnet_encoder_forward.13} parent=0 // pred_check_branch
    %1966 = sbr.rel (0) target = $region9
  $region8: #{resnet_encoder_forward.13} parent=0 // pred_region
    _
  $region9: #{resnet_encoder_forward.13} parent=0 // pred_fallthru
    _
  // Predicated region
  $region10: #{resnet_encoder_forward.13} parent=0 // pred_check
    _
  $region11: #{resnet_encoder_forward.13} parent=0 // pred_check_branch
    %1968 = sbr.rel (0) target = $region13
  $region12: #{resnet_encoder_forward.13} parent=0 // pred_region
    _
  $region13: #{resnet_encoder_forward.13} parent=0 // pred_fallthru
    _

// kernel: resnet_encoder_forward.14
$region0: #{resnet_encoder_forward.14}
  #allocation0 [shape = 'u32[]', space=smem, size = 0x4, offset = 0x4, fixed_abs, tag = 'smem constant byte address 0x4 - core index']
  #allocation1 [shape = 'u32[144,128]{1,0:T(1,128)}', space=vmem, size = 0x12000, scoped, tag = 'internal scratch']
  #allocation2 [shape = 'bf16[288,128]{1,0:T(16,128)(2,1)}', space=vmem, size = 0x12000, scoped, tag = 'scratch operand']
  %s0 = inlined_call_operand.vmem [shape: bf16[32,142], index: 0, kind: input, shape index: {}]
  %s1 = inlined_call_operand.vmem [shape: bf16[32,288], index: 1, kind: input, shape index: {}]
  %s2 = inlined_call_operand.vmem [shape: f32[32,1], index: 2, kind: input, shape index: {}]
  %s3 = inlined_call_operand.vmem [shape: bf16[32,128], index: 3, kind: output, shape index: {}]
  %s4 = sld [smem:[#allocation0]]
  $region22: #{resnet_encoder_forward.14} parent=0
    _
  %s6 = ssub.s32 1, %s4
  %s7 = scalar_select 0, %s6, %s4
  // Predicated region
  $region2: #{resnet_encoder_forward.14} parent=0 // pred_check
    _
  $region3: #{resnet_encoder_forward.14} parent=0 // pred_check_branch
    %9 = sbr.rel (0) target = $region5
  $region4: #{resnet_encoder_forward.14} parent=0 // pred_region
    _
  $region5: #{resnet_encoder_forward.14} parent=0 // pred_fallthru
    _
  // Predicated region
  $region6: #{resnet_encoder_forward.14} parent=0 // pred_check
    _
  $region7: #{resnet_encoder_forward.14} parent=0 // pred_check_branch
    %11 = sbr.rel (0) target = $region9
  $region8: #{resnet_encoder_forward.14} parent=0 // pred_region
    _
  $region9: #{resnet_encoder_forward.14} parent=0 // pred_fallthru
    _
  // Predicated region
  $region10: #{resnet_encoder_forward.14} parent=0 // pred_check
    _
  $region11: #{resnet_encoder_forward.14} parent=0 // pred_check_branch
    %13 = sbr.rel (0) target = $region13
  $region12: #{resnet_encoder_forward.14} parent=0 // pred_region
    _
  $region13: #{resnet_encoder_forward.14} parent=0 // pred_fallthru
    _
  %v15 = vld [vmem:[%s0] sm:$0xf]
  %v16 = vld [vmem:[%s0 + $0x8] sm:$0xf]
  %v17 = vld [vmem:[%s0 + $0x10] sm:$0xf]
  %v18 = vld [vmem:[%s0 + $0x18] sm:$0xf]
  %v23 = vunpack.c.l.b16 %v15
  %v24 = vunpack.c.l.b16 %v16
  %v25 = vunpack.c.l.b16 %v17
  %v26 = vunpack.c.l.b16 %v18
  %v27 = vpack.c.b16 %v24, %v23
  %v28 = vpack.c.b16 %v26, %v25
  %31 = vst [vmem:[#allocation2] sm:$0xff] %v27
  %32 = vst [vmem:[#allocation2 + $0x8] sm:$0xff] %v28
  %v33 = vld [vmem:[%s0] sm:$0xff]
  %v34 = vld [vmem:[%s0 + $0x8] sm:$0xff]
  %v35 = vld [vmem:[%s0 + $0x10] sm:$0xff]
  %v36 = vld [vmem:[%s0 + $0x18] sm:$0xff]
  %v41 = vunpack.c.l.b16 %v33
  %v42 = vunpack.c.h.b16 %v33
  %v43 = vunpack.c.l.b16 %v34
  %v44 = vunpack.c.h.b16 %v34
  %v45 = vunpack.c.l.b16 %v35
  %v46 = vunpack.c.h.b16 %v35
  %v47 = vunpack.c.l.b16 %v36
  %v48 = vunpack.c.h.b16 %v36
  %v49 = vpack.c.b16 %v43, %v41
  %v50 = vpack.c.b16 %v44, %v42
  %v51 = vpack.c.b16 %v47, %v45
  %v52 = vpack.c.b16 %v48, %v46
  %53 = vrot.lane.b32.xlu0 %v49, 127
  %v54 = vpop.permute.xlu0 %53
  %55 = vrot.lane.b32.xlu0 %v50, 127
  %v56 = vpop.permute.xlu0 %55
  %57 = vrot.lane.b32.xlu0 %v51, 127
  %v58 = vpop.permute.xlu0 %57
  %59 = vrot.lane.b32.xlu0 %v52, 127
  %v60 = vpop.permute.xlu0 %59
  %vm61 = vcmask 1039360
  %v62 = vsel %vm61, %v54, %v56
  %v63 = vsel %vm61, %v58, %v60
  %66 = vst [vmem:[#allocation2 + $0x10] sm:$0xff] %v62
  %67 = vst [vmem:[#allocation2 + $0x18] sm:$0xff] %v63
  %v68 = vld [vmem:[%s0] sm:$0xff]
  %v69 = vld [vmem:[%s0 + $0x8] sm:$0xff]
  %v70 = vld [vmem:[%s0 + $0x10] sm:$0xff]
  %v71 = vld [vmem:[%s0 + $0x18] sm:$0xff]
  %v76 = vunpack.c.l.b16 %v68
  %v77 = vunpack.c.h.b16 %v68
  %v78 = vunpack.c.l.b16 %v69
  %v79 = vunpack.c.h.b16 %v69
  %v80 = vunpack.c.l.b16 %v70
  %v81 = vunpack.c.h.b16 %v70
  %v82 = vunpack.c.l.b16 %v71
  %v83 = vunpack.c.h.b16 %v71
  %v84 = vpack.c.b16 %v78, %v76
  %v85 = vpack.c.b16 %v79, %v77
  %v86 = vpack.c.b16 %v82, %v80
  %v87 = vpack.c.b16 %v83, %v81
  %88 = vrot.lane.b32.xlu0 %v84, 126
  %v89 = vpop.permute.xlu0 %88
  %90 = vrot.lane.b32.xlu0 %v85, 126
  %v91 = vpop.permute.xlu0 %90
  %92 = vrot.lane.b32.xlu0 %v86, 126
  %v93 = vpop.permute.xlu0 %92
  %94 = vrot.lane.b32.xlu0 %v87, 126
  %v95 = vpop.permute.xlu0 %94
  %vm96 = vcmask 1031168
  %v97 = vsel %vm96, %v89, %v91
  %v98 = vsel %vm96, %v93, %v95
  %101 = vst [vmem:[#allocation2 + $0x20] sm:$0xff] %v97
  %102 = vst [vmem:[#allocation2 + $0x28] sm:$0xff] %v98
  %v103 = vld [vmem:[%s0] sm:$0xff]
  %v104 = vld [vmem:[%s0 + $0x8] sm:$0xff]
  %v105 = vld [vmem:[%s0 + $0x10] sm:$0xff]
  %v106 = vld [vmem:[%s0 + $0x18] sm:$0xff]
  %v111 = vunpack.c.l.b16 %v103
  %v112 = vunpack.c.h.b16 %v103
  %v113 = vunpack.c.l.b16 %v104
  %v114 = vunpack.c.h.b16 %v104
  %v115 = vunpack.c.l.b16 %v105
  %v116 = vunpack.c.h.b16 %v105
  %v117 = vunpack.c.l.b16 %v106
  %v118 = vunpack.c.h.b16 %v106
  %v119 = vpack.c.b16 %v113, %v111
  %v120 = vpack.c.b16 %v114, %v112
  %v121 = vpack.c.b16 %v117, %v115
  %v122 = vpack.c.b16 %v118, %v116
  %123 = vrot.lane.b32.xlu0 %v119, 122
  %v124 = vpop.permute.xlu0 %123
  %125 = vrot.lane.b32.xlu0 %v120, 122
  %v126 = vpop.permute.xlu0 %125
  %127 = vrot.lane.b32.xlu0 %v121, 122
  %v128 = vpop.permute.xlu0 %127
  %129 = vrot.lane.b32.xlu0 %v122, 122
  %v130 = vpop.permute.xlu0 %129
  %vm131 = vcmask 998400
  %v132 = vsel %vm131, %v124, %v126
  %v133 = vsel %vm131, %v128, %v130
  %136 = vst [vmem:[#allocation2 + $0x30] sm:$0xff] %v132
  %137 = vst [vmem:[#allocation2 + $0x38] sm:$0xff] %v133
  %v138 = vld [vmem:[%s0] sm:$0xff]
  %v139 = vld [vmem:[%s0 + $0x8] sm:$0xff]
  %v140 = vld [vmem:[%s0 + $0x10] sm:$0xff]
  %v141 = vld [vmem:[%s0 + $0x18] sm:$0xff]
  %v146 = vunpack.c.l.b16 %v138
  %v147 = vunpack.c.h.b16 %v138
  %v148 = vunpack.c.l.b16 %v139
  %v149 = vunpack.c.h.b16 %v139
  %v150 = vunpack.c.l.b16 %v140
  %v151 = vunpack.c.h.b16 %v140
  %v152 = vunpack.c.l.b16 %v141
  %v153 = vunpack.c.h.b16 %v141
  %v154 = vpack.c.b16 %v148, %v146
  %v155 = vpack.c.b16 %v149, %v147
  %v156 = vpack.c.b16 %v152, %v150
  %v157 = vpack.c.b16 %v153, %v151
  %158 = vrot.lane.b32.xlu0 %v154, 121
  %v159 = vpop.permute.xlu0 %158
  %160 = vrot.lane.b32.xlu0 %v155, 121
  %v161 = vpop.permute.xlu0 %160
  %162 = vrot.lane.b32.xlu0 %v156, 121
  %v163 = vpop.permute.xlu0 %162
  %164 = vrot.lane.b32.xlu0 %v157, 121
  %v165 = vpop.permute.xlu0 %164
  %vm166 = vcmask 990208
  %v167 = vsel %vm166, %v159, %v161
  %v168 = vsel %vm166, %v163, %v165
  %171 = vst [vmem:[#allocation2 + $0x40] sm:$0xff] %v167
  %172 = vst [vmem:[#allocation2 + $0x48] sm:$0xff] %v168
  %v173 = vld [vmem:[%s0] sm:$0xff]
  %v174 = vld [vmem:[%s0 + $0x8] sm:$0xff]
  %v175 = vld [vmem:[%s0 + $0x10] sm:$0xff]
  %v176 = vld [vmem:[%s0 + $0x18] sm:$0xff]
  %v181 = vunpack.c.l.b16 %v173
  %v182 = vunpack.c.h.b16 %v173
  %v183 = vunpack.c.l.b16 %v174
  %v184 = vunpack.c.h.b16 %v174
  %v185 = vunpack.c.l.b16 %v175
  %v186 = vunpack.c.h.b16 %v175
  %v187 = vunpack.c.l.b16 %v176
  %v188 = vunpack.c.h.b16 %v176
  %v189 = vpack.c.b16 %v183, %v181
  %v190 = vpack.c.b16 %v184, %v182
  %v191 = vpack.c.b16 %v187, %v185
  %v192 = vpack.c.b16 %v188, %v186
  %193 = vrot.lane.b32.xlu0 %v189, 120
  %v194 = vpop.permute.xlu0 %193
  %195 = vrot.lane.b32.xlu0 %v190, 120
  %v196 = vpop.permute.xlu0 %195
  %197 = vrot.lane.b32.xlu0 %v191, 120
  %v198 = vpop.permute.xlu0 %197
  %199 = vrot.lane.b32.xlu0 %v192, 120
  %v200 = vpop.permute.xlu0 %199
  %vm201 = vcmask 982016
  %v202 = vsel %vm201, %v194, %v196
  %v203 = vsel %vm201, %v198, %v200
  %206 = vst [vmem:[#allocation2 + $0x50] sm:$0xff] %v202
  %207 = vst [vmem:[#allocation2 + $0x58] sm:$0xff] %v203
  %v208 = vld [vmem:[%s0] sm:$0xff]
  %v209 = vld [vmem:[%s0 + $0x8] sm:$0xff]
  %v210 = vld [vmem:[%s0 + $0x10] sm:$0xff]
  %v211 = vld [vmem:[%s0 + $0x18] sm:$0xff]
  %v216 = vunpack.c.l.b16 %v208
  %v217 = vunpack.c.h.b16 %v208
  %v218 = vunpack.c.l.b16 %v209
  %v219 = vunpack.c.h.b16 %v209
  %v220 = vunpack.c.l.b16 %v210
  %v221 = vunpack.c.h.b16 %v210
  %v222 = vunpack.c.l.b16 %v211
  %v223 = vunpack.c.h.b16 %v211
  %v224 = vpack.c.b16 %v218, %v216
  %v225 = vpack.c.b16 %v219, %v217
  %v226 = vpack.c.b16 %v222, %v220
  %v227 = vpack.c.b16 %v223, %v221
  %228 = vrot.lane.b32.xlu0 %v224, 116
  %v229 = vpop.permute.xlu0 %228
  %230 = vrot.lane.b32.xlu0 %v225, 116
  %v231 = vpop.permute.xlu0 %230
  %232 = vrot.lane.b32.xlu0 %v226, 116
  %v233 = vpop.permute.xlu0 %232
  %234 = vrot.lane.b32.xlu0 %v227, 116
  %v235 = vpop.permute.xlu0 %234
  %vm236 = vcmask 949248
  %v237 = vsel %vm236, %v229, %v231
  %v238 = vsel %vm236, %v233, %v235
  %241 = vst [vmem:[#allocation2 + $0x60] sm:$0xff] %v237
  %242 = vst [vmem:[#allocation2 + $0x68] sm:$0xff] %v238
  %v243 = vld [vmem:[%s0] sm:$0xff]
  %v244 = vld [vmem:[%s0 + $0x8] sm:$0xff]
  %v245 = vld [vmem:[%s0 + $0x10] sm:$0xff]
  %v246 = vld [vmem:[%s0 + $0x18] sm:$0xff]
  %v251 = vunpack.c.l.b16 %v243
  %v252 = vunpack.c.h.b16 %v243
  %v253 = vunpack.c.l.b16 %v244
  %v254 = vunpack.c.h.b16 %v244
  %v255 = vunpack.c.l.b16 %v245
  %v256 = vunpack.c.h.b16 %v245
  %v257 = vunpack.c.l.b16 %v246
  %v258 = vunpack.c.h.b16 %v246
  %v259 = vpack.c.b16 %v253, %v251
  %v260 = vpack.c.b16 %v254, %v252
  %v261 = vpack.c.b16 %v257, %v255
  %v262 = vpack.c.b16 %v258, %v256
  %263 = vrot.lane.b32.xlu0 %v259, 115
  %v264 = vpop.permute.xlu0 %263
  %265 = vrot.lane.b32.xlu0 %v260, 115
  %v266 = vpop.permute.xlu0 %265
  %267 = vrot.lane.b32.xlu0 %v261, 115
  %v268 = vpop.permute.xlu0 %267
  %269 = vrot.lane.b32.xlu0 %v262, 115
  %v270 = vpop.permute.xlu0 %269
  %vm271 = vcmask 941056
  %v272 = vsel %vm271, %v264, %v266
  %v273 = vsel %vm271, %v268, %v270
  %276 = vst [vmem:[#allocation2 + $0x70] sm:$0xff] %v272
  %277 = vst [vmem:[#allocation2 + $0x78] sm:$0xff] %v273
  %v278 = vld [vmem:[%s0] sm:$0xff]
  %v279 = vld [vmem:[%s0 + $0x8] sm:$0xff]
  %v280 = vld [vmem:[%s0 + $0x10] sm:$0xff]
  %v281 = vld [vmem:[%s0 + $0x18] sm:$0xff]
  %v286 = vunpack.c.l.b16 %v278
  %v287 = vunpack.c.h.b16 %v278
  %v288 = vunpack.c.l.b16 %v279
  %v289 = vunpack.c.h.b16 %v279
  %v290 = vunpack.c.l.b16 %v280
  %v291 = vunpack.c.h.b16 %v280
  %v292 = vunpack.c.l.b16 %v281
  %v293 = vunpack.c.h.b16 %v281
  %v294 = vpack.c.b16 %v288, %v286
  %v295 = vpack.c.b16 %v289, %v287
  %v296 = vpack.c.b16 %v292, %v290
  %v297 = vpack.c.b16 %v293, %v291
  %298 = vrot.lane.b32.xlu0 %v294, 114
  %v299 = vpop.permute.xlu0 %298
  %300 = vrot.lane.b32.xlu0 %v295, 114
  %v301 = vpop.permute.xlu0 %300
  %302 = vrot.lane.b32.xlu0 %v296, 114
  %v303 = vpop.permute.xlu0 %302
  %304 = vrot.lane.b32.xlu0 %v297, 114
  %v305 = vpop.permute.xlu0 %304
  %vm306 = vcmask 932864
  %v307 = vsel %vm306, %v299, %v301
  %v308 = vsel %vm306, %v303, %v305
  %311 = vst [vmem:[#allocation2 + $0x80] sm:$0xff] %v307
  %312 = vst [vmem:[#allocation2 + $0x88] sm:$0xff] %v308
  %v313 = vld [vmem:[%s1] sm:$0xff]
  %v314 = vld [vmem:[%s1 + $0x8] sm:$0xf]
  %v315 = vld [vmem:[%s1 + $0xc] sm:$0xff]
  %v316 = vld [vmem:[%s1 + $0x14] sm:$0xf]
  %v317 = vld [vmem:[%s1 + $0x18] sm:$0xff]
  %v318 = vld [vmem:[%s1 + $0x20] sm:$0xf]
  %v319 = vld [vmem:[%s1 + $0x24] sm:$0xff]
  %v320 = vld [vmem:[%s1 + $0x2c] sm:$0xf]
  %v321 = vld [vmem:[#allocation2] sm:$0xff]
  %v322 = vld [vmem:[#allocation2 + $0x8] sm:$0xff]
  %v323 = vld [vmem:[#allocation2 + $0x10] sm:$0xff]
  %v324 = vld [vmem:[#allocation2 + $0x18] sm:$0xff]
  %v325 = vld [vmem:[#allocation2 + $0x20] sm:$0xff]
  %v326 = vld [vmem:[#allocation2 + $0x28] sm:$0xff]
  %v327 = vld [vmem:[#allocation2 + $0x30] sm:$0xff]
  %v328 = vld [vmem:[#allocation2 + $0x38] sm:$0xff]
  %v329 = vld [vmem:[#allocation2 + $0x40] sm:$0xff]
  %v330 = vld [vmem:[#allocation2 + $0x48] sm:$0xff]
  %v331 = vld [vmem:[#allocation2 + $0x50] sm:$0xff]
  %v332 = vld [vmem:[#allocation2 + $0x58] sm:$0xff]
  %v333 = vld [vmem:[#allocation2 + $0x60] sm:$0xff]
  %v334 = vld [vmem:[#allocation2 + $0x68] sm:$0xff]
  %v335 = vld [vmem:[#allocation2 + $0x70] sm:$0xff]
  %v336 = vld [vmem:[#allocation2 + $0x78] sm:$0xff]
  %v337 = vld [vmem:[#allocation2 + $0x80] sm:$0xff]
  %v338 = vld [vmem:[#allocation2 + $0x88] sm:$0xff]
  %v339 = vld [vmem:[%s2] sm:$0xff]
  %v340 = vld [vmem:[%s2 + $0x8] sm:$0xff]
  %v341 = vld [vmem:[%s2 + $0x10] sm:$0xff]
  %v342 = vld [vmem:[%s2 + $0x18] sm:$0xff]
  %344 = vset.pattern.permute.xlu0 0
  %345 = vperm.xlu0 %344, %v339
  %v346 = vpop.permute.xlu0 %345
  %349 = vset.pattern.permute.xlu0 0
  %350 = vperm.xlu0 %349, %v340
  %v351 = vpop.permute.xlu0 %350
  %354 = vset.pattern.permute.xlu0 0
  %355 = vperm.xlu0 %354, %v341
  %v356 = vpop.permute.xlu0 %355
  %359 = vset.pattern.permute.xlu0 0
  %360 = vperm.xlu0 %359, %v342
  %v361 = vpop.permute.xlu0 %360
  %v371 = vunpack.c.l.b16 %v313
  %v372 = vunpack.c.h.b16 %v313
  %v373 = vunpack.c.l.b16 %v314
  %v374 = vunpack.c.l.b16 %v315
  %v375 = vunpack.c.h.b16 %v315
  %v376 = vunpack.c.l.b16 %v316
  %v377 = vunpack.c.l.b16 %v317
  %v378 = vunpack.c.h.b16 %v317
  %v379 = vunpack.c.l.b16 %v318
  %v380 = vunpack.c.l.b16 %v319
  %v381 = vunpack.c.h.b16 %v319
  %v382 = vunpack.c.l.b16 %v320
  %v383 = vpack.c.b16 %v374, %v371
  %v384 = vpack.c.b16 %v375, %v372
  %v385 = vpack.c.b16 %v376, %v373
  %v386 = vpack.c.b16 %v380, %v377
  %v387 = vpack.c.b16 %v381, %v378
  %v388 = vpack.c.b16 %v382, %v379
  %vm393 = vcmask 261120
  %v395 = vsel %vm393, %v385, 0
  %v398 = vsel %vm393, %v388, 0
  %400 = vmatprep.subr.bf16.mxu0 0
  %401 = vmatpush1.bf16.msra.mxu0 %v321
  %402 = vmatprep.subr.bf16.mxu0 0
  %403 = vmatpush1.bf16.msra.mxu0 %v322
  %404 = vmatprep.subr.bf16.mxu0 0
  %405 = vmatpush1.bf16.msra.mxu0 %v323
  %406 = vmatprep.subr.bf16.mxu0 0
  %407 = vmatpush1.bf16.msra.mxu0 %v324
  %408 = vmatprep.subr.bf16.mxu0 0
  %409 = vmatpush1.bf16.msra.mxu0 %v325
  %410 = vmatprep.subr.bf16.mxu0 0
  %411 = vmatpush1.bf16.msra.mxu0 %v326
  %412 = vmatprep.subr.bf16.mxu0 0
  %413 = vmatpush1.bf16.msra.mxu0 %v327
  %414 = vmatprep.subr.bf16.mxu0 0
  %415 = vmatpush1.bf16.msra.mxu0 %v328
  %416 = vmatprep.subr.bf16.mxu0 0
  %417 = vmatpush1.bf16.msra.mxu0 %v329
  %418 = vmatprep.subr.bf16.mxu0 0
  %419 = vmatpush1.bf16.msra.mxu0 %v330
  %420 = vmatprep.subr.bf16.mxu0 0
  %421 = vmatpush1.bf16.msra.mxu0 %v331
  %422 = vmatprep.subr.bf16.mxu0 0
  %423 = vmatpush1.bf16.msra.mxu0 %v332
  %424 = vmatprep.subr.bf16.mxu0 0
  %425 = vmatpush1.bf16.msra.mxu0 %v333
  %426 = vmatprep.subr.bf16.mxu0 0
  %427 = vmatpush1.bf16.msra.mxu0 %v334
  %428 = vmatprep.subr.bf16.mxu0 0
  %429 = vmatpush1.bf16.msra.mxu0 %v335
  %430 = vmatprep.subr.bf16.mxu0 0
  %431 = vmatpush1.bf16.msra.mxu0 %v336
  %432 = vmatprep.mubr.bf16.mxu0 %v384
  %433 = vmatmul.mubr.bf16.gmra.mrb[0].mxu0 %v383
  %v434 = vpop.f32.mrb[0].mxu0
  %v435 = vadd.f32 %v346, %v434
  %v436 = vpop.f32.mrb[0].mxu0
  %v437 = vpop.f32.mrb[0].mxu0
  %v438 = vadd.f32 %v351, %v437
  %v439 = vpop.f32.mrb[0].mxu0
  %440 = vmatprep.mubr.bf16.mxu0 %v387
  %441 = vmatmul.mubr.bf16.gmra.mrb[0].mxu0 %v386
  %v442 = vpop.f32.mrb[0].mxu0
  %v443 = vadd.f32 %v356, %v442
  %v444 = vpop.f32.mrb[0].mxu0
  %v445 = vpop.f32.mrb[0].mxu0
  %v446 = vadd.f32 %v361, %v445
  %v447 = vpop.f32.mrb[0].mxu0
  %448 = vdwg.mxu0
  %449 = vmatprep.subr.bf16.mxu0 0
  %450 = vmatpush1.bf16.msra.mxu0 %v337
  %451 = vmatprep.subr.bf16.mxu0 0
  %452 = vmatpush1.bf16.msra.mxu0 %v338
  %453 = vmatprep.subr.bf16.mxu0 0
  %454 = vmatpush1.bf16.msra.mxu0 0
  %455 = vmatprep.subr.bf16.mxu0 0
  %456 = vmatpush1.bf16.msra.mxu0 0
  %457 = vmatprep.subr.bf16.mxu0 0
  %458 = vmatpush1.bf16.msra.mxu0 0
  %459 = vmatprep.subr.bf16.mxu0 0
  %460 = vmatpush1.bf16.msra.mxu0 0
  %461 = vmatprep.subr.bf16.mxu0 0
  %462 = vmatpush1.bf16.msra.mxu0 0
  %463 = vmatprep.subr.bf16.mxu0 0
  %464 = vmatpush1.bf16.msra.mxu0 0
  %465 = vmatprep.subr.bf16.mxu0 0
  %466 = vmatpush1.bf16.msra.mxu0 0
  %467 = vmatprep.subr.bf16.mxu0 0
  %468 = vmatpush1.bf16.msra.mxu0 0
  %469 = vmatprep.subr.bf16.mxu0 0
  %470 = vmatpush1.bf16.msra.mxu0 0
  %471 = vmatprep.subr.bf16.mxu0 0
  %472 = vmatpush1.bf16.msra.mxu0 0
  %473 = vmatprep.subr.bf16.mxu0 0
  %474 = vmatpush1.bf16.msra.mxu0 0
  %475 = vmatprep.subr.bf16.mxu0 0
  %476 = vmatpush1.bf16.msra.mxu0 0
  %477 = vmatprep.subr.bf16.mxu0 0
  %478 = vmatpush1.bf16.msra.mxu0 0
  %479 = vmatprep.subr.bf16.mxu0 0
  %480 = vmatpush1.bf16.msra.mxu0 0
  %481 = vmatprep.mubr.bf16.mxu0 0
  %482 = vmatmul.mubr.bf16.gmra.mrb[0].mxu0 %v395
  %v483 = vpop.f32.mrb[0].mxu0
  %v484 = vadd.f32 %v435, %v483
  %v485 = vpop.f32.mrb[0].mxu0
  %v486 = vpop.f32.mrb[0].mxu0
  %v487 = vadd.f32 %v438, %v486
  %v488 = vpop.f32.mrb[0].mxu0
  %489 = vmatprep.mubr.bf16.mxu0 0
  %490 = vmatmul.mubr.bf16.gmra.mrb[0].mxu0 %v398
  %v491 = vpop.f32.mrb[0].mxu0
  %v492 = vadd.f32 %v443, %v491
  %v493 = vpop.f32.mrb[0].mxu0
  %v494 = vpop.f32.mrb[0].mxu0
  %v495 = vadd.f32 %v446, %v494
  %v496 = vpop.f32.mrb[0].mxu0
  %497 = vdwg.mxu0
  %v498 = vmax.f32 %v484, 0.0
  %v499 = vmax.f32 %v487, 0.0
  %v500 = vmax.f32 %v492, 0.0
  %v501 = vmax.f32 %v495, 0.0
  %v502 = vpack.c.bf16 %v499, %v498
  %v503 = vpack.c.bf16 %v501, %v500
  %v506 = vunpack.c.l.b16 %v502
  %v507 = vunpack.c.h.b16 %v502
  %v508 = vunpack.c.l.b16 %v503
  %v509 = vunpack.c.h.b16 %v503
  %v510 = vpack.c.b16 %v506, %v506
  %v511 = vpack.c.b16 %v507, %v507
  %v512 = vpack.c.b16 %v508, %v508
  %v513 = vpack.c.b16 %v509, %v509
  %518 = vst [vmem:[%s3] sm:$0xf] %v510
  %519 = vst [vmem:[%s3 + $0x4] sm:$0xf] %v511
  %520 = vst [vmem:[%s3 + $0x8] sm:$0xf] %v512
  %521 = vst [vmem:[%s3 + $0xc] sm:$0xf] %v513
  // Predicated region
  $region14: #{resnet_encoder_forward.14} parent=0 // pred_check
    _
  $region15: #{resnet_encoder_forward.14} parent=0 // pred_check_branch
    %523 = sbr.rel (0) target = $region17
  $region16: #{resnet_encoder_forward.14} parent=0 // pred_region
    _
  $region17: #{resnet_encoder_forward.14} parent=0 // pred_fallthru
    _
  // Predicated region
  $region18: #{resnet_encoder_forward.14} parent=0 // pred_check
    _
  $region19: #{resnet_encoder_forward.14} parent=0 // pred_check_branch
    %525 = sbr.rel (0) target = $region21
  $region20: #{resnet_encoder_forward.14} parent=0 // pred_region
    _
  $region21: #{resnet_encoder_forward.14} parent=0 // pred_fallthru
    _

// kernel: resnet_encoder_forward.15
$region0: #{resnet_encoder_forward.15}
  #allocation0 [shape = 'u32[]', space=smem, size = 0x4, offset = 0x4, fixed_abs, tag = 'smem constant byte address 0x4 - core index']
  #allocation1 [shape = 'u32[144,128]{1,0:T(1,128)}', space=vmem, size = 0x12000, scoped, tag = 'internal scratch']
  #allocation2 [shape = 'bf16[288,128]{1,0:T(16,128)(2,1)}', space=vmem, size = 0x12000, scoped, tag = 'scratch operand']
  %s0 = inlined_call_operand.vmem [shape: bf16[32,142], index: 0, kind: input, shape index: {}]
  %s1 = inlined_call_operand.vmem [shape: bf16[32,288], index: 1, kind: input, shape index: {}]
  %s2 = inlined_call_operand.vmem [shape: f32[32,1], index: 2, kind: input, shape index: {}]
  %s3 = inlined_call_operand.vmem [shape: bf16[32,128], index: 3, kind: input, shape index: {}]
  %s4 = inlined_call_operand.vmem [shape: bf16[32,128], index: 4, kind: output, shape index: {}]
  %s5 = sld [smem:[#allocation0]]
  $region26: #{resnet_encoder_forward.15} parent=0
    _
  %s7 = ssub.s32 1, %s5
  %s8 = scalar_select 0, %s7, %s5
  // Predicated region
  $region2: #{resnet_encoder_forward.15} parent=0 // pred_check
    _
  $region3: #{resnet_encoder_forward.15} parent=0 // pred_check_branch
    %10 = sbr.rel (0) target = $region5
  $region4: #{resnet_encoder_forward.15} parent=0 // pred_region
    _
  $region5: #{resnet_encoder_forward.15} parent=0 // pred_fallthru
    _
  // Predicated region
  $region6: #{resnet_encoder_forward.15} parent=0 // pred_check
    _
  $region7: #{resnet_encoder_forward.15} parent=0 // pred_check_branch
    %12 = sbr.rel (0) target = $region9
  $region8: #{resnet_encoder_forward.15} parent=0 // pred_region
    _
  $region9: #{resnet_encoder_forward.15} parent=0 // pred_fallthru
    _
  // Predicated region
  $region10: #{resnet_encoder_forward.15} parent=0 // pred_check
    _
  $region11: #{resnet_encoder_forward.15} parent=0 // pred_check_branch
    %14 = sbr.rel (0) target = $region13
  $region12: #{resnet_encoder_forward.15} parent=0 // pred_region
    _
  $region13: #{resnet_encoder_forward.15} parent=0 // pred_fallthru
    _
  // Predicated region
  $region14: #{resnet_encoder_forward.15} parent=0 // pred_check
    _
  $region15: #{resnet_encoder_forward.15} parent=0 // pred_check_branch
    %16 = sbr.rel (0) target = $region17
  $region16: #{resnet_encoder_forward.15} parent=0 // pred_region
    _
  $region17: #{resnet_encoder_forward.15} parent=0 // pred_fallthru
    _
  %v18 = vld [vmem:[%s0] sm:$0xf]
  %v19 = vld [vmem:[%s0 + $0x8] sm:$0xf]
  %v20 = vld [vmem:[%s0 + $0x10] sm:$0xf]
  %v21 = vld [vmem:[%s0 + $0x18] sm:$0xf]
  %v26 = vunpack.c.l.b16 %v18
  %v27 = vunpack.c.l.b16 %v19
  %v28 = vunpack.c.l.b16 %v20
  %v29 = vunpack.c.l.b16 %v21
  %v30 = vpack.c.b16 %v27, %v26
  %v31 = vpack.c.b16 %v29, %v28
  %34 = vst [vmem:[#allocation2] sm:$0xff] %v30
  %35 = vst [vmem:[#allocation2 + $0x8] sm:$0xff] %v31
  %v36 = vld [vmem:[%s0] sm:$0xff]
  %v37 = vld [vmem:[%s0 + $0x8] sm:$0xff]
  %v38 = vld [vmem:[%s0 + $0x10] sm:$0xff]
  %v39 = vld [vmem:[%s0 + $0x18] sm:$0xff]
  %v44 = vunpack.c.l.b16 %v36
  %v45 = vunpack.c.h.b16 %v36
  %v46 = vunpack.c.l.b16 %v37
  %v47 = vunpack.c.h.b16 %v37
  %v48 = vunpack.c.l.b16 %v38
  %v49 = vunpack.c.h.b16 %v38
  %v50 = vunpack.c.l.b16 %v39
  %v51 = vunpack.c.h.b16 %v39
  %v52 = vpack.c.b16 %v46, %v44
  %v53 = vpack.c.b16 %v47, %v45
  %v54 = vpack.c.b16 %v50, %v48
  %v55 = vpack.c.b16 %v51, %v49
  %56 = vrot.lane.b32.xlu0 %v52, 127
  %v57 = vpop.permute.xlu0 %56
  %58 = vrot.lane.b32.xlu0 %v53, 127
  %v59 = vpop.permute.xlu0 %58
  %60 = vrot.lane.b32.xlu0 %v54, 127
  %v61 = vpop.permute.xlu0 %60
  %62 = vrot.lane.b32.xlu0 %v55, 127
  %v63 = vpop.permute.xlu0 %62
  %vm64 = vcmask 1039360
  %v65 = vsel %vm64, %v57, %v59
  %v66 = vsel %vm64, %v61, %v63
  %69 = vst [vmem:[#allocation2 + $0x10] sm:$0xff] %v65
  %70 = vst [vmem:[#allocation2 + $0x18] sm:$0xff] %v66
  %v71 = vld [vmem:[%s0] sm:$0xff]
  %v72 = vld [vmem:[%s0 + $0x8] sm:$0xff]
  %v73 = vld [vmem:[%s0 + $0x10] sm:$0xff]
  %v74 = vld [vmem:[%s0 + $0x18] sm:$0xff]
  %v79 = vunpack.c.l.b16 %v71
  %v80 = vunpack.c.h.b16 %v71
  %v81 = vunpack.c.l.b16 %v72
  %v82 = vunpack.c.h.b16 %v72
  %v83 = vunpack.c.l.b16 %v73
  %v84 = vunpack.c.h.b16 %v73
  %v85 = vunpack.c.l.b16 %v74
  %v86 = vunpack.c.h.b16 %v74
  %v87 = vpack.c.b16 %v81, %v79
  %v88 = vpack.c.b16 %v82, %v80
  %v89 = vpack.c.b16 %v85, %v83
  %v90 = vpack.c.b16 %v86, %v84
  %91 = vrot.lane.b32.xlu0 %v87, 126
  %v92 = vpop.permute.xlu0 %91
  %93 = vrot.lane.b32.xlu0 %v88, 126
  %v94 = vpop.permute.xlu0 %93
  %95 = vrot.lane.b32.xlu0 %v89, 126
  %v96 = vpop.permute.xlu0 %95
  %97 = vrot.lane.b32.xlu0 %v90, 126
  %v98 = vpop.permute.xlu0 %97
  %vm99 = vcmask 1031168
  %v100 = vsel %vm99, %v92, %v94
  %v101 = vsel %vm99, %v96, %v98
  %104 = vst [vmem:[#allocation2 + $0x20] sm:$0xff] %v100
  %105 = vst [vmem:[#allocation2 + $0x28] sm:$0xff] %v101
  %v106 = vld [vmem:[%s0] sm:$0xff]
  %v107 = vld [vmem:[%s0 + $0x8] sm:$0xff]
  %v108 = vld [vmem:[%s0 + $0x10] sm:$0xff]
  %v109 = vld [vmem:[%s0 + $0x18] sm:$0xff]
  %v114 = vunpack.c.l.b16 %v106
  %v115 = vunpack.c.h.b16 %v106
  %v116 = vunpack.c.l.b16 %v107
  %v117 = vunpack.c.h.b16 %v107
  %v118 = vunpack.c.l.b16 %v108
  %v119 = vunpack.c.h.b16 %v108
  %v120 = vunpack.c.l.b16 %v109
  %v121 = vunpack.c.h.b16 %v109
  %v122 = vpack.c.b16 %v116, %v114
  %v123 = vpack.c.b16 %v117, %v115
  %v124 = vpack.c.b16 %v120, %v118
  %v125 = vpack.c.b16 %v121, %v119
  %126 = vrot.lane.b32.xlu0 %v122, 122
  %v127 = vpop.permute.xlu0 %126
  %128 = vrot.lane.b32.xlu0 %v123, 122
  %v129 = vpop.permute.xlu0 %128
  %130 = vrot.lane.b32.xlu0 %v124, 122
  %v131 = vpop.permute.xlu0 %130
  %132 = vrot.lane.b32.xlu0 %v125, 122
  %v133 = vpop.permute.xlu0 %132
  %vm134 = vcmask 998400
  %v135 = vsel %vm134, %v127, %v129
  %v136 = vsel %vm134, %v131, %v133
  %139 = vst [vmem:[#allocation2 + $0x30] sm:$0xff] %v135
  %140 = vst [vmem:[#allocation2 + $0x38] sm:$0xff] %v136
  %v141 = vld [vmem:[%s0] sm:$0xff]
  %v142 = vld [vmem:[%s0 + $0x8] sm:$0xff]
  %v143 = vld [vmem:[%s0 + $0x10] sm:$0xff]
  %v144 = vld [vmem:[%s0 + $0x18] sm:$0xff]
  %v149 = vunpack.c.l.b16 %v141
  %v150 = vunpack.c.h.b16 %v141
  %v151 = vunpack.c.l.b16 %v142
  %v152 = vunpack.c.h.b16 %v142
  %v153 = vunpack.c.l.b16 %v143
  %v154 = vunpack.c.h.b16 %v143
  %v155 = vunpack.c.l.b16 %v144
  %v156 = vunpack.c.h.b16 %v144
  %v157 = vpack.c.b16 %v151, %v149
  %v158 = vpack.c.b16 %v152, %v150
  %v159 = vpack.c.b16 %v155, %v153
  %v160 = vpack.c.b16 %v156, %v154
  %161 = vrot.lane.b32.xlu0 %v157, 121
  %v162 = vpop.permute.xlu0 %161
  %163 = vrot.lane.b32.xlu0 %v158, 121
  %v164 = vpop.permute.xlu0 %163
  %165 = vrot.lane.b32.xlu0 %v159, 121
  %v166 = vpop.permute.xlu0 %165
  %167 = vrot.lane.b32.xlu0 %v160, 121
  %v168 = vpop.permute.xlu0 %167
  %vm169 = vcmask 990208
  %v170 = vsel %vm169, %v162, %v164
  %v171 = vsel %vm169, %v166, %v168
  %174 = vst [vmem:[#allocation2 + $0x40] sm:$0xff] %v170
  %175 = vst [vmem:[#allocation2 + $0x48] sm:$0xff] %v171
  %v176 = vld [vmem:[%s0] sm:$0xff]
  %v177 = vld [vmem:[%s0 + $0x8] sm:$0xff]
  %v178 = vld [vmem:[%s0 + $0x10] sm:$0xff]
  %v179 = vld [vmem:[%s0 + $0x18] sm:$0xff]
  %v184 = vunpack.c.l.b16 %v176
  %v185 = vunpack.c.h.b16 %v176
  %v186 = vunpack.c.l.b16 %v177
  %v187 = vunpack.c.h.b16 %v177
  %v188 = vunpack.c.l.b16 %v178
  %v189 = vunpack.c.h.b16 %v178
  %v190 = vunpack.c.l.b16 %v179
  %v191 = vunpack.c.h.b16 %v179
  %v192 = vpack.c.b16 %v186, %v184
  %v193 = vpack.c.b16 %v187, %v185
  %v194 = vpack.c.b16 %v190, %v188
  %v195 = vpack.c.b16 %v191, %v189
  %196 = vrot.lane.b32.xlu0 %v192, 120
  %v197 = vpop.permute.xlu0 %196
  %198 = vrot.lane.b32.xlu0 %v193, 120
  %v199 = vpop.permute.xlu0 %198
  %200 = vrot.lane.b32.xlu0 %v194, 120
  %v201 = vpop.permute.xlu0 %200
  %202 = vrot.lane.b32.xlu0 %v195, 120
  %v203 = vpop.permute.xlu0 %202
  %vm204 = vcmask 982016
  %v205 = vsel %vm204, %v197, %v199
  %v206 = vsel %vm204, %v201, %v203
  %209 = vst [vmem:[#allocation2 + $0x50] sm:$0xff] %v205
  %210 = vst [vmem:[#allocation2 + $0x58] sm:$0xff] %v206
  %v211 = vld [vmem:[%s0] sm:$0xff]
  %v212 = vld [vmem:[%s0 + $0x8] sm:$0xff]
  %v213 = vld [vmem:[%s0 + $0x10] sm:$0xff]
  %v214 = vld [vmem:[%s0 + $0x18] sm:$0xff]
  %v219 = vunpack.c.l.b16 %v211
  %v220 = vunpack.c.h.b16 %v211
  %v221 = vunpack.c.l.b16 %v212
  %v222 = vunpack.c.h.b16 %v212
  %v223 = vunpack.c.l.b16 %v213
  %v224 = vunpack.c.h.b16 %v213
  %v225 = vunpack.c.l.b16 %v214
  %v226 = vunpack.c.h.b16 %v214
  %v227 = vpack.c.b16 %v221, %v219
  %v228 = vpack.c.b16 %v222, %v220
  %v229 = vpack.c.b16 %v225, %v223
  %v230 = vpack.c.b16 %v226, %v224
  %231 = vrot.lane.b32.xlu0 %v227, 116
  %v232 = vpop.permute.xlu0 %231
  %233 = vrot.lane.b32.xlu0 %v228, 116
  %v234 = vpop.permute.xlu0 %233
  %235 = vrot.lane.b32.xlu0 %v229, 116
  %v236 = vpop.permute.xlu0 %235
  %237 = vrot.lane.b32.xlu0 %v230, 116
  %v238 = vpop.permute.xlu0 %237
  %vm239 = vcmask 949248
  %v240 = vsel %vm239, %v232, %v234
  %v241 = vsel %vm239, %v236, %v238
  %244 = vst [vmem:[#allocation2 + $0x60] sm:$0xff] %v240
  %245 = vst [vmem:[#allocation2 + $0x68] sm:$0xff] %v241
  %v246 = vld [vmem:[%s0] sm:$0xff]
  %v247 = vld [vmem:[%s0 + $0x8] sm:$0xff]
  %v248 = vld [vmem:[%s0 + $0x10] sm:$0xff]
  %v249 = vld [vmem:[%s0 + $0x18] sm:$0xff]
  %v254 = vunpack.c.l.b16 %v246
  %v255 = vunpack.c.h.b16 %v246
  %v256 = vunpack.c.l.b16 %v247
  %v257 = vunpack.c.h.b16 %v247
  %v258 = vunpack.c.l.b16 %v248
  %v259 = vunpack.c.h.b16 %v248
  %v260 = vunpack.c.l.b16 %v249
  %v261 = vunpack.c.h.b16 %v249
  %v262 = vpack.c.b16 %v256, %v254
  %v263 = vpack.c.b16 %v257, %v255
  %v264 = vpack.c.b16 %v260, %v258
  %v265 = vpack.c.b16 %v261, %v259
  %266 = vrot.lane.b32.xlu0 %v262, 115
  %v267 = vpop.permute.xlu0 %266
  %268 = vrot.lane.b32.xlu0 %v263, 115
  %v269 = vpop.permute.xlu0 %268
  %270 = vrot.lane.b32.xlu0 %v264, 115
  %v271 = vpop.permute.xlu0 %270
  %272 = vrot.lane.b32.xlu0 %v265, 115
  %v273 = vpop.permute.xlu0 %272
  %vm274 = vcmask 941056
  %v275 = vsel %vm274, %v267, %v269
  %v276 = vsel %vm274, %v271, %v273
  %279 = vst [vmem:[#allocation2 + $0x70] sm:$0xff] %v275
  %280 = vst [vmem:[#allocation2 + $0x78] sm:$0xff] %v276
  %v281 = vld [vmem:[%s0] sm:$0xff]
  %v282 = vld [vmem:[%s0 + $0x8] sm:$0xff]
  %v283 = vld [vmem:[%s0 + $0x10] sm:$0xff]
  %v284 = vld [vmem:[%s0 + $0x18] sm:$0xff]
  %v289 = vunpack.c.l.b16 %v281
  %v290 = vunpack.c.h.b16 %v281
  %v291 = vunpack.c.l.b16 %v282
  %v292 = vunpack.c.h.b16 %v282
  %v293 = vunpack.c.l.b16 %v283
  %v294 = vunpack.c.h.b16 %v283
  %v295 = vunpack.c.l.b16 %v284
  %v296 = vunpack.c.h.b16 %v284
  %v297 = vpack.c.b16 %v291, %v289
  %v298 = vpack.c.b16 %v292, %v290
  %v299 = vpack.c.b16 %v295, %v293
  %v300 = vpack.c.b16 %v296, %v294
  %301 = vrot.lane.b32.xlu0 %v297, 114
  %v302 = vpop.permute.xlu0 %301
  %303 = vrot.lane.b32.xlu0 %v298, 114
  %v304 = vpop.permute.xlu0 %303
  %305 = vrot.lane.b32.xlu0 %v299, 114
  %v306 = vpop.permute.xlu0 %305
  %307 = vrot.lane.b32.xlu0 %v300, 114
  %v308 = vpop.permute.xlu0 %307
  %vm309 = vcmask 932864
  %v310 = vsel %vm309, %v302, %v304
  %v311 = vsel %vm309, %v306, %v308
  %314 = vst [vmem:[#allocation2 + $0x80] sm:$0xff] %v310
  %315 = vst [vmem:[#allocation2 + $0x88] sm:$0xff] %v311
  %v316 = vld [vmem:[%s1] sm:$0xff]
  %v317 = vld [vmem:[%s1 + $0x8] sm:$0xf]
  %v318 = vld [vmem:[%s1 + $0xc] sm:$0xff]
  %v319 = vld [vmem:[%s1 + $0x14] sm:$0xf]
  %v320 = vld [vmem:[%s1 + $0x18] sm:$0xff]
  %v321 = vld [vmem:[%s1 + $0x20] sm:$0xf]
  %v322 = vld [vmem:[%s1 + $0x24] sm:$0xff]
  %v323 = vld [vmem:[%s1 + $0x2c] sm:$0xf]
  %v324 = vld [vmem:[#allocation2] sm:$0xff]
  %v325 = vld [vmem:[#allocation2 + $0x8] sm:$0xff]
  %v326 = vld [vmem:[#allocation2 + $0x10] sm:$0xff]
  %v327 = vld [vmem:[#allocation2 + $0x18] sm:$0xff]
  %v328 = vld [vmem:[#allocation2 + $0x20] sm:$0xff]
  %v329 = vld [vmem:[#allocation2 + $0x28] sm:$0xff]
  %v330 = vld [vmem:[#allocation2 + $0x30] sm:$0xff]
  %v331 = vld [vmem:[#allocation2 + $0x38] sm:$0xff]
  %v332 = vld [vmem:[#allocation2 + $0x40] sm:$0xff]
  %v333 = vld [vmem:[#allocation2 + $0x48] sm:$0xff]
  %v334 = vld [vmem:[#allocation2 + $0x50] sm:$0xff]
  %v335 = vld [vmem:[#allocation2 + $0x58] sm:$0xff]
  %v336 = vld [vmem:[#allocation2 + $0x60] sm:$0xff]
  %v337 = vld [vmem:[#allocation2 + $0x68] sm:$0xff]
  %v338 = vld [vmem:[#allocation2 + $0x70] sm:$0xff]
  %v339 = vld [vmem:[#allocation2 + $0x78] sm:$0xff]
  %v340 = vld [vmem:[#allocation2 + $0x80] sm:$0xff]
  %v341 = vld [vmem:[#allocation2 + $0x88] sm:$0xff]
  %v342 = vld [vmem:[%s2] sm:$0xff]
  %v343 = vld [vmem:[%s2 + $0x8] sm:$0xff]
  %v344 = vld [vmem:[%s2 + $0x10] sm:$0xff]
  %v345 = vld [vmem:[%s2 + $0x18] sm:$0xff]
  %347 = vset.pattern.permute.xlu0 0
  %348 = vperm.xlu0 %347, %v342
  %v349 = vpop.permute.xlu0 %348
  %352 = vset.pattern.permute.xlu0 0
  %353 = vperm.xlu0 %352, %v343
  %v354 = vpop.permute.xlu0 %353
  %357 = vset.pattern.permute.xlu0 0
  %358 = vperm.xlu0 %357, %v344
  %v359 = vpop.permute.xlu0 %358
  %362 = vset.pattern.permute.xlu0 0
  %363 = vperm.xlu0 %362, %v345
  %v364 = vpop.permute.xlu0 %363
  %v374 = vunpack.c.l.b16 %v316
  %v375 = vunpack.c.h.b16 %v316
  %v376 = vunpack.c.l.b16 %v317
  %v377 = vunpack.c.l.b16 %v318
  %v378 = vunpack.c.h.b16 %v318
  %v379 = vunpack.c.l.b16 %v319
  %v380 = vunpack.c.l.b16 %v320
  %v381 = vunpack.c.h.b16 %v320
  %v382 = vunpack.c.l.b16 %v321
  %v383 = vunpack.c.l.b16 %v322
  %v384 = vunpack.c.h.b16 %v322
  %v385 = vunpack.c.l.b16 %v323
  %v386 = vpack.c.b16 %v377, %v374
  %v387 = vpack.c.b16 %v378, %v375
  %v388 = vpack.c.b16 %v379, %v376
  %v389 = vpack.c.b16 %v383, %v380
  %v390 = vpack.c.b16 %v384, %v381
  %v391 = vpack.c.b16 %v385, %v382
  %vm396 = vcmask 261120
  %v398 = vsel %vm396, %v388, 0
  %v401 = vsel %vm396, %v391, 0
  %403 = vmatprep.subr.bf16.mxu0 0
  %404 = vmatpush1.bf16.msra.mxu0 %v324
  %405 = vmatprep.subr.bf16.mxu0 0
  %406 = vmatpush1.bf16.msra.mxu0 %v325
  %407 = vmatprep.subr.bf16.mxu0 0
  %408 = vmatpush1.bf16.msra.mxu0 %v326
  %409 = vmatprep.subr.bf16.mxu0 0
  %410 = vmatpush1.bf16.msra.mxu0 %v327
  %411 = vmatprep.subr.bf16.mxu0 0
  %412 = vmatpush1.bf16.msra.mxu0 %v328
  %413 = vmatprep.subr.bf16.mxu0 0
  %414 = vmatpush1.bf16.msra.mxu0 %v329
  %415 = vmatprep.subr.bf16.mxu0 0
  %416 = vmatpush1.bf16.msra.mxu0 %v330
  %417 = vmatprep.subr.bf16.mxu0 0
  %418 = vmatpush1.bf16.msra.mxu0 %v331
  %419 = vmatprep.subr.bf16.mxu0 0
  %420 = vmatpush1.bf16.msra.mxu0 %v332
  %421 = vmatprep.subr.bf16.mxu0 0
  %422 = vmatpush1.bf16.msra.mxu0 %v333
  %423 = vmatprep.subr.bf16.mxu0 0
  %424 = vmatpush1.bf16.msra.mxu0 %v334
  %425 = vmatprep.subr.bf16.mxu0 0
  %426 = vmatpush1.bf16.msra.mxu0 %v335
  %427 = vmatprep.subr.bf16.mxu0 0
  %428 = vmatpush1.bf16.msra.mxu0 %v336
  %429 = vmatprep.subr.bf16.mxu0 0
  %430 = vmatpush1.bf16.msra.mxu0 %v337
  %431 = vmatprep.subr.bf16.mxu0 0
  %432 = vmatpush1.bf16.msra.mxu0 %v338
  %433 = vmatprep.subr.bf16.mxu0 0
  %434 = vmatpush1.bf16.msra.mxu0 %v339
  %435 = vmatprep.mubr.bf16.mxu0 %v387
  %436 = vmatmul.mubr.bf16.gmra.mrb[0].mxu0 %v386
  %v437 = vpop.f32.mrb[0].mxu0
  %v438 = vadd.f32 %v349, %v437
  %v439 = vpop.f32.mrb[0].mxu0
  %v440 = vpop.f32.mrb[0].mxu0
  %v441 = vadd.f32 %v354, %v440
  %v442 = vpop.f32.mrb[0].mxu0
  %443 = vmatprep.mubr.bf16.mxu0 %v390
  %444 = vmatmul.mubr.bf16.gmra.mrb[0].mxu0 %v389
  %v445 = vpop.f32.mrb[0].mxu0
  %v446 = vadd.f32 %v359, %v445
  %v447 = vpop.f32.mrb[0].mxu0
  %v448 = vpop.f32.mrb[0].mxu0
  %v449 = vadd.f32 %v364, %v448
  %v450 = vpop.f32.mrb[0].mxu0
  %451 = vdwg.mxu0
  %452 = vmatprep.subr.bf16.mxu0 0
  %453 = vmatpush1.bf16.msra.mxu0 %v340
  %454 = vmatprep.subr.bf16.mxu0 0
  %455 = vmatpush1.bf16.msra.mxu0 %v341
  %456 = vmatprep.subr.bf16.mxu0 0
  %457 = vmatpush1.bf16.msra.mxu0 0
  %458 = vmatprep.subr.bf16.mxu0 0
  %459 = vmatpush1.bf16.msra.mxu0 0
  %460 = vmatprep.subr.bf16.mxu0 0
  %461 = vmatpush1.bf16.msra.mxu0 0
  %462 = vmatprep.subr.bf16.mxu0 0
  %463 = vmatpush1.bf16.msra.mxu0 0
  %464 = vmatprep.subr.bf16.mxu0 0
  %465 = vmatpush1.bf16.msra.mxu0 0
  %466 = vmatprep.subr.bf16.mxu0 0
  %467 = vmatpush1.bf16.msra.mxu0 0
  %468 = vmatprep.subr.bf16.mxu0 0
  %469 = vmatpush1.bf16.msra.mxu0 0
  %470 = vmatprep.subr.bf16.mxu0 0
  %471 = vmatpush1.bf16.msra.mxu0 0
  %472 = vmatprep.subr.bf16.mxu0 0
  %473 = vmatpush1.bf16.msra.mxu0 0
  %474 = vmatprep.subr.bf16.mxu0 0
  %475 = vmatpush1.bf16.msra.mxu0 0
  %476 = vmatprep.subr.bf16.mxu0 0
  %477 = vmatpush1.bf16.msra.mxu0 0
  %478 = vmatprep.subr.bf16.mxu0 0
  %479 = vmatpush1.bf16.msra.mxu0 0
  %480 = vmatprep.subr.bf16.mxu0 0
  %481 = vmatpush1.bf16.msra.mxu0 0
  %482 = vmatprep.subr.bf16.mxu0 0
  %483 = vmatpush1.bf16.msra.mxu0 0
  %484 = vmatprep.mubr.bf16.mxu0 0
  %485 = vmatmul.mubr.bf16.gmra.mrb[0].mxu0 %v398
  %v486 = vpop.f32.mrb[0].mxu0
  %v487 = vadd.f32 %v438, %v486
  %v488 = vpop.f32.mrb[0].mxu0
  %v489 = vpop.f32.mrb[0].mxu0
  %v490 = vadd.f32 %v441, %v489
  %v491 = vpop.f32.mrb[0].mxu0
  %492 = vmatprep.mubr.bf16.mxu0 0
  %493 = vmatmul.mubr.bf16.gmra.mrb[0].mxu0 %v401
  %v494 = vpop.f32.mrb[0].mxu0
  %v495 = vadd.f32 %v446, %v494
  %v496 = vpop.f32.mrb[0].mxu0
  %v497 = vpop.f32.mrb[0].mxu0
  %v498 = vadd.f32 %v449, %v497
  %v499 = vpop.f32.mrb[0].mxu0
  %500 = vdwg.mxu0
  %v501 = vld [vmem:[%s3] sm:$0xf]
  %v502 = vld [vmem:[%s3 + $0x4] sm:$0xf]
  %v503 = vld [vmem:[%s3 + $0x8] sm:$0xf]
  %v504 = vld [vmem:[%s3 + $0xc] sm:$0xf]
  %v505 = vunpack.c.l.bf16 %v501
  %v506 = vunpack.c.l.bf16 %v502
  %v507 = vunpack.c.l.bf16 %v503
  %v508 = vunpack.c.l.bf16 %v504
  %v509 = vadd.f32 %v487, %v505
  %v510 = vadd.f32 %v490, %v506
  %v511 = vadd.f32 %v495, %v507
  %v512 = vadd.f32 %v498, %v508
  %v513 = vpack.c.bf16 %v510, %v509
  %v514 = vpack.c.bf16 %v512, %v511
  %v517 = vunpack.c.l.b16 %v513
  %v518 = vunpack.c.h.b16 %v513
  %v519 = vunpack.c.l.b16 %v514
  %v520 = vunpack.c.h.b16 %v514
  %v521 = vpack.c.b16 %v517, %v517
  %v522 = vpack.c.b16 %v518, %v518
  %v523 = vpack.c.b16 %v519, %v519
  %v524 = vpack.c.b16 %v520, %v520
  %529 = vst [vmem:[%s4] sm:$0xf] %v521
  %530 = vst [vmem:[%s4 + $0x4] sm:$0xf] %v522
  %531 = vst [vmem:[%s4 + $0x8] sm:$0xf] %v523
  %532 = vst [vmem:[%s4 + $0xc] sm:$0xf] %v524
  // Predicated region
  $region18: #{resnet_encoder_forward.15} parent=0 // pred_check
    _
  $region19: #{resnet_encoder_forward.15} parent=0 // pred_check_branch
    %534 = sbr.rel (0) target = $region21
  $region20: #{resnet_encoder_forward.15} parent=0 // pred_region
    _
  $region21: #{resnet_encoder_forward.15} parent=0 // pred_fallthru
    _
  // Predicated region
  $region22: #{resnet_encoder_forward.15} parent=0 // pred_check
    _
  $region23: #{resnet_encoder_forward.15} parent=0 // pred_check_branch
    %536 = sbr.rel (0) target = $region25
  $region24: #{resnet_encoder_forward.15} parent=0 // pred_region
    _
  $region25: #{resnet_encoder_forward.15} parent=0 // pred_fallthru
    _

// kernel: resnet_encoder_forward.17
$region0: #{resnet_encoder_forward.17}
  #allocation0 [shape = 'u32[]', space=smem, size = 0x4, offset = 0x4, fixed_abs, tag = 'smem constant byte address 0x4 - core index']
  #allocation1 [shape = 'u32[144,128]{1,0:T(1,128)}', space=vmem, size = 0x12000, scoped, tag = 'internal scratch']
  #allocation2 [shape = 'bf16[288,128]{1,0:T(16,128)(2,1)}', space=vmem, size = 0x12000, scoped, tag = 'scratch operand']
  %s0 = inlined_call_operand.vmem [shape: bf16[32,142], index: 0, kind: input, shape index: {}]
  %s1 = inlined_call_operand.vmem [shape: bf16[32,288], index: 1, kind: input, shape index: {}]
  %s2 = inlined_call_operand.vmem [shape: f32[32,1], index: 2, kind: input, shape index: {}]
  %s3 = inlined_call_operand.vmem [shape: bf16[32,128], index: 3, kind: input, shape index: {}]
  %s4 = inlined_call_operand.vmem [shape: f32[32,128], index: 4, kind: output, shape index: {}]
  %s5 = sld [smem:[#allocation0]]
  $region26: #{resnet_encoder_forward.17} parent=0
    _
  %s7 = ssub.s32 1, %s5
  %s8 = scalar_select 0, %s7, %s5
  // Predicated region
  $region2: #{resnet_encoder_forward.17} parent=0 // pred_check
    _
  $region3: #{resnet_encoder_forward.17} parent=0 // pred_check_branch
    %10 = sbr.rel (0) target = $region5
  $region4: #{resnet_encoder_forward.17} parent=0 // pred_region
    _
  $region5: #{resnet_encoder_forward.17} parent=0 // pred_fallthru
    _
  // Predicated region
  $region6: #{resnet_encoder_forward.17} parent=0 // pred_check
    _
  $region7: #{resnet_encoder_forward.17} parent=0 // pred_check_branch
    %12 = sbr.rel (0) target = $region9
  $region8: #{resnet_encoder_forward.17} parent=0 // pred_region
    _
  $region9: #{resnet_encoder_forward.17} parent=0 // pred_fallthru
    _
  // Predicated region
  $region10: #{resnet_encoder_forward.17} parent=0 // pred_check
    _
  $region11: #{resnet_encoder_forward.17} parent=0 // pred_check_branch
    %14 = sbr.rel (0) target = $region13
  $region12: #{resnet_encoder_forward.17} parent=0 // pred_region
    _
  $region13: #{resnet_encoder_forward.17} parent=0 // pred_fallthru
    _
  // Predicated region
  $region14: #{resnet_encoder_forward.17} parent=0 // pred_check
    _
  $region15: #{resnet_encoder_forward.17} parent=0 // pred_check_branch
    %16 = sbr.rel (0) target = $region17
  $region16: #{resnet_encoder_forward.17} parent=0 // pred_region
    _
  $region17: #{resnet_encoder_forward.17} parent=0 // pred_fallthru
    _
  %v18 = vld [vmem:[%s0] sm:$0xf]
  %v19 = vld [vmem:[%s0 + $0x8] sm:$0xf]
  %v20 = vld [vmem:[%s0 + $0x10] sm:$0xf]
  %v21 = vld [vmem:[%s0 + $0x18] sm:$0xf]
  %v26 = vunpack.c.l.b16 %v18
  %v27 = vunpack.c.l.b16 %v19
  %v28 = vunpack.c.l.b16 %v20
  %v29 = vunpack.c.l.b16 %v21
  %v30 = vpack.c.b16 %v27, %v26
  %v31 = vpack.c.b16 %v29, %v28
  %34 = vst [vmem:[#allocation2] sm:$0xff] %v30
  %35 = vst [vmem:[#allocation2 + $0x8] sm:$0xff] %v31
  %v36 = vld [vmem:[%s0] sm:$0xff]
  %v37 = vld [vmem:[%s0 + $0x8] sm:$0xff]
  %v38 = vld [vmem:[%s0 + $0x10] sm:$0xff]
  %v39 = vld [vmem:[%s0 + $0x18] sm:$0xff]
  %v44 = vunpack.c.l.b16 %v36
  %v45 = vunpack.c.h.b16 %v36
  %v46 = vunpack.c.l.b16 %v37
  %v47 = vunpack.c.h.b16 %v37
  %v48 = vunpack.c.l.b16 %v38
  %v49 = vunpack.c.h.b16 %v38
  %v50 = vunpack.c.l.b16 %v39
  %v51 = vunpack.c.h.b16 %v39
  %v52 = vpack.c.b16 %v46, %v44
  %v53 = vpack.c.b16 %v47, %v45
  %v54 = vpack.c.b16 %v50, %v48
  %v55 = vpack.c.b16 %v51, %v49
  %56 = vrot.lane.b32.xlu0 %v52, 127
  %v57 = vpop.permute.xlu0 %56
  %58 = vrot.lane.b32.xlu0 %v53, 127
  %v59 = vpop.permute.xlu0 %58
  %60 = vrot.lane.b32.xlu0 %v54, 127
  %v61 = vpop.permute.xlu0 %60
  %62 = vrot.lane.b32.xlu0 %v55, 127
  %v63 = vpop.permute.xlu0 %62
  %vm64 = vcmask 1039360
  %v65 = vsel %vm64, %v57, %v59
  %v66 = vsel %vm64, %v61, %v63
  %69 = vst [vmem:[#allocation2 + $0x10] sm:$0xff] %v65
  %70 = vst [vmem:[#allocation2 + $0x18] sm:$0xff] %v66
  %v71 = vld [vmem:[%s0] sm:$0xff]
  %v72 = vld [vmem:[%s0 + $0x8] sm:$0xff]
  %v73 = vld [vmem:[%s0 + $0x10] sm:$0xff]
  %v74 = vld [vmem:[%s0 + $0x18] sm:$0xff]
  %v79 = vunpack.c.l.b16 %v71
  %v80 = vunpack.c.h.b16 %v71
  %v81 = vunpack.c.l.b16 %v72
  %v82 = vunpack.c.h.b16 %v72
  %v83 = vunpack.c.l.b16 %v73
  %v84 = vunpack.c.h.b16 %v73
  %v85 = vunpack.c.l.b16 %v74
  %v86 = vunpack.c.h.b16 %v74
  %v87 = vpack.c.b16 %v81, %v79
  %v88 = vpack.c.b16 %v82, %v80
  %v89 = vpack.c.b16 %v85, %v83
  %v90 = vpack.c.b16 %v86, %v84
  %91 = vrot.lane.b32.xlu0 %v87, 126
  %v92 = vpop.permute.xlu0 %91
  %93 = vrot.lane.b32.xlu0 %v88, 126
  %v94 = vpop.permute.xlu0 %93
  %95 = vrot.lane.b32.xlu0 %v89, 126
  %v96 = vpop.permute.xlu0 %95
  %97 = vrot.lane.b32.xlu0 %v90, 126
  %v98 = vpop.permute.xlu0 %97
  %vm99 = vcmask 1031168
  %v100 = vsel %vm99, %v92, %v94
  %v101 = vsel %vm99, %v96, %v98
  %104 = vst [vmem:[#allocation2 + $0x20] sm:$0xff] %v100
  %105 = vst [vmem:[#allocation2 + $0x28] sm:$0xff] %v101
  %v106 = vld [vmem:[%s0] sm:$0xff]
  %v107 = vld [vmem:[%s0 + $0x8] sm:$0xff]
  %v108 = vld [vmem:[%s0 + $0x10] sm:$0xff]
  %v109 = vld [vmem:[%s0 + $0x18] sm:$0xff]
  %v114 = vunpack.c.l.b16 %v106
  %v115 = vunpack.c.h.b16 %v106
  %v116 = vunpack.c.l.b16 %v107
  %v117 = vunpack.c.h.b16 %v107
  %v118 = vunpack.c.l.b16 %v108
  %v119 = vunpack.c.h.b16 %v108
  %v120 = vunpack.c.l.b16 %v109
  %v121 = vunpack.c.h.b16 %v109
  %v122 = vpack.c.b16 %v116, %v114
  %v123 = vpack.c.b16 %v117, %v115
  %v124 = vpack.c.b16 %v120, %v118
  %v125 = vpack.c.b16 %v121, %v119
  %126 = vrot.lane.b32.xlu0 %v122, 122
  %v127 = vpop.permute.xlu0 %126
  %128 = vrot.lane.b32.xlu0 %v123, 122
  %v129 = vpop.permute.xlu0 %128
  %130 = vrot.lane.b32.xlu0 %v124, 122
  %v131 = vpop.permute.xlu0 %130
  %132 = vrot.lane.b32.xlu0 %v125, 122
  %v133 = vpop.permute.xlu0 %132
  %vm134 = vcmask 998400
  %v135 = vsel %vm134, %v127, %v129
  %v136 = vsel %vm134, %v131, %v133
  %139 = vst [vmem:[#allocation2 + $0x30] sm:$0xff] %v135
  %140 = vst [vmem:[#allocation2 + $0x38] sm:$0xff] %v136
  %v141 = vld [vmem:[%s0] sm:$0xff]
  %v142 = vld [vmem:[%s0 + $0x8] sm:$0xff]
  %v143 = vld [vmem:[%s0 + $0x10] sm:$0xff]
  %v144 = vld [vmem:[%s0 + $0x18] sm:$0xff]
  %v149 = vunpack.c.l.b16 %v141
  %v150 = vunpack.c.h.b16 %v141
  %v151 = vunpack.c.l.b16 %v142
  %v152 = vunpack.c.h.b16 %v142
  %v153 = vunpack.c.l.b16 %v143
  %v154 = vunpack.c.h.b16 %v143
  %v155 = vunpack.c.l.b16 %v144
  %v156 = vunpack.c.h.b16 %v144
  %v157 = vpack.c.b16 %v151, %v149
  %v158 = vpack.c.b16 %v152, %v150
  %v159 = vpack.c.b16 %v155, %v153
  %v160 = vpack.c.b16 %v156, %v154
  %161 = vrot.lane.b32.xlu0 %v157, 121
  %v162 = vpop.permute.xlu0 %161
  %163 = vrot.lane.b32.xlu0 %v158, 121
  %v164 = vpop.permute.xlu0 %163
  %165 = vrot.lane.b32.xlu0 %v159, 121
  %v166 = vpop.permute.xlu0 %165
  %167 = vrot.lane.b32.xlu0 %v160, 121
  %v168 = vpop.permute.xlu0 %167
  %vm169 = vcmask 990208
  %v170 = vsel %vm169, %v162, %v164
  %v171 = vsel %vm169, %v166, %v168
  %174 = vst [vmem:[#allocation2 + $0x40] sm:$0xff] %v170
  %175 = vst [vmem:[#allocation2 + $0x48] sm:$0xff] %v171
  %v176 = vld [vmem:[%s0] sm:$0xff]
  %v177 = vld [vmem:[%s0 + $0x8] sm:$0xff]
  %v178 = vld [vmem:[%s0 + $0x10] sm:$0xff]
  %v179 = vld [vmem:[%s0 + $0x18] sm:$0xff]
  %v184 = vunpack.c.l.b16 %v176
  %v185 = vunpack.c.h.b16 %v176
  %v186 = vunpack.c.l.b16 %v177
  %v187 = vunpack.c.h.b16 %v177
  %v188 = vunpack.c.l.b16 %v178
  %v189 = vunpack.c.h.b16 %v178
  %v190 = vunpack.c.l.b16 %v179
  %v191 = vunpack.c.h.b16 %v179
  %v192 = vpack.c.b16 %v186, %v184
  %v193 = vpack.c.b16 %v187, %v185
  %v194 = vpack.c.b16 %v190, %v188
  %v195 = vpack.c.b16 %v191, %v189
  %196 = vrot.lane.b32.xlu0 %v192, 120
  %v197 = vpop.permute.xlu0 %196
  %198 = vrot.lane.b32.xlu0 %v193, 120
  %v199 = vpop.permute.xlu0 %198
  %200 = vrot.lane.b32.xlu0 %v194, 120
  %v201 = vpop.permute.xlu0 %200
  %202 = vrot.lane.b32.xlu0 %v195, 120
  %v203 = vpop.permute.xlu0 %202
  %vm204 = vcmask 982016
  %v205 = vsel %vm204, %v197, %v199
  %v206 = vsel %vm204, %v201, %v203
  %209 = vst [vmem:[#allocation2 + $0x50] sm:$0xff] %v205
  %210 = vst [vmem:[#allocation2 + $0x58] sm:$0xff] %v206
  %v211 = vld [vmem:[%s0] sm:$0xff]
  %v212 = vld [vmem:[%s0 + $0x8] sm:$0xff]
  %v213 = vld [vmem:[%s0 + $0x10] sm:$0xff]
  %v214 = vld [vmem:[%s0 + $0x18] sm:$0xff]
  %v219 = vunpack.c.l.b16 %v211
  %v220 = vunpack.c.h.b16 %v211
  %v221 = vunpack.c.l.b16 %v212
  %v222 = vunpack.c.h.b16 %v212
  %v223 = vunpack.c.l.b16 %v213
  %v224 = vunpack.c.h.b16 %v213
  %v225 = vunpack.c.l.b16 %v214
  %v226 = vunpack.c.h.b16 %v214
  %v227 = vpack.c.b16 %v221, %v219
  %v228 = vpack.c.b16 %v222, %v220
  %v229 = vpack.c.b16 %v225, %v223
  %v230 = vpack.c.b16 %v226, %v224
  %231 = vrot.lane.b32.xlu0 %v227, 116
  %v232 = vpop.permute.xlu0 %231
  %233 = vrot.lane.b32.xlu0 %v228, 116
  %v234 = vpop.permute.xlu0 %233
  %235 = vrot.lane.b32.xlu0 %v229, 116
  %v236 = vpop.permute.xlu0 %235
  %237 = vrot.lane.b32.xlu0 %v230, 116
  %v238 = vpop.permute.xlu0 %237
  %vm239 = vcmask 949248
  %v240 = vsel %vm239, %v232, %v234
  %v241 = vsel %vm239, %v236, %v238
  %244 = vst [vmem:[#allocation2 + $0x60] sm:$0xff] %v240
  %245 = vst [vmem:[#allocation2 + $0x68] sm:$0xff] %v241
  %v246 = vld [vmem:[%s0] sm:$0xff]
  %v247 = vld [vmem:[%s0 + $0x8] sm:$0xff]
  %v248 = vld [vmem:[%s0 + $0x10] sm:$0xff]
  %v249 = vld [vmem:[%s0 + $0x18] sm:$0xff]
  %v254 = vunpack.c.l.b16 %v246
  %v255 = vunpack.c.h.b16 %v246
  %v256 = vunpack.c.l.b16 %v247
  %v257 = vunpack.c.h.b16 %v247
  %v258 = vunpack.c.l.b16 %v248
  %v259 = vunpack.c.h.b16 %v248
  %v260 = vunpack.c.l.b16 %v249
  %v261 = vunpack.c.h.b16 %v249
  %v262 = vpack.c.b16 %v256, %v254
  %v263 = vpack.c.b16 %v257, %v255
  %v264 = vpack.c.b16 %v260, %v258
  %v265 = vpack.c.b16 %v261, %v259
  %266 = vrot.lane.b32.xlu0 %v262, 115
  %v267 = vpop.permute.xlu0 %266
  %268 = vrot.lane.b32.xlu0 %v263, 115
  %v269 = vpop.permute.xlu0 %268
  %270 = vrot.lane.b32.xlu0 %v264, 115
  %v271 = vpop.permute.xlu0 %270
  %272 = vrot.lane.b32.xlu0 %v265, 115
  %v273 = vpop.permute.xlu0 %272
  %vm274 = vcmask 941056
  %v275 = vsel %vm274, %v267, %v269
  %v276 = vsel %vm274, %v271, %v273
  %279 = vst [vmem:[#allocation2 + $0x70] sm:$0xff] %v275
  %280 = vst [vmem:[#allocation2 + $0x78] sm:$0xff] %v276
  %v281 = vld [vmem:[%s0] sm:$0xff]
  %v282 = vld [vmem:[%s0 + $0x8] sm:$0xff]
  %v283 = vld [vmem:[%s0 + $0x10] sm:$0xff]
  %v284 = vld [vmem:[%s0 + $0x18] sm:$0xff]
  %v289 = vunpack.c.l.b16 %v281
  %v290 = vunpack.c.h.b16 %v281
  %v291 = vunpack.c.l.b16 %v282
  %v292 = vunpack.c.h.b16 %v282
  %v293 = vunpack.c.l.b16 %v283
  %v294 = vunpack.c.h.b16 %v283
  %v295 = vunpack.c.l.b16 %v284
  %v296 = vunpack.c.h.b16 %v284
  %v297 = vpack.c.b16 %v291, %v289
  %v298 = vpack.c.b16 %v292, %v290
  %v299 = vpack.c.b16 %v295, %v293
  %v300 = vpack.c.b16 %v296, %v294
  %301 = vrot.lane.b32.xlu0 %v297, 114
  %v302 = vpop.permute.xlu0 %301
  %303 = vrot.lane.b32.xlu0 %v298, 114
  %v304 = vpop.permute.xlu0 %303
  %305 = vrot.lane.b32.xlu0 %v299, 114
  %v306 = vpop.permute.xlu0 %305
  %307 = vrot.lane.b32.xlu0 %v300, 114
  %v308 = vpop.permute.xlu0 %307
  %vm309 = vcmask 932864
  %v310 = vsel %vm309, %v302, %v304
  %v311 = vsel %vm309, %v306, %v308
  %314 = vst [vmem:[#allocation2 + $0x80] sm:$0xff] %v310
  %315 = vst [vmem:[#allocation2 + $0x88] sm:$0xff] %v311
  %v316 = vld [vmem:[%s1] sm:$0xff]
  %v317 = vld [vmem:[%s1 + $0x8] sm:$0xf]
  %v318 = vld [vmem:[%s1 + $0xc] sm:$0xff]
  %v319 = vld [vmem:[%s1 + $0x14] sm:$0xf]
  %v320 = vld [vmem:[%s1 + $0x18] sm:$0xff]
  %v321 = vld [vmem:[%s1 + $0x20] sm:$0xf]
  %v322 = vld [vmem:[%s1 + $0x24] sm:$0xff]
  %v323 = vld [vmem:[%s1 + $0x2c] sm:$0xf]
  %v324 = vld [vmem:[#allocation2] sm:$0xff]
  %v325 = vld [vmem:[#allocation2 + $0x8] sm:$0xff]
  %v326 = vld [vmem:[#allocation2 + $0x10] sm:$0xff]
  %v327 = vld [vmem:[#allocation2 + $0x18] sm:$0xff]
  %v328 = vld [vmem:[#allocation2 + $0x20] sm:$0xff]
  %v329 = vld [vmem:[#allocation2 + $0x28] sm:$0xff]
  %v330 = vld [vmem:[#allocation2 + $0x30] sm:$0xff]
  %v331 = vld [vmem:[#allocation2 + $0x38] sm:$0xff]
  %v332 = vld [vmem:[#allocation2 + $0x40] sm:$0xff]
  %v333 = vld [vmem:[#allocation2 + $0x48] sm:$0xff]
  %v334 = vld [vmem:[#allocation2 + $0x50] sm:$0xff]
  %v335 = vld [vmem:[#allocation2 + $0x58] sm:$0xff]
  %v336 = vld [vmem:[#allocation2 + $0x60] sm:$0xff]
  %v337 = vld [vmem:[#allocation2 + $0x68] sm:$0xff]
  %v338 = vld [vmem:[#allocation2 + $0x70] sm:$0xff]
  %v339 = vld [vmem:[#allocation2 + $0x78] sm:$0xff]
  %v340 = vld [vmem:[#allocation2 + $0x80] sm:$0xff]
  %v341 = vld [vmem:[#allocation2 + $0x88] sm:$0xff]
  %v342 = vld [vmem:[%s2] sm:$0xff]
  %v343 = vld [vmem:[%s2 + $0x8] sm:$0xff]
  %v344 = vld [vmem:[%s2 + $0x10] sm:$0xff]
  %v345 = vld [vmem:[%s2 + $0x18] sm:$0xff]
  %347 = vset.pattern.permute.xlu0 0
  %348 = vperm.xlu0 %347, %v342
  %v349 = vpop.permute.xlu0 %348
  %352 = vset.pattern.permute.xlu0 0
  %353 = vperm.xlu0 %352, %v343
  %v354 = vpop.permute.xlu0 %353
  %357 = vset.pattern.permute.xlu0 0
  %358 = vperm.xlu0 %357, %v344
  %v359 = vpop.permute.xlu0 %358
  %362 = vset.pattern.permute.xlu0 0
  %363 = vperm.xlu0 %362, %v345
  %v364 = vpop.permute.xlu0 %363
  %v374 = vunpack.c.l.b16 %v316
  %v375 = vunpack.c.h.b16 %v316
  %v376 = vunpack.c.l.b16 %v317
  %v377 = vunpack.c.l.b16 %v318
  %v378 = vunpack.c.h.b16 %v318
  %v379 = vunpack.c.l.b16 %v319
  %v380 = vunpack.c.l.b16 %v320
  %v381 = vunpack.c.h.b16 %v320
  %v382 = vunpack.c.l.b16 %v321
  %v383 = vunpack.c.l.b16 %v322
  %v384 = vunpack.c.h.b16 %v322
  %v385 = vunpack.c.l.b16 %v323
  %v386 = vpack.c.b16 %v377, %v374
  %v387 = vpack.c.b16 %v378, %v375
  %v388 = vpack.c.b16 %v379, %v376
  %v389 = vpack.c.b16 %v383, %v380
  %v390 = vpack.c.b16 %v384, %v381
  %v391 = vpack.c.b16 %v385, %v382
  %vm396 = vcmask 261120
  %v398 = vsel %vm396, %v388, 0
  %v401 = vsel %vm396, %v391, 0
  %403 = vmatprep.subr.bf16.mxu0 0
  %404 = vmatpush1.bf16.msra.mxu0 %v324
  %405 = vmatprep.subr.bf16.mxu0 0
  %406 = vmatpush1.bf16.msra.mxu0 %v325
  %407 = vmatprep.subr.bf16.mxu0 0
  %408 = vmatpush1.bf16.msra.mxu0 %v326
  %409 = vmatprep.subr.bf16.mxu0 0
  %410 = vmatpush1.bf16.msra.mxu0 %v327
  %411 = vmatprep.subr.bf16.mxu0 0
  %412 = vmatpush1.bf16.msra.mxu0 %v328
  %413 = vmatprep.subr.bf16.mxu0 0
  %414 = vmatpush1.bf16.msra.mxu0 %v329
  %415 = vmatprep.subr.bf16.mxu0 0
  %416 = vmatpush1.bf16.msra.mxu0 %v330
  %417 = vmatprep.subr.bf16.mxu0 0
  %418 = vmatpush1.bf16.msra.mxu0 %v331
  %419 = vmatprep.subr.bf16.mxu0 0
  %420 = vmatpush1.bf16.msra.mxu0 %v332
  %421 = vmatprep.subr.bf16.mxu0 0
  %422 = vmatpush1.bf16.msra.mxu0 %v333
  %423 = vmatprep.subr.bf16.mxu0 0
  %424 = vmatpush1.bf16.msra.mxu0 %v334
  %425 = vmatprep.subr.bf16.mxu0 0
  %426 = vmatpush1.bf16.msra.mxu0 %v335
  %427 = vmatprep.subr.bf16.mxu0 0
  %428 = vmatpush1.bf16.msra.mxu0 %v336
  %429 = vmatprep.subr.bf16.mxu0 0
  %430 = vmatpush1.bf16.msra.mxu0 %v337
  %431 = vmatprep.subr.bf16.mxu0 0
  %432 = vmatpush1.bf16.msra.mxu0 %v338
  %433 = vmatprep.subr.bf16.mxu0 0
  %434 = vmatpush1.bf16.msra.mxu0 %v339
  %435 = vmatprep.mubr.bf16.mxu0 %v387
  %436 = vmatmul.mubr.bf16.gmra.mrb[0].mxu0 %v386
  %v437 = vpop.f32.mrb[0].mxu0
  %v438 = vadd.f32 %v349, %v437
  %v439 = vpop.f32.mrb[0].mxu0
  %v440 = vpop.f32.mrb[0].mxu0
  %v441 = vadd.f32 %v354, %v440
  %v442 = vpop.f32.mrb[0].mxu0
  %443 = vmatprep.mubr.bf16.mxu0 %v390
  %444 = vmatmul.mubr.bf16.gmra.mrb[0].mxu0 %v389
  %v445 = vpop.f32.mrb[0].mxu0
  %v446 = vadd.f32 %v359, %v445
  %v447 = vpop.f32.mrb[0].mxu0
  %v448 = vpop.f32.mrb[0].mxu0
  %v449 = vadd.f32 %v364, %v448
  %v450 = vpop.f32.mrb[0].mxu0
  %451 = vdwg.mxu0
  %452 = vmatprep.subr.bf16.mxu0 0
  %453 = vmatpush1.bf16.msra.mxu0 %v340
  %454 = vmatprep.subr.bf16.mxu0 0
  %455 = vmatpush1.bf16.msra.mxu0 %v341
  %456 = vmatprep.subr.bf16.mxu0 0
  %457 = vmatpush1.bf16.msra.mxu0 0
  %458 = vmatprep.subr.bf16.mxu0 0
  %459 = vmatpush1.bf16.msra.mxu0 0
  %460 = vmatprep.subr.bf16.mxu0 0
  %461 = vmatpush1.bf16.msra.mxu0 0
  %462 = vmatprep.subr.bf16.mxu0 0
  %463 = vmatpush1.bf16.msra.mxu0 0
  %464 = vmatprep.subr.bf16.mxu0 0
  %465 = vmatpush1.bf16.msra.mxu0 0
  %466 = vmatprep.subr.bf16.mxu0 0
  %467 = vmatpush1.bf16.msra.mxu0 0
  %468 = vmatprep.subr.bf16.mxu0 0
  %469 = vmatpush1.bf16.msra.mxu0 0
  %470 = vmatprep.subr.bf16.mxu0 0
  %471 = vmatpush1.bf16.msra.mxu0 0
  %472 = vmatprep.subr.bf16.mxu0 0
  %473 = vmatpush1.bf16.msra.mxu0 0
  %474 = vmatprep.subr.bf16.mxu0 0
  %475 = vmatpush1.bf16.msra.mxu0 0
  %476 = vmatprep.subr.bf16.mxu0 0
  %477 = vmatpush1.bf16.msra.mxu0 0
  %478 = vmatprep.subr.bf16.mxu0 0
  %479 = vmatpush1.bf16.msra.mxu0 0
  %480 = vmatprep.subr.bf16.mxu0 0
  %481 = vmatpush1.bf16.msra.mxu0 0
  %482 = vmatprep.subr.bf16.mxu0 0
  %483 = vmatpush1.bf16.msra.mxu0 0
  %484 = vmatprep.mubr.bf16.mxu0 0
  %485 = vmatmul.mubr.bf16.gmra.mrb[0].mxu0 %v398
  %v486 = vpop.f32.mrb[0].mxu0
  %v487 = vadd.f32 %v438, %v486
  %v488 = vpop.f32.mrb[0].mxu0
  %v489 = vpop.f32.mrb[0].mxu0
  %v490 = vadd.f32 %v441, %v489
  %v491 = vpop.f32.mrb[0].mxu0
  %492 = vmatprep.mubr.bf16.mxu0 0
  %493 = vmatmul.mubr.bf16.gmra.mrb[0].mxu0 %v401
  %v494 = vpop.f32.mrb[0].mxu0
  %v495 = vadd.f32 %v446, %v494
  %v496 = vpop.f32.mrb[0].mxu0
  %v497 = vpop.f32.mrb[0].mxu0
  %v498 = vadd.f32 %v449, %v497
  %v499 = vpop.f32.mrb[0].mxu0
  %500 = vdwg.mxu0
  %v501 = vld [vmem:[%s3] sm:$0xf]
  %v502 = vld [vmem:[%s3 + $0x4] sm:$0xf]
  %v503 = vld [vmem:[%s3 + $0x8] sm:$0xf]
  %v504 = vld [vmem:[%s3 + $0xc] sm:$0xf]
  %v505 = vunpack.c.l.bf16 %v501
  %v506 = vunpack.c.l.bf16 %v502
  %v507 = vunpack.c.l.bf16 %v503
  %v508 = vunpack.c.l.bf16 %v504
  %v509 = vadd.f32 %v487, %v505
  %v510 = vadd.f32 %v490, %v506
  %v511 = vadd.f32 %v495, %v507
  %v512 = vadd.f32 %v498, %v508
  %513 = vst [vmem:[%s4] sm:$0xff] %v509
  %514 = vst [vmem:[%s4 + $0x8] sm:$0xff] %v510
  %515 = vst [vmem:[%s4 + $0x10] sm:$0xff] %v511
  %516 = vst [vmem:[%s4 + $0x18] sm:$0xff] %v512
  // Predicated region
  $region18: #{resnet_encoder_forward.17} parent=0 // pred_check
    _
  $region19: #{resnet_encoder_forward.17} parent=0 // pred_check_branch
    %518 = sbr.rel (0) target = $region21
  $region20: #{resnet_encoder_forward.17} parent=0 // pred_region
    _
  $region21: #{resnet_encoder_forward.17} parent=0 // pred_fallthru
    _
  // Predicated region
  $region22: #{resnet_encoder_forward.17} parent=0 // pred_check
    _
  $region23: #{resnet_encoder_forward.17} parent=0 // pred_check_branch
    %520 = sbr.rel (0) target = $region25
  $region24: #{resnet_encoder_forward.17} parent=0 // pred_region
    _
  $region25: #{resnet_encoder_forward.17} parent=0 // pred_fallthru
    _

</llo_original>
